<compile_context>
chip_gen: v6e
topology: v6e:2x2x1
jax: 0.10.0
libtpu: 0.0.40
codegen_flags: <defaults>
</compile_context>

<pallas_src>
import functools
import math

import jax
import jax.numpy as jnp
from jax.experimental import pallas as pl
from jax.experimental.pallas import tpu as pltpu


def _tpu_vmem_capacity_bytes():
    try:
        return int(pltpu.get_tpu_info().vmem_capacity_bytes)
    except Exception:
        return 128 * 1024 * 1024  # v5e/v6e physical VMEM


def _pick_tq(S, vmem_capacity_bytes):
    """Largest query tile dividing S, capped by generation (v7x has 64 MiB VMEM)."""
    max_tq = 256 if vmem_capacity_bytes <= 64 * 1024 * 1024 else 512
    for tq in (512, 256, 128):
        if tq <= max_tq and S > tq and S % tq == 0:
            return tq
    return S


def _pick_heads_per_group(num_heads, head_size):
    """Group heads so one group spans 128 lanes (lane-aligned ctx writes)."""
    if head_size >= 128 or 128 % head_size != 0:
        return 1
    cand = 128 // head_size
    for g in range(min(cand, num_heads), 0, -1):
        if num_heads % g == 0:
            return g
    return 1


def bert_layer_kernel(x_ref, mask_ref,
                      wq_ref, bq_ref, wkv_ref, bkv_ref,
                      wo_ref, bo_ref, g1_ref, be1_ref,
                      w1_ref, b1_ref, w2_ref, b2_ref, g2_ref, be2_ref,
                      o_ref,
                      kT_s, v_s, ctx_s,
                      *, num_heads, head_size, heads_per_group, eps, tq,
                      approx_recip):
    qi = pl.program_id(1)
    S, H = v_s.shape
    dh = head_size
    inv_sqrt_dh = 1.0 / math.sqrt(dh)
    cdt = wkv_ref.dtype  # compute dtype for MXU inputs (f32 or bf16)

    # --- once per batch element: fused K/V projection over the full sequence.
    #     K is stored transposed (head-major rows) so per-tile score matmuls need
    #     no transposes; the single (S,H)->(H,S) XLU transpose is hoisted here. ---
    @pl.when(qi == 0)
    def _project_kv():
        x_full = x_ref[...]                                       # (S, H)
        kv = jnp.dot(x_full.astype(cdt), wkv_ref[...],
                     preferred_element_type=jnp.float32) + bkv_ref[...]
        kT_s[...] = kv[:, 0:H].T.astype(kT_s.dtype)                # (H, S)
        v_s[...] = kv[:, H:2 * H].astype(v_s.dtype)                # (S, H)

    row0 = pl.multiple_of(qi * tq, tq)
    x_tile = x_ref[pl.ds(row0, tq), :]                             # (TQ, H) residual input

    # --- Q for this query tile only; scale by 1/sqrt(dh) in f32, then cast. ---
    q_tile = jnp.dot(x_tile.astype(cdt), wq_ref[...],
                     preferred_element_type=jnp.float32) + bq_ref[...]
    q_tile = (q_tile * inv_sqrt_dh).astype(cdt)                    # (TQ, H)

    # Mask is scaled once ((q@kT + m)/s == (q/s)@kT + m/s) and broadcast once,
    # hoisted out of the head loop (JAX does not CSE broadcast_in_dim).
    mask_b = jnp.broadcast_to(mask_ref[...] * inv_sqrt_dh, (tq, S))  # (TQ, S)

    # --- attention: heads in 128-lane groups; each group writes one lane-aligned
    #     slab into the ctx scratch (no masked partial stores). ---
    gw = heads_per_group * dh
    for g in range(num_heads // heads_per_group):
        parts = []
        for j in range(heads_per_group):
            lo = (g * heads_per_group + j) * dh
            qh = q_tile[:, lo:lo + dh]                             # (TQ, dh)
            kTh = kT_s[lo:lo + dh, :]                              # (dh, S) 8-aligned sublane slice
            vh = v_s[:, lo:lo + dh]                                # (S, dh)
            s = jnp.dot(qh, kTh, preferred_element_type=jnp.float32) + mask_b
            s = s - jnp.max(s, axis=-1, keepdims=True)
            e = jnp.exp(s)
            denom = jnp.sum(e, axis=-1, keepdims=True)
            p = e * pl.reciprocal(denom, approx=approx_recip)
            parts.append(jnp.dot(p.astype(cdt), vh,
                                 preferred_element_type=jnp.float32))
        blk = parts[0] if heads_per_group == 1 else jnp.concatenate(parts, axis=-1)
        ctx_s[:, g * gw:(g + 1) * gw] = blk

    ctx = ctx_s[...]                                               # (TQ, H)

    # --- attention output dense + residual + layernorm (stats in f32) ---
    attn_out = jnp.dot(ctx.astype(cdt), wo_ref[...],
                       preferred_element_type=jnp.float32) + bo_ref[...]
    resid1 = attn_out + x_tile
    mu1 = jnp.mean(resid1, axis=-1, keepdims=True)
    var1 = jnp.mean((resid1 - mu1) ** 2, axis=-1, keepdims=True)
    ln1 = (resid1 - mu1) * jax.lax.rsqrt(var1 + eps) * g1_ref[...] + be1_ref[...]

    # --- feed-forward: exact GELU (erf), like F.gelu default ---
    h1 = jnp.dot(ln1.astype(cdt), w1_ref[...],
                 preferred_element_type=jnp.float32) + b1_ref[...]
    gelu = 0.5 * h1 * (1.0 + jax.lax.erf(h1 * (1.0 / math.sqrt(2.0))))
    out2 = jnp.dot(gelu.astype(cdt), w2_ref[...],
                   preferred_element_type=jnp.float32) + b2_ref[...]

    # --- FFN residual + layernorm ---
    resid2 = out2 + ln1
    mu2 = jnp.mean(resid2, axis=-1, keepdims=True)
    var2 = jnp.mean((resid2 - mu2) ** 2, axis=-1, keepdims=True)
    o_ref[...] = ((resid2 - mu2) * jax.lax.rsqrt(var2 + eps) * g2_ref[...]
                  + be2_ref[...]).astype(o_ref.dtype)


def bert_layer(x, attention_mask, params, *, num_heads, eps,
               compute_dtype=jnp.float32):
    """x: (B, S, H) f32, attention_mask: (B, S) additive f32.

    compute_dtype=jnp.bfloat16 is recommended at real BERT sizes on v5e/v6e/v7x
    (MXU inputs only; accumulation / softmax / LN statistics stay f32).
    For the v7x 2-TC split, keep B >= 2 (batch is the 'parallel' grid axis).
    """
    B, S, H = x.shape
    head_size = H // num_heads
    I = params["w1"].shape[1]

    vmem_cap = _tpu_vmem_capacity_bytes()
    TQ = _pick_tq(S, vmem_cap)
    nq = S // TQ
    hpg = _pick_heads_per_group(num_heads, head_size)

    # Host-side fusion of K/V projection weights -> one (H, 2H) matmul at qi==0.
    wkv = jnp.concatenate([params["wk"], params["wv"]], axis=1).astype(compute_dtype)
    bkv = jnp.concatenate([params["bk"], params["bv"]], axis=1).astype(jnp.float32)
    weights = [
        params["wq"].astype(compute_dtype), params["bq"],
        wkv, bkv,
        params["wo"].astype(compute_dtype), params["bo"],
        params["g1"], params["be1"],
        params["w1"].astype(compute_dtype), params["b1"],
        params["w2"].astype(compute_dtype), params["b2"],
        params["g2"], params["be2"],
    ]

    mask3 = attention_mask.reshape(B, 1, S).astype(jnp.float32)

    front_specs = [
        pl.BlockSpec((None, S, H), lambda b, q: (b, 0, 0)),   # x: full seq per batch elem
        pl.BlockSpec((None, 1, S), lambda b, q: (b, 0, 0)),   # additive key mask
    ]
    out_spec = pl.BlockSpec((None, TQ, H), lambda b, q: (b, q, 0))

    scratch_shapes = [
        pltpu.VMEM((H, S), compute_dtype),   # K^T (head-major rows)
        pltpu.VMEM((S, H), compute_dtype),   # V
        pltpu.VMEM((TQ, H), jnp.float32),    # per-tile context
    ]

    # VMEM budget: weights (assume worst-case double-buffered), pipelined I/O,
    # scratch, activation headroom; capped by physical VMEM minus ~12 MiB headroom.
    f32b = 4
    cdb = jnp.dtype(compute_dtype).itemsize
    wbytes = sum(int(w.size) * jnp.dtype(w.dtype).itemsize for w in weights)
    io_bytes = 2 * ((S * H + 8 * S + TQ * H) * f32b)
    scratch_bytes = 2 * S * H * cdb + TQ * H * f32b
    act_bytes = (2 * S * 2 * H + 2 * hpg * TQ * S + 2 * TQ * I + 8 * TQ * H) * f32b
    est = 2 * wbytes + io_bytes + scratch_bytes + act_bytes
    cap = max(vmem_cap - 12 * 1024 * 1024, 32 * 1024 * 1024)
    vmem_limit = int(min(max(int(1.25 * est), 32 * 1024 * 1024), cap))

    kernel = functools.partial(
        bert_layer_kernel, num_heads=num_heads, head_size=head_size,
        heads_per_group=hpg, eps=eps, tq=TQ,
        approx_recip=(jnp.dtype(compute_dtype) == jnp.dtype(jnp.bfloat16)))

    def build(single_buffer_weights):
        def wspec(a):
            idx = lambda b, q: (0, 0)
            if single_buffer_weights:
                # Constant index map -> no re-fetch; Buffered(1) drops the wasted
                # second buffer (halves weight VMEM; mandatory to fit v7x at f32).
                return pl.BlockSpec(a.shape, idx, pipeline_mode=pl.Buffered(1))
            return pl.BlockSpec(a.shape, idx)

        return pl.pallas_call(
            kernel,
            out_shape=jax.ShapeDtypeStruct((B, S, H), jnp.float32),
            grid=(B, nq),
            in_specs=front_specs + [wspec(w) for w in weights],
            out_specs=out_spec,
            scratch_shapes=scratch_shapes,
            compiler_params=pltpu.CompilerParams(
                dimension_semantics=("parallel", "arbitrary"),
                vmem_limit_bytes=vmem_limit),
        )

    try:
        return build(True)(x, mask3, *weights)
    except Exception:
        # Fallback for JAX versions without pipeline_mode support on BlockSpec.
        return build(False)(x, mask3, *weights)


def bert_layer_reference(x, attention_mask, params, *, num_heads, eps):
    """Pure-JAX reference mirroring the PyTorch module (dropout = identity)."""
    B, S, H = x.shape
    dh = H // num_heads

    def lin(a, w, b):
        return a @ w + b

    def split_heads(t):
        return t.reshape(B, S, num_heads, dh).transpose(0, 2, 1, 3)

    q = split_heads(lin(x, params["wq"], params["bq"]))
    k = split_heads(lin(x, params["wk"], params["bk"]))
    v = split_heads(lin(x, params["wv"], params["bv"]))

    mask4 = attention_mask.reshape(B, 1, 1, S)
    scores = jnp.einsum("bhqd,bhkd->bhqk", q, k)
    scores = (scores + mask4) / math.sqrt(dh)       # spec order: add mask, then scale
    p = jax.nn.softmax(scores, axis=-1)
    ctx = jnp.einsum("bhqk,bhkd->bhqd", p, v)
    ctx = ctx.transpose(0, 2, 1, 3).reshape(B, S, H)

    def layer_norm(t, g, b):
        mu = jnp.mean(t, axis=-1, keepdims=True)
        var = jnp.mean((t - mu) ** 2, axis=-1, keepdims=True)
        return (t - mu) * jax.lax.rsqrt(var + eps) * g + b

    resid1 = lin(ctx, params["wo"], params["bo"]) + x
    ln1 = layer_norm(resid1, params["g1"], params["be1"])
    h1 = lin(ln1, params["w1"], params["b1"])
    gelu = 0.5 * h1 * (1.0 + jax.lax.erf(h1 / math.sqrt(2.0)))
    resid2 = lin(gelu, params["w2"], params["b2"]) + ln1
    return layer_norm(resid2, params["g2"], params["be2"])


def init_params(key, hidden_size, intermediate_size):
    H, I = hidden_size, intermediate_size
    keys = jax.random.split(key, 8)
    s = 0.02
    return {
        "wq": s * jax.random.normal(keys[0], (H, H), jnp.float32),
        "bq": jnp.zeros((1, H), jnp.float32),
        "wk": s * jax.random.normal(keys[1], (H, H), jnp.float32),
        "bk": jnp.zeros((1, H), jnp.float32),
        "wv": s * jax.random.normal(keys[2], (H, H), jnp.float32),
        "bv": jnp.zeros((1, H), jnp.float32),
        "wo": s * jax.random.normal(keys[3], (H, H), jnp.float32),
        "bo": 0.01 * jax.random.normal(keys[4], (1, H), jnp.float32),
        "g1": jnp.ones((1, H), jnp.float32),
        "be1": jnp.zeros((1, H), jnp.float32),
        "w1": s * jax.random.normal(keys[5], (H, I), jnp.float32),
        "b1": 0.01 * jax.random.normal(keys[6], (1, I), jnp.float32),
        "w2": s * jax.random.normal(keys[7], (I, H), jnp.float32),
        "b2": jnp.zeros((1, H), jnp.float32),
        "g2": jnp.ones((1, H), jnp.float32),
        "be2": jnp.zeros((1, H), jnp.float32),
    }


if __name__ == "__main__":
    # Small but TPU-layout-friendly shapes: dh=64 per head (like BERT), two query
    # tiles so the qi>0 path (K/V scratch reuse) is exercised, even batch for v7x.
    B, S, H, I = 2, 256, 128, 512
    NUM_HEADS = 2
    EPS = 1e-12

    key = jax.random.PRNGKey(0)
    kx, kp = jax.random.split(key)
    x = jax.random.normal(kx, (B, S, H), jnp.float32)
    params = init_params(kp, H, I)

    # Additive attention mask: last 64 tokens of batch element 1 are padding.
    pad = jnp.zeros((B, S), jnp.bool_).at[1, -64:].set(True)
    attention_mask = jnp.where(pad, -10000.0, 0.0).astype(jnp.float32)

    out = bert_layer(x, attention_mask, params, num_heads=NUM_HEADS, eps=EPS)
    out = jax.block_until_ready(out)

    ref = bert_layer_reference(x, attention_mask, params, num_heads=NUM_HEADS, eps=EPS)
    assert out.shape == (B, S, H)
    assert jnp.allclose(out, ref, rtol=1e-3, atol=1e-3), "mismatch vs pure-JAX reference"

    print("KERNEL_OK")
</pallas_src>

<mosaic_0001>
module attributes {stable_mosaic.version = 11 : i64} {
  func.func @bert_layer_kernel(%arg0: i32, %arg1: i32, %arg2: memref<1x256x128xf32, #tpu.memory_space<vmem>>, %arg3: memref<1x1x256xf32, #tpu.memory_space<vmem>>, %arg4: memref<128x128xf32, #tpu.memory_space<vmem>>, %arg5: memref<1x128xf32, #tpu.memory_space<vmem>>, %arg6: memref<128x256xf32, #tpu.memory_space<vmem>>, %arg7: memref<1x256xf32, #tpu.memory_space<vmem>>, %arg8: memref<128x128xf32, #tpu.memory_space<vmem>>, %arg9: memref<1x128xf32, #tpu.memory_space<vmem>>, %arg10: memref<1x128xf32, #tpu.memory_space<vmem>>, %arg11: memref<1x128xf32, #tpu.memory_space<vmem>>, %arg12: memref<128x512xf32, #tpu.memory_space<vmem>>, %arg13: memref<1x512xf32, #tpu.memory_space<vmem>>, %arg14: memref<512x128xf32, #tpu.memory_space<vmem>>, %arg15: memref<1x128xf32, #tpu.memory_space<vmem>>, %arg16: memref<1x128xf32, #tpu.memory_space<vmem>>, %arg17: memref<1x128xf32, #tpu.memory_space<vmem>>, %arg18: memref<1x128x128xf32, #tpu.memory_space<vmem>>, %arg19: memref<128x256xf32, #tpu.memory_space<vmem>>, %arg20: memref<256x128xf32, #tpu.memory_space<vmem>>, %arg21: memref<128x128xf32, #tpu.memory_space<vmem>>) attributes {dimension_semantics = [#tpu.dimension_semantics<parallel>, #tpu.dimension_semantics<arbitrary>], iteration_bounds = array<i64: 2, 2>, scalar_prefetch = 0 : i64, scratch_operands = 3 : i64, tpu.core_type = #tpu.core_type<tc>, window_params = [{transform_indices = @transform_0, window_bounds = array<i64: 1, 256, 128>}, {transform_indices = @transform_1, window_bounds = array<i64: 1, 1, 256>}, {pipeline_mode = #tpu.pipeline_mode<synchronous>, transform_indices = @transform_2, window_bounds = array<i64: 128, 128>}, {pipeline_mode = #tpu.pipeline_mode<synchronous>, transform_indices = @transform_3, window_bounds = array<i64: 1, 128>}, {pipeline_mode = #tpu.pipeline_mode<synchronous>, transform_indices = @transform_4, window_bounds = array<i64: 128, 256>}, {pipeline_mode = #tpu.pipeline_mode<synchronous>, transform_indices = @transform_5, window_bounds = array<i64: 1, 256>}, {pipeline_mode = #tpu.pipeline_mode<synchronous>, transform_indices = @transform_6, window_bounds = array<i64: 128, 128>}, {pipeline_mode = #tpu.pipeline_mode<synchronous>, transform_indices = @transform_7, window_bounds = array<i64: 1, 128>}, {pipeline_mode = #tpu.pipeline_mode<synchronous>, transform_indices = @transform_8, window_bounds = array<i64: 1, 128>}, {pipeline_mode = #tpu.pipeline_mode<synchronous>, transform_indices = @transform_9, window_bounds = array<i64: 1, 128>}, {pipeline_mode = #tpu.pipeline_mode<synchronous>, transform_indices = @transform_10, window_bounds = array<i64: 128, 512>}, {pipeline_mode = #tpu.pipeline_mode<synchronous>, transform_indices = @transform_11, window_bounds = array<i64: 1, 512>}, {pipeline_mode = #tpu.pipeline_mode<synchronous>, transform_indices = @transform_12, window_bounds = array<i64: 512, 128>}, {pipeline_mode = #tpu.pipeline_mode<synchronous>, transform_indices = @transform_13, window_bounds = array<i64: 1, 128>}, {pipeline_mode = #tpu.pipeline_mode<synchronous>, transform_indices = @transform_14, window_bounds = array<i64: 1, 128>}, {pipeline_mode = #tpu.pipeline_mode<synchronous>, transform_indices = @transform_15, window_bounds = array<i64: 1, 128>}, {transform_indices = @transform_16, window_bounds = array<i64: 1, 128, 128>}]} {
    %c0_i32 = arith.constant 0 : i32
    %0 = arith.cmpi eq, %arg1, %c0_i32 : i32
    %1 = arith.extui %0 : i1 to i32
    %c0_i32_0 = arith.constant 0 : i32
    %2 = arith.cmpi ne, %1, %c0_i32_0 : i32
    scf.if %2 {
      %c0_69 = arith.constant 0 : index
      %c0_70 = arith.constant 0 : index
      %c0_71 = arith.constant 0 : index
      %132 = vector.load %arg2[%c0_69, %c0_70, %c0_71] : memref<1x256x128xf32, #tpu.memory_space<vmem>>, vector<1x256x128xf32>
      %133 = vector.shape_cast %132 : vector<1x256x128xf32> to vector<256x128xf32>
      %c0_72 = arith.constant 0 : index
      %c0_73 = arith.constant 0 : index
      %134 = vector.load %arg6[%c0_72, %c0_73] : memref<128x256xf32, #tpu.memory_space<vmem>>, vector<128x256xf32>
      %cst_74 = arith.constant dense<0.000000e+00> : vector<256x256xf32>
      %135 = tpu.matmul %133, %134, %cst_74 {dimension_numbers = #tpu.dot_dimension_numbers<[1], [0], [0], [1], [0, 0, 1, 1], [], []>} : vector<256x128xf32>, vector<128x256xf32>, vector<256x256xf32> -> vector<256x256xf32>
      %c0_75 = arith.constant 0 : index
      %c0_76 = arith.constant 0 : index
      %136 = vector.load %arg7[%c0_75, %c0_76] : memref<1x256xf32, #tpu.memory_space<vmem>>, vector<1x256xf32>
      %137 = vector.broadcast %136 : vector<1x256xf32> to vector<256x256xf32>
      %138 = arith.addf %135, %137 : vector<256x256xf32>
      %139 = vector.extract_strided_slice %138 {offsets = [0, 0], sizes = [256, 128], strides = [1, 1]} : vector<256x256xf32> to vector<256x128xf32>
      %140 = tpu.transpose %139, [1, 0] : vector<256x128xf32> -> vector<128x256xf32>
      %c0_77 = arith.constant 0 : index
      %c0_78 = arith.constant 0 : index
      %141 = vector.load %arg19[%c0_77, %c0_78] : memref<128x256xf32, #tpu.memory_space<vmem>>, vector<128x256xf32>
      tpu.vector_store %arg19[%c0_77, %c0_78], %140 {strides = array<i32>} : memref<128x256xf32, #tpu.memory_space<vmem>>, vector<128x256xf32>,
      %142 = vector.extract_strided_slice %138 {offsets = [0, 128], sizes = [256, 128], strides = [1, 1]} : vector<256x256xf32> to vector<256x128xf32>
      %c0_79 = arith.constant 0 : index
      %c0_80 = arith.constant 0 : index
      %143 = vector.load %arg20[%c0_79, %c0_80] : memref<256x128xf32, #tpu.memory_space<vmem>>, vector<256x128xf32>
      tpu.vector_store %arg20[%c0_79, %c0_80], %142 {strides = array<i32>} : memref<256x128xf32, #tpu.memory_space<vmem>>, vector<256x128xf32>,
    } else {
    }
    %c128_i32 = arith.constant 128 : i32
    %3 = arith.muli %arg1, %c128_i32 : i32
    %4 = tpu.assume_multiple %3, 128 : i32
    %c0 = arith.constant 0 : index
    %5 = arith.index_cast %4 : i32 to index
    %c0_1 = arith.constant 0 : index
    %6 = vector.load %arg2[%c0, %5, %c0_1] : memref<1x256x128xf32, #tpu.memory_space<vmem>>, vector<1x128x128xf32>
    %7 = vector.shape_cast %6 : vector<1x128x128xf32> to vector<128x128xf32>
    %c0_2 = arith.constant 0 : index
    %c0_3 = arith.constant 0 : index
    %8 = vector.load %arg4[%c0_2, %c0_3] : memref<128x128xf32, #tpu.memory_space<vmem>>, vector<128x128xf32>
    %cst = arith.constant dense<0.000000e+00> : vector<128x128xf32>
    %9 = tpu.matmul %7, %8, %cst {dimension_numbers = #tpu.dot_dimension_numbers<[1], [0], [0], [1], [0, 0, 1, 1], [], []>} : vector<128x128xf32>, vector<128x128xf32>, vector<128x128xf32> -> vector<128x128xf32>
    %c0_4 = arith.constant 0 : index
    %c0_5 = arith.constant 0 : index
    %10 = vector.load %arg5[%c0_4, %c0_5] : memref<1x128xf32, #tpu.memory_space<vmem>>, vector<1x128xf32>
    %11 = vector.broadcast %10 : vector<1x128xf32> to vector<128x128xf32>
    %12 = arith.addf %9, %11 : vector<128x128xf32>
    %cst_6 = arith.constant 1.250000e-01 : f32
    %13 = vector.broadcast %cst_6 : f32 to vector<128x128xf32>
    %14 = arith.mulf %12, %13 : vector<128x128xf32>
    %c0_7 = arith.constant 0 : index
    %c0_8 = arith.constant 0 : index
    %c0_9 = arith.constant 0 : index
    %15 = vector.load %arg3[%c0_7, %c0_8, %c0_9] : memref<1x1x256xf32, #tpu.memory_space<vmem>>, vector<1x1x256xf32>
    %16 = vector.shape_cast %15 : vector<1x1x256xf32> to vector<1x256xf32>
    %cst_10 = arith.constant 1.250000e-01 : f32
    %17 = vector.broadcast %cst_10 : f32 to vector<1x256xf32>
    %18 = arith.mulf %16, %17 : vector<1x256xf32>
    %19 = vector.shape_cast %18 : vector<1x256xf32> to vector<1x256xf32>
    %20 = vector.broadcast %19 : vector<1x256xf32> to vector<128x256xf32>
    %21 = vector.extract_strided_slice %14 {offsets = [0, 0], sizes = [128, 64], strides = [1, 1]} : vector<128x128xf32> to vector<128x64xf32>
    %c0_11 = arith.constant 0 : index
    %c0_12 = arith.constant 0 : index
    %22 = vector.load %arg19[%c0_11, %c0_12] : memref<128x256xf32, #tpu.memory_space<vmem>>, vector<64x256xf32>
    %c0_13 = arith.constant 0 : index
    %c0_14 = arith.constant 0 : index
    %23 = vector.load %arg20[%c0_13, %c0_14] : memref<256x128xf32, #tpu.memory_space<vmem>>, vector<256x64xf32>
    %cst_15 = arith.constant dense<0.000000e+00> : vector<128x256xf32>
    %24 = tpu.matmul %21, %22, %cst_15 {dimension_numbers = #tpu.dot_dimension_numbers<[1], [0], [0], [1], [0, 0, 1, 1], [], []>} : vector<128x64xf32>, vector<64x256xf32>, vector<128x256xf32> -> vector<128x256xf32>
    %25 = arith.addf %24, %20 : vector<128x256xf32>
    %cst_16 = arith.constant dense<0xFF800000> : vector<128xf32>
    %26 = vector.multi_reduction <maximumf>, %25, %cst_16 [1] : vector<128x256xf32> to vector<128xf32>
    %27 = vector.shape_cast %26 : vector<128xf32> to vector<128x1xf32>
    %28 = vector.broadcast %27 : vector<128x1xf32> to vector<128x256xf32>
    %29 = arith.subf %25, %28 : vector<128x256xf32>
    %30 = math.exp %29 : vector<128x256xf32>
    %cst_17 = arith.constant dense<0.000000e+00> : vector<128xf32>
    %31 = vector.multi_reduction <add>, %30, %cst_17 [1] : vector<128x256xf32> to vector<128xf32>
    %32 = vector.shape_cast %31 : vector<128xf32> to vector<128x1xf32>
    %33 = tpu.reciprocal %32 : vector<128x1xf32> -> vector<128x1xf32>
    %34 = vector.broadcast %33 : vector<128x1xf32> to vector<128x256xf32>
    %35 = arith.mulf %30, %34 : vector<128x256xf32>
    %cst_18 = arith.constant dense<0.000000e+00> : vector<128x64xf32>
    %36 = tpu.matmul %35, %23, %cst_18 {dimension_numbers = #tpu.dot_dimension_numbers<[1], [0], [0], [1], [0, 0, 1, 1], [], []>} : vector<128x256xf32>, vector<256x64xf32>, vector<128x64xf32> -> vector<128x64xf32>
    %37 = vector.extract_strided_slice %14 {offsets = [0, 64], sizes = [128, 64], strides = [1, 1]} : vector<128x128xf32> to vector<128x64xf32>
    %c64 = arith.constant 64 : index
    %c0_19 = arith.constant 0 : index
    %38 = vector.load %arg19[%c64, %c0_19] : memref<128x256xf32, #tpu.memory_space<vmem>>, vector<64x256xf32>
    %c0_20 = arith.constant 0 : index
    %c64_21 = arith.constant 64 : index
    %39 = vector.load %arg20[%c0_20, %c64_21] : memref<256x128xf32, #tpu.memory_space<vmem>>, vector<256x64xf32>
    %cst_22 = arith.constant dense<0.000000e+00> : vector<128x256xf32>
    %40 = tpu.matmul %37, %38, %cst_22 {dimension_numbers = #tpu.dot_dimension_numbers<[1], [0], [0], [1], [0, 0, 1, 1], [], []>} : vector<128x64xf32>, vector<64x256xf32>, vector<128x256xf32> -> vector<128x256xf32>
    %41 = arith.addf %40, %20 : vector<128x256xf32>
    %cst_23 = arith.constant dense<0xFF800000> : vector<128xf32>
    %42 = vector.multi_reduction <maximumf>, %41, %cst_23 [1] : vector<128x256xf32> to vector<128xf32>
    %43 = vector.shape_cast %42 : vector<128xf32> to vector<128x1xf32>
    %44 = vector.broadcast %43 : vector<128x1xf32> to vector<128x256xf32>
    %45 = arith.subf %41, %44 : vector<128x256xf32>
    %46 = math.exp %45 : vector<128x256xf32>
    %cst_24 = arith.constant dense<0.000000e+00> : vector<128xf32>
    %47 = vector.multi_reduction <add>, %46, %cst_24 [1] : vector<128x256xf32> to vector<128xf32>
    %48 = vector.shape_cast %47 : vector<128xf32> to vector<128x1xf32>
    %49 = tpu.reciprocal %48 : vector<128x1xf32> -> vector<128x1xf32>
    %50 = vector.broadcast %49 : vector<128x1xf32> to vector<128x256xf32>
    %51 = arith.mulf %46, %50 : vector<128x256xf32>
    %cst_25 = arith.constant dense<0.000000e+00> : vector<128x64xf32>
    %52 = tpu.matmul %51, %39, %cst_25 {dimension_numbers = #tpu.dot_dimension_numbers<[1], [0], [0], [1], [0, 0, 1, 1], [], []>} : vector<128x256xf32>, vector<256x64xf32>, vector<128x64xf32> -> vector<128x64xf32>
    %53 = tpu.concatenate %36, %52 in 1 : vector<128x64xf32>, vector<128x64xf32> -> vector<128x128xf32>
    %c0_26 = arith.constant 0 : index
    %c0_27 = arith.constant 0 : index
    %54 = vector.load %arg21[%c0_26, %c0_27] : memref<128x128xf32, #tpu.memory_space<vmem>>, vector<128x128xf32>
    tpu.vector_store %arg21[%c0_26, %c0_27], %53 {strides = array<i32>} : memref<128x128xf32, #tpu.memory_space<vmem>>, vector<128x128xf32>,
    %c0_28 = arith.constant 0 : index
    %c0_29 = arith.constant 0 : index
    %55 = vector.load %arg21[%c0_28, %c0_29] : memref<128x128xf32, #tpu.memory_space<vmem>>, vector<128x128xf32>
    %c0_30 = arith.constant 0 : index
    %c0_31 = arith.constant 0 : index
    %56 = vector.load %arg8[%c0_30, %c0_31] : memref<128x128xf32, #tpu.memory_space<vmem>>, vector<128x128xf32>
    %cst_32 = arith.constant dense<0.000000e+00> : vector<128x128xf32>
    %57 = tpu.matmul %55, %56, %cst_32 {dimension_numbers = #tpu.dot_dimension_numbers<[1], [0], [0], [1], [0, 0, 1, 1], [], []>} : vector<128x128xf32>, vector<128x128xf32>, vector<128x128xf32> -> vector<128x128xf32>
    %c0_33 = arith.constant 0 : index
    %c0_34 = arith.constant 0 : index
    %58 = vector.load %arg9[%c0_33, %c0_34] : memref<1x128xf32, #tpu.memory_space<vmem>>, vector<1x128xf32>
    %59 = vector.broadcast %58 : vector<1x128xf32> to vector<128x128xf32>
    %60 = arith.addf %57, %59 : vector<128x128xf32>
    %61 = arith.addf %60, %7 : vector<128x128xf32>
    %cst_35 = arith.constant dense<0.000000e+00> : vector<128xf32>
    %62 = vector.multi_reduction <add>, %61, %cst_35 [1] : vector<128x128xf32> to vector<128xf32>
    %63 = vector.shape_cast %62 : vector<128xf32> to vector<128x1xf32>
    %cst_36 = arith.constant 1.280000e+02 : f32
    %64 = vector.broadcast %cst_36 : f32 to vector<128x1xf32>
    %65 = arith.divf %63, %64 : vector<128x1xf32>
    %66 = vector.broadcast %65 : vector<128x1xf32> to vector<128x128xf32>
    %67 = arith.subf %61, %66 : vector<128x128xf32>
    %68 = arith.mulf %67, %67 : vector<128x128xf32>
    %cst_37 = arith.constant dense<0.000000e+00> : vector<128xf32>
    %69 = vector.multi_reduction <add>, %68, %cst_37 [1] : vector<128x128xf32> to vector<128xf32>
    %70 = vector.shape_cast %69 : vector<128xf32> to vector<128x1xf32>
    %cst_38 = arith.constant 1.280000e+02 : f32
    %71 = vector.broadcast %cst_38 : f32 to vector<128x1xf32>
    %72 = arith.divf %70, %71 : vector<128x1xf32>
    %73 = vector.broadcast %65 : vector<128x1xf32> to vector<128x128xf32>
    %74 = arith.subf %61, %73 : vector<128x128xf32>
    %cst_39 = arith.constant 9.99999996E-13 : f32
    %75 = vector.broadcast %cst_39 : f32 to vector<128x1xf32>
    %76 = arith.addf %72, %75 : vector<128x1xf32>
    %77 = math.rsqrt %76 : vector<128x1xf32>
    %78 = vector.broadcast %77 : vector<128x1xf32> to vector<128x128xf32>
    %79 = arith.mulf %74, %78 : vector<128x128xf32>
    %c0_40 = arith.constant 0 : index
    %c0_41 = arith.constant 0 : index
    %80 = vector.load %arg10[%c0_40, %c0_41] : memref<1x128xf32, #tpu.memory_space<vmem>>, vector<1x128xf32>
    %81 = vector.broadcast %80 : vector<1x128xf32> to vector<128x128xf32>
    %82 = arith.mulf %79, %81 : vector<128x128xf32>
    %c0_42 = arith.constant 0 : index
    %c0_43 = arith.constant 0 : index
    %83 = vector.load %arg11[%c0_42, %c0_43] : memref<1x128xf32, #tpu.memory_space<vmem>>, vector<1x128xf32>
    %84 = vector.broadcast %83 : vector<1x128xf32> to vector<128x128xf32>
    %85 = arith.addf %82, %84 : vector<128x128xf32>
    %c0_44 = arith.constant 0 : index
    %c0_45 = arith.constant 0 : index
    %86 = vector.load %arg12[%c0_44, %c0_45] : memref<128x512xf32, #tpu.memory_space<vmem>>, vector<128x512xf32>
    %cst_46 = arith.constant dense<0.000000e+00> : vector<128x512xf32>
    %87 = tpu.matmul %85, %86, %cst_46 {dimension_numbers = #tpu.dot_dimension_numbers<[1], [0], [0], [1], [0, 0, 1, 1], [], []>} : vector<128x128xf32>, vector<128x512xf32>, vector<128x512xf32> -> vector<128x512xf32>
    %c0_47 = arith.constant 0 : index
    %c0_48 = arith.constant 0 : index
    %88 = vector.load %arg13[%c0_47, %c0_48] : memref<1x512xf32, #tpu.memory_space<vmem>>, vector<1x512xf32>
    %89 = vector.broadcast %88 : vector<1x512xf32> to vector<128x512xf32>
    %90 = arith.addf %87, %89 : vector<128x512xf32>
    %cst_49 = arith.constant 5.000000e-01 : f32
    %91 = vector.broadcast %cst_49 : f32 to vector<128x512xf32>
    %92 = arith.mulf %91, %90 : vector<128x512xf32>
    %cst_50 = arith.constant 0.707106769 : f32
    %93 = vector.broadcast %cst_50 : f32 to vector<128x512xf32>
    %94 = arith.mulf %90, %93 : vector<128x512xf32>
    %95 = math.erf %94 : vector<128x512xf32>
    %cst_51 = arith.constant 1.000000e+00 : f32
    %96 = vector.broadcast %cst_51 : f32 to vector<128x512xf32>
    %97 = arith.addf %96, %95 : vector<128x512xf32>
    %98 = arith.mulf %92, %97 : vector<128x512xf32>
    %c0_52 = arith.constant 0 : index
    %c0_53 = arith.constant 0 : index
    %99 = vector.load %arg14[%c0_52, %c0_53] : memref<512x128xf32, #tpu.memory_space<vmem>>, vector<512x128xf32>
    %cst_54 = arith.constant dense<0.000000e+00> : vector<128x128xf32>
    %100 = tpu.matmul %98, %99, %cst_54 {dimension_numbers = #tpu.dot_dimension_numbers<[1], [0], [0], [1], [0, 0, 1, 1], [], []>} : vector<128x512xf32>, vector<512x128xf32>, vector<128x128xf32> -> vector<128x128xf32>
    %c0_55 = arith.constant 0 : index
    %c0_56 = arith.constant 0 : index
    %101 = vector.load %arg15[%c0_55, %c0_56] : memref<1x128xf32, #tpu.memory_space<vmem>>, vector<1x128xf32>
    %102 = vector.broadcast %101 : vector<1x128xf32> to vector<128x128xf32>
    %103 = arith.addf %100, %102 : vector<128x128xf32>
    %104 = arith.addf %103, %85 : vector<128x128xf32>
    %cst_57 = arith.constant dense<0.000000e+00> : vector<128xf32>
    %105 = vector.multi_reduction <add>, %104, %cst_57 [1] : vector<128x128xf32> to vector<128xf32>
    %106 = vector.shape_cast %105 : vector<128xf32> to vector<128x1xf32>
    %cst_58 = arith.constant 1.280000e+02 : f32
    %107 = vector.broadcast %cst_58 : f32 to vector<128x1xf32>
    %108 = arith.divf %106, %107 : vector<128x1xf32>
    %109 = vector.broadcast %108 : vector<128x1xf32> to vector<128x128xf32>
    %110 = arith.subf %104, %109 : vector<128x128xf32>
    %111 = arith.mulf %110, %110 : vector<128x128xf32>
    %cst_59 = arith.constant dense<0.000000e+00> : vector<128xf32>
    %112 = vector.multi_reduction <add>, %111, %cst_59 [1] : vector<128x128xf32> to vector<128xf32>
    %113 = vector.shape_cast %112 : vector<128xf32> to vector<128x1xf32>
    %cst_60 = arith.constant 1.280000e+02 : f32
    %114 = vector.broadcast %cst_60 : f32 to vector<128x1xf32>
    %115 = arith.divf %113, %114 : vector<128x1xf32>
    %116 = vector.broadcast %108 : vector<128x1xf32> to vector<128x128xf32>
    %117 = arith.subf %104, %116 : vector<128x128xf32>
    %cst_61 = arith.constant 9.99999996E-13 : f32
    %118 = vector.broadcast %cst_61 : f32 to vector<128x1xf32>
    %119 = arith.addf %115, %118 : vector<128x1xf32>
    %120 = math.rsqrt %119 : vector<128x1xf32>
    %121 = vector.broadcast %120 : vector<128x1xf32> to vector<128x128xf32>
    %122 = arith.mulf %117, %121 : vector<128x128xf32>
    %c0_62 = arith.constant 0 : index
    %c0_63 = arith.constant 0 : index
    %123 = vector.load %arg16[%c0_62, %c0_63] : memref<1x128xf32, #tpu.memory_space<vmem>>, vector<1x128xf32>
    %124 = vector.broadcast %123 : vector<1x128xf32> to vector<128x128xf32>
    %125 = arith.mulf %122, %124 : vector<128x128xf32>
    %c0_64 = arith.constant 0 : index
    %c0_65 = arith.constant 0 : index
    %126 = vector.load %arg17[%c0_64, %c0_65] : memref<1x128xf32, #tpu.memory_space<vmem>>, vector<1x128xf32>
    %127 = vector.broadcast %126 : vector<1x128xf32> to vector<128x128xf32>
    %128 = arith.addf %125, %127 : vector<128x128xf32>
    %c0_66 = arith.constant 0 : index
    %c0_67 = arith.constant 0 : index
    %c0_68 = arith.constant 0 : index
    %129 = vector.load %arg18[%c0_66, %c0_67, %c0_68] : memref<1x128x128xf32, #tpu.memory_space<vmem>>, vector<1x128x128xf32>
    %130 = vector.shape_cast %129 : vector<1x128x128xf32> to vector<128x128xf32>
    %131 = vector.shape_cast %128 : vector<128x128xf32> to vector<1x128x128xf32>
    tpu.vector_store %arg18[%c0_66, %c0_67, %c0_68], %131 {strides = array<i32>} : memref<1x128x128xf32, #tpu.memory_space<vmem>>, vector<1x128x128xf32>,
    return
  }
  func.func @transform_0(%arg0: i32, %arg1: i32) -> (i32, i32, i32) {
    %c0_i32 = arith.constant 0 : i32
    %c0_i32_0 = arith.constant 0 : i32
    %c0_i32_1 = arith.constant 0 : i32
    return %arg0, %c0_i32, %c0_i32_0 : i32, i32, i32
  }
  func.func @transform_1(%arg0: i32, %arg1: i32) -> (i32, i32, i32) {
    %c0_i32 = arith.constant 0 : i32
    %c0_i32_0 = arith.constant 0 : i32
    %c0_i32_1 = arith.constant 0 : i32
    return %arg0, %c0_i32, %c0_i32_0 : i32, i32, i32
  }
  func.func @transform_2(%arg0: i32, %arg1: i32) -> (i32, i32) {
    %c0_i32 = arith.constant 0 : i32
    %c0_i32_0 = arith.constant 0 : i32
    %c0_i32_1 = arith.constant 0 : i32
    return %c0_i32, %c0_i32_0 : i32, i32
  }
  func.func @transform_3(%arg0: i32, %arg1: i32) -> (i32, i32) {
    %c0_i32 = arith.constant 0 : i32
    %c0_i32_0 = arith.constant 0 : i32
    %c0_i32_1 = arith.constant 0 : i32
    return %c0_i32, %c0_i32_0 : i32, i32
  }
  func.func @transform_4(%arg0: i32, %arg1: i32) -> (i32, i32) {
    %c0_i32 = arith.constant 0 : i32
    %c0_i32_0 = arith.constant 0 : i32
    %c0_i32_1 = arith.constant 0 : i32
    return %c0_i32, %c0_i32_0 : i32, i32
  }
  func.func @transform_5(%arg0: i32, %arg1: i32) -> (i32, i32) {
    %c0_i32 = arith.constant 0 : i32
    %c0_i32_0 = arith.constant 0 : i32
    %c0_i32_1 = arith.constant 0 : i32
    return %c0_i32, %c0_i32_0 : i32, i32
  }
  func.func @transform_6(%arg0: i32, %arg1: i32) -> (i32, i32) {
    %c0_i32 = arith.constant 0 : i32
    %c0_i32_0 = arith.constant 0 : i32
    %c0_i32_1 = arith.constant 0 : i32
    return %c0_i32, %c0_i32_0 : i32, i32
  }
  func.func @transform_7(%arg0: i32, %arg1: i32) -> (i32, i32) {
    %c0_i32 = arith.constant 0 : i32
    %c0_i32_0 = arith.constant 0 : i32
    %c0_i32_1 = arith.constant 0 : i32
    return %c0_i32, %c0_i32_0 : i32, i32
  }
  func.func @transform_8(%arg0: i32, %arg1: i32) -> (i32, i32) {
    %c0_i32 = arith.constant 0 : i32
    %c0_i32_0 = arith.constant 0 : i32
    %c0_i32_1 = arith.constant 0 : i32
    return %c0_i32, %c0_i32_0 : i32, i32
  }
  func.func @transform_9(%arg0: i32, %arg1: i32) -> (i32, i32) {
    %c0_i32 = arith.constant 0 : i32
    %c0_i32_0 = arith.constant 0 : i32
    %c0_i32_1 = arith.constant 0 : i32
    return %c0_i32, %c0_i32_0 : i32, i32
  }
  func.func @transform_10(%arg0: i32, %arg1: i32) -> (i32, i32) {
    %c0_i32 = arith.constant 0 : i32
    %c0_i32_0 = arith.constant 0 : i32
    %c0_i32_1 = arith.constant 0 : i32
    return %c0_i32, %c0_i32_0 : i32, i32
  }
  func.func @transform_11(%arg0: i32, %arg1: i32) -> (i32, i32) {
    %c0_i32 = arith.constant 0 : i32
    %c0_i32_0 = arith.constant 0 : i32
    %c0_i32_1 = arith.constant 0 : i32
    return %c0_i32, %c0_i32_0 : i32, i32
  }
  func.func @transform_12(%arg0: i32, %arg1: i32) -> (i32, i32) {
    %c0_i32 = arith.constant 0 : i32
    %c0_i32_0 = arith.constant 0 : i32
    %c0_i32_1 = arith.constant 0 : i32
    return %c0_i32, %c0_i32_0 : i32, i32
  }
  func.func @transform_13(%arg0: i32, %arg1: i32) -> (i32, i32) {
    %c0_i32 = arith.constant 0 : i32
    %c0_i32_0 = arith.constant 0 : i32
    %c0_i32_1 = arith.constant 0 : i32
    return %c0_i32, %c0_i32_0 : i32, i32
  }
  func.func @transform_14(%arg0: i32, %arg1: i32) -> (i32, i32) {
    %c0_i32 = arith.constant 0 : i32
    %c0_i32_0 = arith.constant 0 : i32
    %c0_i32_1 = arith.constant 0 : i32
    return %c0_i32, %c0_i32_0 : i32, i32
  }
  func.func @transform_15(%arg0: i32, %arg1: i32) -> (i32, i32) {
    %c0_i32 = arith.constant 0 : i32
    %c0_i32_0 = arith.constant 0 : i32
    %c0_i32_1 = arith.constant 0 : i32
    return %c0_i32, %c0_i32_0 : i32, i32
  }
  func.func @transform_16(%arg0: i32, %arg1: i32) -> (i32, i32, i32) {
    %c0_i32 = arith.constant 0 : i32
    %c0_i32_0 = arith.constant 0 : i32
    return %arg0, %arg1, %c0_i32 : i32, i32, i32
  }
}

module attributes {stable_mosaic.version = 11 : i64} {
  func.func @bert_layer_kernel(%arg0: i32, %arg1: i32, %arg2: memref<1x256x128xf32, #tpu.memory_space<vmem>>, %arg3: memref<1x1x256xf32, #tpu.memory_space<vmem>>, %arg4: memref<128x128xf32, #tpu.memory_space<vmem>>, %arg5: memref<1x128xf32, #tpu.memory_space<vmem>>, %arg6: memref<128x256xf32, #tpu.memory_space<vmem>>, %arg7: memref<1x256xf32, #tpu.memory_space<vmem>>, %arg8: memref<128x128xf32, #tpu.memory_space<vmem>>, %arg9: memref<1x128xf32, #tpu.memory_space<vmem>>, %arg10: memref<1x128xf32, #tpu.memory_space<vmem>>, %arg11: memref<1x128xf32, #tpu.memory_space<vmem>>, %arg12: memref<128x512xf32, #tpu.memory_space<vmem>>, %arg13: memref<1x512xf32, #tpu.memory_space<vmem>>, %arg14: memref<512x128xf32, #tpu.memory_space<vmem>>, %arg15: memref<1x128xf32, #tpu.memory_space<vmem>>, %arg16: memref<1x128xf32, #tpu.memory_space<vmem>>, %arg17: memref<1x128xf32, #tpu.memory_space<vmem>>, %arg18: memref<1x128x128xf32, #tpu.memory_space<vmem>>, %arg19: memref<128x256xf32, #tpu.memory_space<vmem>>, %arg20: memref<256x128xf32, #tpu.memory_space<vmem>>, %arg21: memref<128x128xf32, #tpu.memory_space<vmem>>) attributes {dimension_semantics = [#tpu.dimension_semantics<parallel>, #tpu.dimension_semantics<arbitrary>], iteration_bounds = array<i64: 2, 2>, scalar_prefetch = 0 : i64, scratch_operands = 3 : i64, tpu.core_type = #tpu.core_type<tc>, window_params = [{transform_indices = @transform_0, window_bounds = array<i64: 1, 256, 128>}, {transform_indices = @transform_1, window_bounds = array<i64: 1, 1, 256>}, {pipeline_mode = #tpu.pipeline_mode<synchronous>, transform_indices = @transform_2, window_bounds = array<i64: 128, 128>}, {pipeline_mode = #tpu.pipeline_mode<synchronous>, transform_indices = @transform_3, window_bounds = array<i64: 1, 128>}, {pipeline_mode = #tpu.pipeline_mode<synchronous>, transform_indices = @transform_4, window_bounds = array<i64: 128, 256>}, {pipeline_mode = #tpu.pipeline_mode<synchronous>, transform_indices = @transform_5, window_bounds = array<i64: 1, 256>}, {pipeline_mode = #tpu.pipeline_mode<synchronous>, transform_indices = @transform_6, window_bounds = array<i64: 128, 128>}, {pipeline_mode = #tpu.pipeline_mode<synchronous>, transform_indices = @transform_7, window_bounds = array<i64: 1, 128>}, {pipeline_mode = #tpu.pipeline_mode<synchronous>, transform_indices = @transform_8, window_bounds = array<i64: 1, 128>}, {pipeline_mode = #tpu.pipeline_mode<synchronous>, transform_indices = @transform_9, window_bounds = array<i64: 1, 128>}, {pipeline_mode = #tpu.pipeline_mode<synchronous>, transform_indices = @transform_10, window_bounds = array<i64: 128, 512>}, {pipeline_mode = #tpu.pipeline_mode<synchronous>, transform_indices = @transform_11, window_bounds = array<i64: 1, 512>}, {pipeline_mode = #tpu.pipeline_mode<synchronous>, transform_indices = @transform_12, window_bounds = array<i64: 512, 128>}, {pipeline_mode = #tpu.pipeline_mode<synchronous>, transform_indices = @transform_13, window_bounds = array<i64: 1, 128>}, {pipeline_mode = #tpu.pipeline_mode<synchronous>, transform_indices = @transform_14, window_bounds = array<i64: 1, 128>}, {pipeline_mode = #tpu.pipeline_mode<synchronous>, transform_indices = @transform_15, window_bounds = array<i64: 1, 128>}, {transform_indices = @transform_16, window_bounds = array<i64: 1, 128, 128>}]} {
    %c0_i32 = arith.constant 0 : i32
    %0 = arith.cmpi eq, %arg1, %c0_i32 : i32
    %1 = arith.extui %0 : i1 to i32
    %c0_i32_0 = arith.constant 0 : i32
    %2 = arith.cmpi ne, %1, %c0_i32_0 : i32
    scf.if %2 {
      %c0_69 = arith.constant 0 : index
      %c0_70 = arith.constant 0 : index
      %c0_71 = arith.constant 0 : index
      %132 = vector.load %arg2[%c0_69, %c0_70, %c0_71] : memref<1x256x128xf32, #tpu.memory_space<vmem>>, vector<1x256x128xf32>
      %133 = vector.shape_cast %132 : vector<1x256x128xf32> to vector<256x128xf32>
      %c0_72 = arith.constant 0 : index
      %c0_73 = arith.constant 0 : index
      %134 = vector.load %arg6[%c0_72, %c0_73] : memref<128x256xf32, #tpu.memory_space<vmem>>, vector<128x256xf32>
      %cst_74 = arith.constant dense<0.000000e+00> : vector<256x256xf32>
      %135 = tpu.matmul %133, %134, %cst_74 {dimension_numbers = #tpu.dot_dimension_numbers<[1], [0], [0], [1], [0, 0, 1, 1], [], []>} : vector<256x128xf32>, vector<128x256xf32>, vector<256x256xf32> -> vector<256x256xf32>
      %c0_75 = arith.constant 0 : index
      %c0_76 = arith.constant 0 : index
      %136 = vector.load %arg7[%c0_75, %c0_76] : memref<1x256xf32, #tpu.memory_space<vmem>>, vector<1x256xf32>
      %137 = vector.broadcast %136 : vector<1x256xf32> to vector<256x256xf32>
      %138 = arith.addf %135, %137 : vector<256x256xf32>
      %139 = vector.extract_strided_slice %138 {offsets = [0, 0], sizes = [256, 128], strides = [1, 1]} : vector<256x256xf32> to vector<256x128xf32>
      %140 = tpu.transpose %139, [1, 0] : vector<256x128xf32> -> vector<128x256xf32>
      %c0_77 = arith.constant 0 : index
      %c0_78 = arith.constant 0 : index
      %141 = vector.load %arg19[%c0_77, %c0_78] : memref<128x256xf32, #tpu.memory_space<vmem>>, vector<128x256xf32>
      tpu.vector_store %arg19[%c0_77, %c0_78], %140 {strides = array<i32>} : memref<128x256xf32, #tpu.memory_space<vmem>>, vector<128x256xf32>,
      %142 = vector.extract_strided_slice %138 {offsets = [0, 128], sizes = [256, 128], strides = [1, 1]} : vector<256x256xf32> to vector<256x128xf32>
      %c0_79 = arith.constant 0 : index
      %c0_80 = arith.constant 0 : index
      %143 = vector.load %arg20[%c0_79, %c0_80] : memref<256x128xf32, #tpu.memory_space<vmem>>, vector<256x128xf32>
      tpu.vector_store %arg20[%c0_79, %c0_80], %142 {strides = array<i32>} : memref<256x128xf32, #tpu.memory_space<vmem>>, vector<256x128xf32>,
    } else {
    }
    %c128_i32 = arith.constant 128 : i32
    %3 = arith.muli %arg1, %c128_i32 : i32
    %4 = tpu.assume_multiple %3, 128 : i32
    %c0 = arith.constant 0 : index
    %5 = arith.index_cast %4 : i32 to index
    %c0_1 = arith.constant 0 : index
    %6 = vector.load %arg2[%c0, %5, %c0_1] : memref<1x256x128xf32, #tpu.memory_space<vmem>>, vector<1x128x128xf32>
    %7 = vector.shape_cast %6 : vector<1x128x128xf32> to vector<128x128xf32>
    %c0_2 = arith.constant 0 : index
    %c0_3 = arith.constant 0 : index
    %8 = vector.load %arg4[%c0_2, %c0_3] : memref<128x128xf32, #tpu.memory_space<vmem>>, vector<128x128xf32>
    %cst = arith.constant dense<0.000000e+00> : vector<128x128xf32>
    %9 = tpu.matmul %7, %8, %cst {dimension_numbers = #tpu.dot_dimension_numbers<[1], [0], [0], [1], [0, 0, 1, 1], [], []>} : vector<128x128xf32>, vector<128x128xf32>, vector<128x128xf32> -> vector<128x128xf32>
    %c0_4 = arith.constant 0 : index
    %c0_5 = arith.constant 0 : index
    %10 = vector.load %arg5[%c0_4, %c0_5] : memref<1x128xf32, #tpu.memory_space<vmem>>, vector<1x128xf32>
    %11 = vector.broadcast %10 : vector<1x128xf32> to vector<128x128xf32>
    %12 = arith.addf %9, %11 : vector<128x128xf32>
    %cst_6 = arith.constant 1.250000e-01 : f32
    %13 = vector.broadcast %cst_6 : f32 to vector<128x128xf32>
    %14 = arith.mulf %12, %13 : vector<128x128xf32>
    %c0_7 = arith.constant 0 : index
    %c0_8 = arith.constant 0 : index
    %c0_9 = arith.constant 0 : index
    %15 = vector.load %arg3[%c0_7, %c0_8, %c0_9] : memref<1x1x256xf32, #tpu.memory_space<vmem>>, vector<1x1x256xf32>
    %16 = vector.shape_cast %15 : vector<1x1x256xf32> to vector<1x256xf32>
    %cst_10 = arith.constant 1.250000e-01 : f32
    %17 = vector.broadcast %cst_10 : f32 to vector<1x256xf32>
    %18 = arith.mulf %16, %17 : vector<1x256xf32>
    %19 = vector.shape_cast %18 : vector<1x256xf32> to vector<1x256xf32>
    %20 = vector.broadcast %19 : vector<1x256xf32> to vector<128x256xf32>
    %21 = vector.extract_strided_slice %14 {offsets = [0, 0], sizes = [128, 64], strides = [1, 1]} : vector<128x128xf32> to vector<128x64xf32>
    %c0_11 = arith.constant 0 : index
    %c0_12 = arith.constant 0 : index
    %22 = vector.load %arg19[%c0_11, %c0_12] : memref<128x256xf32, #tpu.memory_space<vmem>>, vector<64x256xf32>
    %c0_13 = arith.constant 0 : index
    %c0_14 = arith.constant 0 : index
    %23 = vector.load %arg20[%c0_13, %c0_14] : memref<256x128xf32, #tpu.memory_space<vmem>>, vector<256x64xf32>
    %cst_15 = arith.constant dense<0.000000e+00> : vector<128x256xf32>
    %24 = tpu.matmul %21, %22, %cst_15 {dimension_numbers = #tpu.dot_dimension_numbers<[1], [0], [0], [1], [0, 0, 1, 1], [], []>} : vector<128x64xf32>, vector<64x256xf32>, vector<128x256xf32> -> vector<128x256xf32>
    %25 = arith.addf %24, %20 : vector<128x256xf32>
    %cst_16 = arith.constant dense<0xFF800000> : vector<128xf32>
    %26 = vector.multi_reduction <maximumf>, %25, %cst_16 [1] : vector<128x256xf32> to vector<128xf32>
    %27 = vector.shape_cast %26 : vector<128xf32> to vector<128x1xf32>
    %28 = vector.broadcast %27 : vector<128x1xf32> to vector<128x256xf32>
    %29 = arith.subf %25, %28 : vector<128x256xf32>
    %30 = math.exp %29 : vector<128x256xf32>
    %cst_17 = arith.constant dense<0.000000e+00> : vector<128xf32>
    %31 = vector.multi_reduction <add>, %30, %cst_17 [1] : vector<128x256xf32> to vector<128xf32>
    %32 = vector.shape_cast %31 : vector<128xf32> to vector<128x1xf32>
    %33 = tpu.reciprocal %32 : vector<128x1xf32> -> vector<128x1xf32>
    %34 = vector.broadcast %33 : vector<128x1xf32> to vector<128x256xf32>
    %35 = arith.mulf %30, %34 : vector<128x256xf32>
    %cst_18 = arith.constant dense<0.000000e+00> : vector<128x64xf32>
    %36 = tpu.matmul %35, %23, %cst_18 {dimension_numbers = #tpu.dot_dimension_numbers<[1], [0], [0], [1], [0, 0, 1, 1], [], []>} : vector<128x256xf32>, vector<256x64xf32>, vector<128x64xf32> -> vector<128x64xf32>
    %37 = vector.extract_strided_slice %14 {offsets = [0, 64], sizes = [128, 64], strides = [1, 1]} : vector<128x128xf32> to vector<128x64xf32>
    %c64 = arith.constant 64 : index
    %c0_19 = arith.constant 0 : index
    %38 = vector.load %arg19[%c64, %c0_19] : memref<128x256xf32, #tpu.memory_space<vmem>>, vector<64x256xf32>
    %c0_20 = arith.constant 0 : index
    %c64_21 = arith.constant 64 : index
    %39 = vector.load %arg20[%c0_20, %c64_21] : memref<256x128xf32, #tpu.memory_space<vmem>>, vector<256x64xf32>
    %cst_22 = arith.constant dense<0.000000e+00> : vector<128x256xf32>
    %40 = tpu.matmul %37, %38, %cst_22 {dimension_numbers = #tpu.dot_dimension_numbers<[1], [0], [0], [1], [0, 0, 1, 1], [], []>} : vector<128x64xf32>, vector<64x256xf32>, vector<128x256xf32> -> vector<128x256xf32>
    %41 = arith.addf %40, %20 : vector<128x256xf32>
    %cst_23 = arith.constant dense<0xFF800000> : vector<128xf32>
    %42 = vector.multi_reduction <maximumf>, %41, %cst_23 [1] : vector<128x256xf32> to vector<128xf32>
    %43 = vector.shape_cast %42 : vector<128xf32> to vector<128x1xf32>
    %44 = vector.broadcast %43 : vector<128x1xf32> to vector<128x256xf32>
    %45 = arith.subf %41, %44 : vector<128x256xf32>
    %46 = math.exp %45 : vector<128x256xf32>
    %cst_24 = arith.constant dense<0.000000e+00> : vector<128xf32>
    %47 = vector.multi_reduction <add>, %46, %cst_24 [1] : vector<128x256xf32> to vector<128xf32>
    %48 = vector.shape_cast %47 : vector<128xf32> to vector<128x1xf32>
    %49 = tpu.reciprocal %48 : vector<128x1xf32> -> vector<128x1xf32>
    %50 = vector.broadcast %49 : vector<128x1xf32> to vector<128x256xf32>
    %51 = arith.mulf %46, %50 : vector<128x256xf32>
    %cst_25 = arith.constant dense<0.000000e+00> : vector<128x64xf32>
    %52 = tpu.matmul %51, %39, %cst_25 {dimension_numbers = #tpu.dot_dimension_numbers<[1], [0], [0], [1], [0, 0, 1, 1], [], []>} : vector<128x256xf32>, vector<256x64xf32>, vector<128x64xf32> -> vector<128x64xf32>
    %53 = tpu.concatenate %36, %52 in 1 : vector<128x64xf32>, vector<128x64xf32> -> vector<128x128xf32>
    %c0_26 = arith.constant 0 : index
    %c0_27 = arith.constant 0 : index
    %54 = vector.load %arg21[%c0_26, %c0_27] : memref<128x128xf32, #tpu.memory_space<vmem>>, vector<128x128xf32>
    tpu.vector_store %arg21[%c0_26, %c0_27], %53 {strides = array<i32>} : memref<128x128xf32, #tpu.memory_space<vmem>>, vector<128x128xf32>,
    %c0_28 = arith.constant 0 : index
    %c0_29 = arith.constant 0 : index
    %55 = vector.load %arg21[%c0_28, %c0_29] : memref<128x128xf32, #tpu.memory_space<vmem>>, vector<128x128xf32>
    %c0_30 = arith.constant 0 : index
    %c0_31 = arith.constant 0 : index
    %56 = vector.load %arg8[%c0_30, %c0_31] : memref<128x128xf32, #tpu.memory_space<vmem>>, vector<128x128xf32>
    %cst_32 = arith.constant dense<0.000000e+00> : vector<128x128xf32>
    %57 = tpu.matmul %55, %56, %cst_32 {dimension_numbers = #tpu.dot_dimension_numbers<[1], [0], [0], [1], [0, 0, 1, 1], [], []>} : vector<128x128xf32>, vector<128x128xf32>, vector<128x128xf32> -> vector<128x128xf32>
    %c0_33 = arith.constant 0 : index
    %c0_34 = arith.constant 0 : index
    %58 = vector.load %arg9[%c0_33, %c0_34] : memref<1x128xf32, #tpu.memory_space<vmem>>, vector<1x128xf32>
    %59 = vector.broadcast %58 : vector<1x128xf32> to vector<128x128xf32>
    %60 = arith.addf %57, %59 : vector<128x128xf32>
    %61 = arith.addf %60, %7 : vector<128x128xf32>
    %cst_35 = arith.constant dense<0.000000e+00> : vector<128xf32>
    %62 = vector.multi_reduction <add>, %61, %cst_35 [1] : vector<128x128xf32> to vector<128xf32>
    %63 = vector.shape_cast %62 : vector<128xf32> to vector<128x1xf32>
    %cst_36 = arith.constant 1.280000e+02 : f32
    %64 = vector.broadcast %cst_36 : f32 to vector<128x1xf32>
    %65 = arith.divf %63, %64 : vector<128x1xf32>
    %66 = vector.broadcast %65 : vector<128x1xf32> to vector<128x128xf32>
    %67 = arith.subf %61, %66 : vector<128x128xf32>
    %68 = arith.mulf %67, %67 : vector<128x128xf32>
    %cst_37 = arith.constant dense<0.000000e+00> : vector<128xf32>
    %69 = vector.multi_reduction <add>, %68, %cst_37 [1] : vector<128x128xf32> to vector<128xf32>
    %70 = vector.shape_cast %69 : vector<128xf32> to vector<128x1xf32>
    %cst_38 = arith.constant 1.280000e+02 : f32
    %71 = vector.broadcast %cst_38 : f32 to vector<128x1xf32>
    %72 = arith.divf %70, %71 : vector<128x1xf32>
    %73 = vector.broadcast %65 : vector<128x1xf32> to vector<128x128xf32>
    %74 = arith.subf %61, %73 : vector<128x128xf32>
    %cst_39 = arith.constant 9.99999996E-13 : f32
    %75 = vector.broadcast %cst_39 : f32 to vector<128x1xf32>
    %76 = arith.addf %72, %75 : vector<128x1xf32>
    %77 = math.rsqrt %76 : vector<128x1xf32>
    %78 = vector.broadcast %77 : vector<128x1xf32> to vector<128x128xf32>
    %79 = arith.mulf %74, %78 : vector<128x128xf32>
    %c0_40 = arith.constant 0 : index
    %c0_41 = arith.constant 0 : index
    %80 = vector.load %arg10[%c0_40, %c0_41] : memref<1x128xf32, #tpu.memory_space<vmem>>, vector<1x128xf32>
    %81 = vector.broadcast %80 : vector<1x128xf32> to vector<128x128xf32>
    %82 = arith.mulf %79, %81 : vector<128x128xf32>
    %c0_42 = arith.constant 0 : index
    %c0_43 = arith.constant 0 : index
    %83 = vector.load %arg11[%c0_42, %c0_43] : memref<1x128xf32, #tpu.memory_space<vmem>>, vector<1x128xf32>
    %84 = vector.broadcast %83 : vector<1x128xf32> to vector<128x128xf32>
    %85 = arith.addf %82, %84 : vector<128x128xf32>
    %c0_44 = arith.constant 0 : index
    %c0_45 = arith.constant 0 : index
    %86 = vector.load %arg12[%c0_44, %c0_45] : memref<128x512xf32, #tpu.memory_space<vmem>>, vector<128x512xf32>
    %cst_46 = arith.constant dense<0.000000e+00> : vector<128x512xf32>
    %87 = tpu.matmul %85, %86, %cst_46 {dimension_numbers = #tpu.dot_dimension_numbers<[1], [0], [0], [1], [0, 0, 1, 1], [], []>} : vector<128x128xf32>, vector<128x512xf32>, vector<128x512xf32> -> vector<128x512xf32>
    %c0_47 = arith.constant 0 : index
    %c0_48 = arith.constant 0 : index
    %88 = vector.load %arg13[%c0_47, %c0_48] : memref<1x512xf32, #tpu.memory_space<vmem>>, vector<1x512xf32>
    %89 = vector.broadcast %88 : vector<1x512xf32> to vector<128x512xf32>
    %90 = arith.addf %87, %89 : vector<128x512xf32>
    %cst_49 = arith.constant 5.000000e-01 : f32
    %91 = vector.broadcast %cst_49 : f32 to vector<128x512xf32>
    %92 = arith.mulf %91, %90 : vector<128x512xf32>
    %cst_50 = arith.constant 0.707106769 : f32
    %93 = vector.broadcast %cst_50 : f32 to vector<128x512xf32>
    %94 = arith.mulf %90, %93 : vector<128x512xf32>
    %95 = math.erf %94 : vector<128x512xf32>
    %cst_51 = arith.constant 1.000000e+00 : f32
    %96 = vector.broadcast %cst_51 : f32 to vector<128x512xf32>
    %97 = arith.addf %96, %95 : vector<128x512xf32>
    %98 = arith.mulf %92, %97 : vector<128x512xf32>
    %c0_52 = arith.constant 0 : index
    %c0_53 = arith.constant 0 : index
    %99 = vector.load %arg14[%c0_52, %c0_53] : memref<512x128xf32, #tpu.memory_space<vmem>>, vector<512x128xf32>
    %cst_54 = arith.constant dense<0.000000e+00> : vector<128x128xf32>
    %100 = tpu.matmul %98, %99, %cst_54 {dimension_numbers = #tpu.dot_dimension_numbers<[1], [0], [0], [1], [0, 0, 1, 1], [], []>} : vector<128x512xf32>, vector<512x128xf32>, vector<128x128xf32> -> vector<128x128xf32>
    %c0_55 = arith.constant 0 : index
    %c0_56 = arith.constant 0 : index
    %101 = vector.load %arg15[%c0_55, %c0_56] : memref<1x128xf32, #tpu.memory_space<vmem>>, vector<1x128xf32>
    %102 = vector.broadcast %101 : vector<1x128xf32> to vector<128x128xf32>
    %103 = arith.addf %100, %102 : vector<128x128xf32>
    %104 = arith.addf %103, %85 : vector<128x128xf32>
    %cst_57 = arith.constant dense<0.000000e+00> : vector<128xf32>
    %105 = vector.multi_reduction <add>, %104, %cst_57 [1] : vector<128x128xf32> to vector<128xf32>
    %106 = vector.shape_cast %105 : vector<128xf32> to vector<128x1xf32>
    %cst_58 = arith.constant 1.280000e+02 : f32
    %107 = vector.broadcast %cst_58 : f32 to vector<128x1xf32>
    %108 = arith.divf %106, %107 : vector<128x1xf32>
    %109 = vector.broadcast %108 : vector<128x1xf32> to vector<128x128xf32>
    %110 = arith.subf %104, %109 : vector<128x128xf32>
    %111 = arith.mulf %110, %110 : vector<128x128xf32>
    %cst_59 = arith.constant dense<0.000000e+00> : vector<128xf32>
    %112 = vector.multi_reduction <add>, %111, %cst_59 [1] : vector<128x128xf32> to vector<128xf32>
    %113 = vector.shape_cast %112 : vector<128xf32> to vector<128x1xf32>
    %cst_60 = arith.constant 1.280000e+02 : f32
    %114 = vector.broadcast %cst_60 : f32 to vector<128x1xf32>
    %115 = arith.divf %113, %114 : vector<128x1xf32>
    %116 = vector.broadcast %108 : vector<128x1xf32> to vector<128x128xf32>
    %117 = arith.subf %104, %116 : vector<128x128xf32>
    %cst_61 = arith.constant 9.99999996E-13 : f32
    %118 = vector.broadcast %cst_61 : f32 to vector<128x1xf32>
    %119 = arith.addf %115, %118 : vector<128x1xf32>
    %120 = math.rsqrt %119 : vector<128x1xf32>
    %121 = vector.broadcast %120 : vector<128x1xf32> to vector<128x128xf32>
    %122 = arith.mulf %117, %121 : vector<128x128xf32>
    %c0_62 = arith.constant 0 : index
    %c0_63 = arith.constant 0 : index
    %123 = vector.load %arg16[%c0_62, %c0_63] : memref<1x128xf32, #tpu.memory_space<vmem>>, vector<1x128xf32>
    %124 = vector.broadcast %123 : vector<1x128xf32> to vector<128x128xf32>
    %125 = arith.mulf %122, %124 : vector<128x128xf32>
    %c0_64 = arith.constant 0 : index
    %c0_65 = arith.constant 0 : index
    %126 = vector.load %arg17[%c0_64, %c0_65] : memref<1x128xf32, #tpu.memory_space<vmem>>, vector<1x128xf32>
    %127 = vector.broadcast %126 : vector<1x128xf32> to vector<128x128xf32>
    %128 = arith.addf %125, %127 : vector<128x128xf32>
    %c0_66 = arith.constant 0 : index
    %c0_67 = arith.constant 0 : index
    %c0_68 = arith.constant 0 : index
    %129 = vector.load %arg18[%c0_66, %c0_67, %c0_68] : memref<1x128x128xf32, #tpu.memory_space<vmem>>, vector<1x128x128xf32>
    %130 = vector.shape_cast %129 : vector<1x128x128xf32> to vector<128x128xf32>
    %131 = vector.shape_cast %128 : vector<128x128xf32> to vector<1x128x128xf32>
    tpu.vector_store %arg18[%c0_66, %c0_67, %c0_68], %131 {strides = array<i32>} : memref<1x128x128xf32, #tpu.memory_space<vmem>>, vector<1x128x128xf32>,
    return
  }
  func.func @transform_0(%arg0: i32, %arg1: i32) -> (i32, i32, i32) {
    %c0_i32 = arith.constant 0 : i32
    %c0_i32_0 = arith.constant 0 : i32
    %c0_i32_1 = arith.constant 0 : i32
    return %arg0, %c0_i32, %c0_i32_0 : i32, i32, i32
  }
  func.func @transform_1(%arg0: i32, %arg1: i32) -> (i32, i32, i32) {
    %c0_i32 = arith.constant 0 : i32
    %c0_i32_0 = arith.constant 0 : i32
    %c0_i32_1 = arith.constant 0 : i32
    return %arg0, %c0_i32, %c0_i32_0 : i32, i32, i32
  }
  func.func @transform_2(%arg0: i32, %arg1: i32) -> (i32, i32) {
    %c0_i32 = arith.constant 0 : i32
    %c0_i32_0 = arith.constant 0 : i32
    %c0_i32_1 = arith.constant 0 : i32
    return %c0_i32, %c0_i32_0 : i32, i32
  }
  func.func @transform_3(%arg0: i32, %arg1: i32) -> (i32, i32) {
    %c0_i32 = arith.constant 0 : i32
    %c0_i32_0 = arith.constant 0 : i32
    %c0_i32_1 = arith.constant 0 : i32
    return %c0_i32, %c0_i32_0 : i32, i32
  }
  func.func @transform_4(%arg0: i32, %arg1: i32) -> (i32, i32) {
    %c0_i32 = arith.constant 0 : i32
    %c0_i32_0 = arith.constant 0 : i32
    %c0_i32_1 = arith.constant 0 : i32
    return %c0_i32, %c0_i32_0 : i32, i32
  }
  func.func @transform_5(%arg0: i32, %arg1: i32) -> (i32, i32) {
    %c0_i32 = arith.constant 0 : i32
    %c0_i32_0 = arith.constant 0 : i32
    %c0_i32_1 = arith.constant 0 : i32
    return %c0_i32, %c0_i32_0 : i32, i32
  }
  func.func @transform_6(%arg0: i32, %arg1: i32) -> (i32, i32) {
    %c0_i32 = arith.constant 0 : i32
    %c0_i32_0 = arith.constant 0 : i32
    %c0_i32_1 = arith.constant 0 : i32
    return %c0_i32, %c0_i32_0 : i32, i32
  }
  func.func @transform_7(%arg0: i32, %arg1: i32) -> (i32, i32) {
    %c0_i32 = arith.constant 0 : i32
    %c0_i32_0 = arith.constant 0 : i32
    %c0_i32_1 = arith.constant 0 : i32
    return %c0_i32, %c0_i32_0 : i32, i32
  }
  func.func @transform_8(%arg0: i32, %arg1: i32) -> (i32, i32) {
    %c0_i32 = arith.constant 0 : i32
    %c0_i32_0 = arith.constant 0 : i32
    %c0_i32_1 = arith.constant 0 : i32
    return %c0_i32, %c0_i32_0 : i32, i32
  }
  func.func @transform_9(%arg0: i32, %arg1: i32) -> (i32, i32) {
    %c0_i32 = arith.constant 0 : i32
    %c0_i32_0 = arith.constant 0 : i32
    %c0_i32_1 = arith.constant 0 : i32
    return %c0_i32, %c0_i32_0 : i32, i32
  }
  func.func @transform_10(%arg0: i32, %arg1: i32) -> (i32, i32) {
    %c0_i32 = arith.constant 0 : i32
    %c0_i32_0 = arith.constant 0 : i32
    %c0_i32_1 = arith.constant 0 : i32
    return %c0_i32, %c0_i32_0 : i32, i32
  }
  func.func @transform_11(%arg0: i32, %arg1: i32) -> (i32, i32) {
    %c0_i32 = arith.constant 0 : i32
    %c0_i32_0 = arith.constant 0 : i32
    %c0_i32_1 = arith.constant 0 : i32
    return %c0_i32, %c0_i32_0 : i32, i32
  }
  func.func @transform_12(%arg0: i32, %arg1: i32) -> (i32, i32) {
    %c0_i32 = arith.constant 0 : i32
    %c0_i32_0 = arith.constant 0 : i32
    %c0_i32_1 = arith.constant 0 : i32
    return %c0_i32, %c0_i32_0 : i32, i32
  }
  func.func @transform_13(%arg0: i32, %arg1: i32) -> (i32, i32) {
    %c0_i32 = arith.constant 0 : i32
    %c0_i32_0 = arith.constant 0 : i32
    %c0_i32_1 = arith.constant 0 : i32
    return %c0_i32, %c0_i32_0 : i32, i32
  }
  func.func @transform_14(%arg0: i32, %arg1: i32) -> (i32, i32) {
    %c0_i32 = arith.constant 0 : i32
    %c0_i32_0 = arith.constant 0 : i32
    %c0_i32_1 = arith.constant 0 : i32
    return %c0_i32, %c0_i32_0 : i32, i32
  }
  func.func @transform_15(%arg0: i32, %arg1: i32) -> (i32, i32) {
    %c0_i32 = arith.constant 0 : i32
    %c0_i32_0 = arith.constant 0 : i32
    %c0_i32_1 = arith.constant 0 : i32
    return %c0_i32, %c0_i32_0 : i32, i32
  }
  func.func @transform_16(%arg0: i32, %arg1: i32) -> (i32, i32, i32) {
    %c0_i32 = arith.constant 0 : i32
    %c0_i32_0 = arith.constant 0 : i32
    return %arg0, %arg1, %c0_i32 : i32, i32, i32
  }
}

</mosaic_0001>

<llo_original>
// kernel: tpu_custom_call.1
$region0: #{tpu_custom_call.1}
  #allocation0 [shape = 'u32[]', space=smem, size = 0x4, offset = 0x4, fixed_abs, tag = 'smem constant byte address 0x4 - core index']
  #allocation1 [shape = 'u32[144,128]{1,0:T(1,128)}', space=vmem, size = 0x12000, scoped, tag = 'internal scratch']
  #allocation2 [shape = 'f32[128,256]{1,0:T(8,128)}', space=vmem, size = 0x20000, scoped, tag = 'scratch operand']
  #allocation3 [shape = 'f32[256,128]{1,0:T(8,128)}', space=vmem, size = 0x20000, scoped, tag = 'scratch operand']
  #allocation4 [shape = 'f32[128,128]{1,0:T(8,128)}', space=vmem, size = 0x10000, scoped, tag = 'scratch operand']
  %s0 = inlined_call_operand.hbm [shape: f32[2,256,128], index: 0, kind: input, shape index: {}]
  %s1 = inlined_call_operand.hbm [shape: f32[2,1,256], index: 1, kind: input, shape index: {}]
  %s2 = inlined_call_operand.hbm [shape: f32[128,128], index: 2, kind: input, shape index: {}]
  %s3 = inlined_call_operand.vmem [shape: f32[1,128], index: 3, kind: input, shape index: {}]
  %s4 = inlined_call_operand.hbm [shape: f32[128,256], index: 4, kind: input, shape index: {}]
  %s5 = inlined_call_operand.vmem [shape: f32[1,256], index: 5, kind: input, shape index: {}]
  %s6 = inlined_call_operand.hbm [shape: f32[128,128], index: 6, kind: input, shape index: {}]
  %s7 = inlined_call_operand.vmem [shape: f32[1,128], index: 7, kind: input, shape index: {}]
  %s8 = inlined_call_operand.vmem [shape: f32[1,128], index: 8, kind: input, shape index: {}]
  %s9 = inlined_call_operand.vmem [shape: f32[1,128], index: 9, kind: input, shape index: {}]
  %s10 = inlined_call_operand.hbm [shape: f32[128,512], index: 10, kind: input, shape index: {}]
  %s11 = inlined_call_operand.vmem [shape: f32[1,512], index: 11, kind: input, shape index: {}]
  %s12 = inlined_call_operand.hbm [shape: f32[512,128], index: 12, kind: input, shape index: {}]
  %s13 = inlined_call_operand.vmem [shape: f32[1,128], index: 13, kind: input, shape index: {}]
  %s14 = inlined_call_operand.vmem [shape: f32[1,128], index: 14, kind: input, shape index: {}]
  %s15 = inlined_call_operand.vmem [shape: f32[1,128], index: 15, kind: input, shape index: {}]
  %s16 = inlined_call_operand.hbm [shape: f32[2,256,128], index: 16, kind: output, shape index: {}]
  %s17 = sld [smem:[#allocation0]]
  $region129: #{tpu_custom_call.1} parent=0
    _
  %s19 = ssub.s32 1, %s17
  %s20 = scalar_select 0, %s19, %s17
  $region1: #{tpu_custom_call.1} parent=0
    #allocation5 [shape = 'u8[262144]{0}', space=vmem, size = 0x40000, scoped, tag = 'input window, operand 0']
    #allocation6 [shape = 's32[2]{0}', space=sflag, size = 0x8, scoped, tag = 'scoped memory for tpu_custom_call.1']
    #allocation7 [shape = 's32[2]{0}', space=sflag, size = 0x8, scoped, tag = 'scoped memory for tpu_custom_call.1']
    #allocation8 [shape = 'u8[2048]{0}', space=vmem, size = 0x800, scoped, tag = 'input window, operand 1']
    #allocation9 [shape = 's32[2]{0}', space=sflag, size = 0x8, scoped, tag = 'scoped memory for tpu_custom_call.1']
    #allocation10 [shape = 'u8[65536]{0}', space=vmem, size = 0x10000, scoped, tag = 'input window, operand 2, single buffered']
    #allocation11 [shape = 'u8[131072]{0}', space=vmem, size = 0x20000, scoped, tag = 'input window, operand 4, single buffered']
    #allocation12 [shape = 's32[1]{0}', space=sflag, size = 0x4, scoped, tag = 'scoped memory for tpu_custom_call.1']
    #allocation13 [shape = 'u8[65536]{0}', space=vmem, size = 0x10000, scoped, tag = 'input window, operand 6, single buffered']
    #allocation14 [shape = 'u8[262144]{0}', space=vmem, size = 0x40000, scoped, tag = 'input window, operand 10, single buffered']
    #allocation15 [shape = 's32[1]{0}', space=sflag, size = 0x4, scoped, tag = 'scoped memory for tpu_custom_call.1']
    #allocation16 [shape = 'u8[262144]{0}', space=vmem, size = 0x40000, scoped, tag = 'input window, operand 12, single buffered']
    #allocation17 [shape = 'u8[131072]{0}', space=vmem, size = 0x20000, scoped, tag = 'output window, operand 0']
    %21 = vsyncpa [#allocation6], 0
    %s22 = scalar_lea.sflag [#allocation6], 1
    %23 = vsyncpa %s22, 0
    %24 = vsyncpa [#allocation9], 0
    %s25 = scalar_lea.sflag [#allocation9], 1
    %26 = vsyncpa %s25, 0
    %27 = vsyncpa [#allocation12], 0
    %28 = vsyncpa [#allocation15], 0
    %29 = vsyncpa [#allocation7], 0
    %s30 = scalar_lea.sflag [#allocation7], 1
    %31 = vsyncpa %s30, 0
    loop: start=0, step=1, limit=6
    $region2: #{tpu_custom_call.1} parent=1 // loop_pre_header
      _
    $region3: #{tpu_custom_call.1} parent=1 // loop_header
      %s33 = sphi 0, %s37
      %p34 = scmp.ge.s32.totalorder %s33, 6
      %s40 = sphi 0, %s52
      %s41 = sphi 0, %s48
      %s42 = sphi 0, %s40
      %s43 = sphi 0, %s41
      %s44 = sphi 0, %s42
      %s45 = sphi 0, %s43
      %s55 = sphi 0, %s57
      %s58 = sphi 0, %s55
      %s59 = sphi 0, %s58
      %s75 = sphi 0, %s59
      %s81 = sphi 0, %s83
      %s84 = sphi 0, %s81
      %s85 = sphi 0, %s84
      %s101 = sphi 0, %s85
      %s105 = sphi 0, %s105
      %s107 = sphi 0, %s105
      %s108 = sphi 0, %s107
      %s122 = sphi 0, %s108
      %s126 = sphi 0, %s126
      %s128 = sphi 0, %s126
      %s129 = sphi 0, %s128
      %s143 = sphi 0, %s129
      %s147 = sphi 0, %s147
      %s149 = sphi 0, %s147
      %s150 = sphi 0, %s149
      %s164 = sphi 0, %s150
      %s168 = sphi 0, %s168
      %s170 = sphi 0, %s168
      %s171 = sphi 0, %s170
      %s185 = sphi 0, %s171
      %s189 = sphi 0, %s189
      %s191 = sphi 0, %s189
      %s192 = sphi 0, %s191
      %s206 = sphi 0, %s192
      %s210 = sphi 0, %s210
      %s212 = sphi 0, %s210
      %s213 = sphi 0, %s212
      %s227 = sphi 0, %s213
      %s231 = sphi 0, %s231
      %s233 = sphi 0, %s231
      %s234 = sphi 0, %s233
      %s248 = sphi 0, %s234
      %s252 = sphi 0, %s252
      %s254 = sphi 0, %s252
      %s255 = sphi 0, %s254
      %s269 = sphi 0, %s255
      %s273 = sphi 0, %s273
      %s275 = sphi 0, %s273
      %s276 = sphi 0, %s275
      %s290 = sphi 0, %s276
      %s294 = sphi 0, %s294
      %s296 = sphi 0, %s294
      %s297 = sphi 0, %s296
      %s311 = sphi 0, %s297
      %s315 = sphi 0, %s315
      %s317 = sphi 0, %s315
      %s318 = sphi 0, %s317
      %s332 = sphi 0, %s318
      %s336 = sphi 0, %s336
      %s338 = sphi 0, %s336
      %s339 = sphi 0, %s338
      %s353 = sphi 0, %s339
      %s357 = sphi 0, %s357
      %s359 = sphi 0, %s357
      %s360 = sphi 0, %s359
      %s374 = sphi 0, %s360
      %s378 = sphi 0, %s378
      %s380 = sphi 0, %s378
      %s381 = sphi 0, %s380
      %s395 = sphi 0, %s381
      %s403 = sphi 0, %s405
      %s406 = sphi 0, %s403
      %s407 = sphi 0, %s406
      %s423 = sphi 0, %s407
    $region4: #{tpu_custom_call.1} parent=1 // loop_header_branch
      %36 = sbr.rel (%p34) target = $region8
    $region5: #{tpu_custom_call.1} parent=1 // loop_body
      %s38 = ssub.s32 %s33, 1
      %s39 = ssub.s32 %s33, 2
      %s46 = sadd.s32 1, %s41
      %p47 = scmp.ge.s32.totalorder %s46, 2
      %s48 = scalar_select %p47, 0, %s46
      %s49 = sadd.s32 1, %s40
      %s50 = scalar_select %p47, %s49, %s40
      %p51 = scmp.ge.s32.totalorder %s50, 2
      %s52 = scalar_select %p51, 0, %s50
      %s53 = ssub.s32 %s40, %s52
      %p54 = scmp.eq.s32.totalorder %s53, 0
      %s56 = sadd.s32 %s55, 1
      %s57 = scalar_select %p54, %s55, %s56
      %p60 = pneg %p54
      %p61 = scmp.eq.s32.totalorder %s33, 3
      %p62 = por %p60, %p61
      %p63 = scmp.ne.s32.totalorder %s55, %s58
      %p64 = scmp.eq.s32.totalorder %s33, 0
      %p65 = por %p63, %p64
      %p66 = scmp.ne.s32.totalorder %s55, %s58
      %p67 = scmp.eq.s32.totalorder %s38, 3
      %p68 = por %p66, %p67
      %p69 = scmp.ne.s32.totalorder %s58, %s59
      %p70 = scmp.eq.s32.totalorder %s38, 0
      %p71 = por %p69, %p70
      %p72 = scmp.ne.s32.totalorder %s58, %s59
      %p73 = scmp.eq.s32.totalorder %s39, 3
      %p74 = por %p72, %p73
      %p76 = scmp.ne.s32.totalorder %s59, %s75
      %p77 = scmp.eq.s32.totalorder %s39, 0
      %p78 = por %p76, %p77
      %s79 = ssub.s32 %s40, %s52
      %p80 = scmp.eq.s32.totalorder %s79, 0
      %s82 = sadd.s32 %s81, 1
      %s83 = scalar_select %p80, %s81, %s82
      %p86 = pneg %p80
      %p87 = scmp.eq.s32.totalorder %s33, 3
      %p88 = por %p86, %p87
      %p89 = scmp.ne.s32.totalorder %s81, %s84
      %p90 = scmp.eq.s32.totalorder %s33, 0
      %p91 = por %p89, %p90
      %p92 = scmp.ne.s32.totalorder %s81, %s84
      %p93 = scmp.eq.s32.totalorder %s38, 3
      %p94 = por %p92, %p93
      %p95 = scmp.ne.s32.totalorder %s84, %s85
      %p96 = scmp.eq.s32.totalorder %s38, 0
      %p97 = por %p95, %p96
      %p98 = scmp.ne.s32.totalorder %s84, %s85
      %p99 = scmp.eq.s32.totalorder %s39, 3
      %p100 = por %p98, %p99
      %p102 = scmp.ne.s32.totalorder %s85, %s101
      %p103 = scmp.eq.s32.totalorder %s39, 0
      %p104 = por %p102, %p103
      %s106 = sadd.s32 %s105, 1
      %p109 = scmp.eq.s32.totalorder %s33, 3
      %p110 = scmp.ne.s32.totalorder %s105, %s107
      %p111 = scmp.eq.s32.totalorder %s33, 0
      %p112 = por %p110, %p111
      %p113 = scmp.ne.s32.totalorder %s105, %s107
      %p114 = scmp.eq.s32.totalorder %s38, 3
      %p115 = por %p113, %p114
      %p116 = scmp.ne.s32.totalorder %s107, %s108
      %p117 = scmp.eq.s32.totalorder %s38, 0
      %p118 = por %p116, %p117
      %p119 = scmp.ne.s32.totalorder %s107, %s108
      %p120 = scmp.eq.s32.totalorder %s39, 3
      %p121 = por %p119, %p120
      %p123 = scmp.ne.s32.totalorder %s108, %s122
      %p124 = scmp.eq.s32.totalorder %s39, 0
      %p125 = por %p123, %p124
      %s127 = sadd.s32 %s126, 1
      %p130 = scmp.eq.s32.totalorder %s33, 3
      %p131 = scmp.ne.s32.totalorder %s126, %s128
      %p132 = scmp.eq.s32.totalorder %s33, 0
      %p133 = por %p131, %p132
      %p134 = scmp.ne.s32.totalorder %s126, %s128
      %p135 = scmp.eq.s32.totalorder %s38, 3
      %p136 = por %p134, %p135
      %p137 = scmp.ne.s32.totalorder %s128, %s129
      %p138 = scmp.eq.s32.totalorder %s38, 0
      %p139 = por %p137, %p138
      %p140 = scmp.ne.s32.totalorder %s128, %s129
      %p141 = scmp.eq.s32.totalorder %s39, 3
      %p142 = por %p140, %p141
      %p144 = scmp.ne.s32.totalorder %s129, %s143
      %p145 = scmp.eq.s32.totalorder %s39, 0
      %p146 = por %p144, %p145
      %s148 = sadd.s32 %s147, 1
      %p151 = scmp.eq.s32.totalorder %s33, 3
      %p152 = scmp.ne.s32.totalorder %s147, %s149
      %p153 = scmp.eq.s32.totalorder %s33, 0
      %p154 = por %p152, %p153
      %p155 = scmp.ne.s32.totalorder %s147, %s149
      %p156 = scmp.eq.s32.totalorder %s38, 3
      %p157 = por %p155, %p156
      %p158 = scmp.ne.s32.totalorder %s149, %s150
      %p159 = scmp.eq.s32.totalorder %s38, 0
      %p160 = por %p158, %p159
      %p161 = scmp.ne.s32.totalorder %s149, %s150
      %p162 = scmp.eq.s32.totalorder %s39, 3
      %p163 = por %p161, %p162
      %p165 = scmp.ne.s32.totalorder %s150, %s164
      %p166 = scmp.eq.s32.totalorder %s39, 0
      %p167 = por %p165, %p166
      %s169 = sadd.s32 %s168, 1
      %p172 = scmp.eq.s32.totalorder %s33, 3
      %p173 = scmp.ne.s32.totalorder %s168, %s170
      %p174 = scmp.eq.s32.totalorder %s33, 0
      %p175 = por %p173, %p174
      %p176 = scmp.ne.s32.totalorder %s168, %s170
      %p177 = scmp.eq.s32.totalorder %s38, 3
      %p178 = por %p176, %p177
      %p179 = scmp.ne.s32.totalorder %s170, %s171
      %p180 = scmp.eq.s32.totalorder %s38, 0
      %p181 = por %p179, %p180
      %p182 = scmp.ne.s32.totalorder %s170, %s171
      %p183 = scmp.eq.s32.totalorder %s39, 3
      %p184 = por %p182, %p183
      %p186 = scmp.ne.s32.totalorder %s171, %s185
      %p187 = scmp.eq.s32.totalorder %s39, 0
      %p188 = por %p186, %p187
      %s190 = sadd.s32 %s189, 1
      %p193 = scmp.eq.s32.totalorder %s33, 3
      %p194 = scmp.ne.s32.totalorder %s189, %s191
      %p195 = scmp.eq.s32.totalorder %s33, 0
      %p196 = por %p194, %p195
      %p197 = scmp.ne.s32.totalorder %s189, %s191
      %p198 = scmp.eq.s32.totalorder %s38, 3
      %p199 = por %p197, %p198
      %p200 = scmp.ne.s32.totalorder %s191, %s192
      %p201 = scmp.eq.s32.totalorder %s38, 0
      %p202 = por %p200, %p201
      %p203 = scmp.ne.s32.totalorder %s191, %s192
      %p204 = scmp.eq.s32.totalorder %s39, 3
      %p205 = por %p203, %p204
      %p207 = scmp.ne.s32.totalorder %s192, %s206
      %p208 = scmp.eq.s32.totalorder %s39, 0
      %p209 = por %p207, %p208
      %s211 = sadd.s32 %s210, 1
      %p214 = scmp.eq.s32.totalorder %s33, 3
      %p215 = scmp.ne.s32.totalorder %s210, %s212
      %p216 = scmp.eq.s32.totalorder %s33, 0
      %p217 = por %p215, %p216
      %p218 = scmp.ne.s32.totalorder %s210, %s212
      %p219 = scmp.eq.s32.totalorder %s38, 3
      %p220 = por %p218, %p219
      %p221 = scmp.ne.s32.totalorder %s212, %s213
      %p222 = scmp.eq.s32.totalorder %s38, 0
      %p223 = por %p221, %p222
      %p224 = scmp.ne.s32.totalorder %s212, %s213
      %p225 = scmp.eq.s32.totalorder %s39, 3
      %p226 = por %p224, %p225
      %p228 = scmp.ne.s32.totalorder %s213, %s227
      %p229 = scmp.eq.s32.totalorder %s39, 0
      %p230 = por %p228, %p229
      %s232 = sadd.s32 %s231, 1
      %p235 = scmp.eq.s32.totalorder %s33, 3
      %p236 = scmp.ne.s32.totalorder %s231, %s233
      %p237 = scmp.eq.s32.totalorder %s33, 0
      %p238 = por %p236, %p237
      %p239 = scmp.ne.s32.totalorder %s231, %s233
      %p240 = scmp.eq.s32.totalorder %s38, 3
      %p241 = por %p239, %p240
      %p242 = scmp.ne.s32.totalorder %s233, %s234
      %p243 = scmp.eq.s32.totalorder %s38, 0
      %p244 = por %p242, %p243
      %p245 = scmp.ne.s32.totalorder %s233, %s234
      %p246 = scmp.eq.s32.totalorder %s39, 3
      %p247 = por %p245, %p246
      %p249 = scmp.ne.s32.totalorder %s234, %s248
      %p250 = scmp.eq.s32.totalorder %s39, 0
      %p251 = por %p249, %p250
      %s253 = sadd.s32 %s252, 1
      %p256 = scmp.eq.s32.totalorder %s33, 3
      %p257 = scmp.ne.s32.totalorder %s252, %s254
      %p258 = scmp.eq.s32.totalorder %s33, 0
      %p259 = por %p257, %p258
      %p260 = scmp.ne.s32.totalorder %s252, %s254
      %p261 = scmp.eq.s32.totalorder %s38, 3
      %p262 = por %p260, %p261
      %p263 = scmp.ne.s32.totalorder %s254, %s255
      %p264 = scmp.eq.s32.totalorder %s38, 0
      %p265 = por %p263, %p264
      %p266 = scmp.ne.s32.totalorder %s254, %s255
      %p267 = scmp.eq.s32.totalorder %s39, 3
      %p268 = por %p266, %p267
      %p270 = scmp.ne.s32.totalorder %s255, %s269
      %p271 = scmp.eq.s32.totalorder %s39, 0
      %p272 = por %p270, %p271
      %s274 = sadd.s32 %s273, 1
      %p277 = scmp.eq.s32.totalorder %s33, 3
      %p278 = scmp.ne.s32.totalorder %s273, %s275
      %p279 = scmp.eq.s32.totalorder %s33, 0
      %p280 = por %p278, %p279
      %p281 = scmp.ne.s32.totalorder %s273, %s275
      %p282 = scmp.eq.s32.totalorder %s38, 3
      %p283 = por %p281, %p282
      %p284 = scmp.ne.s32.totalorder %s275, %s276
      %p285 = scmp.eq.s32.totalorder %s38, 0
      %p286 = por %p284, %p285
      %p287 = scmp.ne.s32.totalorder %s275, %s276
      %p288 = scmp.eq.s32.totalorder %s39, 3
      %p289 = por %p287, %p288
      %p291 = scmp.ne.s32.totalorder %s276, %s290
      %p292 = scmp.eq.s32.totalorder %s39, 0
      %p293 = por %p291, %p292
      %s295 = sadd.s32 %s294, 1
      %p298 = scmp.eq.s32.totalorder %s33, 3
      %p299 = scmp.ne.s32.totalorder %s294, %s296
      %p300 = scmp.eq.s32.totalorder %s33, 0
      %p301 = por %p299, %p300
      %p302 = scmp.ne.s32.totalorder %s294, %s296
      %p303 = scmp.eq.s32.totalorder %s38, 3
      %p304 = por %p302, %p303
      %p305 = scmp.ne.s32.totalorder %s296, %s297
      %p306 = scmp.eq.s32.totalorder %s38, 0
      %p307 = por %p305, %p306
      %p308 = scmp.ne.s32.totalorder %s296, %s297
      %p309 = scmp.eq.s32.totalorder %s39, 3
      %p310 = por %p308, %p309
      %p312 = scmp.ne.s32.totalorder %s297, %s311
      %p313 = scmp.eq.s32.totalorder %s39, 0
      %p314 = por %p312, %p313
      %s316 = sadd.s32 %s315, 1
      %p319 = scmp.eq.s32.totalorder %s33, 3
      %p320 = scmp.ne.s32.totalorder %s315, %s317
      %p321 = scmp.eq.s32.totalorder %s33, 0
      %p322 = por %p320, %p321
      %p323 = scmp.ne.s32.totalorder %s315, %s317
      %p324 = scmp.eq.s32.totalorder %s38, 3
      %p325 = por %p323, %p324
      %p326 = scmp.ne.s32.totalorder %s317, %s318
      %p327 = scmp.eq.s32.totalorder %s38, 0
      %p328 = por %p326, %p327
      %p329 = scmp.ne.s32.totalorder %s317, %s318
      %p330 = scmp.eq.s32.totalorder %s39, 3
      %p331 = por %p329, %p330
      %p333 = scmp.ne.s32.totalorder %s318, %s332
      %p334 = scmp.eq.s32.totalorder %s39, 0
      %p335 = por %p333, %p334
      %s337 = sadd.s32 %s336, 1
      %p340 = scmp.eq.s32.totalorder %s33, 3
      %p341 = scmp.ne.s32.totalorder %s336, %s338
      %p342 = scmp.eq.s32.totalorder %s33, 0
      %p343 = por %p341, %p342
      %p344 = scmp.ne.s32.totalorder %s336, %s338
      %p345 = scmp.eq.s32.totalorder %s38, 3
      %p346 = por %p344, %p345
      %p347 = scmp.ne.s32.totalorder %s338, %s339
      %p348 = scmp.eq.s32.totalorder %s38, 0
      %p349 = por %p347, %p348
      %p350 = scmp.ne.s32.totalorder %s338, %s339
      %p351 = scmp.eq.s32.totalorder %s39, 3
      %p352 = por %p350, %p351
      %p354 = scmp.ne.s32.totalorder %s339, %s353
      %p355 = scmp.eq.s32.totalorder %s39, 0
      %p356 = por %p354, %p355
      %s358 = sadd.s32 %s357, 1
      %p361 = scmp.eq.s32.totalorder %s33, 3
      %p362 = scmp.ne.s32.totalorder %s357, %s359
      %p363 = scmp.eq.s32.totalorder %s33, 0
      %p364 = por %p362, %p363
      %p365 = scmp.ne.s32.totalorder %s357, %s359
      %p366 = scmp.eq.s32.totalorder %s38, 3
      %p367 = por %p365, %p366
      %p368 = scmp.ne.s32.totalorder %s359, %s360
      %p369 = scmp.eq.s32.totalorder %s38, 0
      %p370 = por %p368, %p369
      %p371 = scmp.ne.s32.totalorder %s359, %s360
      %p372 = scmp.eq.s32.totalorder %s39, 3
      %p373 = por %p371, %p372
      %p375 = scmp.ne.s32.totalorder %s360, %s374
      %p376 = scmp.eq.s32.totalorder %s39, 0
      %p377 = por %p375, %p376
      %s379 = sadd.s32 %s378, 1
      %p382 = scmp.eq.s32.totalorder %s33, 3
      %p383 = scmp.ne.s32.totalorder %s378, %s380
      %p384 = scmp.eq.s32.totalorder %s33, 0
      %p385 = por %p383, %p384
      %p386 = scmp.ne.s32.totalorder %s378, %s380
      %p387 = scmp.eq.s32.totalorder %s38, 3
      %p388 = por %p386, %p387
      %p389 = scmp.ne.s32.totalorder %s380, %s381
      %p390 = scmp.eq.s32.totalorder %s38, 0
      %p391 = por %p389, %p390
      %p392 = scmp.ne.s32.totalorder %s380, %s381
      %p393 = scmp.eq.s32.totalorder %s39, 3
      %p394 = por %p392, %p393
      %p396 = scmp.ne.s32.totalorder %s381, %s395
      %p397 = scmp.eq.s32.totalorder %s39, 0
      %p398 = por %p396, %p397
      %s399 = ssub.s32 %s40, %s52
      %s400 = ssub.s32 %s41, %s48
      %s401 = sor.u32 %s399, %s400
      %p402 = scmp.eq.s32.totalorder %s401, 0
      %s404 = sadd.s32 %s403, 1
      %s405 = scalar_select %p402, %s403, %s404
      %p408 = pneg %p402
      %p409 = scmp.eq.s32.totalorder %s33, 3
      %p410 = por %p408, %p409
      %p411 = scmp.ne.s32.totalorder %s403, %s406
      %p412 = scmp.eq.s32.totalorder %s33, 0
      %p413 = por %p411, %p412
      %p414 = scmp.ne.s32.totalorder %s403, %s406
      %p415 = scmp.eq.s32.totalorder %s38, 3
      %p416 = por %p414, %p415
      %p417 = scmp.ne.s32.totalorder %s406, %s407
      %p418 = scmp.eq.s32.totalorder %s38, 0
      %p419 = por %p417, %p418
      %p420 = scmp.ne.s32.totalorder %s406, %s407
      %p421 = scmp.eq.s32.totalorder %s39, 3
      %p422 = por %p420, %p421
      %p424 = scmp.ne.s32.totalorder %s407, %s423
      %p425 = scmp.eq.s32.totalorder %s39, 0
      %p426 = por %p424, %p425
      %p427 = scmp.le.s32.totalorder 1, %s33
      %p428 = scmp.lt.s32.totalorder %s33, 5
      %p429 = pnand %p427, %p428
      %p430 = pneg %p429
      // Predicated region
      $region9: #{tpu_custom_call.1} parent=5 // pred_check
        _
      $region10: #{tpu_custom_call.1} parent=5 // pred_check_branch
        %432 = sbr.rel (%p429) target = $region12
      $region11: #{tpu_custom_call.1} parent=5 // pred_region
        %s433 = ssub.s32 %s33, 1
        // Predicated region
        $region13: #{tpu_custom_call.1} parent=11 // pred_check
          %p434 = pneg %p118
        $region14: #{tpu_custom_call.1} parent=11 // pred_check_branch
          %436 = sbr.rel (%p434) target = $region16
        $region15: #{tpu_custom_call.1} parent=11 // pred_region
          %s438 = ssub.s32 2048, 2048
          %439 = vsyncadd [#allocation9], %s438
          %s440 = sshll.u32 [#allocation10], 4
          %s441 = int_to_ptr.vmem [resolvable:$true] %s440
          %446 = dma.hbm_to_vmem [thread:$0]  %s2, 2048, %s441, [#allocation9], 128, 128, 8
        $region16: #{tpu_custom_call.1} parent=11 // pred_fallthru
          _
        // Predicated region
        $region17: #{tpu_custom_call.1} parent=11 // pred_check
          %p447 = pneg %p139
        $region18: #{tpu_custom_call.1} parent=11 // pred_check_branch
          %449 = sbr.rel (%p447) target = $region20
        $region19: #{tpu_custom_call.1} parent=11 // pred_region
          _
        $region20: #{tpu_custom_call.1} parent=11 // pred_fallthru
          _
        // Predicated region
        $region21: #{tpu_custom_call.1} parent=11 // pred_check
          %p450 = pneg %p160
        $region22: #{tpu_custom_call.1} parent=11 // pred_check_branch
          %452 = sbr.rel (%p450) target = $region24
        $region23: #{tpu_custom_call.1} parent=11 // pred_region
          %s454 = ssub.s32 4096, 4096
          %455 = vsyncadd [#allocation12], %s454
          %s456 = sshll.u32 [#allocation11], 4
          %s457 = int_to_ptr.vmem [resolvable:$true] %s456
          %462 = dma.hbm_to_vmem [thread:$0]  %s4, 4096, %s457, [#allocation12], 256, 256, 16
        $region24: #{tpu_custom_call.1} parent=11 // pred_fallthru
          _
        // Predicated region
        $region25: #{tpu_custom_call.1} parent=11 // pred_check
          %p463 = pneg %p181
        $region26: #{tpu_custom_call.1} parent=11 // pred_check_branch
          %465 = sbr.rel (%p463) target = $region28
        $region27: #{tpu_custom_call.1} parent=11 // pred_region
          _
        $region28: #{tpu_custom_call.1} parent=11 // pred_fallthru
          _
        // Predicated region
        $region29: #{tpu_custom_call.1} parent=11 // pred_check
          %p466 = pneg %p202
        $region30: #{tpu_custom_call.1} parent=11 // pred_check_branch
          %468 = sbr.rel (%p466) target = $region32
        $region31: #{tpu_custom_call.1} parent=11 // pred_region
          %s470 = ssub.s32 2048, 2048
          %471 = vsyncadd [#allocation12], %s470
          %s472 = sshll.u32 [#allocation13], 4
          %s473 = int_to_ptr.vmem [resolvable:$true] %s472
          %478 = dma.hbm_to_vmem [thread:$0]  %s6, 2048, %s473, [#allocation12], 128, 128, 8
        $region32: #{tpu_custom_call.1} parent=11 // pred_fallthru
          _
        // Predicated region
        $region33: #{tpu_custom_call.1} parent=11 // pred_check
          %p479 = pneg %p223
        $region34: #{tpu_custom_call.1} parent=11 // pred_check_branch
          %481 = sbr.rel (%p479) target = $region36
        $region35: #{tpu_custom_call.1} parent=11 // pred_region
          _
        $region36: #{tpu_custom_call.1} parent=11 // pred_fallthru
          _
        // Predicated region
        $region37: #{tpu_custom_call.1} parent=11 // pred_check
          %p482 = pneg %p244
        $region38: #{tpu_custom_call.1} parent=11 // pred_check_branch
          %484 = sbr.rel (%p482) target = $region40
        $region39: #{tpu_custom_call.1} parent=11 // pred_region
          _
        $region40: #{tpu_custom_call.1} parent=11 // pred_fallthru
          _
        // Predicated region
        $region41: #{tpu_custom_call.1} parent=11 // pred_check
          %p485 = pneg %p265
        $region42: #{tpu_custom_call.1} parent=11 // pred_check_branch
          %487 = sbr.rel (%p485) target = $region44
        $region43: #{tpu_custom_call.1} parent=11 // pred_region
          _
        $region44: #{tpu_custom_call.1} parent=11 // pred_fallthru
          _
        // Predicated region
        $region45: #{tpu_custom_call.1} parent=11 // pred_check
          %p488 = pneg %p286
        $region46: #{tpu_custom_call.1} parent=11 // pred_check_branch
          %490 = sbr.rel (%p488) target = $region48
        $region47: #{tpu_custom_call.1} parent=11 // pred_region
          %s492 = ssub.s32 8192, 8192
          %493 = vsyncadd [#allocation15], %s492
          %s494 = sshll.u32 [#allocation14], 4
          %s495 = int_to_ptr.vmem [resolvable:$true] %s494
          %500 = dma.hbm_to_vmem [thread:$0]  %s10, 8192, %s495, [#allocation15], 512, 512, 32
        $region48: #{tpu_custom_call.1} parent=11 // pred_fallthru
          _
        // Predicated region
        $region49: #{tpu_custom_call.1} parent=11 // pred_check
          %p501 = pneg %p307
        $region50: #{tpu_custom_call.1} parent=11 // pred_check_branch
          %503 = sbr.rel (%p501) target = $region52
        $region51: #{tpu_custom_call.1} parent=11 // pred_region
          _
        $region52: #{tpu_custom_call.1} parent=11 // pred_fallthru
          _
        // Predicated region
        $region53: #{tpu_custom_call.1} parent=11 // pred_check
          %p504 = pneg %p328
        $region54: #{tpu_custom_call.1} parent=11 // pred_check_branch
          %506 = sbr.rel (%p504) target = $region56
        $region55: #{tpu_custom_call.1} parent=11 // pred_region
          %s508 = ssub.s32 8192, 8192
          %509 = vsyncadd [#allocation15], %s508
          %s510 = sshll.u32 [#allocation16], 4
          %s511 = int_to_ptr.vmem [resolvable:$true] %s510
          %516 = dma.hbm_to_vmem [thread:$0]  %s12, 8192, %s511, [#allocation15], 128, 128, 8
        $region56: #{tpu_custom_call.1} parent=11 // pred_fallthru
          _
        // Predicated region
        $region57: #{tpu_custom_call.1} parent=11 // pred_check
          %p517 = pneg %p349
        $region58: #{tpu_custom_call.1} parent=11 // pred_check_branch
          %519 = sbr.rel (%p517) target = $region60
        $region59: #{tpu_custom_call.1} parent=11 // pred_region
          _
        $region60: #{tpu_custom_call.1} parent=11 // pred_fallthru
          _
        // Predicated region
        $region61: #{tpu_custom_call.1} parent=11 // pred_check
          %p520 = pneg %p370
        $region62: #{tpu_custom_call.1} parent=11 // pred_check_branch
          %522 = sbr.rel (%p520) target = $region64
        $region63: #{tpu_custom_call.1} parent=11 // pred_region
          _
        $region64: #{tpu_custom_call.1} parent=11 // pred_fallthru
          _
        // Predicated region
        $region65: #{tpu_custom_call.1} parent=11 // pred_check
          %p523 = pneg %p391
        $region66: #{tpu_custom_call.1} parent=11 // pred_check_branch
          %525 = sbr.rel (%p523) target = $region68
        $region67: #{tpu_custom_call.1} parent=11 // pred_region
          _
        $region68: #{tpu_custom_call.1} parent=11 // pred_fallthru
          _
      $region12: #{tpu_custom_call.1} parent=5 // pred_fallthru
        _
      %p526 = scmp.lt.s32.totalorder %s33, 4
      // Predicated region
      $region69: #{tpu_custom_call.1} parent=5 // pred_check
        %p527 = pneg %p526
      $region70: #{tpu_custom_call.1} parent=5 // pred_check_branch
        %529 = sbr.rel (%p527) target = $region72
      $region71: #{tpu_custom_call.1} parent=5 // pred_region
        // Predicated region
        $region73: #{tpu_custom_call.1} parent=71 // pred_check
          %p530 = pneg %p65
        $region74: #{tpu_custom_call.1} parent=71 // pred_check_branch
          %532 = sbr.rel (%p530) target = $region76
        $region75: #{tpu_custom_call.1} parent=71 // pred_region
          %s533 = sand.u32 %s55, 1
          %s534 = scalar_lea.sflag [#allocation6], %s533
          %s535 = sand.u32 %s55, 1
          %s536 = smul.addr %s535, 256
          %s537 = scalar_lea.vmem [#allocation5], %s536
          %s539 = ssub.s32 4096, 4096
          %540 = vsyncadd %s534, %s539
          %s541 = smul.addr %s40, 32
          %s542 = smul.addr %s541, 128
          %s543 = scalar_lea.hbm %s0, %s542
          %s544 = sshll.u32 %s537, 4
          %s545 = int_to_ptr.vmem [resolvable:$true] %s544
          %550 = dma.hbm_to_vmem [thread:$0]  %s543, 4096, %s545, %s534, 128, 128, 8
        $region76: #{tpu_custom_call.1} parent=71 // pred_fallthru
          _
        // Predicated region
        $region77: #{tpu_custom_call.1} parent=71 // pred_check
          %p551 = pneg %p91
        $region78: #{tpu_custom_call.1} parent=71 // pred_check_branch
          %553 = sbr.rel (%p551) target = $region80
        $region79: #{tpu_custom_call.1} parent=71 // pred_region
          %s554 = sand.u32 %s33, 1
          %s555 = scalar_lea.sflag [#allocation9], %s554
          %s556 = sand.u32 %s81, 1
          %s557 = smul.addr %s556, 2
          %s558 = scalar_lea.vmem [#allocation8], %s557
          %s560 = ssub.s32 32, 32
          %561 = vsyncadd %s555, %s560
          %s562 = smul.addr %s40, 2
          %s563 = smul.addr %s562, 16
          %s564 = scalar_lea.hbm %s1, %s563
          %s566 = sshll.u32 %s558, 4
          %s567 = int_to_ptr.vmem [resolvable:$true] %s566
          %569 = dma.hbm_to_vmem [thread:$0]  %s564, 32, %s567, %s555
        $region80: #{tpu_custom_call.1} parent=71 // pred_fallthru
          _
      $region72: #{tpu_custom_call.1} parent=5 // pred_fallthru
        _
      %p570 = scmp.le.s32.totalorder 1, %s33
      %p571 = scmp.lt.s32.totalorder %s33, 5
      %p572 = pnand %p570, %p571
      %p573 = pneg %p572
      // Predicated region
      $region81: #{tpu_custom_call.1} parent=5 // pred_check
        _
      $region82: #{tpu_custom_call.1} parent=5 // pred_check_branch
        %575 = sbr.rel (%p572) target = $region84
      $region83: #{tpu_custom_call.1} parent=5 // pred_region
        %s576 = ssub.s32 %s33, 1
        %s577 = sand.u32 %s58, 1
        %s578 = scalar_lea.sflag [#allocation6], %s577
        %s579 = sand.u32 %s58, 1
        %s580 = smul.addr %s579, 256
        %s581 = scalar_lea.vmem [#allocation5], %s580
        // Predicated region
        $region85: #{tpu_custom_call.1} parent=83 // pred_check
          %p582 = pneg %p71
        $region86: #{tpu_custom_call.1} parent=83 // pred_check_branch
          %584 = sbr.rel (%p582) target = $region88
        $region87: #{tpu_custom_call.1} parent=83 // pred_region
          %585 = dma.done %s578, 4096
        $region88: #{tpu_custom_call.1} parent=83 // pred_fallthru
          _
        %s586 = sand.u32 %s38, 1
        %s587 = scalar_lea.sflag [#allocation9], %s586
        %s588 = sand.u32 %s84, 1
        %s589 = smul.addr %s588, 2
        %s590 = scalar_lea.vmem [#allocation8], %s589
        // Predicated region
        $region89: #{tpu_custom_call.1} parent=83 // pred_check
          %p591 = pneg %p97
        $region90: #{tpu_custom_call.1} parent=83 // pred_check_branch
          %593 = sbr.rel (%p591) target = $region92
        $region91: #{tpu_custom_call.1} parent=83 // pred_region
          %594 = dma.done %s587, 32
        $region92: #{tpu_custom_call.1} parent=83 // pred_fallthru
          _
        // Predicated region
        $region93: #{tpu_custom_call.1} parent=83 // pred_check
          %p595 = pneg %p118
        $region94: #{tpu_custom_call.1} parent=83 // pred_check_branch
          %597 = sbr.rel (%p595) target = $region96
        $region95: #{tpu_custom_call.1} parent=83 // pred_region
          %598 = dma.done [#allocation9], 2048
        $region96: #{tpu_custom_call.1} parent=83 // pred_fallthru
          _
        // Predicated region
        $region97: #{tpu_custom_call.1} parent=83 // pred_check
          %p599 = pneg %p160
        $region98: #{tpu_custom_call.1} parent=83 // pred_check_branch
          %601 = sbr.rel (%p599) target = $region100
        $region99: #{tpu_custom_call.1} parent=83 // pred_region
          %602 = dma.done [#allocation12], 4096
        $region100: #{tpu_custom_call.1} parent=83 // pred_fallthru
          _
        // Predicated region
        $region101: #{tpu_custom_call.1} parent=83 // pred_check
          %p603 = pneg %p202
        $region102: #{tpu_custom_call.1} parent=83 // pred_check_branch
          %605 = sbr.rel (%p603) target = $region104
        $region103: #{tpu_custom_call.1} parent=83 // pred_region
          %606 = dma.done [#allocation12], 2048
        $region104: #{tpu_custom_call.1} parent=83 // pred_fallthru
          _
        // Predicated region
        $region105: #{tpu_custom_call.1} parent=83 // pred_check
          %p607 = pneg %p286
        $region106: #{tpu_custom_call.1} parent=83 // pred_check_branch
          %609 = sbr.rel (%p607) target = $region108
        $region107: #{tpu_custom_call.1} parent=83 // pred_region
          %610 = dma.done [#allocation15], 8192
        $region108: #{tpu_custom_call.1} parent=83 // pred_fallthru
          _
        // Predicated region
        $region109: #{tpu_custom_call.1} parent=83 // pred_check
          %p611 = pneg %p328
        $region110: #{tpu_custom_call.1} parent=83 // pred_check_branch
          %613 = sbr.rel (%p611) target = $region112
        $region111: #{tpu_custom_call.1} parent=83 // pred_region
          %614 = dma.done [#allocation15], 8192
        $region112: #{tpu_custom_call.1} parent=83 // pred_fallthru
          _
        %s615 = sand.u32 %s58, 1
        %s616 = scalar_lea.sflag [#allocation6], %s615
        %s617 = sand.u32 %s58, 1
        %s618 = smul.addr %s617, 256
        %s619 = scalar_lea.vmem [#allocation5], %s618
        %p620 = pneg %p71
        %p621 = pneg %p68
        %s622 = sand.u32 %s38, 1
        %s623 = scalar_lea.sflag [#allocation9], %s622
        %s624 = sand.u32 %s84, 1
        %s625 = smul.addr %s624, 2
        %s626 = scalar_lea.vmem [#allocation8], %s625
        %p627 = pneg %p97
        %p628 = pneg %p94
        %p629 = pneg %p118
        %p630 = pneg %p115
        %p631 = pneg %p139
        %p632 = pneg %p136
        %p633 = pneg %p160
        %p634 = pneg %p157
        %p635 = pneg %p181
        %p636 = pneg %p178
        %p637 = pneg %p202
        %p638 = pneg %p199
        %p639 = pneg %p223
        %p640 = pneg %p220
        %p641 = pneg %p244
        %p642 = pneg %p241
        %p643 = pneg %p265
        %p644 = pneg %p262
        %p645 = pneg %p286
        %p646 = pneg %p283
        %p647 = pneg %p307
        %p648 = pneg %p304
        %p649 = pneg %p328
        %p650 = pneg %p325
        %p651 = pneg %p349
        %p652 = pneg %p346
        %p653 = pneg %p370
        %p654 = pneg %p367
        %p655 = pneg %p391
        %p656 = pneg %p388
        %p657 = pneg %p419
        %p658 = pneg %p416
        %s659 = sand.u32 %s406, 1
        %s660 = scalar_lea.sflag [#allocation7], %s659
        %s661 = sand.u32 %s406, 1
        %s662 = smul.addr %s661, 128
        %s663 = scalar_lea.vmem [#allocation17], %s662
        %s664 = smul.u32 16, %s43
        %p665 = scmp.eq.s32.totalorder %s43, 0
        // Predicated region
        $region113: #{tpu_custom_call.1} parent=83 // pred_check
          %p666 = pneg %p665
        $region114: #{tpu_custom_call.1} parent=83 // pred_check_branch
          %668 = sbr.rel (%p666) target = $region116
        $region115: #{tpu_custom_call.1} parent=83 // pred_region
          %v669 = vld [vmem:[%s581] sm:$0xff]
          %v670 = vld [vmem:[%s581 + $0x8] sm:$0xff]
          %v671 = vld [vmem:[%s581 + $0x10] sm:$0xff]
          %v672 = vld [vmem:[%s581 + $0x18] sm:$0xff]
          %v673 = vld [vmem:[%s581 + $0x20] sm:$0xff]
          %v674 = vld [vmem:[%s581 + $0x28] sm:$0xff]
          %v675 = vld [vmem:[%s581 + $0x30] sm:$0xff]
          %v676 = vld [vmem:[%s581 + $0x38] sm:$0xff]
          %v677 = vld [vmem:[%s581 + $0x40] sm:$0xff]
          %v678 = vld [vmem:[%s581 + $0x48] sm:$0xff]
          %v679 = vld [vmem:[%s581 + $0x50] sm:$0xff]
          %v680 = vld [vmem:[%s581 + $0x58] sm:$0xff]
          %v681 = vld [vmem:[%s581 + $0x60] sm:$0xff]
          %v682 = vld [vmem:[%s581 + $0x68] sm:$0xff]
          %v683 = vld [vmem:[%s581 + $0x70] sm:$0xff]
          %v684 = vld [vmem:[%s581 + $0x78] sm:$0xff]
          %v685 = vld [vmem:[%s581 + $0x80] sm:$0xff]
          %v686 = vld [vmem:[%s581 + $0x88] sm:$0xff]
          %v687 = vld [vmem:[%s581 + $0x90] sm:$0xff]
          %v688 = vld [vmem:[%s581 + $0x98] sm:$0xff]
          %v689 = vld [vmem:[%s581 + $0xa0] sm:$0xff]
          %v690 = vld [vmem:[%s581 + $0xa8] sm:$0xff]
          %v691 = vld [vmem:[%s581 + $0xb0] sm:$0xff]
          %v692 = vld [vmem:[%s581 + $0xb8] sm:$0xff]
          %v693 = vld [vmem:[%s581 + $0xc0] sm:$0xff]
          %v694 = vld [vmem:[%s581 + $0xc8] sm:$0xff]
          %v695 = vld [vmem:[%s581 + $0xd0] sm:$0xff]
          %v696 = vld [vmem:[%s581 + $0xd8] sm:$0xff]
          %v697 = vld [vmem:[%s581 + $0xe0] sm:$0xff]
          %v698 = vld [vmem:[%s581 + $0xe8] sm:$0xff]
          %v699 = vld [vmem:[%s581 + $0xf0] sm:$0xff]
          %v700 = vld [vmem:[%s581 + $0xf8] sm:$0xff]
          %v701 = vld [vmem:[#allocation11] sm:$0xff]
          %v702 = vld [vmem:[#allocation11 + $0x8] sm:$0xff]
          %v703 = vld [vmem:[#allocation11 + $0x10] sm:$0xff]
          %v704 = vld [vmem:[#allocation11 + $0x18] sm:$0xff]
          %v705 = vld [vmem:[#allocation11 + $0x20] sm:$0xff]
          %v706 = vld [vmem:[#allocation11 + $0x28] sm:$0xff]
          %v707 = vld [vmem:[#allocation11 + $0x30] sm:$0xff]
          %v708 = vld [vmem:[#allocation11 + $0x38] sm:$0xff]
          %v709 = vld [vmem:[#allocation11 + $0x40] sm:$0xff]
          %v710 = vld [vmem:[#allocation11 + $0x48] sm:$0xff]
          %v711 = vld [vmem:[#allocation11 + $0x50] sm:$0xff]
          %v712 = vld [vmem:[#allocation11 + $0x58] sm:$0xff]
          %v713 = vld [vmem:[#allocation11 + $0x60] sm:$0xff]
          %v714 = vld [vmem:[#allocation11 + $0x68] sm:$0xff]
          %v715 = vld [vmem:[#allocation11 + $0x70] sm:$0xff]
          %v716 = vld [vmem:[#allocation11 + $0x78] sm:$0xff]
          %v717 = vld [vmem:[#allocation11 + $0x80] sm:$0xff]
          %v718 = vld [vmem:[#allocation11 + $0x88] sm:$0xff]
          %v719 = vld [vmem:[#allocation11 + $0x90] sm:$0xff]
          %v720 = vld [vmem:[#allocation11 + $0x98] sm:$0xff]
          %v721 = vld [vmem:[#allocation11 + $0xa0] sm:$0xff]
          %v722 = vld [vmem:[#allocation11 + $0xa8] sm:$0xff]
          %v723 = vld [vmem:[#allocation11 + $0xb0] sm:$0xff]
          %v724 = vld [vmem:[#allocation11 + $0xb8] sm:$0xff]
          %v725 = vld [vmem:[#allocation11 + $0xc0] sm:$0xff]
          %v726 = vld [vmem:[#allocation11 + $0xc8] sm:$0xff]
          %v727 = vld [vmem:[#allocation11 + $0xd0] sm:$0xff]
          %v728 = vld [vmem:[#allocation11 + $0xd8] sm:$0xff]
          %v729 = vld [vmem:[#allocation11 + $0xe0] sm:$0xff]
          %v730 = vld [vmem:[#allocation11 + $0xe8] sm:$0xff]
          %v731 = vld [vmem:[#allocation11 + $0xf0] sm:$0xff]
          %v732 = vld [vmem:[#allocation11 + $0xf8] sm:$0xff]
          %v733 = vld [vmem:[%s5] sm:$0x3]
          %v735 = vlaneseq
          %v736 = vshrl.u32 %v735, 7
          %v737 = vsub.s32 0, %v736
          %v738 = vrot.slane %v733, %v737
          %v739 = vlaneseq
          %v740 = vshrl.u32 %v739, 7
          %v741 = vsub.s32 1, %v740
          %v742 = vrot.slane %v733, %v741
          %745 = vmatprep.subr.mxu0 %v732
          %746 = vmatpush1.msra.mxu0 %v731
          %747 = vmatprep.subr.mxu0 %v730
          %748 = vmatpush1.msra.mxu0 %v729
          %749 = vmatprep.subr.mxu0 %v728
          %750 = vmatpush1.msra.mxu0 %v727
          %751 = vmatprep.subr.mxu0 %v726
          %752 = vmatpush1.msra.mxu0 %v725
          %753 = vmatprep.subr.mxu0 %v724
          %754 = vmatpush1.msra.mxu0 %v723
          %755 = vmatprep.subr.mxu0 %v722
          %756 = vmatpush1.msra.mxu0 %v721
          %757 = vmatprep.subr.mxu0 %v720
          %758 = vmatpush1.msra.mxu0 %v719
          %759 = vmatprep.subr.mxu0 %v718
          %760 = vmatpush1.msra.mxu0 %v717
          %761 = vmatprep.subr.mxu0 %v716
          %762 = vmatpush1.msra.mxu0 %v715
          %763 = vmatprep.subr.mxu0 %v714
          %764 = vmatpush1.msra.mxu0 %v713
          %765 = vmatprep.subr.mxu0 %v712
          %766 = vmatpush1.msra.mxu0 %v711
          %767 = vmatprep.subr.mxu0 %v710
          %768 = vmatpush1.msra.mxu0 %v709
          %769 = vmatprep.subr.mxu0 %v708
          %770 = vmatpush1.msra.mxu0 %v707
          %771 = vmatprep.subr.mxu0 %v706
          %772 = vmatpush1.msra.mxu0 %v705
          %773 = vmatprep.subr.mxu0 %v704
          %774 = vmatpush1.msra.mxu0 %v703
          %775 = vmatprep.subr.mxu0 %v702
          %776 = vmatpush1.msra.mxu0 %v701
          %777 = vmatprep.subr.mxu0 0.0
          %778 = vmatpush2.msra.mxu0 0.0
          %779 = vmatprep.subr.mxu0 0.0
          %780 = vmatpush2.msra.mxu0 0.0
          %781 = vmatprep.subr.mxu0 0.0
          %782 = vmatpush2.msra.mxu0 0.0
          %783 = vmatprep.subr.mxu0 0.0
          %784 = vmatpush2.msra.mxu0 0.0
          %785 = vmatprep.subr.mxu0 0.0
          %786 = vmatpush2.msra.mxu0 0.0
          %787 = vmatprep.subr.mxu0 0.0
          %788 = vmatpush2.msra.mxu0 0.0
          %789 = vmatprep.subr.mxu0 0.0
          %790 = vmatpush2.msra.mxu0 0.0
          %791 = vmatprep.subr.mxu0 0.0
          %792 = vmatpush2.msra.mxu0 0.0
          %793 = vmatprep.subr.mxu0 0.0
          %794 = vmatpush2.msra.mxu0 0.0
          %795 = vmatprep.subr.mxu0 0.0
          %796 = vmatpush2.msra.mxu0 0.0
          %797 = vmatprep.subr.mxu0 0.0
          %798 = vmatpush2.msra.mxu0 0.0
          %799 = vmatprep.subr.mxu0 0.0
          %800 = vmatpush2.msra.mxu0 0.0
          %801 = vmatprep.subr.mxu0 0.0
          %802 = vmatpush2.msra.mxu0 0.0
          %803 = vmatprep.subr.mxu0 0.0
          %804 = vmatpush2.msra.mxu0 0.0
          %805 = vmatprep.subr.mxu0 0.0
          %806 = vmatpush2.msra.mxu0 0.0
          %807 = vmatprep.subr.mxu0 0.0
          %808 = vmatpush2.msra.mxu0 0.0
          %809 = vmatprep.mubr.f32.mxu0 0.0
          %810 = vmatmul.mubr.f32.gmra.mxu0 %v669
          %v811 = vpop.f32.mrf.mxu0
          %v812 = vadd.f32 %v738, %v811
          %v813 = vpop.f32.mrf.mxu0
          %v814 = vadd.f32 %v742, %v813
          %815 = vmatprep.mubr.f32.mxu0 0.0
          %816 = vmatmul.mubr.f32.gmra.mxu0 %v670
          %v817 = vpop.f32.mrf.mxu0
          %v818 = vadd.f32 %v738, %v817
          %v819 = vpop.f32.mrf.mxu0
          %v820 = vadd.f32 %v742, %v819
          %821 = vmatprep.mubr.f32.mxu0 0.0
          %822 = vmatmul.mubr.f32.gmra.mxu0 %v671
          %v823 = vpop.f32.mrf.mxu0
          %v824 = vadd.f32 %v738, %v823
          %v825 = vpop.f32.mrf.mxu0
          %v826 = vadd.f32 %v742, %v825
          %827 = vmatprep.mubr.f32.mxu0 0.0
          %828 = vmatmul.mubr.f32.gmra.mxu0 %v672
          %v829 = vpop.f32.mrf.mxu0
          %v830 = vadd.f32 %v738, %v829
          %v831 = vpop.f32.mrf.mxu0
          %v832 = vadd.f32 %v742, %v831
          %833 = vmatprep.mubr.f32.mxu0 0.0
          %834 = vmatmul.mubr.f32.gmra.mxu0 %v673
          %v835 = vpop.f32.mrf.mxu0
          %v836 = vadd.f32 %v738, %v835
          %v837 = vpop.f32.mrf.mxu0
          %v838 = vadd.f32 %v742, %v837
          %839 = vmatprep.mubr.f32.mxu0 0.0
          %840 = vmatmul.mubr.f32.gmra.mxu0 %v674
          %v841 = vpop.f32.mrf.mxu0
          %v842 = vadd.f32 %v738, %v841
          %v843 = vpop.f32.mrf.mxu0
          %v844 = vadd.f32 %v742, %v843
          %845 = vmatprep.mubr.f32.mxu0 0.0
          %846 = vmatmul.mubr.f32.gmra.mxu0 %v675
          %v847 = vpop.f32.mrf.mxu0
          %v848 = vadd.f32 %v738, %v847
          %v849 = vpop.f32.mrf.mxu0
          %v850 = vadd.f32 %v742, %v849
          %851 = vmatprep.mubr.f32.mxu0 0.0
          %852 = vmatmul.mubr.f32.gmra.mxu0 %v676
          %v853 = vpop.f32.mrf.mxu0
          %v854 = vadd.f32 %v738, %v853
          %v855 = vpop.f32.mrf.mxu0
          %v856 = vadd.f32 %v742, %v855
          %857 = vmatprep.mubr.f32.mxu0 0.0
          %858 = vmatmul.mubr.f32.gmra.mxu0 %v677
          %v859 = vpop.f32.mrf.mxu0
          %v860 = vadd.f32 %v738, %v859
          %v861 = vpop.f32.mrf.mxu0
          %v862 = vadd.f32 %v742, %v861
          %863 = vmatprep.mubr.f32.mxu0 0.0
          %864 = vmatmul.mubr.f32.gmra.mxu0 %v678
          %v865 = vpop.f32.mrf.mxu0
          %v866 = vadd.f32 %v738, %v865
          %v867 = vpop.f32.mrf.mxu0
          %v868 = vadd.f32 %v742, %v867
          %869 = vmatprep.mubr.f32.mxu0 0.0
          %870 = vmatmul.mubr.f32.gmra.mxu0 %v679
          %v871 = vpop.f32.mrf.mxu0
          %v872 = vadd.f32 %v738, %v871
          %v873 = vpop.f32.mrf.mxu0
          %v874 = vadd.f32 %v742, %v873
          %875 = vmatprep.mubr.f32.mxu0 0.0
          %876 = vmatmul.mubr.f32.gmra.mxu0 %v680
          %v877 = vpop.f32.mrf.mxu0
          %v878 = vadd.f32 %v738, %v877
          %v879 = vpop.f32.mrf.mxu0
          %v880 = vadd.f32 %v742, %v879
          %881 = vmatprep.mubr.f32.mxu0 0.0
          %882 = vmatmul.mubr.f32.gmra.mxu0 %v681
          %v883 = vpop.f32.mrf.mxu0
          %v884 = vadd.f32 %v738, %v883
          %v885 = vpop.f32.mrf.mxu0
          %v886 = vadd.f32 %v742, %v885
          %887 = vmatprep.mubr.f32.mxu0 0.0
          %888 = vmatmul.mubr.f32.gmra.mxu0 %v682
          %v889 = vpop.f32.mrf.mxu0
          %v890 = vadd.f32 %v738, %v889
          %v891 = vpop.f32.mrf.mxu0
          %v892 = vadd.f32 %v742, %v891
          %893 = vmatprep.mubr.f32.mxu0 0.0
          %894 = vmatmul.mubr.f32.gmra.mxu0 %v683
          %v895 = vpop.f32.mrf.mxu0
          %v896 = vadd.f32 %v738, %v895
          %v897 = vpop.f32.mrf.mxu0
          %v898 = vadd.f32 %v742, %v897
          %899 = vmatprep.mubr.f32.mxu0 0.0
          %900 = vmatmul.mubr.f32.gmra.mxu0 %v684
          %v901 = vpop.f32.mrf.mxu0
          %v902 = vadd.f32 %v738, %v901
          %v903 = vpop.f32.mrf.mxu0
          %v904 = vadd.f32 %v742, %v903
          %905 = vmatprep.mubr.f32.mxu0 0.0
          %906 = vmatmul.mubr.f32.gmra.mxu0 %v685
          %v907 = vpop.f32.mrf.mxu0
          %v908 = vadd.f32 %v738, %v907
          %v909 = vpop.f32.mrf.mxu0
          %v910 = vadd.f32 %v742, %v909
          %911 = vmatprep.mubr.f32.mxu0 0.0
          %912 = vmatmul.mubr.f32.gmra.mxu0 %v686
          %v913 = vpop.f32.mrf.mxu0
          %v914 = vadd.f32 %v738, %v913
          %v915 = vpop.f32.mrf.mxu0
          %v916 = vadd.f32 %v742, %v915
          %917 = vmatprep.mubr.f32.mxu0 0.0
          %918 = vmatmul.mubr.f32.gmra.mxu0 %v687
          %v919 = vpop.f32.mrf.mxu0
          %v920 = vadd.f32 %v738, %v919
          %v921 = vpop.f32.mrf.mxu0
          %v922 = vadd.f32 %v742, %v921
          %923 = vmatprep.mubr.f32.mxu0 0.0
          %924 = vmatmul.mubr.f32.gmra.mxu0 %v688
          %v925 = vpop.f32.mrf.mxu0
          %v926 = vadd.f32 %v738, %v925
          %v927 = vpop.f32.mrf.mxu0
          %v928 = vadd.f32 %v742, %v927
          %929 = vmatprep.mubr.f32.mxu0 0.0
          %930 = vmatmul.mubr.f32.gmra.mxu0 %v689
          %v931 = vpop.f32.mrf.mxu0
          %v932 = vadd.f32 %v738, %v931
          %v933 = vpop.f32.mrf.mxu0
          %v934 = vadd.f32 %v742, %v933
          %935 = vmatprep.mubr.f32.mxu0 0.0
          %936 = vmatmul.mubr.f32.gmra.mxu0 %v690
          %v937 = vpop.f32.mrf.mxu0
          %v938 = vadd.f32 %v738, %v937
          %v939 = vpop.f32.mrf.mxu0
          %v940 = vadd.f32 %v742, %v939
          %941 = vmatprep.mubr.f32.mxu0 0.0
          %942 = vmatmul.mubr.f32.gmra.mxu0 %v691
          %v943 = vpop.f32.mrf.mxu0
          %v944 = vadd.f32 %v738, %v943
          %v945 = vpop.f32.mrf.mxu0
          %v946 = vadd.f32 %v742, %v945
          %947 = vmatprep.mubr.f32.mxu0 0.0
          %948 = vmatmul.mubr.f32.gmra.mxu0 %v692
          %v949 = vpop.f32.mrf.mxu0
          %v950 = vadd.f32 %v738, %v949
          %v951 = vpop.f32.mrf.mxu0
          %v952 = vadd.f32 %v742, %v951
          %953 = vmatprep.mubr.f32.mxu0 0.0
          %954 = vmatmul.mubr.f32.gmra.mxu0 %v693
          %v955 = vpop.f32.mrf.mxu0
          %v956 = vadd.f32 %v738, %v955
          %v957 = vpop.f32.mrf.mxu0
          %v958 = vadd.f32 %v742, %v957
          %959 = vmatprep.mubr.f32.mxu0 0.0
          %960 = vmatmul.mubr.f32.gmra.mxu0 %v694
          %v961 = vpop.f32.mrf.mxu0
          %v962 = vadd.f32 %v738, %v961
          %v963 = vpop.f32.mrf.mxu0
          %v964 = vadd.f32 %v742, %v963
          %965 = vmatprep.mubr.f32.mxu0 0.0
          %966 = vmatmul.mubr.f32.gmra.mxu0 %v695
          %v967 = vpop.f32.mrf.mxu0
          %v968 = vadd.f32 %v738, %v967
          %v969 = vpop.f32.mrf.mxu0
          %v970 = vadd.f32 %v742, %v969
          %971 = vmatprep.mubr.f32.mxu0 0.0
          %972 = vmatmul.mubr.f32.gmra.mxu0 %v696
          %v973 = vpop.f32.mrf.mxu0
          %v974 = vadd.f32 %v738, %v973
          %v975 = vpop.f32.mrf.mxu0
          %v976 = vadd.f32 %v742, %v975
          %977 = vmatprep.mubr.f32.mxu0 0.0
          %978 = vmatmul.mubr.f32.gmra.mxu0 %v697
          %v979 = vpop.f32.mrf.mxu0
          %v980 = vadd.f32 %v738, %v979
          %v981 = vpop.f32.mrf.mxu0
          %v982 = vadd.f32 %v742, %v981
          %983 = vmatprep.mubr.f32.mxu0 0.0
          %984 = vmatmul.mubr.f32.gmra.mxu0 %v698
          %v985 = vpop.f32.mrf.mxu0
          %v986 = vadd.f32 %v738, %v985
          %v987 = vpop.f32.mrf.mxu0
          %v988 = vadd.f32 %v742, %v987
          %989 = vmatprep.mubr.f32.mxu0 0.0
          %990 = vmatmul.mubr.f32.gmra.mxu0 %v699
          %v991 = vpop.f32.mrf.mxu0
          %v992 = vadd.f32 %v738, %v991
          %v993 = vpop.f32.mrf.mxu0
          %v994 = vadd.f32 %v742, %v993
          %995 = vmatprep.mubr.f32.mxu0 0.0
          %996 = vmatmul.mubr.f32.gmra.mxu0 %v700
          %v997 = vpop.f32.mrf.mxu0
          %v998 = vadd.f32 %v738, %v997
          %v999 = vpop.f32.mrf.mxu0
          %v1000 = vadd.f32 %v742, %v999
          %1001 = vdwg.mxu0
          %1002 = vxpose.xlu0.b32.start [1/16] %v812, 128
          %1003 = vxpose.xlu0.b32.cont [2/16] %v818, 128
          %1004 = vxpose.xlu0.b32.cont [3/16] %v824, 128
          %1005 = vxpose.xlu0.b32.cont [4/16] %v830, 128
          %1006 = vxpose.xlu0.b32.cont [5/16] %v836, 128
          %1007 = vxpose.xlu0.b32.cont [6/16] %v842, 128
          %1008 = vxpose.xlu0.b32.cont [7/16] %v848, 128
          %1009 = vxpose.xlu0.b32.cont [8/16] %v854, 128
          %1010 = vxpose.xlu0.b32.cont [9/16] %v860, 128
          %1011 = vxpose.xlu0.b32.cont [10/16] %v866, 128
          %1012 = vxpose.xlu0.b32.cont [11/16] %v872, 128
          %1013 = vxpose.xlu0.b32.cont [12/16] %v878, 128
          %1014 = vxpose.xlu0.b32.cont [13/16] %v884, 128
          %1015 = vxpose.xlu0.b32.cont [14/16] %v890, 128
          %1016 = vxpose.xlu0.b32.cont [15/16] %v896, 128
          %1017 = vxpose.xlu0.b32.end [16/16] %v902, 128
          %v1018 = vpop.trf.xlu0
          %v1019 = vpop.trf.xlu0
          %v1020 = vpop.trf.xlu0
          %v1021 = vpop.trf.xlu0
          %v1022 = vpop.trf.xlu0
          %v1023 = vpop.trf.xlu0
          %v1024 = vpop.trf.xlu0
          %v1025 = vpop.trf.xlu0
          %v1026 = vpop.trf.xlu0
          %v1027 = vpop.trf.xlu0
          %v1028 = vpop.trf.xlu0
          %v1029 = vpop.trf.xlu0
          %v1030 = vpop.trf.xlu0
          %v1031 = vpop.trf.xlu0
          %v1032 = vpop.trf.xlu0
          %v1033 = vpop.trf.xlu0
          %1034 = vxpose.xlu0.b32.start [1/16] %v908, 128
          %1035 = vxpose.xlu0.b32.cont [2/16] %v914, 128
          %1036 = vxpose.xlu0.b32.cont [3/16] %v920, 128
          %1037 = vxpose.xlu0.b32.cont [4/16] %v926, 128
          %1038 = vxpose.xlu0.b32.cont [5/16] %v932, 128
          %1039 = vxpose.xlu0.b32.cont [6/16] %v938, 128
          %1040 = vxpose.xlu0.b32.cont [7/16] %v944, 128
          %1041 = vxpose.xlu0.b32.cont [8/16] %v950, 128
          %1042 = vxpose.xlu0.b32.cont [9/16] %v956, 128
          %1043 = vxpose.xlu0.b32.cont [10/16] %v962, 128
          %1044 = vxpose.xlu0.b32.cont [11/16] %v968, 128
          %1045 = vxpose.xlu0.b32.cont [12/16] %v974, 128
          %1046 = vxpose.xlu0.b32.cont [13/16] %v980, 128
          %1047 = vxpose.xlu0.b32.cont [14/16] %v986, 128
          %1048 = vxpose.xlu0.b32.cont [15/16] %v992, 128
          %1049 = vxpose.xlu0.b32.end [16/16] %v998, 128
          %v1050 = vpop.trf.xlu0
          %v1051 = vpop.trf.xlu0
          %v1052 = vpop.trf.xlu0
          %v1053 = vpop.trf.xlu0
          %v1054 = vpop.trf.xlu0
          %v1055 = vpop.trf.xlu0
          %v1056 = vpop.trf.xlu0
          %v1057 = vpop.trf.xlu0
          %v1058 = vpop.trf.xlu0
          %v1059 = vpop.trf.xlu0
          %v1060 = vpop.trf.xlu0
          %v1061 = vpop.trf.xlu0
          %v1062 = vpop.trf.xlu0
          %v1063 = vpop.trf.xlu0
          %v1064 = vpop.trf.xlu0
          %v1065 = vpop.trf.xlu0
          %1066 = vst [vmem:[#allocation2] sm:$0xff] %v1018
          %1067 = vst [vmem:[#allocation2 + $0x8] sm:$0xff] %v1050
          %1068 = vst [vmem:[#allocation2 + $0x10] sm:$0xff] %v1019
          %1069 = vst [vmem:[#allocation2 + $0x18] sm:$0xff] %v1051
          %1070 = vst [vmem:[#allocation2 + $0x20] sm:$0xff] %v1020
          %1071 = vst [vmem:[#allocation2 + $0x28] sm:$0xff] %v1052
          %1072 = vst [vmem:[#allocation2 + $0x30] sm:$0xff] %v1021
          %1073 = vst [vmem:[#allocation2 + $0x38] sm:$0xff] %v1053
          %1074 = vst [vmem:[#allocation2 + $0x40] sm:$0xff] %v1022
          %1075 = vst [vmem:[#allocation2 + $0x48] sm:$0xff] %v1054
          %1076 = vst [vmem:[#allocation2 + $0x50] sm:$0xff] %v1023
          %1077 = vst [vmem:[#allocation2 + $0x58] sm:$0xff] %v1055
          %1078 = vst [vmem:[#allocation2 + $0x60] sm:$0xff] %v1024
          %1079 = vst [vmem:[#allocation2 + $0x68] sm:$0xff] %v1056
          %1080 = vst [vmem:[#allocation2 + $0x70] sm:$0xff] %v1025
          %1081 = vst [vmem:[#allocation2 + $0x78] sm:$0xff] %v1057
          %1082 = vst [vmem:[#allocation2 + $0x80] sm:$0xff] %v1026
          %1083 = vst [vmem:[#allocation2 + $0x88] sm:$0xff] %v1058
          %1084 = vst [vmem:[#allocation2 + $0x90] sm:$0xff] %v1027
          %1085 = vst [vmem:[#allocation2 + $0x98] sm:$0xff] %v1059
          %1086 = vst [vmem:[#allocation2 + $0xa0] sm:$0xff] %v1028
          %1087 = vst [vmem:[#allocation2 + $0xa8] sm:$0xff] %v1060
          %1088 = vst [vmem:[#allocation2 + $0xb0] sm:$0xff] %v1029
          %1089 = vst [vmem:[#allocation2 + $0xb8] sm:$0xff] %v1061
          %1090 = vst [vmem:[#allocation2 + $0xc0] sm:$0xff] %v1030
          %1091 = vst [vmem:[#allocation2 + $0xc8] sm:$0xff] %v1062
          %1092 = vst [vmem:[#allocation2 + $0xd0] sm:$0xff] %v1031
          %1093 = vst [vmem:[#allocation2 + $0xd8] sm:$0xff] %v1063
          %1094 = vst [vmem:[#allocation2 + $0xe0] sm:$0xff] %v1032
          %1095 = vst [vmem:[#allocation2 + $0xe8] sm:$0xff] %v1064
          %1096 = vst [vmem:[#allocation2 + $0xf0] sm:$0xff] %v1033
          %1097 = vst [vmem:[#allocation2 + $0xf8] sm:$0xff] %v1065
          %1098 = vst [vmem:[#allocation3] sm:$0xff] %v814
          %1099 = vst [vmem:[#allocation3 + $0x8] sm:$0xff] %v820
          %1100 = vst [vmem:[#allocation3 + $0x10] sm:$0xff] %v826
          %1101 = vst [vmem:[#allocation3 + $0x18] sm:$0xff] %v832
          %1102 = vst [vmem:[#allocation3 + $0x20] sm:$0xff] %v838
          %1103 = vst [vmem:[#allocation3 + $0x28] sm:$0xff] %v844
          %1104 = vst [vmem:[#allocation3 + $0x30] sm:$0xff] %v850
          %1105 = vst [vmem:[#allocation3 + $0x38] sm:$0xff] %v856
          %1106 = vst [vmem:[#allocation3 + $0x40] sm:$0xff] %v862
          %1107 = vst [vmem:[#allocation3 + $0x48] sm:$0xff] %v868
          %1108 = vst [vmem:[#allocation3 + $0x50] sm:$0xff] %v874
          %1109 = vst [vmem:[#allocation3 + $0x58] sm:$0xff] %v880
          %1110 = vst [vmem:[#allocation3 + $0x60] sm:$0xff] %v886
          %1111 = vst [vmem:[#allocation3 + $0x68] sm:$0xff] %v892
          %1112 = vst [vmem:[#allocation3 + $0x70] sm:$0xff] %v898
          %1113 = vst [vmem:[#allocation3 + $0x78] sm:$0xff] %v904
          %1114 = vst [vmem:[#allocation3 + $0x80] sm:$0xff] %v910
          %1115 = vst [vmem:[#allocation3 + $0x88] sm:$0xff] %v916
          %1116 = vst [vmem:[#allocation3 + $0x90] sm:$0xff] %v922
          %1117 = vst [vmem:[#allocation3 + $0x98] sm:$0xff] %v928
          %1118 = vst [vmem:[#allocation3 + $0xa0] sm:$0xff] %v934
          %1119 = vst [vmem:[#allocation3 + $0xa8] sm:$0xff] %v940
          %1120 = vst [vmem:[#allocation3 + $0xb0] sm:$0xff] %v946
          %1121 = vst [vmem:[#allocation3 + $0xb8] sm:$0xff] %v952
          %1122 = vst [vmem:[#allocation3 + $0xc0] sm:$0xff] %v958
          %1123 = vst [vmem:[#allocation3 + $0xc8] sm:$0xff] %v964
          %1124 = vst [vmem:[#allocation3 + $0xd0] sm:$0xff] %v970
          %1125 = vst [vmem:[#allocation3 + $0xd8] sm:$0xff] %v976
          %1126 = vst [vmem:[#allocation3 + $0xe0] sm:$0xff] %v982
          %1127 = vst [vmem:[#allocation3 + $0xe8] sm:$0xff] %v988
          %1128 = vst [vmem:[#allocation3 + $0xf0] sm:$0xff] %v994
          %1129 = vst [vmem:[#allocation3 + $0xf8] sm:$0xff] %v1000
        $region116: #{tpu_custom_call.1} parent=83 // pred_fallthru
          _
        %s1130 = smul.u32 %s43, 128
        %s1131 = scalar_lea.vmem %s581, %s1130 [#allocation5]
        %v1132 = vld [vmem:[%s1131] sm:$0xff]
        %v1133 = vld [vmem:[%s1131 + $0x8] sm:$0xff]
        %v1134 = vld [vmem:[%s1131 + $0x10] sm:$0xff]
        %v1135 = vld [vmem:[%s1131 + $0x18] sm:$0xff]
        %v1136 = vld [vmem:[%s1131 + $0x20] sm:$0xff]
        %v1137 = vld [vmem:[%s1131 + $0x28] sm:$0xff]
        %v1138 = vld [vmem:[%s1131 + $0x30] sm:$0xff]
        %v1139 = vld [vmem:[%s1131 + $0x38] sm:$0xff]
        %v1140 = vld [vmem:[%s1131 + $0x40] sm:$0xff]
        %v1141 = vld [vmem:[%s1131 + $0x48] sm:$0xff]
        %v1142 = vld [vmem:[%s1131 + $0x50] sm:$0xff]
        %v1143 = vld [vmem:[%s1131 + $0x58] sm:$0xff]
        %v1144 = vld [vmem:[%s1131 + $0x60] sm:$0xff]
        %v1145 = vld [vmem:[%s1131 + $0x68] sm:$0xff]
        %v1146 = vld [vmem:[%s1131 + $0x70] sm:$0xff]
        %v1147 = vld [vmem:[%s1131 + $0x78] sm:$0xff]
        %v1148 = vld [vmem:[#allocation10] sm:$0xff]
        %v1149 = vld [vmem:[#allocation10 + $0x8] sm:$0xff]
        %v1150 = vld [vmem:[#allocation10 + $0x10] sm:$0xff]
        %v1151 = vld [vmem:[#allocation10 + $0x18] sm:$0xff]
        %v1152 = vld [vmem:[#allocation10 + $0x20] sm:$0xff]
        %v1153 = vld [vmem:[#allocation10 + $0x28] sm:$0xff]
        %v1154 = vld [vmem:[#allocation10 + $0x30] sm:$0xff]
        %v1155 = vld [vmem:[#allocation10 + $0x38] sm:$0xff]
        %v1156 = vld [vmem:[#allocation10 + $0x40] sm:$0xff]
        %v1157 = vld [vmem:[#allocation10 + $0x48] sm:$0xff]
        %v1158 = vld [vmem:[#allocation10 + $0x50] sm:$0xff]
        %v1159 = vld [vmem:[#allocation10 + $0x58] sm:$0xff]
        %v1160 = vld [vmem:[#allocation10 + $0x60] sm:$0xff]
        %v1161 = vld [vmem:[#allocation10 + $0x68] sm:$0xff]
        %v1162 = vld [vmem:[#allocation10 + $0x70] sm:$0xff]
        %v1163 = vld [vmem:[#allocation10 + $0x78] sm:$0xff]
        %v1164 = vld [vmem:[%s3] sm:$0x1]
        %v1166 = vlaneseq
        %v1167 = vshrl.u32 %v1166, 7
        %v1168 = vsub.s32 0, %v1167
        %v1169 = vrot.slane %v1164, %v1168
        %1171 = vmatprep.subr.mxu0 0.0
        %1172 = vmatpush1.msra.mxu0 %v1163
        %1173 = vmatprep.subr.mxu0 0.0
        %1174 = vmatpush1.msra.mxu0 %v1162
        %1175 = vmatprep.subr.mxu0 0.0
        %1176 = vmatpush1.msra.mxu0 %v1161
        %1177 = vmatprep.subr.mxu0 0.0
        %1178 = vmatpush1.msra.mxu0 %v1160
        %1179 = vmatprep.subr.mxu0 0.0
        %1180 = vmatpush1.msra.mxu0 %v1159
        %1181 = vmatprep.subr.mxu0 0.0
        %1182 = vmatpush1.msra.mxu0 %v1158
        %1183 = vmatprep.subr.mxu0 0.0
        %1184 = vmatpush1.msra.mxu0 %v1157
        %1185 = vmatprep.subr.mxu0 0.0
        %1186 = vmatpush1.msra.mxu0 %v1156
        %1187 = vmatprep.subr.mxu0 0.0
        %1188 = vmatpush1.msra.mxu0 %v1155
        %1189 = vmatprep.subr.mxu0 0.0
        %1190 = vmatpush1.msra.mxu0 %v1154
        %1191 = vmatprep.subr.mxu0 0.0
        %1192 = vmatpush1.msra.mxu0 %v1153
        %1193 = vmatprep.subr.mxu0 0.0
        %1194 = vmatpush1.msra.mxu0 %v1152
        %1195 = vmatprep.subr.mxu0 0.0
        %1196 = vmatpush1.msra.mxu0 %v1151
        %1197 = vmatprep.subr.mxu0 0.0
        %1198 = vmatpush1.msra.mxu0 %v1150
        %1199 = vmatprep.subr.mxu0 0.0
        %1200 = vmatpush1.msra.mxu0 %v1149
        %1201 = vmatprep.subr.mxu0 0.0
        %1202 = vmatpush1.msra.mxu0 %v1148
        %1203 = vmatprep.subr.mxu0 0.0
        %1204 = vmatpush2.msra.mxu0 0.0
        %1205 = vmatprep.subr.mxu0 0.0
        %1206 = vmatpush2.msra.mxu0 0.0
        %1207 = vmatprep.subr.mxu0 0.0
        %1208 = vmatpush2.msra.mxu0 0.0
        %1209 = vmatprep.subr.mxu0 0.0
        %1210 = vmatpush2.msra.mxu0 0.0
        %1211 = vmatprep.subr.mxu0 0.0
        %1212 = vmatpush2.msra.mxu0 0.0
        %1213 = vmatprep.subr.mxu0 0.0
        %1214 = vmatpush2.msra.mxu0 0.0
        %1215 = vmatprep.subr.mxu0 0.0
        %1216 = vmatpush2.msra.mxu0 0.0
        %1217 = vmatprep.subr.mxu0 0.0
        %1218 = vmatpush2.msra.mxu0 0.0
        %1219 = vmatprep.subr.mxu0 0.0
        %1220 = vmatpush2.msra.mxu0 0.0
        %1221 = vmatprep.subr.mxu0 0.0
        %1222 = vmatpush2.msra.mxu0 0.0
        %1223 = vmatprep.subr.mxu0 0.0
        %1224 = vmatpush2.msra.mxu0 0.0
        %1225 = vmatprep.subr.mxu0 0.0
        %1226 = vmatpush2.msra.mxu0 0.0
        %1227 = vmatprep.subr.mxu0 0.0
        %1228 = vmatpush2.msra.mxu0 0.0
        %1229 = vmatprep.subr.mxu0 0.0
        %1230 = vmatpush2.msra.mxu0 0.0
        %1231 = vmatprep.subr.mxu0 0.0
        %1232 = vmatpush2.msra.mxu0 0.0
        %1233 = vmatprep.subr.mxu0 0.0
        %1234 = vmatpush2.msra.mxu0 0.0
        %1235 = vmatprep.mubr.f32.mxu0 0.0
        %1236 = vmatmul.mubr.f32.gmra.mxu0 %v1132
        %v1237 = vpop.f32.mrf.mxu0
        %v1238 = vadd.f32 %v1169, %v1237
        %v1239 = vpop.f32.mrf.mxu0
        %1240 = vmatprep.mubr.f32.mxu0 0.0
        %1241 = vmatmul.mubr.f32.gmra.mxu0 %v1133
        %v1242 = vpop.f32.mrf.mxu0
        %v1243 = vadd.f32 %v1169, %v1242
        %v1244 = vpop.f32.mrf.mxu0
        %1245 = vmatprep.mubr.f32.mxu0 0.0
        %1246 = vmatmul.mubr.f32.gmra.mxu0 %v1134
        %v1247 = vpop.f32.mrf.mxu0
        %v1248 = vadd.f32 %v1169, %v1247
        %v1249 = vpop.f32.mrf.mxu0
        %1250 = vmatprep.mubr.f32.mxu0 0.0
        %1251 = vmatmul.mubr.f32.gmra.mxu0 %v1135
        %v1252 = vpop.f32.mrf.mxu0
        %v1253 = vadd.f32 %v1169, %v1252
        %v1254 = vpop.f32.mrf.mxu0
        %1255 = vmatprep.mubr.f32.mxu0 0.0
        %1256 = vmatmul.mubr.f32.gmra.mxu0 %v1136
        %v1257 = vpop.f32.mrf.mxu0
        %v1258 = vadd.f32 %v1169, %v1257
        %v1259 = vpop.f32.mrf.mxu0
        %1260 = vmatprep.mubr.f32.mxu0 0.0
        %1261 = vmatmul.mubr.f32.gmra.mxu0 %v1137
        %v1262 = vpop.f32.mrf.mxu0
        %v1263 = vadd.f32 %v1169, %v1262
        %v1264 = vpop.f32.mrf.mxu0
        %1265 = vmatprep.mubr.f32.mxu0 0.0
        %1266 = vmatmul.mubr.f32.gmra.mxu0 %v1138
        %v1267 = vpop.f32.mrf.mxu0
        %v1268 = vadd.f32 %v1169, %v1267
        %v1269 = vpop.f32.mrf.mxu0
        %1270 = vmatprep.mubr.f32.mxu0 0.0
        %1271 = vmatmul.mubr.f32.gmra.mxu0 %v1139
        %v1272 = vpop.f32.mrf.mxu0
        %v1273 = vadd.f32 %v1169, %v1272
        %v1274 = vpop.f32.mrf.mxu0
        %1275 = vmatprep.mubr.f32.mxu0 0.0
        %1276 = vmatmul.mubr.f32.gmra.mxu0 %v1140
        %v1277 = vpop.f32.mrf.mxu0
        %v1278 = vadd.f32 %v1169, %v1277
        %v1279 = vpop.f32.mrf.mxu0
        %1280 = vmatprep.mubr.f32.mxu0 0.0
        %1281 = vmatmul.mubr.f32.gmra.mxu0 %v1141
        %v1282 = vpop.f32.mrf.mxu0
        %v1283 = vadd.f32 %v1169, %v1282
        %v1284 = vpop.f32.mrf.mxu0
        %1285 = vmatprep.mubr.f32.mxu0 0.0
        %1286 = vmatmul.mubr.f32.gmra.mxu0 %v1142
        %v1287 = vpop.f32.mrf.mxu0
        %v1288 = vadd.f32 %v1169, %v1287
        %v1289 = vpop.f32.mrf.mxu0
        %1290 = vmatprep.mubr.f32.mxu0 0.0
        %1291 = vmatmul.mubr.f32.gmra.mxu0 %v1143
        %v1292 = vpop.f32.mrf.mxu0
        %v1293 = vadd.f32 %v1169, %v1292
        %v1294 = vpop.f32.mrf.mxu0
        %1295 = vmatprep.mubr.f32.mxu0 0.0
        %1296 = vmatmul.mubr.f32.gmra.mxu0 %v1144
        %v1297 = vpop.f32.mrf.mxu0
        %v1298 = vadd.f32 %v1169, %v1297
        %v1299 = vpop.f32.mrf.mxu0
        %1300 = vmatprep.mubr.f32.mxu0 0.0
        %1301 = vmatmul.mubr.f32.gmra.mxu0 %v1145
        %v1302 = vpop.f32.mrf.mxu0
        %v1303 = vadd.f32 %v1169, %v1302
        %v1304 = vpop.f32.mrf.mxu0
        %1305 = vmatprep.mubr.f32.mxu0 0.0
        %1306 = vmatmul.mubr.f32.gmra.mxu0 %v1146
        %v1307 = vpop.f32.mrf.mxu0
        %v1308 = vadd.f32 %v1169, %v1307
        %v1309 = vpop.f32.mrf.mxu0
        %1310 = vmatprep.mubr.f32.mxu0 0.0
        %1311 = vmatmul.mubr.f32.gmra.mxu0 %v1147
        %v1312 = vpop.f32.mrf.mxu0
        %v1313 = vadd.f32 %v1169, %v1312
        %v1314 = vpop.f32.mrf.mxu0
        %1315 = vdwg.mxu0
        %v1316 = vmul.f32 %v1238, 0.125
        %v1317 = vmul.f32 %v1243, 0.125
        %v1318 = vmul.f32 %v1248, 0.125
        %v1319 = vmul.f32 %v1253, 0.125
        %v1320 = vmul.f32 %v1258, 0.125
        %v1321 = vmul.f32 %v1263, 0.125
        %v1322 = vmul.f32 %v1268, 0.125
        %v1323 = vmul.f32 %v1273, 0.125
        %v1324 = vmul.f32 %v1278, 0.125
        %v1325 = vmul.f32 %v1283, 0.125
        %v1326 = vmul.f32 %v1288, 0.125
        %v1327 = vmul.f32 %v1293, 0.125
        %v1328 = vmul.f32 %v1298, 0.125
        %v1329 = vmul.f32 %v1303, 0.125
        %v1330 = vmul.f32 %v1308, 0.125
        %v1331 = vmul.f32 %v1313, 0.125
        %v1332 = vld [vmem:[%s590] sm:$0x3]
        %v1333 = vmul.f32 %v1332, 0.125
        %v1335 = vlaneseq
        %v1336 = vshrl.u32 %v1335, 7
        %v1337 = vsub.s32 0, %v1336
        %v1338 = vrot.slane %v1333, %v1337
        %v1339 = vlaneseq
        %v1340 = vshrl.u32 %v1339, 7
        %v1341 = vsub.s32 1, %v1340
        %v1342 = vrot.slane %v1333, %v1341
        %v1345 = vld [vmem:[#allocation2] sm:$0xff]
        %v1346 = vld [vmem:[#allocation2 + $0x8] sm:$0xff]
        %v1347 = vld [vmem:[#allocation2 + $0x10] sm:$0xff]
        %v1348 = vld [vmem:[#allocation2 + $0x18] sm:$0xff]
        %v1349 = vld [vmem:[#allocation2 + $0x20] sm:$0xff]
        %v1350 = vld [vmem:[#allocation2 + $0x28] sm:$0xff]
        %v1351 = vld [vmem:[#allocation2 + $0x30] sm:$0xff]
        %v1352 = vld [vmem:[#allocation2 + $0x38] sm:$0xff]
        %v1353 = vld [vmem:[#allocation2 + $0x40] sm:$0xff]
        %v1354 = vld [vmem:[#allocation2 + $0x48] sm:$0xff]
        %v1355 = vld [vmem:[#allocation2 + $0x50] sm:$0xff]
        %v1356 = vld [vmem:[#allocation2 + $0x58] sm:$0xff]
        %v1357 = vld [vmem:[#allocation2 + $0x60] sm:$0xff]
        %v1358 = vld [vmem:[#allocation2 + $0x68] sm:$0xff]
        %v1359 = vld [vmem:[#allocation2 + $0x70] sm:$0xff]
        %v1360 = vld [vmem:[#allocation2 + $0x78] sm:$0xff]
        %v1361 = vld [vmem:[#allocation3] sm:$0xff]
        %v1362 = vld [vmem:[#allocation3 + $0x8] sm:$0xff]
        %v1363 = vld [vmem:[#allocation3 + $0x10] sm:$0xff]
        %v1364 = vld [vmem:[#allocation3 + $0x18] sm:$0xff]
        %v1365 = vld [vmem:[#allocation3 + $0x20] sm:$0xff]
        %v1366 = vld [vmem:[#allocation3 + $0x28] sm:$0xff]
        %v1367 = vld [vmem:[#allocation3 + $0x30] sm:$0xff]
        %v1368 = vld [vmem:[#allocation3 + $0x38] sm:$0xff]
        %v1369 = vld [vmem:[#allocation3 + $0x40] sm:$0xff]
        %v1370 = vld [vmem:[#allocation3 + $0x48] sm:$0xff]
        %v1371 = vld [vmem:[#allocation3 + $0x50] sm:$0xff]
        %v1372 = vld [vmem:[#allocation3 + $0x58] sm:$0xff]
        %v1373 = vld [vmem:[#allocation3 + $0x60] sm:$0xff]
        %v1374 = vld [vmem:[#allocation3 + $0x68] sm:$0xff]
        %v1375 = vld [vmem:[#allocation3 + $0x70] sm:$0xff]
        %v1376 = vld [vmem:[#allocation3 + $0x78] sm:$0xff]
        %v1377 = vld [vmem:[#allocation3 + $0x80] sm:$0xff]
        %v1378 = vld [vmem:[#allocation3 + $0x88] sm:$0xff]
        %v1379 = vld [vmem:[#allocation3 + $0x90] sm:$0xff]
        %v1380 = vld [vmem:[#allocation3 + $0x98] sm:$0xff]
        %v1381 = vld [vmem:[#allocation3 + $0xa0] sm:$0xff]
        %v1382 = vld [vmem:[#allocation3 + $0xa8] sm:$0xff]
        %v1383 = vld [vmem:[#allocation3 + $0xb0] sm:$0xff]
        %v1384 = vld [vmem:[#allocation3 + $0xb8] sm:$0xff]
        %v1385 = vld [vmem:[#allocation3 + $0xc0] sm:$0xff]
        %v1386 = vld [vmem:[#allocation3 + $0xc8] sm:$0xff]
        %v1387 = vld [vmem:[#allocation3 + $0xd0] sm:$0xff]
        %v1388 = vld [vmem:[#allocation3 + $0xd8] sm:$0xff]
        %v1389 = vld [vmem:[#allocation3 + $0xe0] sm:$0xff]
        %v1390 = vld [vmem:[#allocation3 + $0xe8] sm:$0xff]
        %v1391 = vld [vmem:[#allocation3 + $0xf0] sm:$0xff]
        %v1392 = vld [vmem:[#allocation3 + $0xf8] sm:$0xff]
        %vm1393 = vcmask 523264
        %v1395 = vsel %vm1393, %v1316, 0
        %v1398 = vsel %vm1393, %v1317, 0
        %v1401 = vsel %vm1393, %v1318, 0
        %v1404 = vsel %vm1393, %v1319, 0
        %v1407 = vsel %vm1393, %v1320, 0
        %v1410 = vsel %vm1393, %v1321, 0
        %v1413 = vsel %vm1393, %v1322, 0
        %v1416 = vsel %vm1393, %v1323, 0
        %v1419 = vsel %vm1393, %v1324, 0
        %v1422 = vsel %vm1393, %v1325, 0
        %v1425 = vsel %vm1393, %v1326, 0
        %v1428 = vsel %vm1393, %v1327, 0
        %v1431 = vsel %vm1393, %v1328, 0
        %v1434 = vsel %vm1393, %v1329, 0
        %v1437 = vsel %vm1393, %v1330, 0
        %v1440 = vsel %vm1393, %v1331, 0
        %1442 = vmatprep.subr.mxu0 0.0
        %1443 = vmatpush1.msra.mxu0 0.0
        %1444 = vmatprep.subr.mxu0 0.0
        %1445 = vmatpush1.msra.mxu0 0.0
        %1446 = vmatprep.subr.mxu0 0.0
        %1447 = vmatpush1.msra.mxu0 0.0
        %1448 = vmatprep.subr.mxu0 0.0
        %1449 = vmatpush1.msra.mxu0 0.0
        %1450 = vmatprep.subr.mxu0 0.0
        %1451 = vmatpush1.msra.mxu0 0.0
        %1452 = vmatprep.subr.mxu0 0.0
        %1453 = vmatpush1.msra.mxu0 0.0
        %1454 = vmatprep.subr.mxu0 0.0
        %1455 = vmatpush1.msra.mxu0 0.0
        %1456 = vmatprep.subr.mxu0 0.0
        %1457 = vmatpush1.msra.mxu0 0.0
        %1458 = vmatprep.subr.mxu0 %v1360
        %1459 = vmatpush1.msra.mxu0 %v1359
        %1460 = vmatprep.subr.mxu0 %v1358
        %1461 = vmatpush1.msra.mxu0 %v1357
        %1462 = vmatprep.subr.mxu0 %v1356
        %1463 = vmatpush1.msra.mxu0 %v1355
        %1464 = vmatprep.subr.mxu0 %v1354
        %1465 = vmatpush1.msra.mxu0 %v1353
        %1466 = vmatprep.subr.mxu0 %v1352
        %1467 = vmatpush1.msra.mxu0 %v1351
        %1468 = vmatprep.subr.mxu0 %v1350
        %1469 = vmatpush1.msra.mxu0 %v1349
        %1470 = vmatprep.subr.mxu0 %v1348
        %1471 = vmatpush1.msra.mxu0 %v1347
        %1472 = vmatprep.subr.mxu0 %v1346
        %1473 = vmatpush1.msra.mxu0 %v1345
        %1474 = vmatprep.subr.mxu0 0.0
        %1475 = vmatpush2.msra.mxu0 0.0
        %1476 = vmatprep.subr.mxu0 0.0
        %1477 = vmatpush2.msra.mxu0 0.0
        %1478 = vmatprep.subr.mxu0 0.0
        %1479 = vmatpush2.msra.mxu0 0.0
        %1480 = vmatprep.subr.mxu0 0.0
        %1481 = vmatpush2.msra.mxu0 0.0
        %1482 = vmatprep.subr.mxu0 0.0
        %1483 = vmatpush2.msra.mxu0 0.0
        %1484 = vmatprep.subr.mxu0 0.0
        %1485 = vmatpush2.msra.mxu0 0.0
        %1486 = vmatprep.subr.mxu0 0.0
        %1487 = vmatpush2.msra.mxu0 0.0
        %1488 = vmatprep.subr.mxu0 0.0
        %1489 = vmatpush2.msra.mxu0 0.0
        %1490 = vmatprep.subr.mxu0 0.0
        %1491 = vmatpush2.msra.mxu0 0.0
        %1492 = vmatprep.subr.mxu0 0.0
        %1493 = vmatpush2.msra.mxu0 0.0
        %1494 = vmatprep.subr.mxu0 0.0
        %1495 = vmatpush2.msra.mxu0 0.0
        %1496 = vmatprep.subr.mxu0 0.0
        %1497 = vmatpush2.msra.mxu0 0.0
        %1498 = vmatprep.subr.mxu0 0.0
        %1499 = vmatpush2.msra.mxu0 0.0
        %1500 = vmatprep.subr.mxu0 0.0
        %1501 = vmatpush2.msra.mxu0 0.0
        %1502 = vmatprep.subr.mxu0 0.0
        %1503 = vmatpush2.msra.mxu0 0.0
        %1504 = vmatprep.subr.mxu0 0.0
        %1505 = vmatpush2.msra.mxu0 0.0
        %1506 = vmatprep.mubr.f32.mxu0 0.0
        %1507 = vmatmul.mubr.f32.gmra.mxu0 %v1395
        %v1508 = vpop.f32.mrf.mxu0
        %v1509 = vadd.f32 %v1338, %v1508
        %v1510 = vpop.f32.mrf.mxu0
        %v1511 = vadd.f32 %v1342, %v1510
        %1512 = vmatprep.mubr.f32.mxu0 0.0
        %1513 = vmatmul.mubr.f32.gmra.mxu0 %v1398
        %v1514 = vpop.f32.mrf.mxu0
        %v1515 = vadd.f32 %v1338, %v1514
        %v1516 = vpop.f32.mrf.mxu0
        %v1517 = vadd.f32 %v1342, %v1516
        %1518 = vmatprep.mubr.f32.mxu0 0.0
        %1519 = vmatmul.mubr.f32.gmra.mxu0 %v1401
        %v1520 = vpop.f32.mrf.mxu0
        %v1521 = vadd.f32 %v1338, %v1520
        %v1522 = vpop.f32.mrf.mxu0
        %v1523 = vadd.f32 %v1342, %v1522
        %1524 = vmatprep.mubr.f32.mxu0 0.0
        %1525 = vmatmul.mubr.f32.gmra.mxu0 %v1404
        %v1526 = vpop.f32.mrf.mxu0
        %v1527 = vadd.f32 %v1338, %v1526
        %v1528 = vpop.f32.mrf.mxu0
        %v1529 = vadd.f32 %v1342, %v1528
        %1530 = vmatprep.mubr.f32.mxu0 0.0
        %1531 = vmatmul.mubr.f32.gmra.mxu0 %v1407
        %v1532 = vpop.f32.mrf.mxu0
        %v1533 = vadd.f32 %v1338, %v1532
        %v1534 = vpop.f32.mrf.mxu0
        %v1535 = vadd.f32 %v1342, %v1534
        %1536 = vmatprep.mubr.f32.mxu0 0.0
        %1537 = vmatmul.mubr.f32.gmra.mxu0 %v1410
        %v1538 = vpop.f32.mrf.mxu0
        %v1539 = vadd.f32 %v1338, %v1538
        %v1540 = vpop.f32.mrf.mxu0
        %v1541 = vadd.f32 %v1342, %v1540
        %1542 = vmatprep.mubr.f32.mxu0 0.0
        %1543 = vmatmul.mubr.f32.gmra.mxu0 %v1413
        %v1544 = vpop.f32.mrf.mxu0
        %v1545 = vadd.f32 %v1338, %v1544
        %v1546 = vpop.f32.mrf.mxu0
        %v1547 = vadd.f32 %v1342, %v1546
        %1548 = vmatprep.mubr.f32.mxu0 0.0
        %1549 = vmatmul.mubr.f32.gmra.mxu0 %v1416
        %v1550 = vpop.f32.mrf.mxu0
        %v1551 = vadd.f32 %v1338, %v1550
        %v1552 = vpop.f32.mrf.mxu0
        %v1553 = vadd.f32 %v1342, %v1552
        %1554 = vmatprep.mubr.f32.mxu0 0.0
        %1555 = vmatmul.mubr.f32.gmra.mxu0 %v1419
        %v1556 = vpop.f32.mrf.mxu0
        %v1557 = vadd.f32 %v1338, %v1556
        %v1558 = vpop.f32.mrf.mxu0
        %v1559 = vadd.f32 %v1342, %v1558
        %1560 = vmatprep.mubr.f32.mxu0 0.0
        %1561 = vmatmul.mubr.f32.gmra.mxu0 %v1422
        %v1562 = vpop.f32.mrf.mxu0
        %v1563 = vadd.f32 %v1338, %v1562
        %v1564 = vpop.f32.mrf.mxu0
        %v1565 = vadd.f32 %v1342, %v1564
        %1566 = vmatprep.mubr.f32.mxu0 0.0
        %1567 = vmatmul.mubr.f32.gmra.mxu0 %v1425
        %v1568 = vpop.f32.mrf.mxu0
        %v1569 = vadd.f32 %v1338, %v1568
        %v1570 = vpop.f32.mrf.mxu0
        %v1571 = vadd.f32 %v1342, %v1570
        %1572 = vmatprep.mubr.f32.mxu0 0.0
        %1573 = vmatmul.mubr.f32.gmra.mxu0 %v1428
        %v1574 = vpop.f32.mrf.mxu0
        %v1575 = vadd.f32 %v1338, %v1574
        %v1576 = vpop.f32.mrf.mxu0
        %v1577 = vadd.f32 %v1342, %v1576
        %1578 = vmatprep.mubr.f32.mxu0 0.0
        %1579 = vmatmul.mubr.f32.gmra.mxu0 %v1431
        %v1580 = vpop.f32.mrf.mxu0
        %v1581 = vadd.f32 %v1338, %v1580
        %v1582 = vpop.f32.mrf.mxu0
        %v1583 = vadd.f32 %v1342, %v1582
        %1584 = vmatprep.mubr.f32.mxu0 0.0
        %1585 = vmatmul.mubr.f32.gmra.mxu0 %v1434
        %v1586 = vpop.f32.mrf.mxu0
        %v1587 = vadd.f32 %v1338, %v1586
        %v1588 = vpop.f32.mrf.mxu0
        %v1589 = vadd.f32 %v1342, %v1588
        %1590 = vmatprep.mubr.f32.mxu0 0.0
        %1591 = vmatmul.mubr.f32.gmra.mxu0 %v1437
        %v1592 = vpop.f32.mrf.mxu0
        %v1593 = vadd.f32 %v1338, %v1592
        %v1594 = vpop.f32.mrf.mxu0
        %v1595 = vadd.f32 %v1342, %v1594
        %1596 = vmatprep.mubr.f32.mxu0 0.0
        %1597 = vmatmul.mubr.f32.gmra.mxu0 %v1440
        %v1598 = vpop.f32.mrf.mxu0
        %v1599 = vadd.f32 %v1338, %v1598
        %v1600 = vpop.f32.mrf.mxu0
        %v1601 = vadd.f32 %v1342, %v1600
        %1602 = vdwg.mxu0
        %v1603 = vmax.f32 %v1509, %v1511
        %1604 = vmax.xlane.f32.xlu0 %v1603
        %v1605 = vpop.xlane.xlu0 %1604
        %v1606 = vmax.f32 %v1515, %v1517
        %1607 = vmax.xlane.f32.xlu0 %v1606
        %v1608 = vpop.xlane.xlu0 %1607
        %v1609 = vmax.f32 %v1521, %v1523
        %1610 = vmax.xlane.f32.xlu0 %v1609
        %v1611 = vpop.xlane.xlu0 %1610
        %v1612 = vmax.f32 %v1527, %v1529
        %1613 = vmax.xlane.f32.xlu0 %v1612
        %v1614 = vpop.xlane.xlu0 %1613
        %v1615 = vmax.f32 %v1533, %v1535
        %1616 = vmax.xlane.f32.xlu0 %v1615
        %v1617 = vpop.xlane.xlu0 %1616
        %v1618 = vmax.f32 %v1539, %v1541
        %1619 = vmax.xlane.f32.xlu0 %v1618
        %v1620 = vpop.xlane.xlu0 %1619
        %v1621 = vmax.f32 %v1545, %v1547
        %1622 = vmax.xlane.f32.xlu0 %v1621
        %v1623 = vpop.xlane.xlu0 %1622
        %v1624 = vmax.f32 %v1551, %v1553
        %1625 = vmax.xlane.f32.xlu0 %v1624
        %v1626 = vpop.xlane.xlu0 %1625
        %v1627 = vmax.f32 %v1557, %v1559
        %1628 = vmax.xlane.f32.xlu0 %v1627
        %v1629 = vpop.xlane.xlu0 %1628
        %v1630 = vmax.f32 %v1563, %v1565
        %1631 = vmax.xlane.f32.xlu0 %v1630
        %v1632 = vpop.xlane.xlu0 %1631
        %v1633 = vmax.f32 %v1569, %v1571
        %1634 = vmax.xlane.f32.xlu0 %v1633
        %v1635 = vpop.xlane.xlu0 %1634
        %v1636 = vmax.f32 %v1575, %v1577
        %1637 = vmax.xlane.f32.xlu0 %v1636
        %v1638 = vpop.xlane.xlu0 %1637
        %v1639 = vmax.f32 %v1581, %v1583
        %1640 = vmax.xlane.f32.xlu0 %v1639
        %v1641 = vpop.xlane.xlu0 %1640
        %v1642 = vmax.f32 %v1587, %v1589
        %1643 = vmax.xlane.f32.xlu0 %v1642
        %v1644 = vpop.xlane.xlu0 %1643
        %v1645 = vmax.f32 %v1593, %v1595
        %1646 = vmax.xlane.f32.xlu0 %v1645
        %v1647 = vpop.xlane.xlu0 %1646
        %v1648 = vmax.f32 %v1599, %v1601
        %1649 = vmax.xlane.f32.xlu0 %v1648
        %v1650 = vpop.xlane.xlu0 %1649
        %v1651 = vsub.f32 %v1509, %v1605
        %v1652 = vsub.f32 %v1511, %v1605
        %v1653 = vsub.f32 %v1515, %v1608
        %v1654 = vsub.f32 %v1517, %v1608
        %v1655 = vsub.f32 %v1521, %v1611
        %v1656 = vsub.f32 %v1523, %v1611
        %v1657 = vsub.f32 %v1527, %v1614
        %v1658 = vsub.f32 %v1529, %v1614
        %v1659 = vsub.f32 %v1533, %v1617
        %v1660 = vsub.f32 %v1535, %v1617
        %v1661 = vsub.f32 %v1539, %v1620
        %v1662 = vsub.f32 %v1541, %v1620
        %v1663 = vsub.f32 %v1545, %v1623
        %v1664 = vsub.f32 %v1547, %v1623
        %v1665 = vsub.f32 %v1551, %v1626
        %v1666 = vsub.f32 %v1553, %v1626
        %v1667 = vsub.f32 %v1557, %v1629
        %v1668 = vsub.f32 %v1559, %v1629
        %v1669 = vsub.f32 %v1563, %v1632
        %v1670 = vsub.f32 %v1565, %v1632
        %v1671 = vsub.f32 %v1569, %v1635
        %v1672 = vsub.f32 %v1571, %v1635
        %v1673 = vsub.f32 %v1575, %v1638
        %v1674 = vsub.f32 %v1577, %v1638
        %v1675 = vsub.f32 %v1581, %v1641
        %v1676 = vsub.f32 %v1583, %v1641
        %v1677 = vsub.f32 %v1587, %v1644
        %v1678 = vsub.f32 %v1589, %v1644
        %v1679 = vsub.f32 %v1593, %v1647
        %v1680 = vsub.f32 %v1595, %v1647
        %v1681 = vsub.f32 %v1599, %v1650
        %v1682 = vsub.f32 %v1601, %v1650
        %v1683 = vmul.f32 %v1651, 1.442695
        %v1684 = vpow.pop %v1683
        %v1685 = vmul.f32 %v1652, 1.442695
        %v1686 = vpow.pop %v1685
        %v1687 = vmul.f32 %v1653, 1.442695
        %v1688 = vpow.pop %v1687
        %v1689 = vmul.f32 %v1654, 1.442695
        %v1690 = vpow.pop %v1689
        %v1691 = vmul.f32 %v1655, 1.442695
        %v1692 = vpow.pop %v1691
        %v1693 = vmul.f32 %v1656, 1.442695
        %v1694 = vpow.pop %v1693
        %v1695 = vmul.f32 %v1657, 1.442695
        %v1696 = vpow.pop %v1695
        %v1697 = vmul.f32 %v1658, 1.442695
        %v1698 = vpow.pop %v1697
        %v1699 = vmul.f32 %v1659, 1.442695
        %v1700 = vpow.pop %v1699
        %v1701 = vmul.f32 %v1660, 1.442695
        %v1702 = vpow.pop %v1701
        %v1703 = vmul.f32 %v1661, 1.442695
        %v1704 = vpow.pop %v1703
        %v1705 = vmul.f32 %v1662, 1.442695
        %v1706 = vpow.pop %v1705
        %v1707 = vmul.f32 %v1663, 1.442695
        %v1708 = vpow.pop %v1707
        %v1709 = vmul.f32 %v1664, 1.442695
        %v1710 = vpow.pop %v1709
        %v1711 = vmul.f32 %v1665, 1.442695
        %v1712 = vpow.pop %v1711
        %v1713 = vmul.f32 %v1666, 1.442695
        %v1714 = vpow.pop %v1713
        %v1715 = vmul.f32 %v1667, 1.442695
        %v1716 = vpow.pop %v1715
        %v1717 = vmul.f32 %v1668, 1.442695
        %v1718 = vpow.pop %v1717
        %v1719 = vmul.f32 %v1669, 1.442695
        %v1720 = vpow.pop %v1719
        %v1721 = vmul.f32 %v1670, 1.442695
        %v1722 = vpow.pop %v1721
        %v1723 = vmul.f32 %v1671, 1.442695
        %v1724 = vpow.pop %v1723
        %v1725 = vmul.f32 %v1672, 1.442695
        %v1726 = vpow.pop %v1725
        %v1727 = vmul.f32 %v1673, 1.442695
        %v1728 = vpow.pop %v1727
        %v1729 = vmul.f32 %v1674, 1.442695
        %v1730 = vpow.pop %v1729
        %v1731 = vmul.f32 %v1675, 1.442695
        %v1732 = vpow.pop %v1731
        %v1733 = vmul.f32 %v1676, 1.442695
        %v1734 = vpow.pop %v1733
        %v1735 = vmul.f32 %v1677, 1.442695
        %v1736 = vpow.pop %v1735
        %v1737 = vmul.f32 %v1678, 1.442695
        %v1738 = vpow.pop %v1737
        %v1739 = vmul.f32 %v1679, 1.442695
        %v1740 = vpow.pop %v1739
        %v1741 = vmul.f32 %v1680, 1.442695
        %v1742 = vpow.pop %v1741
        %v1743 = vmul.f32 %v1681, 1.442695
        %v1744 = vpow.pop %v1743
        %v1745 = vmul.f32 %v1682, 1.442695
        %v1746 = vpow.pop %v1745
        %v1747 = vadd.f32 %v1684, %v1686
        %1748 = vadd.xlane.f32.xlu0 %v1747
        %v1749 = vpop.xlane.xlu0 %1748
        %v1750 = vadd.f32 %v1688, %v1690
        %1751 = vadd.xlane.f32.xlu0 %v1750
        %v1752 = vpop.xlane.xlu0 %1751
        %v1753 = vadd.f32 %v1692, %v1694
        %1754 = vadd.xlane.f32.xlu0 %v1753
        %v1755 = vpop.xlane.xlu0 %1754
        %v1756 = vadd.f32 %v1696, %v1698
        %1757 = vadd.xlane.f32.xlu0 %v1756
        %v1758 = vpop.xlane.xlu0 %1757
        %v1759 = vadd.f32 %v1700, %v1702
        %1760 = vadd.xlane.f32.xlu0 %v1759
        %v1761 = vpop.xlane.xlu0 %1760
        %v1762 = vadd.f32 %v1704, %v1706
        %1763 = vadd.xlane.f32.xlu0 %v1762
        %v1764 = vpop.xlane.xlu0 %1763
        %v1765 = vadd.f32 %v1708, %v1710
        %1766 = vadd.xlane.f32.xlu0 %v1765
        %v1767 = vpop.xlane.xlu0 %1766
        %v1768 = vadd.f32 %v1712, %v1714
        %1769 = vadd.xlane.f32.xlu0 %v1768
        %v1770 = vpop.xlane.xlu0 %1769
        %v1771 = vadd.f32 %v1716, %v1718
        %1772 = vadd.xlane.f32.xlu0 %v1771
        %v1773 = vpop.xlane.xlu0 %1772
        %v1774 = vadd.f32 %v1720, %v1722
        %1775 = vadd.xlane.f32.xlu0 %v1774
        %v1776 = vpop.xlane.xlu0 %1775
        %v1777 = vadd.f32 %v1724, %v1726
        %1778 = vadd.xlane.f32.xlu0 %v1777
        %v1779 = vpop.xlane.xlu0 %1778
        %v1780 = vadd.f32 %v1728, %v1730
        %1781 = vadd.xlane.f32.xlu0 %v1780
        %v1782 = vpop.xlane.xlu0 %1781
        %v1783 = vadd.f32 %v1732, %v1734
        %1784 = vadd.xlane.f32.xlu0 %v1783
        %v1785 = vpop.xlane.xlu0 %1784
        %v1786 = vadd.f32 %v1736, %v1738
        %1787 = vadd.xlane.f32.xlu0 %v1786
        %v1788 = vpop.xlane.xlu0 %1787
        %v1789 = vadd.f32 %v1740, %v1742
        %1790 = vadd.xlane.f32.xlu0 %v1789
        %v1791 = vpop.xlane.xlu0 %1790
        %v1792 = vadd.f32 %v1744, %v1746
        %1793 = vadd.xlane.f32.xlu0 %v1792
        %v1794 = vpop.xlane.xlu0 %1793
        %v1795 = vrcp.pop %v1749
        %v1796 = vrcp.pop %v1752
        %v1797 = vrcp.pop %v1755
        %v1798 = vrcp.pop %v1758
        %v1799 = vrcp.pop %v1761
        %v1800 = vrcp.pop %v1764
        %v1801 = vrcp.pop %v1767
        %v1802 = vrcp.pop %v1770
        %v1803 = vrcp.pop %v1773
        %v1804 = vrcp.pop %v1776
        %v1805 = vrcp.pop %v1779
        %v1806 = vrcp.pop %v1782
        %v1807 = vrcp.pop %v1785
        %v1808 = vrcp.pop %v1788
        %v1809 = vrcp.pop %v1791
        %v1810 = vrcp.pop %v1794
        %v1811 = vmul.f32 %v1684, %v1795
        %v1812 = vmul.f32 %v1686, %v1795
        %v1813 = vmul.f32 %v1688, %v1796
        %v1814 = vmul.f32 %v1690, %v1796
        %v1815 = vmul.f32 %v1692, %v1797
        %v1816 = vmul.f32 %v1694, %v1797
        %v1817 = vmul.f32 %v1696, %v1798
        %v1818 = vmul.f32 %v1698, %v1798
        %v1819 = vmul.f32 %v1700, %v1799
        %v1820 = vmul.f32 %v1702, %v1799
        %v1821 = vmul.f32 %v1704, %v1800
        %v1822 = vmul.f32 %v1706, %v1800
        %v1823 = vmul.f32 %v1708, %v1801
        %v1824 = vmul.f32 %v1710, %v1801
        %v1825 = vmul.f32 %v1712, %v1802
        %v1826 = vmul.f32 %v1714, %v1802
        %v1827 = vmul.f32 %v1716, %v1803
        %v1828 = vmul.f32 %v1718, %v1803
        %v1829 = vmul.f32 %v1720, %v1804
        %v1830 = vmul.f32 %v1722, %v1804
        %v1831 = vmul.f32 %v1724, %v1805
        %v1832 = vmul.f32 %v1726, %v1805
        %v1833 = vmul.f32 %v1728, %v1806
        %v1834 = vmul.f32 %v1730, %v1806
        %v1835 = vmul.f32 %v1732, %v1807
        %v1836 = vmul.f32 %v1734, %v1807
        %v1837 = vmul.f32 %v1736, %v1808
        %v1838 = vmul.f32 %v1738, %v1808
        %v1839 = vmul.f32 %v1740, %v1809
        %v1840 = vmul.f32 %v1742, %v1809
        %v1841 = vmul.f32 %v1744, %v1810
        %v1842 = vmul.f32 %v1746, %v1810
        %1843 = vmatprep.subr.mxu0 0.0
        %1844 = vmatpush1.msra.mxu0 %v1376
        %1845 = vmatprep.subr.mxu0 0.0
        %1846 = vmatpush1.msra.mxu0 %v1375
        %1847 = vmatprep.subr.mxu0 0.0
        %1848 = vmatpush1.msra.mxu0 %v1374
        %1849 = vmatprep.subr.mxu0 0.0
        %1850 = vmatpush1.msra.mxu0 %v1373
        %1851 = vmatprep.subr.mxu0 0.0
        %1852 = vmatpush1.msra.mxu0 %v1372
        %1853 = vmatprep.subr.mxu0 0.0
        %1854 = vmatpush1.msra.mxu0 %v1371
        %1855 = vmatprep.subr.mxu0 0.0
        %1856 = vmatpush1.msra.mxu0 %v1370
        %1857 = vmatprep.subr.mxu0 0.0
        %1858 = vmatpush1.msra.mxu0 %v1369
        %1859 = vmatprep.subr.mxu0 0.0
        %1860 = vmatpush1.msra.mxu0 %v1368
        %1861 = vmatprep.subr.mxu0 0.0
        %1862 = vmatpush1.msra.mxu0 %v1367
        %1863 = vmatprep.subr.mxu0 0.0
        %1864 = vmatpush1.msra.mxu0 %v1366
        %1865 = vmatprep.subr.mxu0 0.0
        %1866 = vmatpush1.msra.mxu0 %v1365
        %1867 = vmatprep.subr.mxu0 0.0
        %1868 = vmatpush1.msra.mxu0 %v1364
        %1869 = vmatprep.subr.mxu0 0.0
        %1870 = vmatpush1.msra.mxu0 %v1363
        %1871 = vmatprep.subr.mxu0 0.0
        %1872 = vmatpush1.msra.mxu0 %v1362
        %1873 = vmatprep.subr.mxu0 0.0
        %1874 = vmatpush1.msra.mxu0 %v1361
        %1875 = vmatprep.subr.mxu0 0.0
        %1876 = vmatpush2.msra.mxu0 %v1392
        %1877 = vmatprep.subr.mxu0 0.0
        %1878 = vmatpush2.msra.mxu0 %v1391
        %1879 = vmatprep.subr.mxu0 0.0
        %1880 = vmatpush2.msra.mxu0 %v1390
        %1881 = vmatprep.subr.mxu0 0.0
        %1882 = vmatpush2.msra.mxu0 %v1389
        %1883 = vmatprep.subr.mxu0 0.0
        %1884 = vmatpush2.msra.mxu0 %v1388
        %1885 = vmatprep.subr.mxu0 0.0
        %1886 = vmatpush2.msra.mxu0 %v1387
        %1887 = vmatprep.subr.mxu0 0.0
        %1888 = vmatpush2.msra.mxu0 %v1386
        %1889 = vmatprep.subr.mxu0 0.0
        %1890 = vmatpush2.msra.mxu0 %v1385
        %1891 = vmatprep.subr.mxu0 0.0
        %1892 = vmatpush2.msra.mxu0 %v1384
        %1893 = vmatprep.subr.mxu0 0.0
        %1894 = vmatpush2.msra.mxu0 %v1383
        %1895 = vmatprep.subr.mxu0 0.0
        %1896 = vmatpush2.msra.mxu0 %v1382
        %1897 = vmatprep.subr.mxu0 0.0
        %1898 = vmatpush2.msra.mxu0 %v1381
        %1899 = vmatprep.subr.mxu0 0.0
        %1900 = vmatpush2.msra.mxu0 %v1380
        %1901 = vmatprep.subr.mxu0 0.0
        %1902 = vmatpush2.msra.mxu0 %v1379
        %1903 = vmatprep.subr.mxu0 0.0
        %1904 = vmatpush2.msra.mxu0 %v1378
        %1905 = vmatprep.subr.mxu0 0.0
        %1906 = vmatpush2.msra.mxu0 %v1377
        %1907 = vmatprep.mubr.f32.mxu0 %v1812
        %1908 = vmatmul.mubr.f32.gmra.mxu0 %v1811
        %v1909 = vpop.f32.mrf.mxu0
        %v1910 = vadd.f32 0.0, %v1909
        %v1911 = vpop.f32.mrf.mxu0
        %1912 = vmatprep.mubr.f32.mxu0 %v1814
        %1913 = vmatmul.mubr.f32.gmra.mxu0 %v1813
        %v1914 = vpop.f32.mrf.mxu0
        %v1915 = vadd.f32 0.0, %v1914
        %v1916 = vpop.f32.mrf.mxu0
        %1917 = vmatprep.mubr.f32.mxu0 %v1816
        %1918 = vmatmul.mubr.f32.gmra.mxu0 %v1815
        %v1919 = vpop.f32.mrf.mxu0
        %v1920 = vadd.f32 0.0, %v1919
        %v1921 = vpop.f32.mrf.mxu0
        %1922 = vmatprep.mubr.f32.mxu0 %v1818
        %1923 = vmatmul.mubr.f32.gmra.mxu0 %v1817
        %v1924 = vpop.f32.mrf.mxu0
        %v1925 = vadd.f32 0.0, %v1924
        %v1926 = vpop.f32.mrf.mxu0
        %1927 = vmatprep.mubr.f32.mxu0 %v1820
        %1928 = vmatmul.mubr.f32.gmra.mxu0 %v1819
        %v1929 = vpop.f32.mrf.mxu0
        %v1930 = vadd.f32 0.0, %v1929
        %v1931 = vpop.f32.mrf.mxu0
        %1932 = vmatprep.mubr.f32.mxu0 %v1822
        %1933 = vmatmul.mubr.f32.gmra.mxu0 %v1821
        %v1934 = vpop.f32.mrf.mxu0
        %v1935 = vadd.f32 0.0, %v1934
        %v1936 = vpop.f32.mrf.mxu0
        %1937 = vmatprep.mubr.f32.mxu0 %v1824
        %1938 = vmatmul.mubr.f32.gmra.mxu0 %v1823
        %v1939 = vpop.f32.mrf.mxu0
        %v1940 = vadd.f32 0.0, %v1939
        %v1941 = vpop.f32.mrf.mxu0
        %1942 = vmatprep.mubr.f32.mxu0 %v1826
        %1943 = vmatmul.mubr.f32.gmra.mxu0 %v1825
        %v1944 = vpop.f32.mrf.mxu0
        %v1945 = vadd.f32 0.0, %v1944
        %v1946 = vpop.f32.mrf.mxu0
        %1947 = vmatprep.mubr.f32.mxu0 %v1828
        %1948 = vmatmul.mubr.f32.gmra.mxu0 %v1827
        %v1949 = vpop.f32.mrf.mxu0
        %v1950 = vadd.f32 0.0, %v1949
        %v1951 = vpop.f32.mrf.mxu0
        %1952 = vmatprep.mubr.f32.mxu0 %v1830
        %1953 = vmatmul.mubr.f32.gmra.mxu0 %v1829
        %v1954 = vpop.f32.mrf.mxu0
        %v1955 = vadd.f32 0.0, %v1954
        %v1956 = vpop.f32.mrf.mxu0
        %1957 = vmatprep.mubr.f32.mxu0 %v1832
        %1958 = vmatmul.mubr.f32.gmra.mxu0 %v1831
        %v1959 = vpop.f32.mrf.mxu0
        %v1960 = vadd.f32 0.0, %v1959
        %v1961 = vpop.f32.mrf.mxu0
        %1962 = vmatprep.mubr.f32.mxu0 %v1834
        %1963 = vmatmul.mubr.f32.gmra.mxu0 %v1833
        %v1964 = vpop.f32.mrf.mxu0
        %v1965 = vadd.f32 0.0, %v1964
        %v1966 = vpop.f32.mrf.mxu0
        %1967 = vmatprep.mubr.f32.mxu0 %v1836
        %1968 = vmatmul.mubr.f32.gmra.mxu0 %v1835
        %v1969 = vpop.f32.mrf.mxu0
        %v1970 = vadd.f32 0.0, %v1969
        %v1971 = vpop.f32.mrf.mxu0
        %1972 = vmatprep.mubr.f32.mxu0 %v1838
        %1973 = vmatmul.mubr.f32.gmra.mxu0 %v1837
        %v1974 = vpop.f32.mrf.mxu0
        %v1975 = vadd.f32 0.0, %v1974
        %v1976 = vpop.f32.mrf.mxu0
        %1977 = vmatprep.mubr.f32.mxu0 %v1840
        %1978 = vmatmul.mubr.f32.gmra.mxu0 %v1839
        %v1979 = vpop.f32.mrf.mxu0
        %v1980 = vadd.f32 0.0, %v1979
        %v1981 = vpop.f32.mrf.mxu0
        %1982 = vmatprep.mubr.f32.mxu0 %v1842
        %1983 = vmatmul.mubr.f32.gmra.mxu0 %v1841
        %v1984 = vpop.f32.mrf.mxu0
        %v1985 = vadd.f32 0.0, %v1984
        %v1986 = vpop.f32.mrf.mxu0
        %1987 = vdwg.mxu0
        %v1988 = vld [vmem:[#allocation2 + $0x80] sm:$0xff]
        %v1989 = vld [vmem:[#allocation2 + $0x88] sm:$0xff]
        %v1990 = vld [vmem:[#allocation2 + $0x90] sm:$0xff]
        %v1991 = vld [vmem:[#allocation2 + $0x98] sm:$0xff]
        %v1992 = vld [vmem:[#allocation2 + $0xa0] sm:$0xff]
        %v1993 = vld [vmem:[#allocation2 + $0xa8] sm:$0xff]
        %v1994 = vld [vmem:[#allocation2 + $0xb0] sm:$0xff]
        %v1995 = vld [vmem:[#allocation2 + $0xb8] sm:$0xff]
        %v1996 = vld [vmem:[#allocation2 + $0xc0] sm:$0xff]
        %v1997 = vld [vmem:[#allocation2 + $0xc8] sm:$0xff]
        %v1998 = vld [vmem:[#allocation2 + $0xd0] sm:$0xff]
        %v1999 = vld [vmem:[#allocation2 + $0xd8] sm:$0xff]
        %v2000 = vld [vmem:[#allocation2 + $0xe0] sm:$0xff]
        %v2001 = vld [vmem:[#allocation2 + $0xe8] sm:$0xff]
        %v2002 = vld [vmem:[#allocation2 + $0xf0] sm:$0xff]
        %v2003 = vld [vmem:[#allocation2 + $0xf8] sm:$0xff]
        %2004 = vrot.lane.b32.xlu0 %v1316, 64
        %v2005 = vpop.permute.xlu0 %2004
        %2006 = vrot.lane.b32.xlu0 %v1317, 64
        %v2007 = vpop.permute.xlu0 %2006
        %2008 = vrot.lane.b32.xlu0 %v1318, 64
        %v2009 = vpop.permute.xlu0 %2008
        %2010 = vrot.lane.b32.xlu0 %v1319, 64
        %v2011 = vpop.permute.xlu0 %2010
        %2012 = vrot.lane.b32.xlu0 %v1320, 64
        %v2013 = vpop.permute.xlu0 %2012
        %2014 = vrot.lane.b32.xlu0 %v1321, 64
        %v2015 = vpop.permute.xlu0 %2014
        %2016 = vrot.lane.b32.xlu0 %v1322, 64
        %v2017 = vpop.permute.xlu0 %2016
        %2018 = vrot.lane.b32.xlu0 %v1323, 64
        %v2019 = vpop.permute.xlu0 %2018
        %2020 = vrot.lane.b32.xlu0 %v1324, 64
        %v2021 = vpop.permute.xlu0 %2020
        %2022 = vrot.lane.b32.xlu0 %v1325, 64
        %v2023 = vpop.permute.xlu0 %2022
        %2024 = vrot.lane.b32.xlu0 %v1326, 64
        %v2025 = vpop.permute.xlu0 %2024
        %2026 = vrot.lane.b32.xlu0 %v1327, 64
        %v2027 = vpop.permute.xlu0 %2026
        %2028 = vrot.lane.b32.xlu0 %v1328, 64
        %v2029 = vpop.permute.xlu0 %2028
        %2030 = vrot.lane.b32.xlu0 %v1329, 64
        %v2031 = vpop.permute.xlu0 %2030
        %2032 = vrot.lane.b32.xlu0 %v1330, 64
        %v2033 = vpop.permute.xlu0 %2032
        %2034 = vrot.lane.b32.xlu0 %v1331, 64
        %v2035 = vpop.permute.xlu0 %2034
        %v2036 = vsel %vm1393, %v2005, 0
        %v2038 = vsel %vm1393, %v2007, 0
        %v2040 = vsel %vm1393, %v2009, 0
        %v2042 = vsel %vm1393, %v2011, 0
        %v2044 = vsel %vm1393, %v2013, 0
        %v2046 = vsel %vm1393, %v2015, 0
        %v2048 = vsel %vm1393, %v2017, 0
        %v2050 = vsel %vm1393, %v2019, 0
        %v2052 = vsel %vm1393, %v2021, 0
        %v2054 = vsel %vm1393, %v2023, 0
        %v2056 = vsel %vm1393, %v2025, 0
        %v2058 = vsel %vm1393, %v2027, 0
        %v2060 = vsel %vm1393, %v2029, 0
        %v2062 = vsel %vm1393, %v2031, 0
        %v2064 = vsel %vm1393, %v2033, 0
        %v2066 = vsel %vm1393, %v2035, 0
        %2068 = vmatprep.subr.mxu0 0.0
        %2069 = vmatpush1.msra.mxu0 0.0
        %2070 = vmatprep.subr.mxu0 0.0
        %2071 = vmatpush1.msra.mxu0 0.0
        %2072 = vmatprep.subr.mxu0 0.0
        %2073 = vmatpush1.msra.mxu0 0.0
        %2074 = vmatprep.subr.mxu0 0.0
        %2075 = vmatpush1.msra.mxu0 0.0
        %2076 = vmatprep.subr.mxu0 0.0
        %2077 = vmatpush1.msra.mxu0 0.0
        %2078 = vmatprep.subr.mxu0 0.0
        %2079 = vmatpush1.msra.mxu0 0.0
        %2080 = vmatprep.subr.mxu0 0.0
        %2081 = vmatpush1.msra.mxu0 0.0
        %2082 = vmatprep.subr.mxu0 0.0
        %2083 = vmatpush1.msra.mxu0 0.0
        %2084 = vmatprep.subr.mxu0 %v2003
        %2085 = vmatpush1.msra.mxu0 %v2002
        %2086 = vmatprep.subr.mxu0 %v2001
        %2087 = vmatpush1.msra.mxu0 %v2000
        %2088 = vmatprep.subr.mxu0 %v1999
        %2089 = vmatpush1.msra.mxu0 %v1998
        %2090 = vmatprep.subr.mxu0 %v1997
        %2091 = vmatpush1.msra.mxu0 %v1996
        %2092 = vmatprep.subr.mxu0 %v1995
        %2093 = vmatpush1.msra.mxu0 %v1994
        %2094 = vmatprep.subr.mxu0 %v1993
        %2095 = vmatpush1.msra.mxu0 %v1992
        %2096 = vmatprep.subr.mxu0 %v1991
        %2097 = vmatpush1.msra.mxu0 %v1990
        %2098 = vmatprep.subr.mxu0 %v1989
        %2099 = vmatpush1.msra.mxu0 %v1988
        %2100 = vmatprep.subr.mxu0 0.0
        %2101 = vmatpush2.msra.mxu0 0.0
        %2102 = vmatprep.subr.mxu0 0.0
        %2103 = vmatpush2.msra.mxu0 0.0
        %2104 = vmatprep.subr.mxu0 0.0
        %2105 = vmatpush2.msra.mxu0 0.0
        %2106 = vmatprep.subr.mxu0 0.0
        %2107 = vmatpush2.msra.mxu0 0.0
        %2108 = vmatprep.subr.mxu0 0.0
        %2109 = vmatpush2.msra.mxu0 0.0
        %2110 = vmatprep.subr.mxu0 0.0
        %2111 = vmatpush2.msra.mxu0 0.0
        %2112 = vmatprep.subr.mxu0 0.0
        %2113 = vmatpush2.msra.mxu0 0.0
        %2114 = vmatprep.subr.mxu0 0.0
        %2115 = vmatpush2.msra.mxu0 0.0
        %2116 = vmatprep.subr.mxu0 0.0
        %2117 = vmatpush2.msra.mxu0 0.0
        %2118 = vmatprep.subr.mxu0 0.0
        %2119 = vmatpush2.msra.mxu0 0.0
        %2120 = vmatprep.subr.mxu0 0.0
        %2121 = vmatpush2.msra.mxu0 0.0
        %2122 = vmatprep.subr.mxu0 0.0
        %2123 = vmatpush2.msra.mxu0 0.0
        %2124 = vmatprep.subr.mxu0 0.0
        %2125 = vmatpush2.msra.mxu0 0.0
        %2126 = vmatprep.subr.mxu0 0.0
        %2127 = vmatpush2.msra.mxu0 0.0
        %2128 = vmatprep.subr.mxu0 0.0
        %2129 = vmatpush2.msra.mxu0 0.0
        %2130 = vmatprep.subr.mxu0 0.0
        %2131 = vmatpush2.msra.mxu0 0.0
        %2132 = vmatprep.mubr.f32.mxu0 0.0
        %2133 = vmatmul.mubr.f32.gmra.mxu0 %v2036
        %v2134 = vpop.f32.mrf.mxu0
        %v2135 = vadd.f32 %v1338, %v2134
        %v2136 = vpop.f32.mrf.mxu0
        %v2137 = vadd.f32 %v1342, %v2136
        %2138 = vmatprep.mubr.f32.mxu0 0.0
        %2139 = vmatmul.mubr.f32.gmra.mxu0 %v2038
        %v2140 = vpop.f32.mrf.mxu0
        %v2141 = vadd.f32 %v1338, %v2140
        %v2142 = vpop.f32.mrf.mxu0
        %v2143 = vadd.f32 %v1342, %v2142
        %2144 = vmatprep.mubr.f32.mxu0 0.0
        %2145 = vmatmul.mubr.f32.gmra.mxu0 %v2040
        %v2146 = vpop.f32.mrf.mxu0
        %v2147 = vadd.f32 %v1338, %v2146
        %v2148 = vpop.f32.mrf.mxu0
        %v2149 = vadd.f32 %v1342, %v2148
        %2150 = vmatprep.mubr.f32.mxu0 0.0
        %2151 = vmatmul.mubr.f32.gmra.mxu0 %v2042
        %v2152 = vpop.f32.mrf.mxu0
        %v2153 = vadd.f32 %v1338, %v2152
        %v2154 = vpop.f32.mrf.mxu0
        %v2155 = vadd.f32 %v1342, %v2154
        %2156 = vmatprep.mubr.f32.mxu0 0.0
        %2157 = vmatmul.mubr.f32.gmra.mxu0 %v2044
        %v2158 = vpop.f32.mrf.mxu0
        %v2159 = vadd.f32 %v1338, %v2158
        %v2160 = vpop.f32.mrf.mxu0
        %v2161 = vadd.f32 %v1342, %v2160
        %2162 = vmatprep.mubr.f32.mxu0 0.0
        %2163 = vmatmul.mubr.f32.gmra.mxu0 %v2046
        %v2164 = vpop.f32.mrf.mxu0
        %v2165 = vadd.f32 %v1338, %v2164
        %v2166 = vpop.f32.mrf.mxu0
        %v2167 = vadd.f32 %v1342, %v2166
        %2168 = vmatprep.mubr.f32.mxu0 0.0
        %2169 = vmatmul.mubr.f32.gmra.mxu0 %v2048
        %v2170 = vpop.f32.mrf.mxu0
        %v2171 = vadd.f32 %v1338, %v2170
        %v2172 = vpop.f32.mrf.mxu0
        %v2173 = vadd.f32 %v1342, %v2172
        %2174 = vmatprep.mubr.f32.mxu0 0.0
        %2175 = vmatmul.mubr.f32.gmra.mxu0 %v2050
        %v2176 = vpop.f32.mrf.mxu0
        %v2177 = vadd.f32 %v1338, %v2176
        %v2178 = vpop.f32.mrf.mxu0
        %v2179 = vadd.f32 %v1342, %v2178
        %2180 = vmatprep.mubr.f32.mxu0 0.0
        %2181 = vmatmul.mubr.f32.gmra.mxu0 %v2052
        %v2182 = vpop.f32.mrf.mxu0
        %v2183 = vadd.f32 %v1338, %v2182
        %v2184 = vpop.f32.mrf.mxu0
        %v2185 = vadd.f32 %v1342, %v2184
        %2186 = vmatprep.mubr.f32.mxu0 0.0
        %2187 = vmatmul.mubr.f32.gmra.mxu0 %v2054
        %v2188 = vpop.f32.mrf.mxu0
        %v2189 = vadd.f32 %v1338, %v2188
        %v2190 = vpop.f32.mrf.mxu0
        %v2191 = vadd.f32 %v1342, %v2190
        %2192 = vmatprep.mubr.f32.mxu0 0.0
        %2193 = vmatmul.mubr.f32.gmra.mxu0 %v2056
        %v2194 = vpop.f32.mrf.mxu0
        %v2195 = vadd.f32 %v1338, %v2194
        %v2196 = vpop.f32.mrf.mxu0
        %v2197 = vadd.f32 %v1342, %v2196
        %2198 = vmatprep.mubr.f32.mxu0 0.0
        %2199 = vmatmul.mubr.f32.gmra.mxu0 %v2058
        %v2200 = vpop.f32.mrf.mxu0
        %v2201 = vadd.f32 %v1338, %v2200
        %v2202 = vpop.f32.mrf.mxu0
        %v2203 = vadd.f32 %v1342, %v2202
        %2204 = vmatprep.mubr.f32.mxu0 0.0
        %2205 = vmatmul.mubr.f32.gmra.mxu0 %v2060
        %v2206 = vpop.f32.mrf.mxu0
        %v2207 = vadd.f32 %v1338, %v2206
        %v2208 = vpop.f32.mrf.mxu0
        %v2209 = vadd.f32 %v1342, %v2208
        %2210 = vmatprep.mubr.f32.mxu0 0.0
        %2211 = vmatmul.mubr.f32.gmra.mxu0 %v2062
        %v2212 = vpop.f32.mrf.mxu0
        %v2213 = vadd.f32 %v1338, %v2212
        %v2214 = vpop.f32.mrf.mxu0
        %v2215 = vadd.f32 %v1342, %v2214
        %2216 = vmatprep.mubr.f32.mxu0 0.0
        %2217 = vmatmul.mubr.f32.gmra.mxu0 %v2064
        %v2218 = vpop.f32.mrf.mxu0
        %v2219 = vadd.f32 %v1338, %v2218
        %v2220 = vpop.f32.mrf.mxu0
        %v2221 = vadd.f32 %v1342, %v2220
        %2222 = vmatprep.mubr.f32.mxu0 0.0
        %2223 = vmatmul.mubr.f32.gmra.mxu0 %v2066
        %v2224 = vpop.f32.mrf.mxu0
        %v2225 = vadd.f32 %v1338, %v2224
        %v2226 = vpop.f32.mrf.mxu0
        %v2227 = vadd.f32 %v1342, %v2226
        %2228 = vdwg.mxu0
        %v2229 = vmax.f32 %v2135, %v2137
        %2230 = vmax.xlane.f32.xlu0 %v2229
        %v2231 = vpop.xlane.xlu0 %2230
        %v2232 = vmax.f32 %v2141, %v2143
        %2233 = vmax.xlane.f32.xlu0 %v2232
        %v2234 = vpop.xlane.xlu0 %2233
        %v2235 = vmax.f32 %v2147, %v2149
        %2236 = vmax.xlane.f32.xlu0 %v2235
        %v2237 = vpop.xlane.xlu0 %2236
        %v2238 = vmax.f32 %v2153, %v2155
        %2239 = vmax.xlane.f32.xlu0 %v2238
        %v2240 = vpop.xlane.xlu0 %2239
        %v2241 = vmax.f32 %v2159, %v2161
        %2242 = vmax.xlane.f32.xlu0 %v2241
        %v2243 = vpop.xlane.xlu0 %2242
        %v2244 = vmax.f32 %v2165, %v2167
        %2245 = vmax.xlane.f32.xlu0 %v2244
        %v2246 = vpop.xlane.xlu0 %2245
        %v2247 = vmax.f32 %v2171, %v2173
        %2248 = vmax.xlane.f32.xlu0 %v2247
        %v2249 = vpop.xlane.xlu0 %2248
        %v2250 = vmax.f32 %v2177, %v2179
        %2251 = vmax.xlane.f32.xlu0 %v2250
        %v2252 = vpop.xlane.xlu0 %2251
        %v2253 = vmax.f32 %v2183, %v2185
        %2254 = vmax.xlane.f32.xlu0 %v2253
        %v2255 = vpop.xlane.xlu0 %2254
        %v2256 = vmax.f32 %v2189, %v2191
        %2257 = vmax.xlane.f32.xlu0 %v2256
        %v2258 = vpop.xlane.xlu0 %2257
        %v2259 = vmax.f32 %v2195, %v2197
        %2260 = vmax.xlane.f32.xlu0 %v2259
        %v2261 = vpop.xlane.xlu0 %2260
        %v2262 = vmax.f32 %v2201, %v2203
        %2263 = vmax.xlane.f32.xlu0 %v2262
        %v2264 = vpop.xlane.xlu0 %2263
        %v2265 = vmax.f32 %v2207, %v2209
        %2266 = vmax.xlane.f32.xlu0 %v2265
        %v2267 = vpop.xlane.xlu0 %2266
        %v2268 = vmax.f32 %v2213, %v2215
        %2269 = vmax.xlane.f32.xlu0 %v2268
        %v2270 = vpop.xlane.xlu0 %2269
        %v2271 = vmax.f32 %v2219, %v2221
        %2272 = vmax.xlane.f32.xlu0 %v2271
        %v2273 = vpop.xlane.xlu0 %2272
        %v2274 = vmax.f32 %v2225, %v2227
        %2275 = vmax.xlane.f32.xlu0 %v2274
        %v2276 = vpop.xlane.xlu0 %2275
        %v2277 = vsub.f32 %v2135, %v2231
        %v2278 = vsub.f32 %v2137, %v2231
        %v2279 = vsub.f32 %v2141, %v2234
        %v2280 = vsub.f32 %v2143, %v2234
        %v2281 = vsub.f32 %v2147, %v2237
        %v2282 = vsub.f32 %v2149, %v2237
        %v2283 = vsub.f32 %v2153, %v2240
        %v2284 = vsub.f32 %v2155, %v2240
        %v2285 = vsub.f32 %v2159, %v2243
        %v2286 = vsub.f32 %v2161, %v2243
        %v2287 = vsub.f32 %v2165, %v2246
        %v2288 = vsub.f32 %v2167, %v2246
        %v2289 = vsub.f32 %v2171, %v2249
        %v2290 = vsub.f32 %v2173, %v2249
        %v2291 = vsub.f32 %v2177, %v2252
        %v2292 = vsub.f32 %v2179, %v2252
        %v2293 = vsub.f32 %v2183, %v2255
        %v2294 = vsub.f32 %v2185, %v2255
        %v2295 = vsub.f32 %v2189, %v2258
        %v2296 = vsub.f32 %v2191, %v2258
        %v2297 = vsub.f32 %v2195, %v2261
        %v2298 = vsub.f32 %v2197, %v2261
        %v2299 = vsub.f32 %v2201, %v2264
        %v2300 = vsub.f32 %v2203, %v2264
        %v2301 = vsub.f32 %v2207, %v2267
        %v2302 = vsub.f32 %v2209, %v2267
        %v2303 = vsub.f32 %v2213, %v2270
        %v2304 = vsub.f32 %v2215, %v2270
        %v2305 = vsub.f32 %v2219, %v2273
        %v2306 = vsub.f32 %v2221, %v2273
        %v2307 = vsub.f32 %v2225, %v2276
        %v2308 = vsub.f32 %v2227, %v2276
        %v2309 = vmul.f32 %v2277, 1.442695
        %v2310 = vpow.pop %v2309
        %v2311 = vmul.f32 %v2278, 1.442695
        %v2312 = vpow.pop %v2311
        %v2313 = vmul.f32 %v2279, 1.442695
        %v2314 = vpow.pop %v2313
        %v2315 = vmul.f32 %v2280, 1.442695
        %v2316 = vpow.pop %v2315
        %v2317 = vmul.f32 %v2281, 1.442695
        %v2318 = vpow.pop %v2317
        %v2319 = vmul.f32 %v2282, 1.442695
        %v2320 = vpow.pop %v2319
        %v2321 = vmul.f32 %v2283, 1.442695
        %v2322 = vpow.pop %v2321
        %v2323 = vmul.f32 %v2284, 1.442695
        %v2324 = vpow.pop %v2323
        %v2325 = vmul.f32 %v2285, 1.442695
        %v2326 = vpow.pop %v2325
        %v2327 = vmul.f32 %v2286, 1.442695
        %v2328 = vpow.pop %v2327
        %v2329 = vmul.f32 %v2287, 1.442695
        %v2330 = vpow.pop %v2329
        %v2331 = vmul.f32 %v2288, 1.442695
        %v2332 = vpow.pop %v2331
        %v2333 = vmul.f32 %v2289, 1.442695
        %v2334 = vpow.pop %v2333
        %v2335 = vmul.f32 %v2290, 1.442695
        %v2336 = vpow.pop %v2335
        %v2337 = vmul.f32 %v2291, 1.442695
        %v2338 = vpow.pop %v2337
        %v2339 = vmul.f32 %v2292, 1.442695
        %v2340 = vpow.pop %v2339
        %v2341 = vmul.f32 %v2293, 1.442695
        %v2342 = vpow.pop %v2341
        %v2343 = vmul.f32 %v2294, 1.442695
        %v2344 = vpow.pop %v2343
        %v2345 = vmul.f32 %v2295, 1.442695
        %v2346 = vpow.pop %v2345
        %v2347 = vmul.f32 %v2296, 1.442695
        %v2348 = vpow.pop %v2347
        %v2349 = vmul.f32 %v2297, 1.442695
        %v2350 = vpow.pop %v2349
        %v2351 = vmul.f32 %v2298, 1.442695
        %v2352 = vpow.pop %v2351
        %v2353 = vmul.f32 %v2299, 1.442695
        %v2354 = vpow.pop %v2353
        %v2355 = vmul.f32 %v2300, 1.442695
        %v2356 = vpow.pop %v2355
        %v2357 = vmul.f32 %v2301, 1.442695
        %v2358 = vpow.pop %v2357
        %v2359 = vmul.f32 %v2302, 1.442695
        %v2360 = vpow.pop %v2359
        %v2361 = vmul.f32 %v2303, 1.442695
        %v2362 = vpow.pop %v2361
        %v2363 = vmul.f32 %v2304, 1.442695
        %v2364 = vpow.pop %v2363
        %v2365 = vmul.f32 %v2305, 1.442695
        %v2366 = vpow.pop %v2365
        %v2367 = vmul.f32 %v2306, 1.442695
        %v2368 = vpow.pop %v2367
        %v2369 = vmul.f32 %v2307, 1.442695
        %v2370 = vpow.pop %v2369
        %v2371 = vmul.f32 %v2308, 1.442695
        %v2372 = vpow.pop %v2371
        %v2373 = vadd.f32 %v2310, %v2312
        %2374 = vadd.xlane.f32.xlu0 %v2373
        %v2375 = vpop.xlane.xlu0 %2374
        %v2376 = vadd.f32 %v2314, %v2316
        %2377 = vadd.xlane.f32.xlu0 %v2376
        %v2378 = vpop.xlane.xlu0 %2377
        %v2379 = vadd.f32 %v2318, %v2320
        %2380 = vadd.xlane.f32.xlu0 %v2379
        %v2381 = vpop.xlane.xlu0 %2380
        %v2382 = vadd.f32 %v2322, %v2324
        %2383 = vadd.xlane.f32.xlu0 %v2382
        %v2384 = vpop.xlane.xlu0 %2383
        %v2385 = vadd.f32 %v2326, %v2328
        %2386 = vadd.xlane.f32.xlu0 %v2385
        %v2387 = vpop.xlane.xlu0 %2386
        %v2388 = vadd.f32 %v2330, %v2332
        %2389 = vadd.xlane.f32.xlu0 %v2388
        %v2390 = vpop.xlane.xlu0 %2389
        %v2391 = vadd.f32 %v2334, %v2336
        %2392 = vadd.xlane.f32.xlu0 %v2391
        %v2393 = vpop.xlane.xlu0 %2392
        %v2394 = vadd.f32 %v2338, %v2340
        %2395 = vadd.xlane.f32.xlu0 %v2394
        %v2396 = vpop.xlane.xlu0 %2395
        %v2397 = vadd.f32 %v2342, %v2344
        %2398 = vadd.xlane.f32.xlu0 %v2397
        %v2399 = vpop.xlane.xlu0 %2398
        %v2400 = vadd.f32 %v2346, %v2348
        %2401 = vadd.xlane.f32.xlu0 %v2400
        %v2402 = vpop.xlane.xlu0 %2401
        %v2403 = vadd.f32 %v2350, %v2352
        %2404 = vadd.xlane.f32.xlu0 %v2403
        %v2405 = vpop.xlane.xlu0 %2404
        %v2406 = vadd.f32 %v2354, %v2356
        %2407 = vadd.xlane.f32.xlu0 %v2406
        %v2408 = vpop.xlane.xlu0 %2407
        %v2409 = vadd.f32 %v2358, %v2360
        %2410 = vadd.xlane.f32.xlu0 %v2409
        %v2411 = vpop.xlane.xlu0 %2410
        %v2412 = vadd.f32 %v2362, %v2364
        %2413 = vadd.xlane.f32.xlu0 %v2412
        %v2414 = vpop.xlane.xlu0 %2413
        %v2415 = vadd.f32 %v2366, %v2368
        %2416 = vadd.xlane.f32.xlu0 %v2415
        %v2417 = vpop.xlane.xlu0 %2416
        %v2418 = vadd.f32 %v2370, %v2372
        %2419 = vadd.xlane.f32.xlu0 %v2418
        %v2420 = vpop.xlane.xlu0 %2419
        %v2421 = vrcp.pop %v2375
        %v2422 = vrcp.pop %v2378
        %v2423 = vrcp.pop %v2381
        %v2424 = vrcp.pop %v2384
        %v2425 = vrcp.pop %v2387
        %v2426 = vrcp.pop %v2390
        %v2427 = vrcp.pop %v2393
        %v2428 = vrcp.pop %v2396
        %v2429 = vrcp.pop %v2399
        %v2430 = vrcp.pop %v2402
        %v2431 = vrcp.pop %v2405
        %v2432 = vrcp.pop %v2408
        %v2433 = vrcp.pop %v2411
        %v2434 = vrcp.pop %v2414
        %v2435 = vrcp.pop %v2417
        %v2436 = vrcp.pop %v2420
        %v2437 = vmul.f32 %v2310, %v2421
        %v2438 = vmul.f32 %v2312, %v2421
        %v2439 = vmul.f32 %v2314, %v2422
        %v2440 = vmul.f32 %v2316, %v2422
        %v2441 = vmul.f32 %v2318, %v2423
        %v2442 = vmul.f32 %v2320, %v2423
        %v2443 = vmul.f32 %v2322, %v2424
        %v2444 = vmul.f32 %v2324, %v2424
        %v2445 = vmul.f32 %v2326, %v2425
        %v2446 = vmul.f32 %v2328, %v2425
        %v2447 = vmul.f32 %v2330, %v2426
        %v2448 = vmul.f32 %v2332, %v2426
        %v2449 = vmul.f32 %v2334, %v2427
        %v2450 = vmul.f32 %v2336, %v2427
        %v2451 = vmul.f32 %v2338, %v2428
        %v2452 = vmul.f32 %v2340, %v2428
        %v2453 = vmul.f32 %v2342, %v2429
        %v2454 = vmul.f32 %v2344, %v2429
        %v2455 = vmul.f32 %v2346, %v2430
        %v2456 = vmul.f32 %v2348, %v2430
        %v2457 = vmul.f32 %v2350, %v2431
        %v2458 = vmul.f32 %v2352, %v2431
        %v2459 = vmul.f32 %v2354, %v2432
        %v2460 = vmul.f32 %v2356, %v2432
        %v2461 = vmul.f32 %v2358, %v2433
        %v2462 = vmul.f32 %v2360, %v2433
        %v2463 = vmul.f32 %v2362, %v2434
        %v2464 = vmul.f32 %v2364, %v2434
        %v2465 = vmul.f32 %v2366, %v2435
        %v2466 = vmul.f32 %v2368, %v2435
        %v2467 = vmul.f32 %v2370, %v2436
        %v2468 = vmul.f32 %v2372, %v2436
        %2501 = vrot.lane.b32.xlu0 %v1361, 64
        %v2502 = vpop.permute.xlu0 %2501
        %2503 = vrot.lane.b32.xlu0 %v1362, 64
        %v2504 = vpop.permute.xlu0 %2503
        %2505 = vrot.lane.b32.xlu0 %v1363, 64
        %v2506 = vpop.permute.xlu0 %2505
        %2507 = vrot.lane.b32.xlu0 %v1364, 64
        %v2508 = vpop.permute.xlu0 %2507
        %2509 = vrot.lane.b32.xlu0 %v1365, 64
        %v2510 = vpop.permute.xlu0 %2509
        %2511 = vrot.lane.b32.xlu0 %v1366, 64
        %v2512 = vpop.permute.xlu0 %2511
        %2513 = vrot.lane.b32.xlu0 %v1367, 64
        %v2514 = vpop.permute.xlu0 %2513
        %2515 = vrot.lane.b32.xlu0 %v1368, 64
        %v2516 = vpop.permute.xlu0 %2515
        %2517 = vrot.lane.b32.xlu0 %v1369, 64
        %v2518 = vpop.permute.xlu0 %2517
        %2519 = vrot.lane.b32.xlu0 %v1370, 64
        %v2520 = vpop.permute.xlu0 %2519
        %2521 = vrot.lane.b32.xlu0 %v1371, 64
        %v2522 = vpop.permute.xlu0 %2521
        %2523 = vrot.lane.b32.xlu0 %v1372, 64
        %v2524 = vpop.permute.xlu0 %2523
        %2525 = vrot.lane.b32.xlu0 %v1373, 64
        %v2526 = vpop.permute.xlu0 %2525
        %2527 = vrot.lane.b32.xlu0 %v1374, 64
        %v2528 = vpop.permute.xlu0 %2527
        %2529 = vrot.lane.b32.xlu0 %v1375, 64
        %v2530 = vpop.permute.xlu0 %2529
        %2531 = vrot.lane.b32.xlu0 %v1376, 64
        %v2532 = vpop.permute.xlu0 %2531
        %2533 = vrot.lane.b32.xlu0 %v1377, 64
        %v2534 = vpop.permute.xlu0 %2533
        %2535 = vrot.lane.b32.xlu0 %v1378, 64
        %v2536 = vpop.permute.xlu0 %2535
        %2537 = vrot.lane.b32.xlu0 %v1379, 64
        %v2538 = vpop.permute.xlu0 %2537
        %2539 = vrot.lane.b32.xlu0 %v1380, 64
        %v2540 = vpop.permute.xlu0 %2539
        %2541 = vrot.lane.b32.xlu0 %v1381, 64
        %v2542 = vpop.permute.xlu0 %2541
        %2543 = vrot.lane.b32.xlu0 %v1382, 64
        %v2544 = vpop.permute.xlu0 %2543
        %2545 = vrot.lane.b32.xlu0 %v1383, 64
        %v2546 = vpop.permute.xlu0 %2545
        %2547 = vrot.lane.b32.xlu0 %v1384, 64
        %v2548 = vpop.permute.xlu0 %2547
        %2549 = vrot.lane.b32.xlu0 %v1385, 64
        %v2550 = vpop.permute.xlu0 %2549
        %2551 = vrot.lane.b32.xlu0 %v1386, 64
        %v2552 = vpop.permute.xlu0 %2551
        %2553 = vrot.lane.b32.xlu0 %v1387, 64
        %v2554 = vpop.permute.xlu0 %2553
        %2555 = vrot.lane.b32.xlu0 %v1388, 64
        %v2556 = vpop.permute.xlu0 %2555
        %2557 = vrot.lane.b32.xlu0 %v1389, 64
        %v2558 = vpop.permute.xlu0 %2557
        %2559 = vrot.lane.b32.xlu0 %v1390, 64
        %v2560 = vpop.permute.xlu0 %2559
        %2561 = vrot.lane.b32.xlu0 %v1391, 64
        %v2562 = vpop.permute.xlu0 %2561
        %2563 = vrot.lane.b32.xlu0 %v1392, 64
        %v2564 = vpop.permute.xlu0 %2563
        %2597 = vmatprep.subr.mxu0 0.0
        %2598 = vmatpush1.msra.mxu0 %v2532
        %2599 = vmatprep.subr.mxu0 0.0
        %2600 = vmatpush1.msra.mxu0 %v2530
        %2601 = vmatprep.subr.mxu0 0.0
        %2602 = vmatpush1.msra.mxu0 %v2528
        %2603 = vmatprep.subr.mxu0 0.0
        %2604 = vmatpush1.msra.mxu0 %v2526
        %2605 = vmatprep.subr.mxu0 0.0
        %2606 = vmatpush1.msra.mxu0 %v2524
        %2607 = vmatprep.subr.mxu0 0.0
        %2608 = vmatpush1.msra.mxu0 %v2522
        %2609 = vmatprep.subr.mxu0 0.0
        %2610 = vmatpush1.msra.mxu0 %v2520
        %2611 = vmatprep.subr.mxu0 0.0
        %2612 = vmatpush1.msra.mxu0 %v2518
        %2613 = vmatprep.subr.mxu0 0.0
        %2614 = vmatpush1.msra.mxu0 %v2516
        %2615 = vmatprep.subr.mxu0 0.0
        %2616 = vmatpush1.msra.mxu0 %v2514
        %2617 = vmatprep.subr.mxu0 0.0
        %2618 = vmatpush1.msra.mxu0 %v2512
        %2619 = vmatprep.subr.mxu0 0.0
        %2620 = vmatpush1.msra.mxu0 %v2510
        %2621 = vmatprep.subr.mxu0 0.0
        %2622 = vmatpush1.msra.mxu0 %v2508
        %2623 = vmatprep.subr.mxu0 0.0
        %2624 = vmatpush1.msra.mxu0 %v2506
        %2625 = vmatprep.subr.mxu0 0.0
        %2626 = vmatpush1.msra.mxu0 %v2504
        %2627 = vmatprep.subr.mxu0 0.0
        %2628 = vmatpush1.msra.mxu0 %v2502
        %2629 = vmatprep.subr.mxu0 0.0
        %2630 = vmatpush2.msra.mxu0 %v2564
        %2631 = vmatprep.subr.mxu0 0.0
        %2632 = vmatpush2.msra.mxu0 %v2562
        %2633 = vmatprep.subr.mxu0 0.0
        %2634 = vmatpush2.msra.mxu0 %v2560
        %2635 = vmatprep.subr.mxu0 0.0
        %2636 = vmatpush2.msra.mxu0 %v2558
        %2637 = vmatprep.subr.mxu0 0.0
        %2638 = vmatpush2.msra.mxu0 %v2556
        %2639 = vmatprep.subr.mxu0 0.0
        %2640 = vmatpush2.msra.mxu0 %v2554
        %2641 = vmatprep.subr.mxu0 0.0
        %2642 = vmatpush2.msra.mxu0 %v2552
        %2643 = vmatprep.subr.mxu0 0.0
        %2644 = vmatpush2.msra.mxu0 %v2550
        %2645 = vmatprep.subr.mxu0 0.0
        %2646 = vmatpush2.msra.mxu0 %v2548
        %2647 = vmatprep.subr.mxu0 0.0
        %2648 = vmatpush2.msra.mxu0 %v2546
        %2649 = vmatprep.subr.mxu0 0.0
        %2650 = vmatpush2.msra.mxu0 %v2544
        %2651 = vmatprep.subr.mxu0 0.0
        %2652 = vmatpush2.msra.mxu0 %v2542
        %2653 = vmatprep.subr.mxu0 0.0
        %2654 = vmatpush2.msra.mxu0 %v2540
        %2655 = vmatprep.subr.mxu0 0.0
        %2656 = vmatpush2.msra.mxu0 %v2538
        %2657 = vmatprep.subr.mxu0 0.0
        %2658 = vmatpush2.msra.mxu0 %v2536
        %2659 = vmatprep.subr.mxu0 0.0
        %2660 = vmatpush2.msra.mxu0 %v2534
        %2661 = vmatprep.mubr.f32.mxu0 %v2438
        %2662 = vmatmul.mubr.f32.gmra.mxu0 %v2437
        %v2663 = vpop.f32.mrf.mxu0
        %v2664 = vadd.f32 0.0, %v2663
        %v2665 = vpop.f32.mrf.mxu0
        %2666 = vmatprep.mubr.f32.mxu0 %v2440
        %2667 = vmatmul.mubr.f32.gmra.mxu0 %v2439
        %v2668 = vpop.f32.mrf.mxu0
        %v2669 = vadd.f32 0.0, %v2668
        %v2670 = vpop.f32.mrf.mxu0
        %2671 = vmatprep.mubr.f32.mxu0 %v2442
        %2672 = vmatmul.mubr.f32.gmra.mxu0 %v2441
        %v2673 = vpop.f32.mrf.mxu0
        %v2674 = vadd.f32 0.0, %v2673
        %v2675 = vpop.f32.mrf.mxu0
        %2676 = vmatprep.mubr.f32.mxu0 %v2444
        %2677 = vmatmul.mubr.f32.gmra.mxu0 %v2443
        %v2678 = vpop.f32.mrf.mxu0
        %v2679 = vadd.f32 0.0, %v2678
        %v2680 = vpop.f32.mrf.mxu0
        %2681 = vmatprep.mubr.f32.mxu0 %v2446
        %2682 = vmatmul.mubr.f32.gmra.mxu0 %v2445
        %v2683 = vpop.f32.mrf.mxu0
        %v2684 = vadd.f32 0.0, %v2683
        %v2685 = vpop.f32.mrf.mxu0
        %2686 = vmatprep.mubr.f32.mxu0 %v2448
        %2687 = vmatmul.mubr.f32.gmra.mxu0 %v2447
        %v2688 = vpop.f32.mrf.mxu0
        %v2689 = vadd.f32 0.0, %v2688
        %v2690 = vpop.f32.mrf.mxu0
        %2691 = vmatprep.mubr.f32.mxu0 %v2450
        %2692 = vmatmul.mubr.f32.gmra.mxu0 %v2449
        %v2693 = vpop.f32.mrf.mxu0
        %v2694 = vadd.f32 0.0, %v2693
        %v2695 = vpop.f32.mrf.mxu0
        %2696 = vmatprep.mubr.f32.mxu0 %v2452
        %2697 = vmatmul.mubr.f32.gmra.mxu0 %v2451
        %v2698 = vpop.f32.mrf.mxu0
        %v2699 = vadd.f32 0.0, %v2698
        %v2700 = vpop.f32.mrf.mxu0
        %2701 = vmatprep.mubr.f32.mxu0 %v2454
        %2702 = vmatmul.mubr.f32.gmra.mxu0 %v2453
        %v2703 = vpop.f32.mrf.mxu0
        %v2704 = vadd.f32 0.0, %v2703
        %v2705 = vpop.f32.mrf.mxu0
        %2706 = vmatprep.mubr.f32.mxu0 %v2456
        %2707 = vmatmul.mubr.f32.gmra.mxu0 %v2455
        %v2708 = vpop.f32.mrf.mxu0
        %v2709 = vadd.f32 0.0, %v2708
        %v2710 = vpop.f32.mrf.mxu0
        %2711 = vmatprep.mubr.f32.mxu0 %v2458
        %2712 = vmatmul.mubr.f32.gmra.mxu0 %v2457
        %v2713 = vpop.f32.mrf.mxu0
        %v2714 = vadd.f32 0.0, %v2713
        %v2715 = vpop.f32.mrf.mxu0
        %2716 = vmatprep.mubr.f32.mxu0 %v2460
        %2717 = vmatmul.mubr.f32.gmra.mxu0 %v2459
        %v2718 = vpop.f32.mrf.mxu0
        %v2719 = vadd.f32 0.0, %v2718
        %v2720 = vpop.f32.mrf.mxu0
        %2721 = vmatprep.mubr.f32.mxu0 %v2462
        %2722 = vmatmul.mubr.f32.gmra.mxu0 %v2461
        %v2723 = vpop.f32.mrf.mxu0
        %v2724 = vadd.f32 0.0, %v2723
        %v2725 = vpop.f32.mrf.mxu0
        %2726 = vmatprep.mubr.f32.mxu0 %v2464
        %2727 = vmatmul.mubr.f32.gmra.mxu0 %v2463
        %v2728 = vpop.f32.mrf.mxu0
        %v2729 = vadd.f32 0.0, %v2728
        %v2730 = vpop.f32.mrf.mxu0
        %2731 = vmatprep.mubr.f32.mxu0 %v2466
        %2732 = vmatmul.mubr.f32.gmra.mxu0 %v2465
        %v2733 = vpop.f32.mrf.mxu0
        %v2734 = vadd.f32 0.0, %v2733
        %v2735 = vpop.f32.mrf.mxu0
        %2736 = vmatprep.mubr.f32.mxu0 %v2468
        %2737 = vmatmul.mubr.f32.gmra.mxu0 %v2467
        %v2738 = vpop.f32.mrf.mxu0
        %v2739 = vadd.f32 0.0, %v2738
        %v2740 = vpop.f32.mrf.mxu0
        %2741 = vdwg.mxu0
        %2758 = vrot.lane.b32.xlu0 %v2664, 64
        %v2759 = vpop.permute.xlu0 %2758
        %2760 = vrot.lane.b32.xlu0 %v2669, 64
        %v2761 = vpop.permute.xlu0 %2760
        %2762 = vrot.lane.b32.xlu0 %v2674, 64
        %v2763 = vpop.permute.xlu0 %2762
        %2764 = vrot.lane.b32.xlu0 %v2679, 64
        %v2765 = vpop.permute.xlu0 %2764
        %2766 = vrot.lane.b32.xlu0 %v2684, 64
        %v2767 = vpop.permute.xlu0 %2766
        %2768 = vrot.lane.b32.xlu0 %v2689, 64
        %v2769 = vpop.permute.xlu0 %2768
        %2770 = vrot.lane.b32.xlu0 %v2694, 64
        %v2771 = vpop.permute.xlu0 %2770
        %2772 = vrot.lane.b32.xlu0 %v2699, 64
        %v2773 = vpop.permute.xlu0 %2772
        %2774 = vrot.lane.b32.xlu0 %v2704, 64
        %v2775 = vpop.permute.xlu0 %2774
        %2776 = vrot.lane.b32.xlu0 %v2709, 64
        %v2777 = vpop.permute.xlu0 %2776
        %2778 = vrot.lane.b32.xlu0 %v2714, 64
        %v2779 = vpop.permute.xlu0 %2778
        %2780 = vrot.lane.b32.xlu0 %v2719, 64
        %v2781 = vpop.permute.xlu0 %2780
        %2782 = vrot.lane.b32.xlu0 %v2724, 64
        %v2783 = vpop.permute.xlu0 %2782
        %2784 = vrot.lane.b32.xlu0 %v2729, 64
        %v2785 = vpop.permute.xlu0 %2784
        %2786 = vrot.lane.b32.xlu0 %v2734, 64
        %v2787 = vpop.permute.xlu0 %2786
        %2788 = vrot.lane.b32.xlu0 %v2739, 64
        %v2789 = vpop.permute.xlu0 %2788
        %v2806 = vsel %vm1393, %v1910, %v2759
        %v2807 = vsel %vm1393, %v1915, %v2761
        %v2808 = vsel %vm1393, %v1920, %v2763
        %v2809 = vsel %vm1393, %v1925, %v2765
        %v2810 = vsel %vm1393, %v1930, %v2767
        %v2811 = vsel %vm1393, %v1935, %v2769
        %v2812 = vsel %vm1393, %v1940, %v2771
        %v2813 = vsel %vm1393, %v1945, %v2773
        %v2814 = vsel %vm1393, %v1950, %v2775
        %v2815 = vsel %vm1393, %v1955, %v2777
        %v2816 = vsel %vm1393, %v1960, %v2779
        %v2817 = vsel %vm1393, %v1965, %v2781
        %v2818 = vsel %vm1393, %v1970, %v2783
        %v2819 = vsel %vm1393, %v1975, %v2785
        %v2820 = vsel %vm1393, %v1980, %v2787
        %v2821 = vsel %vm1393, %v1985, %v2789
        %2822 = vst [vmem:[#allocation4] sm:$0xff] %v2806
        %2823 = vst [vmem:[#allocation4 + $0x8] sm:$0xff] %v2807
        %2824 = vst [vmem:[#allocation4 + $0x10] sm:$0xff] %v2808
        %2825 = vst [vmem:[#allocation4 + $0x18] sm:$0xff] %v2809
        %2826 = vst [vmem:[#allocation4 + $0x20] sm:$0xff] %v2810
        %2827 = vst [vmem:[#allocation4 + $0x28] sm:$0xff] %v2811
        %2828 = vst [vmem:[#allocation4 + $0x30] sm:$0xff] %v2812
        %2829 = vst [vmem:[#allocation4 + $0x38] sm:$0xff] %v2813
        %2830 = vst [vmem:[#allocation4 + $0x40] sm:$0xff] %v2814
        %2831 = vst [vmem:[#allocation4 + $0x48] sm:$0xff] %v2815
        %2832 = vst [vmem:[#allocation4 + $0x50] sm:$0xff] %v2816
        %2833 = vst [vmem:[#allocation4 + $0x58] sm:$0xff] %v2817
        %2834 = vst [vmem:[#allocation4 + $0x60] sm:$0xff] %v2818
        %2835 = vst [vmem:[#allocation4 + $0x68] sm:$0xff] %v2819
        %2836 = vst [vmem:[#allocation4 + $0x70] sm:$0xff] %v2820
        %2837 = vst [vmem:[#allocation4 + $0x78] sm:$0xff] %v2821
        %v2838 = vld [vmem:[#allocation4] sm:$0xff]
        %v2839 = vld [vmem:[#allocation4 + $0x8] sm:$0xff]
        %v2840 = vld [vmem:[#allocation4 + $0x10] sm:$0xff]
        %v2841 = vld [vmem:[#allocation4 + $0x18] sm:$0xff]
        %v2842 = vld [vmem:[#allocation4 + $0x20] sm:$0xff]
        %v2843 = vld [vmem:[#allocation4 + $0x28] sm:$0xff]
        %v2844 = vld [vmem:[#allocation4 + $0x30] sm:$0xff]
        %v2845 = vld [vmem:[#allocation4 + $0x38] sm:$0xff]
        %v2846 = vld [vmem:[#allocation4 + $0x40] sm:$0xff]
        %v2847 = vld [vmem:[#allocation4 + $0x48] sm:$0xff]
        %v2848 = vld [vmem:[#allocation4 + $0x50] sm:$0xff]
        %v2849 = vld [vmem:[#allocation4 + $0x58] sm:$0xff]
        %v2850 = vld [vmem:[#allocation4 + $0x60] sm:$0xff]
        %v2851 = vld [vmem:[#allocation4 + $0x68] sm:$0xff]
        %v2852 = vld [vmem:[#allocation4 + $0x70] sm:$0xff]
        %v2853 = vld [vmem:[#allocation4 + $0x78] sm:$0xff]
        %v2854 = vld [vmem:[#allocation13] sm:$0xff]
        %v2855 = vld [vmem:[#allocation13 + $0x8] sm:$0xff]
        %v2856 = vld [vmem:[#allocation13 + $0x10] sm:$0xff]
        %v2857 = vld [vmem:[#allocation13 + $0x18] sm:$0xff]
        %v2858 = vld [vmem:[#allocation13 + $0x20] sm:$0xff]
        %v2859 = vld [vmem:[#allocation13 + $0x28] sm:$0xff]
        %v2860 = vld [vmem:[#allocation13 + $0x30] sm:$0xff]
        %v2861 = vld [vmem:[#allocation13 + $0x38] sm:$0xff]
        %v2862 = vld [vmem:[#allocation13 + $0x40] sm:$0xff]
        %v2863 = vld [vmem:[#allocation13 + $0x48] sm:$0xff]
        %v2864 = vld [vmem:[#allocation13 + $0x50] sm:$0xff]
        %v2865 = vld [vmem:[#allocation13 + $0x58] sm:$0xff]
        %v2866 = vld [vmem:[#allocation13 + $0x60] sm:$0xff]
        %v2867 = vld [vmem:[#allocation13 + $0x68] sm:$0xff]
        %v2868 = vld [vmem:[#allocation13 + $0x70] sm:$0xff]
        %v2869 = vld [vmem:[#allocation13 + $0x78] sm:$0xff]
        %v2870 = vld [vmem:[%s7] sm:$0x1]
        %v2872 = vlaneseq
        %v2873 = vshrl.u32 %v2872, 7
        %v2874 = vsub.s32 0, %v2873
        %v2875 = vrot.slane %v2870, %v2874
        %2877 = vmatprep.subr.mxu0 0.0
        %2878 = vmatpush1.msra.mxu0 %v2869
        %2879 = vmatprep.subr.mxu0 0.0
        %2880 = vmatpush1.msra.mxu0 %v2868
        %2881 = vmatprep.subr.mxu0 0.0
        %2882 = vmatpush1.msra.mxu0 %v2867
        %2883 = vmatprep.subr.mxu0 0.0
        %2884 = vmatpush1.msra.mxu0 %v2866
        %2885 = vmatprep.subr.mxu0 0.0
        %2886 = vmatpush1.msra.mxu0 %v2865
        %2887 = vmatprep.subr.mxu0 0.0
        %2888 = vmatpush1.msra.mxu0 %v2864
        %2889 = vmatprep.subr.mxu0 0.0
        %2890 = vmatpush1.msra.mxu0 %v2863
        %2891 = vmatprep.subr.mxu0 0.0
        %2892 = vmatpush1.msra.mxu0 %v2862
        %2893 = vmatprep.subr.mxu0 0.0
        %2894 = vmatpush1.msra.mxu0 %v2861
        %2895 = vmatprep.subr.mxu0 0.0
        %2896 = vmatpush1.msra.mxu0 %v2860
        %2897 = vmatprep.subr.mxu0 0.0
        %2898 = vmatpush1.msra.mxu0 %v2859
        %2899 = vmatprep.subr.mxu0 0.0
        %2900 = vmatpush1.msra.mxu0 %v2858
        %2901 = vmatprep.subr.mxu0 0.0
        %2902 = vmatpush1.msra.mxu0 %v2857
        %2903 = vmatprep.subr.mxu0 0.0
        %2904 = vmatpush1.msra.mxu0 %v2856
        %2905 = vmatprep.subr.mxu0 0.0
        %2906 = vmatpush1.msra.mxu0 %v2855
        %2907 = vmatprep.subr.mxu0 0.0
        %2908 = vmatpush1.msra.mxu0 %v2854
        %2909 = vmatprep.subr.mxu0 0.0
        %2910 = vmatpush2.msra.mxu0 0.0
        %2911 = vmatprep.subr.mxu0 0.0
        %2912 = vmatpush2.msra.mxu0 0.0
        %2913 = vmatprep.subr.mxu0 0.0
        %2914 = vmatpush2.msra.mxu0 0.0
        %2915 = vmatprep.subr.mxu0 0.0
        %2916 = vmatpush2.msra.mxu0 0.0
        %2917 = vmatprep.subr.mxu0 0.0
        %2918 = vmatpush2.msra.mxu0 0.0
        %2919 = vmatprep.subr.mxu0 0.0
        %2920 = vmatpush2.msra.mxu0 0.0
        %2921 = vmatprep.subr.mxu0 0.0
        %2922 = vmatpush2.msra.mxu0 0.0
        %2923 = vmatprep.subr.mxu0 0.0
        %2924 = vmatpush2.msra.mxu0 0.0
        %2925 = vmatprep.subr.mxu0 0.0
        %2926 = vmatpush2.msra.mxu0 0.0
        %2927 = vmatprep.subr.mxu0 0.0
        %2928 = vmatpush2.msra.mxu0 0.0
        %2929 = vmatprep.subr.mxu0 0.0
        %2930 = vmatpush2.msra.mxu0 0.0
        %2931 = vmatprep.subr.mxu0 0.0
        %2932 = vmatpush2.msra.mxu0 0.0
        %2933 = vmatprep.subr.mxu0 0.0
        %2934 = vmatpush2.msra.mxu0 0.0
        %2935 = vmatprep.subr.mxu0 0.0
        %2936 = vmatpush2.msra.mxu0 0.0
        %2937 = vmatprep.subr.mxu0 0.0
        %2938 = vmatpush2.msra.mxu0 0.0
        %2939 = vmatprep.subr.mxu0 0.0
        %2940 = vmatpush2.msra.mxu0 0.0
        %2941 = vmatprep.mubr.f32.mxu0 0.0
        %2942 = vmatmul.mubr.f32.gmra.mxu0 %v2838
        %v2943 = vpop.f32.mrf.mxu0
        %v2944 = vadd.f32 %v2875, %v2943
        %v2945 = vpop.f32.mrf.mxu0
        %2946 = vmatprep.mubr.f32.mxu0 0.0
        %2947 = vmatmul.mubr.f32.gmra.mxu0 %v2839
        %v2948 = vpop.f32.mrf.mxu0
        %v2949 = vadd.f32 %v2875, %v2948
        %v2950 = vpop.f32.mrf.mxu0
        %2951 = vmatprep.mubr.f32.mxu0 0.0
        %2952 = vmatmul.mubr.f32.gmra.mxu0 %v2840
        %v2953 = vpop.f32.mrf.mxu0
        %v2954 = vadd.f32 %v2875, %v2953
        %v2955 = vpop.f32.mrf.mxu0
        %2956 = vmatprep.mubr.f32.mxu0 0.0
        %2957 = vmatmul.mubr.f32.gmra.mxu0 %v2841
        %v2958 = vpop.f32.mrf.mxu0
        %v2959 = vadd.f32 %v2875, %v2958
        %v2960 = vpop.f32.mrf.mxu0
        %2961 = vmatprep.mubr.f32.mxu0 0.0
        %2962 = vmatmul.mubr.f32.gmra.mxu0 %v2842
        %v2963 = vpop.f32.mrf.mxu0
        %v2964 = vadd.f32 %v2875, %v2963
        %v2965 = vpop.f32.mrf.mxu0
        %2966 = vmatprep.mubr.f32.mxu0 0.0
        %2967 = vmatmul.mubr.f32.gmra.mxu0 %v2843
        %v2968 = vpop.f32.mrf.mxu0
        %v2969 = vadd.f32 %v2875, %v2968
        %v2970 = vpop.f32.mrf.mxu0
        %2971 = vmatprep.mubr.f32.mxu0 0.0
        %2972 = vmatmul.mubr.f32.gmra.mxu0 %v2844
        %v2973 = vpop.f32.mrf.mxu0
        %v2974 = vadd.f32 %v2875, %v2973
        %v2975 = vpop.f32.mrf.mxu0
        %2976 = vmatprep.mubr.f32.mxu0 0.0
        %2977 = vmatmul.mubr.f32.gmra.mxu0 %v2845
        %v2978 = vpop.f32.mrf.mxu0
        %v2979 = vadd.f32 %v2875, %v2978
        %v2980 = vpop.f32.mrf.mxu0
        %2981 = vmatprep.mubr.f32.mxu0 0.0
        %2982 = vmatmul.mubr.f32.gmra.mxu0 %v2846
        %v2983 = vpop.f32.mrf.mxu0
        %v2984 = vadd.f32 %v2875, %v2983
        %v2985 = vpop.f32.mrf.mxu0
        %2986 = vmatprep.mubr.f32.mxu0 0.0
        %2987 = vmatmul.mubr.f32.gmra.mxu0 %v2847
        %v2988 = vpop.f32.mrf.mxu0
        %v2989 = vadd.f32 %v2875, %v2988
        %v2990 = vpop.f32.mrf.mxu0
        %2991 = vmatprep.mubr.f32.mxu0 0.0
        %2992 = vmatmul.mubr.f32.gmra.mxu0 %v2848
        %v2993 = vpop.f32.mrf.mxu0
        %v2994 = vadd.f32 %v2875, %v2993
        %v2995 = vpop.f32.mrf.mxu0
        %2996 = vmatprep.mubr.f32.mxu0 0.0
        %2997 = vmatmul.mubr.f32.gmra.mxu0 %v2849
        %v2998 = vpop.f32.mrf.mxu0
        %v2999 = vadd.f32 %v2875, %v2998
        %v3000 = vpop.f32.mrf.mxu0
        %3001 = vmatprep.mubr.f32.mxu0 0.0
        %3002 = vmatmul.mubr.f32.gmra.mxu0 %v2850
        %v3003 = vpop.f32.mrf.mxu0
        %v3004 = vadd.f32 %v2875, %v3003
        %v3005 = vpop.f32.mrf.mxu0
        %3006 = vmatprep.mubr.f32.mxu0 0.0
        %3007 = vmatmul.mubr.f32.gmra.mxu0 %v2851
        %v3008 = vpop.f32.mrf.mxu0
        %v3009 = vadd.f32 %v2875, %v3008
        %v3010 = vpop.f32.mrf.mxu0
        %3011 = vmatprep.mubr.f32.mxu0 0.0
        %3012 = vmatmul.mubr.f32.gmra.mxu0 %v2852
        %v3013 = vpop.f32.mrf.mxu0
        %v3014 = vadd.f32 %v2875, %v3013
        %v3015 = vpop.f32.mrf.mxu0
        %3016 = vmatprep.mubr.f32.mxu0 0.0
        %3017 = vmatmul.mubr.f32.gmra.mxu0 %v2853
        %v3018 = vpop.f32.mrf.mxu0
        %v3019 = vadd.f32 %v2875, %v3018
        %v3020 = vpop.f32.mrf.mxu0
        %3021 = vdwg.mxu0
        %v3022 = vadd.f32 %v2944, %v1132
        %v3023 = vadd.f32 %v2949, %v1133
        %v3024 = vadd.f32 %v2954, %v1134
        %v3025 = vadd.f32 %v2959, %v1135
        %v3026 = vadd.f32 %v2964, %v1136
        %v3027 = vadd.f32 %v2969, %v1137
        %v3028 = vadd.f32 %v2974, %v1138
        %v3029 = vadd.f32 %v2979, %v1139
        %v3030 = vadd.f32 %v2984, %v1140
        %v3031 = vadd.f32 %v2989, %v1141
        %v3032 = vadd.f32 %v2994, %v1142
        %v3033 = vadd.f32 %v2999, %v1143
        %v3034 = vadd.f32 %v3004, %v1144
        %v3035 = vadd.f32 %v3009, %v1145
        %v3036 = vadd.f32 %v3014, %v1146
        %v3037 = vadd.f32 %v3019, %v1147
        %3038 = vadd.xlane.f32.xlu0 %v3022
        %v3039 = vpop.xlane.xlu0 %3038
        %3040 = vadd.xlane.f32.xlu0 %v3023
        %v3041 = vpop.xlane.xlu0 %3040
        %3042 = vadd.xlane.f32.xlu0 %v3024
        %v3043 = vpop.xlane.xlu0 %3042
        %3044 = vadd.xlane.f32.xlu0 %v3025
        %v3045 = vpop.xlane.xlu0 %3044
        %3046 = vadd.xlane.f32.xlu0 %v3026
        %v3047 = vpop.xlane.xlu0 %3046
        %3048 = vadd.xlane.f32.xlu0 %v3027
        %v3049 = vpop.xlane.xlu0 %3048
        %3050 = vadd.xlane.f32.xlu0 %v3028
        %v3051 = vpop.xlane.xlu0 %3050
        %3052 = vadd.xlane.f32.xlu0 %v3029
        %v3053 = vpop.xlane.xlu0 %3052
        %3054 = vadd.xlane.f32.xlu0 %v3030
        %v3055 = vpop.xlane.xlu0 %3054
        %3056 = vadd.xlane.f32.xlu0 %v3031
        %v3057 = vpop.xlane.xlu0 %3056
        %3058 = vadd.xlane.f32.xlu0 %v3032
        %v3059 = vpop.xlane.xlu0 %3058
        %3060 = vadd.xlane.f32.xlu0 %v3033
        %v3061 = vpop.xlane.xlu0 %3060
        %3062 = vadd.xlane.f32.xlu0 %v3034
        %v3063 = vpop.xlane.xlu0 %3062
        %3064 = vadd.xlane.f32.xlu0 %v3035
        %v3065 = vpop.xlane.xlu0 %3064
        %3066 = vadd.xlane.f32.xlu0 %v3036
        %v3067 = vpop.xlane.xlu0 %3066
        %3068 = vadd.xlane.f32.xlu0 %v3037
        %v3069 = vpop.xlane.xlu0 %3068
        %v3070 = vrcp.pop 128.0
        %v3071 = vmul.f32 %v3039, %v3070
        %v3072 = vmul.f32 %v3041, %v3070
        %v3073 = vmul.f32 %v3043, %v3070
        %v3074 = vmul.f32 %v3045, %v3070
        %v3075 = vmul.f32 %v3047, %v3070
        %v3076 = vmul.f32 %v3049, %v3070
        %v3077 = vmul.f32 %v3051, %v3070
        %v3078 = vmul.f32 %v3053, %v3070
        %v3079 = vmul.f32 %v3055, %v3070
        %v3080 = vmul.f32 %v3057, %v3070
        %v3081 = vmul.f32 %v3059, %v3070
        %v3082 = vmul.f32 %v3061, %v3070
        %v3083 = vmul.f32 %v3063, %v3070
        %v3084 = vmul.f32 %v3065, %v3070
        %v3085 = vmul.f32 %v3067, %v3070
        %v3086 = vmul.f32 %v3069, %v3070
        %v3087 = vsub.f32 %v3022, %v3071
        %v3088 = vsub.f32 %v3023, %v3072
        %v3089 = vsub.f32 %v3024, %v3073
        %v3090 = vsub.f32 %v3025, %v3074
        %v3091 = vsub.f32 %v3026, %v3075
        %v3092 = vsub.f32 %v3027, %v3076
        %v3093 = vsub.f32 %v3028, %v3077
        %v3094 = vsub.f32 %v3029, %v3078
        %v3095 = vsub.f32 %v3030, %v3079
        %v3096 = vsub.f32 %v3031, %v3080
        %v3097 = vsub.f32 %v3032, %v3081
        %v3098 = vsub.f32 %v3033, %v3082
        %v3099 = vsub.f32 %v3034, %v3083
        %v3100 = vsub.f32 %v3035, %v3084
        %v3101 = vsub.f32 %v3036, %v3085
        %v3102 = vsub.f32 %v3037, %v3086
        %v3103 = vmul.f32 %v3087, %v3087
        %v3104 = vmul.f32 %v3088, %v3088
        %v3105 = vmul.f32 %v3089, %v3089
        %v3106 = vmul.f32 %v3090, %v3090
        %v3107 = vmul.f32 %v3091, %v3091
        %v3108 = vmul.f32 %v3092, %v3092
        %v3109 = vmul.f32 %v3093, %v3093
        %v3110 = vmul.f32 %v3094, %v3094
        %v3111 = vmul.f32 %v3095, %v3095
        %v3112 = vmul.f32 %v3096, %v3096
        %v3113 = vmul.f32 %v3097, %v3097
        %v3114 = vmul.f32 %v3098, %v3098
        %v3115 = vmul.f32 %v3099, %v3099
        %v3116 = vmul.f32 %v3100, %v3100
        %v3117 = vmul.f32 %v3101, %v3101
        %v3118 = vmul.f32 %v3102, %v3102
        %3119 = vadd.xlane.f32.xlu0 %v3103
        %v3120 = vpop.xlane.xlu0 %3119
        %3121 = vadd.xlane.f32.xlu0 %v3104
        %v3122 = vpop.xlane.xlu0 %3121
        %3123 = vadd.xlane.f32.xlu0 %v3105
        %v3124 = vpop.xlane.xlu0 %3123
        %3125 = vadd.xlane.f32.xlu0 %v3106
        %v3126 = vpop.xlane.xlu0 %3125
        %3127 = vadd.xlane.f32.xlu0 %v3107
        %v3128 = vpop.xlane.xlu0 %3127
        %3129 = vadd.xlane.f32.xlu0 %v3108
        %v3130 = vpop.xlane.xlu0 %3129
        %3131 = vadd.xlane.f32.xlu0 %v3109
        %v3132 = vpop.xlane.xlu0 %3131
        %3133 = vadd.xlane.f32.xlu0 %v3110
        %v3134 = vpop.xlane.xlu0 %3133
        %3135 = vadd.xlane.f32.xlu0 %v3111
        %v3136 = vpop.xlane.xlu0 %3135
        %3137 = vadd.xlane.f32.xlu0 %v3112
        %v3138 = vpop.xlane.xlu0 %3137
        %3139 = vadd.xlane.f32.xlu0 %v3113
        %v3140 = vpop.xlane.xlu0 %3139
        %3141 = vadd.xlane.f32.xlu0 %v3114
        %v3142 = vpop.xlane.xlu0 %3141
        %3143 = vadd.xlane.f32.xlu0 %v3115
        %v3144 = vpop.xlane.xlu0 %3143
        %3145 = vadd.xlane.f32.xlu0 %v3116
        %v3146 = vpop.xlane.xlu0 %3145
        %3147 = vadd.xlane.f32.xlu0 %v3117
        %v3148 = vpop.xlane.xlu0 %3147
        %3149 = vadd.xlane.f32.xlu0 %v3118
        %v3150 = vpop.xlane.xlu0 %3149
        %v3151 = vmul.f32 %v3120, %v3070
        %v3152 = vmul.f32 %v3122, %v3070
        %v3153 = vmul.f32 %v3124, %v3070
        %v3154 = vmul.f32 %v3126, %v3070
        %v3155 = vmul.f32 %v3128, %v3070
        %v3156 = vmul.f32 %v3130, %v3070
        %v3157 = vmul.f32 %v3132, %v3070
        %v3158 = vmul.f32 %v3134, %v3070
        %v3159 = vmul.f32 %v3136, %v3070
        %v3160 = vmul.f32 %v3138, %v3070
        %v3161 = vmul.f32 %v3140, %v3070
        %v3162 = vmul.f32 %v3142, %v3070
        %v3163 = vmul.f32 %v3144, %v3070
        %v3164 = vmul.f32 %v3146, %v3070
        %v3165 = vmul.f32 %v3148, %v3070
        %v3166 = vmul.f32 %v3150, %v3070
        %v3167 = vadd.f32 %v3151, 1e-12
        %v3168 = vadd.f32 %v3152, 1e-12
        %v3169 = vadd.f32 %v3153, 1e-12
        %v3170 = vadd.f32 %v3154, 1e-12
        %v3171 = vadd.f32 %v3155, 1e-12
        %v3172 = vadd.f32 %v3156, 1e-12
        %v3173 = vadd.f32 %v3157, 1e-12
        %v3174 = vadd.f32 %v3158, 1e-12
        %v3175 = vadd.f32 %v3159, 1e-12
        %v3176 = vadd.f32 %v3160, 1e-12
        %v3177 = vadd.f32 %v3161, 1e-12
        %v3178 = vadd.f32 %v3162, 1e-12
        %v3179 = vadd.f32 %v3163, 1e-12
        %v3180 = vadd.f32 %v3164, 1e-12
        %v3181 = vadd.f32 %v3165, 1e-12
        %v3182 = vadd.f32 %v3166, 1e-12
        %v3183 = vrsqrt.pop %v3167
        %v3184 = vrsqrt.pop %v3168
        %v3185 = vrsqrt.pop %v3169
        %v3186 = vrsqrt.pop %v3170
        %v3187 = vrsqrt.pop %v3171
        %v3188 = vrsqrt.pop %v3172
        %v3189 = vrsqrt.pop %v3173
        %v3190 = vrsqrt.pop %v3174
        %v3191 = vrsqrt.pop %v3175
        %v3192 = vrsqrt.pop %v3176
        %v3193 = vrsqrt.pop %v3177
        %v3194 = vrsqrt.pop %v3178
        %v3195 = vrsqrt.pop %v3179
        %v3196 = vrsqrt.pop %v3180
        %v3197 = vrsqrt.pop %v3181
        %v3198 = vrsqrt.pop %v3182
        %v3199 = vmul.f32 %v3087, %v3183
        %v3200 = vmul.f32 %v3088, %v3184
        %v3201 = vmul.f32 %v3089, %v3185
        %v3202 = vmul.f32 %v3090, %v3186
        %v3203 = vmul.f32 %v3091, %v3187
        %v3204 = vmul.f32 %v3092, %v3188
        %v3205 = vmul.f32 %v3093, %v3189
        %v3206 = vmul.f32 %v3094, %v3190
        %v3207 = vmul.f32 %v3095, %v3191
        %v3208 = vmul.f32 %v3096, %v3192
        %v3209 = vmul.f32 %v3097, %v3193
        %v3210 = vmul.f32 %v3098, %v3194
        %v3211 = vmul.f32 %v3099, %v3195
        %v3212 = vmul.f32 %v3100, %v3196
        %v3213 = vmul.f32 %v3101, %v3197
        %v3214 = vmul.f32 %v3102, %v3198
        %v3215 = vld [vmem:[%s8] sm:$0x1]
        %v3217 = vlaneseq
        %v3218 = vshrl.u32 %v3217, 7
        %v3219 = vsub.s32 0, %v3218
        %v3220 = vrot.slane %v3215, %v3219
        %v3222 = vmul.f32 %v3199, %v3220
        %v3223 = vmul.f32 %v3200, %v3220
        %v3224 = vmul.f32 %v3201, %v3220
        %v3225 = vmul.f32 %v3202, %v3220
        %v3226 = vmul.f32 %v3203, %v3220
        %v3227 = vmul.f32 %v3204, %v3220
        %v3228 = vmul.f32 %v3205, %v3220
        %v3229 = vmul.f32 %v3206, %v3220
        %v3230 = vmul.f32 %v3207, %v3220
        %v3231 = vmul.f32 %v3208, %v3220
        %v3232 = vmul.f32 %v3209, %v3220
        %v3233 = vmul.f32 %v3210, %v3220
        %v3234 = vmul.f32 %v3211, %v3220
        %v3235 = vmul.f32 %v3212, %v3220
        %v3236 = vmul.f32 %v3213, %v3220
        %v3237 = vmul.f32 %v3214, %v3220
        %v3238 = vld [vmem:[%s9] sm:$0x1]
        %v3240 = vlaneseq
        %v3241 = vshrl.u32 %v3240, 7
        %v3242 = vsub.s32 0, %v3241
        %v3243 = vrot.slane %v3238, %v3242
        %v3245 = vadd.f32 %v3222, %v3243
        %v3246 = vadd.f32 %v3223, %v3243
        %v3247 = vadd.f32 %v3224, %v3243
        %v3248 = vadd.f32 %v3225, %v3243
        %v3249 = vadd.f32 %v3226, %v3243
        %v3250 = vadd.f32 %v3227, %v3243
        %v3251 = vadd.f32 %v3228, %v3243
        %v3252 = vadd.f32 %v3229, %v3243
        %v3253 = vadd.f32 %v3230, %v3243
        %v3254 = vadd.f32 %v3231, %v3243
        %v3255 = vadd.f32 %v3232, %v3243
        %v3256 = vadd.f32 %v3233, %v3243
        %v3257 = vadd.f32 %v3234, %v3243
        %v3258 = vadd.f32 %v3235, %v3243
        %v3259 = vadd.f32 %v3236, %v3243
        %v3260 = vadd.f32 %v3237, %v3243
        %v3261 = vld [vmem:[#allocation14] sm:$0xff]
        %v3262 = vld [vmem:[#allocation14 + $0x8] sm:$0xff]
        %v3263 = vld [vmem:[#allocation14 + $0x10] sm:$0xff]
        %v3264 = vld [vmem:[#allocation14 + $0x18] sm:$0xff]
        %v3265 = vld [vmem:[#allocation14 + $0x20] sm:$0xff]
        %v3266 = vld [vmem:[#allocation14 + $0x28] sm:$0xff]
        %v3267 = vld [vmem:[#allocation14 + $0x30] sm:$0xff]
        %v3268 = vld [vmem:[#allocation14 + $0x38] sm:$0xff]
        %v3269 = vld [vmem:[#allocation14 + $0x40] sm:$0xff]
        %v3270 = vld [vmem:[#allocation14 + $0x48] sm:$0xff]
        %v3271 = vld [vmem:[#allocation14 + $0x50] sm:$0xff]
        %v3272 = vld [vmem:[#allocation14 + $0x58] sm:$0xff]
        %v3273 = vld [vmem:[#allocation14 + $0x60] sm:$0xff]
        %v3274 = vld [vmem:[#allocation14 + $0x68] sm:$0xff]
        %v3275 = vld [vmem:[#allocation14 + $0x70] sm:$0xff]
        %v3276 = vld [vmem:[#allocation14 + $0x78] sm:$0xff]
        %v3277 = vld [vmem:[#allocation14 + $0x80] sm:$0xff]
        %v3278 = vld [vmem:[#allocation14 + $0x88] sm:$0xff]
        %v3279 = vld [vmem:[#allocation14 + $0x90] sm:$0xff]
        %v3280 = vld [vmem:[#allocation14 + $0x98] sm:$0xff]
        %v3281 = vld [vmem:[#allocation14 + $0xa0] sm:$0xff]
        %v3282 = vld [vmem:[#allocation14 + $0xa8] sm:$0xff]
        %v3283 = vld [vmem:[#allocation14 + $0xb0] sm:$0xff]
        %v3284 = vld [vmem:[#allocation14 + $0xb8] sm:$0xff]
        %v3285 = vld [vmem:[#allocation14 + $0xc0] sm:$0xff]
        %v3286 = vld [vmem:[#allocation14 + $0xc8] sm:$0xff]
        %v3287 = vld [vmem:[#allocation14 + $0xd0] sm:$0xff]
        %v3288 = vld [vmem:[#allocation14 + $0xd8] sm:$0xff]
        %v3289 = vld [vmem:[#allocation14 + $0xe0] sm:$0xff]
        %v3290 = vld [vmem:[#allocation14 + $0xe8] sm:$0xff]
        %v3291 = vld [vmem:[#allocation14 + $0xf0] sm:$0xff]
        %v3292 = vld [vmem:[#allocation14 + $0xf8] sm:$0xff]
        %v3293 = vld [vmem:[#allocation14 + $0x100] sm:$0xff]
        %v3294 = vld [vmem:[#allocation14 + $0x108] sm:$0xff]
        %v3295 = vld [vmem:[#allocation14 + $0x110] sm:$0xff]
        %v3296 = vld [vmem:[#allocation14 + $0x118] sm:$0xff]
        %v3297 = vld [vmem:[#allocation14 + $0x120] sm:$0xff]
        %v3298 = vld [vmem:[#allocation14 + $0x128] sm:$0xff]
        %v3299 = vld [vmem:[#allocation14 + $0x130] sm:$0xff]
        %v3300 = vld [vmem:[#allocation14 + $0x138] sm:$0xff]
        %v3301 = vld [vmem:[#allocation14 + $0x140] sm:$0xff]
        %v3302 = vld [vmem:[#allocation14 + $0x148] sm:$0xff]
        %v3303 = vld [vmem:[#allocation14 + $0x150] sm:$0xff]
        %v3304 = vld [vmem:[#allocation14 + $0x158] sm:$0xff]
        %v3305 = vld [vmem:[#allocation14 + $0x160] sm:$0xff]
        %v3306 = vld [vmem:[#allocation14 + $0x168] sm:$0xff]
        %v3307 = vld [vmem:[#allocation14 + $0x170] sm:$0xff]
        %v3308 = vld [vmem:[#allocation14 + $0x178] sm:$0xff]
        %v3309 = vld [vmem:[#allocation14 + $0x180] sm:$0xff]
        %v3310 = vld [vmem:[#allocation14 + $0x188] sm:$0xff]
        %v3311 = vld [vmem:[#allocation14 + $0x190] sm:$0xff]
        %v3312 = vld [vmem:[#allocation14 + $0x198] sm:$0xff]
        %v3313 = vld [vmem:[#allocation14 + $0x1a0] sm:$0xff]
        %v3314 = vld [vmem:[#allocation14 + $0x1a8] sm:$0xff]
        %v3315 = vld [vmem:[#allocation14 + $0x1b0] sm:$0xff]
        %v3316 = vld [vmem:[#allocation14 + $0x1b8] sm:$0xff]
        %v3317 = vld [vmem:[#allocation14 + $0x1c0] sm:$0xff]
        %v3318 = vld [vmem:[#allocation14 + $0x1c8] sm:$0xff]
        %v3319 = vld [vmem:[#allocation14 + $0x1d0] sm:$0xff]
        %v3320 = vld [vmem:[#allocation14 + $0x1d8] sm:$0xff]
        %v3321 = vld [vmem:[#allocation14 + $0x1e0] sm:$0xff]
        %v3322 = vld [vmem:[#allocation14 + $0x1e8] sm:$0xff]
        %v3323 = vld [vmem:[#allocation14 + $0x1f0] sm:$0xff]
        %v3324 = vld [vmem:[#allocation14 + $0x1f8] sm:$0xff]
        %v3325 = vld [vmem:[%s11] sm:$0xf]
        %v3327 = vlaneseq
        %v3328 = vshrl.u32 %v3327, 7
        %v3329 = vsub.s32 0, %v3328
        %v3330 = vrot.slane %v3325, %v3329
        %v3331 = vlaneseq
        %v3332 = vshrl.u32 %v3331, 7
        %v3333 = vsub.s32 1, %v3332
        %v3334 = vrot.slane %v3325, %v3333
        %v3335 = vlaneseq
        %v3336 = vshrl.u32 %v3335, 7
        %v3337 = vsub.s32 2, %v3336
        %v3338 = vrot.slane %v3325, %v3337
        %v3339 = vlaneseq
        %v3340 = vshrl.u32 %v3339, 7
        %v3341 = vsub.s32 3, %v3340
        %v3342 = vrot.slane %v3325, %v3341
        %3347 = vmatprep.subr.mxu0 %v3322
        %3348 = vmatpush1.msra.mxu0 %v3321
        %3349 = vmatprep.subr.mxu0 %v3318
        %3350 = vmatpush1.msra.mxu0 %v3317
        %3351 = vmatprep.subr.mxu0 %v3314
        %3352 = vmatpush1.msra.mxu0 %v3313
        %3353 = vmatprep.subr.mxu0 %v3310
        %3354 = vmatpush1.msra.mxu0 %v3309
        %3355 = vmatprep.subr.mxu0 %v3306
        %3356 = vmatpush1.msra.mxu0 %v3305
        %3357 = vmatprep.subr.mxu0 %v3302
        %3358 = vmatpush1.msra.mxu0 %v3301
        %3359 = vmatprep.subr.mxu0 %v3298
        %3360 = vmatpush1.msra.mxu0 %v3297
        %3361 = vmatprep.subr.mxu0 %v3294
        %3362 = vmatpush1.msra.mxu0 %v3293
        %3363 = vmatprep.subr.mxu0 %v3290
        %3364 = vmatpush1.msra.mxu0 %v3289
        %3365 = vmatprep.subr.mxu0 %v3286
        %3366 = vmatpush1.msra.mxu0 %v3285
        %3367 = vmatprep.subr.mxu0 %v3282
        %3368 = vmatpush1.msra.mxu0 %v3281
        %3369 = vmatprep.subr.mxu0 %v3278
        %3370 = vmatpush1.msra.mxu0 %v3277
        %3371 = vmatprep.subr.mxu0 %v3274
        %3372 = vmatpush1.msra.mxu0 %v3273
        %3373 = vmatprep.subr.mxu0 %v3270
        %3374 = vmatpush1.msra.mxu0 %v3269
        %3375 = vmatprep.subr.mxu0 %v3266
        %3376 = vmatpush1.msra.mxu0 %v3265
        %3377 = vmatprep.subr.mxu0 %v3262
        %3378 = vmatpush1.msra.mxu0 %v3261
        %3379 = vmatprep.subr.mxu0 0.0
        %3380 = vmatpush2.msra.mxu0 0.0
        %3381 = vmatprep.subr.mxu0 0.0
        %3382 = vmatpush2.msra.mxu0 0.0
        %3383 = vmatprep.subr.mxu0 0.0
        %3384 = vmatpush2.msra.mxu0 0.0
        %3385 = vmatprep.subr.mxu0 0.0
        %3386 = vmatpush2.msra.mxu0 0.0
        %3387 = vmatprep.subr.mxu0 0.0
        %3388 = vmatpush2.msra.mxu0 0.0
        %3389 = vmatprep.subr.mxu0 0.0
        %3390 = vmatpush2.msra.mxu0 0.0
        %3391 = vmatprep.subr.mxu0 0.0
        %3392 = vmatpush2.msra.mxu0 0.0
        %3393 = vmatprep.subr.mxu0 0.0
        %3394 = vmatpush2.msra.mxu0 0.0
        %3395 = vmatprep.subr.mxu0 0.0
        %3396 = vmatpush2.msra.mxu0 0.0
        %3397 = vmatprep.subr.mxu0 0.0
        %3398 = vmatpush2.msra.mxu0 0.0
        %3399 = vmatprep.subr.mxu0 0.0
        %3400 = vmatpush2.msra.mxu0 0.0
        %3401 = vmatprep.subr.mxu0 0.0
        %3402 = vmatpush2.msra.mxu0 0.0
        %3403 = vmatprep.subr.mxu0 0.0
        %3404 = vmatpush2.msra.mxu0 0.0
        %3405 = vmatprep.subr.mxu0 0.0
        %3406 = vmatpush2.msra.mxu0 0.0
        %3407 = vmatprep.subr.mxu0 0.0
        %3408 = vmatpush2.msra.mxu0 0.0
        %3409 = vmatprep.subr.mxu0 0.0
        %3410 = vmatpush2.msra.mxu0 0.0
        %3411 = vmatprep.mubr.f32.mxu0 0.0
        %3412 = vmatmul.mubr.f32.gmra.mxu0 %v3245
        %v3413 = vpop.f32.mrf.mxu0
        %v3414 = vadd.f32 %v3330, %v3413
        %v3415 = vpop.f32.mrf.mxu0
        %v3416 = vadd.f32 %v3334, %v3415
        %3417 = vmatprep.mubr.f32.mxu0 0.0
        %3418 = vmatmul.mubr.f32.gmra.mxu0 %v3246
        %v3419 = vpop.f32.mrf.mxu0
        %v3420 = vadd.f32 %v3330, %v3419
        %v3421 = vpop.f32.mrf.mxu0
        %v3422 = vadd.f32 %v3334, %v3421
        %3423 = vmatprep.mubr.f32.mxu0 0.0
        %3424 = vmatmul.mubr.f32.gmra.mxu0 %v3247
        %v3425 = vpop.f32.mrf.mxu0
        %v3426 = vadd.f32 %v3330, %v3425
        %v3427 = vpop.f32.mrf.mxu0
        %v3428 = vadd.f32 %v3334, %v3427
        %3429 = vmatprep.mubr.f32.mxu0 0.0
        %3430 = vmatmul.mubr.f32.gmra.mxu0 %v3248
        %v3431 = vpop.f32.mrf.mxu0
        %v3432 = vadd.f32 %v3330, %v3431
        %v3433 = vpop.f32.mrf.mxu0
        %v3434 = vadd.f32 %v3334, %v3433
        %3435 = vmatprep.mubr.f32.mxu0 0.0
        %3436 = vmatmul.mubr.f32.gmra.mxu0 %v3249
        %v3437 = vpop.f32.mrf.mxu0
        %v3438 = vadd.f32 %v3330, %v3437
        %v3439 = vpop.f32.mrf.mxu0
        %v3440 = vadd.f32 %v3334, %v3439
        %3441 = vmatprep.mubr.f32.mxu0 0.0
        %3442 = vmatmul.mubr.f32.gmra.mxu0 %v3250
        %v3443 = vpop.f32.mrf.mxu0
        %v3444 = vadd.f32 %v3330, %v3443
        %v3445 = vpop.f32.mrf.mxu0
        %v3446 = vadd.f32 %v3334, %v3445
        %3447 = vmatprep.mubr.f32.mxu0 0.0
        %3448 = vmatmul.mubr.f32.gmra.mxu0 %v3251
        %v3449 = vpop.f32.mrf.mxu0
        %v3450 = vadd.f32 %v3330, %v3449
        %v3451 = vpop.f32.mrf.mxu0
        %v3452 = vadd.f32 %v3334, %v3451
        %3453 = vmatprep.mubr.f32.mxu0 0.0
        %3454 = vmatmul.mubr.f32.gmra.mxu0 %v3252
        %v3455 = vpop.f32.mrf.mxu0
        %v3456 = vadd.f32 %v3330, %v3455
        %v3457 = vpop.f32.mrf.mxu0
        %v3458 = vadd.f32 %v3334, %v3457
        %3459 = vmatprep.mubr.f32.mxu0 0.0
        %3460 = vmatmul.mubr.f32.gmra.mxu0 %v3253
        %v3461 = vpop.f32.mrf.mxu0
        %v3462 = vadd.f32 %v3330, %v3461
        %v3463 = vpop.f32.mrf.mxu0
        %v3464 = vadd.f32 %v3334, %v3463
        %3465 = vmatprep.mubr.f32.mxu0 0.0
        %3466 = vmatmul.mubr.f32.gmra.mxu0 %v3254
        %v3467 = vpop.f32.mrf.mxu0
        %v3468 = vadd.f32 %v3330, %v3467
        %v3469 = vpop.f32.mrf.mxu0
        %v3470 = vadd.f32 %v3334, %v3469
        %3471 = vmatprep.mubr.f32.mxu0 0.0
        %3472 = vmatmul.mubr.f32.gmra.mxu0 %v3255
        %v3473 = vpop.f32.mrf.mxu0
        %v3474 = vadd.f32 %v3330, %v3473
        %v3475 = vpop.f32.mrf.mxu0
        %v3476 = vadd.f32 %v3334, %v3475
        %3477 = vmatprep.mubr.f32.mxu0 0.0
        %3478 = vmatmul.mubr.f32.gmra.mxu0 %v3256
        %v3479 = vpop.f32.mrf.mxu0
        %v3480 = vadd.f32 %v3330, %v3479
        %v3481 = vpop.f32.mrf.mxu0
        %v3482 = vadd.f32 %v3334, %v3481
        %3483 = vmatprep.mubr.f32.mxu0 0.0
        %3484 = vmatmul.mubr.f32.gmra.mxu0 %v3257
        %v3485 = vpop.f32.mrf.mxu0
        %v3486 = vadd.f32 %v3330, %v3485
        %v3487 = vpop.f32.mrf.mxu0
        %v3488 = vadd.f32 %v3334, %v3487
        %3489 = vmatprep.mubr.f32.mxu0 0.0
        %3490 = vmatmul.mubr.f32.gmra.mxu0 %v3258
        %v3491 = vpop.f32.mrf.mxu0
        %v3492 = vadd.f32 %v3330, %v3491
        %v3493 = vpop.f32.mrf.mxu0
        %v3494 = vadd.f32 %v3334, %v3493
        %3495 = vmatprep.mubr.f32.mxu0 0.0
        %3496 = vmatmul.mubr.f32.gmra.mxu0 %v3259
        %v3497 = vpop.f32.mrf.mxu0
        %v3498 = vadd.f32 %v3330, %v3497
        %v3499 = vpop.f32.mrf.mxu0
        %v3500 = vadd.f32 %v3334, %v3499
        %3501 = vmatprep.mubr.f32.mxu0 0.0
        %3502 = vmatmul.mubr.f32.gmra.mxu0 %v3260
        %v3503 = vpop.f32.mrf.mxu0
        %v3504 = vadd.f32 %v3330, %v3503
        %v3505 = vpop.f32.mrf.mxu0
        %v3506 = vadd.f32 %v3334, %v3505
        %3507 = vdwg.mxu0
        %3508 = vmatprep.subr.mxu0 %v3324
        %3509 = vmatpush1.msra.mxu0 %v3323
        %3510 = vmatprep.subr.mxu0 %v3320
        %3511 = vmatpush1.msra.mxu0 %v3319
        %3512 = vmatprep.subr.mxu0 %v3316
        %3513 = vmatpush1.msra.mxu0 %v3315
        %3514 = vmatprep.subr.mxu0 %v3312
        %3515 = vmatpush1.msra.mxu0 %v3311
        %3516 = vmatprep.subr.mxu0 %v3308
        %3517 = vmatpush1.msra.mxu0 %v3307
        %3518 = vmatprep.subr.mxu0 %v3304
        %3519 = vmatpush1.msra.mxu0 %v3303
        %3520 = vmatprep.subr.mxu0 %v3300
        %3521 = vmatpush1.msra.mxu0 %v3299
        %3522 = vmatprep.subr.mxu0 %v3296
        %3523 = vmatpush1.msra.mxu0 %v3295
        %3524 = vmatprep.subr.mxu0 %v3292
        %3525 = vmatpush1.msra.mxu0 %v3291
        %3526 = vmatprep.subr.mxu0 %v3288
        %3527 = vmatpush1.msra.mxu0 %v3287
        %3528 = vmatprep.subr.mxu0 %v3284
        %3529 = vmatpush1.msra.mxu0 %v3283
        %3530 = vmatprep.subr.mxu0 %v3280
        %3531 = vmatpush1.msra.mxu0 %v3279
        %3532 = vmatprep.subr.mxu0 %v3276
        %3533 = vmatpush1.msra.mxu0 %v3275
        %3534 = vmatprep.subr.mxu0 %v3272
        %3535 = vmatpush1.msra.mxu0 %v3271
        %3536 = vmatprep.subr.mxu0 %v3268
        %3537 = vmatpush1.msra.mxu0 %v3267
        %3538 = vmatprep.subr.mxu0 %v3264
        %3539 = vmatpush1.msra.mxu0 %v3263
        %3540 = vmatprep.subr.mxu0 0.0
        %3541 = vmatpush2.msra.mxu0 0.0
        %3542 = vmatprep.subr.mxu0 0.0
        %3543 = vmatpush2.msra.mxu0 0.0
        %3544 = vmatprep.subr.mxu0 0.0
        %3545 = vmatpush2.msra.mxu0 0.0
        %3546 = vmatprep.subr.mxu0 0.0
        %3547 = vmatpush2.msra.mxu0 0.0
        %3548 = vmatprep.subr.mxu0 0.0
        %3549 = vmatpush2.msra.mxu0 0.0
        %3550 = vmatprep.subr.mxu0 0.0
        %3551 = vmatpush2.msra.mxu0 0.0
        %3552 = vmatprep.subr.mxu0 0.0
        %3553 = vmatpush2.msra.mxu0 0.0
        %3554 = vmatprep.subr.mxu0 0.0
        %3555 = vmatpush2.msra.mxu0 0.0
        %3556 = vmatprep.subr.mxu0 0.0
        %3557 = vmatpush2.msra.mxu0 0.0
        %3558 = vmatprep.subr.mxu0 0.0
        %3559 = vmatpush2.msra.mxu0 0.0
        %3560 = vmatprep.subr.mxu0 0.0
        %3561 = vmatpush2.msra.mxu0 0.0
        %3562 = vmatprep.subr.mxu0 0.0
        %3563 = vmatpush2.msra.mxu0 0.0
        %3564 = vmatprep.subr.mxu0 0.0
        %3565 = vmatpush2.msra.mxu0 0.0
        %3566 = vmatprep.subr.mxu0 0.0
        %3567 = vmatpush2.msra.mxu0 0.0
        %3568 = vmatprep.subr.mxu0 0.0
        %3569 = vmatpush2.msra.mxu0 0.0
        %3570 = vmatprep.subr.mxu0 0.0
        %3571 = vmatpush2.msra.mxu0 0.0
        %3572 = vmatprep.mubr.f32.mxu0 0.0
        %3573 = vmatmul.mubr.f32.gmra.mxu0 %v3245
        %v3574 = vpop.f32.mrf.mxu0
        %v3575 = vadd.f32 %v3338, %v3574
        %v3576 = vpop.f32.mrf.mxu0
        %v3577 = vadd.f32 %v3342, %v3576
        %3578 = vmatprep.mubr.f32.mxu0 0.0
        %3579 = vmatmul.mubr.f32.gmra.mxu0 %v3246
        %v3580 = vpop.f32.mrf.mxu0
        %v3581 = vadd.f32 %v3338, %v3580
        %v3582 = vpop.f32.mrf.mxu0
        %v3583 = vadd.f32 %v3342, %v3582
        %3584 = vmatprep.mubr.f32.mxu0 0.0
        %3585 = vmatmul.mubr.f32.gmra.mxu0 %v3247
        %v3586 = vpop.f32.mrf.mxu0
        %v3587 = vadd.f32 %v3338, %v3586
        %v3588 = vpop.f32.mrf.mxu0
        %v3589 = vadd.f32 %v3342, %v3588
        %3590 = vmatprep.mubr.f32.mxu0 0.0
        %3591 = vmatmul.mubr.f32.gmra.mxu0 %v3248
        %v3592 = vpop.f32.mrf.mxu0
        %v3593 = vadd.f32 %v3338, %v3592
        %v3594 = vpop.f32.mrf.mxu0
        %v3595 = vadd.f32 %v3342, %v3594
        %3596 = vmatprep.mubr.f32.mxu0 0.0
        %3597 = vmatmul.mubr.f32.gmra.mxu0 %v3249
        %v3598 = vpop.f32.mrf.mxu0
        %v3599 = vadd.f32 %v3338, %v3598
        %v3600 = vpop.f32.mrf.mxu0
        %v3601 = vadd.f32 %v3342, %v3600
        %3602 = vmatprep.mubr.f32.mxu0 0.0
        %3603 = vmatmul.mubr.f32.gmra.mxu0 %v3250
        %v3604 = vpop.f32.mrf.mxu0
        %v3605 = vadd.f32 %v3338, %v3604
        %v3606 = vpop.f32.mrf.mxu0
        %v3607 = vadd.f32 %v3342, %v3606
        %3608 = vmatprep.mubr.f32.mxu0 0.0
        %3609 = vmatmul.mubr.f32.gmra.mxu0 %v3251
        %v3610 = vpop.f32.mrf.mxu0
        %v3611 = vadd.f32 %v3338, %v3610
        %v3612 = vpop.f32.mrf.mxu0
        %v3613 = vadd.f32 %v3342, %v3612
        %3614 = vmatprep.mubr.f32.mxu0 0.0
        %3615 = vmatmul.mubr.f32.gmra.mxu0 %v3252
        %v3616 = vpop.f32.mrf.mxu0
        %v3617 = vadd.f32 %v3338, %v3616
        %v3618 = vpop.f32.mrf.mxu0
        %v3619 = vadd.f32 %v3342, %v3618
        %3620 = vmatprep.mubr.f32.mxu0 0.0
        %3621 = vmatmul.mubr.f32.gmra.mxu0 %v3253
        %v3622 = vpop.f32.mrf.mxu0
        %v3623 = vadd.f32 %v3338, %v3622
        %v3624 = vpop.f32.mrf.mxu0
        %v3625 = vadd.f32 %v3342, %v3624
        %3626 = vmatprep.mubr.f32.mxu0 0.0
        %3627 = vmatmul.mubr.f32.gmra.mxu0 %v3254
        %v3628 = vpop.f32.mrf.mxu0
        %v3629 = vadd.f32 %v3338, %v3628
        %v3630 = vpop.f32.mrf.mxu0
        %v3631 = vadd.f32 %v3342, %v3630
        %3632 = vmatprep.mubr.f32.mxu0 0.0
        %3633 = vmatmul.mubr.f32.gmra.mxu0 %v3255
        %v3634 = vpop.f32.mrf.mxu0
        %v3635 = vadd.f32 %v3338, %v3634
        %v3636 = vpop.f32.mrf.mxu0
        %v3637 = vadd.f32 %v3342, %v3636
        %3638 = vmatprep.mubr.f32.mxu0 0.0
        %3639 = vmatmul.mubr.f32.gmra.mxu0 %v3256
        %v3640 = vpop.f32.mrf.mxu0
        %v3641 = vadd.f32 %v3338, %v3640
        %v3642 = vpop.f32.mrf.mxu0
        %v3643 = vadd.f32 %v3342, %v3642
        %3644 = vmatprep.mubr.f32.mxu0 0.0
        %3645 = vmatmul.mubr.f32.gmra.mxu0 %v3257
        %v3646 = vpop.f32.mrf.mxu0
        %v3647 = vadd.f32 %v3338, %v3646
        %v3648 = vpop.f32.mrf.mxu0
        %v3649 = vadd.f32 %v3342, %v3648
        %3650 = vmatprep.mubr.f32.mxu0 0.0
        %3651 = vmatmul.mubr.f32.gmra.mxu0 %v3258
        %v3652 = vpop.f32.mrf.mxu0
        %v3653 = vadd.f32 %v3338, %v3652
        %v3654 = vpop.f32.mrf.mxu0
        %v3655 = vadd.f32 %v3342, %v3654
        %3656 = vmatprep.mubr.f32.mxu0 0.0
        %3657 = vmatmul.mubr.f32.gmra.mxu0 %v3259
        %v3658 = vpop.f32.mrf.mxu0
        %v3659 = vadd.f32 %v3338, %v3658
        %v3660 = vpop.f32.mrf.mxu0
        %v3661 = vadd.f32 %v3342, %v3660
        %3662 = vmatprep.mubr.f32.mxu0 0.0
        %3663 = vmatmul.mubr.f32.gmra.mxu0 %v3260
        %v3664 = vpop.f32.mrf.mxu0
        %v3665 = vadd.f32 %v3338, %v3664
        %v3666 = vpop.f32.mrf.mxu0
        %v3667 = vadd.f32 %v3342, %v3666
        %3668 = vdwg.mxu0
        %v3669 = vmul.f32 %v3414, 0.5
        %v3670 = vmul.f32 %v3416, 0.5
        %v3671 = vmul.f32 %v3575, 0.5
        %v3672 = vmul.f32 %v3577, 0.5
        %v3673 = vmul.f32 %v3420, 0.5
        %v3674 = vmul.f32 %v3422, 0.5
        %v3675 = vmul.f32 %v3581, 0.5
        %v3676 = vmul.f32 %v3583, 0.5
        %v3677 = vmul.f32 %v3426, 0.5
        %v3678 = vmul.f32 %v3428, 0.5
        %v3679 = vmul.f32 %v3587, 0.5
        %v3680 = vmul.f32 %v3589, 0.5
        %v3681 = vmul.f32 %v3432, 0.5
        %v3682 = vmul.f32 %v3434, 0.5
        %v3683 = vmul.f32 %v3593, 0.5
        %v3684 = vmul.f32 %v3595, 0.5
        %v3685 = vmul.f32 %v3438, 0.5
        %v3686 = vmul.f32 %v3440, 0.5
        %v3687 = vmul.f32 %v3599, 0.5
        %v3688 = vmul.f32 %v3601, 0.5
        %v3689 = vmul.f32 %v3444, 0.5
        %v3690 = vmul.f32 %v3446, 0.5
        %v3691 = vmul.f32 %v3605, 0.5
        %v3692 = vmul.f32 %v3607, 0.5
        %v3693 = vmul.f32 %v3450, 0.5
        %v3694 = vmul.f32 %v3452, 0.5
        %v3695 = vmul.f32 %v3611, 0.5
        %v3696 = vmul.f32 %v3613, 0.5
        %v3697 = vmul.f32 %v3456, 0.5
        %v3698 = vmul.f32 %v3458, 0.5
        %v3699 = vmul.f32 %v3617, 0.5
        %v3700 = vmul.f32 %v3619, 0.5
        %v3701 = vmul.f32 %v3462, 0.5
        %v3702 = vmul.f32 %v3464, 0.5
        %v3703 = vmul.f32 %v3623, 0.5
        %v3704 = vmul.f32 %v3625, 0.5
        %v3705 = vmul.f32 %v3468, 0.5
        %v3706 = vmul.f32 %v3470, 0.5
        %v3707 = vmul.f32 %v3629, 0.5
        %v3708 = vmul.f32 %v3631, 0.5
        %v3709 = vmul.f32 %v3474, 0.5
        %v3710 = vmul.f32 %v3476, 0.5
        %v3711 = vmul.f32 %v3635, 0.5
        %v3712 = vmul.f32 %v3637, 0.5
        %v3713 = vmul.f32 %v3480, 0.5
        %v3714 = vmul.f32 %v3482, 0.5
        %v3715 = vmul.f32 %v3641, 0.5
        %v3716 = vmul.f32 %v3643, 0.5
        %v3717 = vmul.f32 %v3486, 0.5
        %v3718 = vmul.f32 %v3488, 0.5
        %v3719 = vmul.f32 %v3647, 0.5
        %v3720 = vmul.f32 %v3649, 0.5
        %v3721 = vmul.f32 %v3492, 0.5
        %v3722 = vmul.f32 %v3494, 0.5
        %v3723 = vmul.f32 %v3653, 0.5
        %v3724 = vmul.f32 %v3655, 0.5
        %v3725 = vmul.f32 %v3498, 0.5
        %v3726 = vmul.f32 %v3500, 0.5
        %v3727 = vmul.f32 %v3659, 0.5
        %v3728 = vmul.f32 %v3661, 0.5
        %v3729 = vmul.f32 %v3504, 0.5
        %v3730 = vmul.f32 %v3506, 0.5
        %v3731 = vmul.f32 %v3665, 0.5
        %v3732 = vmul.f32 %v3667, 0.5
        %v3733 = vmul.f32 %v3414, 0.70710677
        %v3734 = vmul.f32 %v3416, 0.70710677
        %v3735 = vmul.f32 %v3575, 0.70710677
        %v3736 = vmul.f32 %v3577, 0.70710677
        %v3737 = vmul.f32 %v3420, 0.70710677
        %v3738 = vmul.f32 %v3422, 0.70710677
        %v3739 = vmul.f32 %v3581, 0.70710677
        %v3740 = vmul.f32 %v3583, 0.70710677
        %v3741 = vmul.f32 %v3426, 0.70710677
        %v3742 = vmul.f32 %v3428, 0.70710677
        %v3743 = vmul.f32 %v3587, 0.70710677
        %v3744 = vmul.f32 %v3589, 0.70710677
        %v3745 = vmul.f32 %v3432, 0.70710677
        %v3746 = vmul.f32 %v3434, 0.70710677
        %v3747 = vmul.f32 %v3593, 0.70710677
        %v3748 = vmul.f32 %v3595, 0.70710677
        %v3749 = vmul.f32 %v3438, 0.70710677
        %v3750 = vmul.f32 %v3440, 0.70710677
        %v3751 = vmul.f32 %v3599, 0.70710677
        %v3752 = vmul.f32 %v3601, 0.70710677
        %v3753 = vmul.f32 %v3444, 0.70710677
        %v3754 = vmul.f32 %v3446, 0.70710677
        %v3755 = vmul.f32 %v3605, 0.70710677
        %v3756 = vmul.f32 %v3607, 0.70710677
        %v3757 = vmul.f32 %v3450, 0.70710677
        %v3758 = vmul.f32 %v3452, 0.70710677
        %v3759 = vmul.f32 %v3611, 0.70710677
        %v3760 = vmul.f32 %v3613, 0.70710677
        %v3761 = vmul.f32 %v3456, 0.70710677
        %v3762 = vmul.f32 %v3458, 0.70710677
        %v3763 = vmul.f32 %v3617, 0.70710677
        %v3764 = vmul.f32 %v3619, 0.70710677
        %v3765 = vmul.f32 %v3462, 0.70710677
        %v3766 = vmul.f32 %v3464, 0.70710677
        %v3767 = vmul.f32 %v3623, 0.70710677
        %v3768 = vmul.f32 %v3625, 0.70710677
        %v3769 = vmul.f32 %v3468, 0.70710677
        %v3770 = vmul.f32 %v3470, 0.70710677
        %v3771 = vmul.f32 %v3629, 0.70710677
        %v3772 = vmul.f32 %v3631, 0.70710677
        %v3773 = vmul.f32 %v3474, 0.70710677
        %v3774 = vmul.f32 %v3476, 0.70710677
        %v3775 = vmul.f32 %v3635, 0.70710677
        %v3776 = vmul.f32 %v3637, 0.70710677
        %v3777 = vmul.f32 %v3480, 0.70710677
        %v3778 = vmul.f32 %v3482, 0.70710677
        %v3779 = vmul.f32 %v3641, 0.70710677
        %v3780 = vmul.f32 %v3643, 0.70710677
        %v3781 = vmul.f32 %v3486, 0.70710677
        %v3782 = vmul.f32 %v3488, 0.70710677
        %v3783 = vmul.f32 %v3647, 0.70710677
        %v3784 = vmul.f32 %v3649, 0.70710677
        %v3785 = vmul.f32 %v3492, 0.70710677
        %v3786 = vmul.f32 %v3494, 0.70710677
        %v3787 = vmul.f32 %v3653, 0.70710677
        %v3788 = vmul.f32 %v3655, 0.70710677
        %v3789 = vmul.f32 %v3498, 0.70710677
        %v3790 = vmul.f32 %v3500, 0.70710677
        %v3791 = vmul.f32 %v3659, 0.70710677
        %v3792 = vmul.f32 %v3661, 0.70710677
        %v3793 = vmul.f32 %v3504, 0.70710677
        %v3794 = vmul.f32 %v3506, 0.70710677
        %v3795 = vmul.f32 %v3665, 0.70710677
        %v3796 = vmul.f32 %v3667, 0.70710677
        %v3797 = verf.f32.pop %v3733
        %v3798 = verf.f32.pop %v3734
        %v3799 = verf.f32.pop %v3735
        %v3800 = verf.f32.pop %v3736
        %v3801 = verf.f32.pop %v3737
        %v3802 = verf.f32.pop %v3738
        %v3803 = verf.f32.pop %v3739
        %v3804 = verf.f32.pop %v3740
        %v3805 = verf.f32.pop %v3741
        %v3806 = verf.f32.pop %v3742
        %v3807 = verf.f32.pop %v3743
        %v3808 = verf.f32.pop %v3744
        %v3809 = verf.f32.pop %v3745
        %v3810 = verf.f32.pop %v3746
        %v3811 = verf.f32.pop %v3747
        %v3812 = verf.f32.pop %v3748
        %v3813 = verf.f32.pop %v3749
        %v3814 = verf.f32.pop %v3750
        %v3815 = verf.f32.pop %v3751
        %v3816 = verf.f32.pop %v3752
        %v3817 = verf.f32.pop %v3753
        %v3818 = verf.f32.pop %v3754
        %v3819 = verf.f32.pop %v3755
        %v3820 = verf.f32.pop %v3756
        %v3821 = verf.f32.pop %v3757
        %v3822 = verf.f32.pop %v3758
        %v3823 = verf.f32.pop %v3759
        %v3824 = verf.f32.pop %v3760
        %v3825 = verf.f32.pop %v3761
        %v3826 = verf.f32.pop %v3762
        %v3827 = verf.f32.pop %v3763
        %v3828 = verf.f32.pop %v3764
        %v3829 = verf.f32.pop %v3765
        %v3830 = verf.f32.pop %v3766
        %v3831 = verf.f32.pop %v3767
        %v3832 = verf.f32.pop %v3768
        %v3833 = verf.f32.pop %v3769
        %v3834 = verf.f32.pop %v3770
        %v3835 = verf.f32.pop %v3771
        %v3836 = verf.f32.pop %v3772
        %v3837 = verf.f32.pop %v3773
        %v3838 = verf.f32.pop %v3774
        %v3839 = verf.f32.pop %v3775
        %v3840 = verf.f32.pop %v3776
        %v3841 = verf.f32.pop %v3777
        %v3842 = verf.f32.pop %v3778
        %v3843 = verf.f32.pop %v3779
        %v3844 = verf.f32.pop %v3780
        %v3845 = verf.f32.pop %v3781
        %v3846 = verf.f32.pop %v3782
        %v3847 = verf.f32.pop %v3783
        %v3848 = verf.f32.pop %v3784
        %v3849 = verf.f32.pop %v3785
        %v3850 = verf.f32.pop %v3786
        %v3851 = verf.f32.pop %v3787
        %v3852 = verf.f32.pop %v3788
        %v3853 = verf.f32.pop %v3789
        %v3854 = verf.f32.pop %v3790
        %v3855 = verf.f32.pop %v3791
        %v3856 = verf.f32.pop %v3792
        %v3857 = verf.f32.pop %v3793
        %v3858 = verf.f32.pop %v3794
        %v3859 = verf.f32.pop %v3795
        %v3860 = verf.f32.pop %v3796
        %v3861 = vadd.f32 %v3797, 1.0
        %v3862 = vadd.f32 %v3798, 1.0
        %v3863 = vadd.f32 %v3799, 1.0
        %v3864 = vadd.f32 %v3800, 1.0
        %v3865 = vadd.f32 %v3801, 1.0
        %v3866 = vadd.f32 %v3802, 1.0
        %v3867 = vadd.f32 %v3803, 1.0
        %v3868 = vadd.f32 %v3804, 1.0
        %v3869 = vadd.f32 %v3805, 1.0
        %v3870 = vadd.f32 %v3806, 1.0
        %v3871 = vadd.f32 %v3807, 1.0
        %v3872 = vadd.f32 %v3808, 1.0
        %v3873 = vadd.f32 %v3809, 1.0
        %v3874 = vadd.f32 %v3810, 1.0
        %v3875 = vadd.f32 %v3811, 1.0
        %v3876 = vadd.f32 %v3812, 1.0
        %v3877 = vadd.f32 %v3813, 1.0
        %v3878 = vadd.f32 %v3814, 1.0
        %v3879 = vadd.f32 %v3815, 1.0
        %v3880 = vadd.f32 %v3816, 1.0
        %v3881 = vadd.f32 %v3817, 1.0
        %v3882 = vadd.f32 %v3818, 1.0
        %v3883 = vadd.f32 %v3819, 1.0
        %v3884 = vadd.f32 %v3820, 1.0
        %v3885 = vadd.f32 %v3821, 1.0
        %v3886 = vadd.f32 %v3822, 1.0
        %v3887 = vadd.f32 %v3823, 1.0
        %v3888 = vadd.f32 %v3824, 1.0
        %v3889 = vadd.f32 %v3825, 1.0
        %v3890 = vadd.f32 %v3826, 1.0
        %v3891 = vadd.f32 %v3827, 1.0
        %v3892 = vadd.f32 %v3828, 1.0
        %v3893 = vadd.f32 %v3829, 1.0
        %v3894 = vadd.f32 %v3830, 1.0
        %v3895 = vadd.f32 %v3831, 1.0
        %v3896 = vadd.f32 %v3832, 1.0
        %v3897 = vadd.f32 %v3833, 1.0
        %v3898 = vadd.f32 %v3834, 1.0
        %v3899 = vadd.f32 %v3835, 1.0
        %v3900 = vadd.f32 %v3836, 1.0
        %v3901 = vadd.f32 %v3837, 1.0
        %v3902 = vadd.f32 %v3838, 1.0
        %v3903 = vadd.f32 %v3839, 1.0
        %v3904 = vadd.f32 %v3840, 1.0
        %v3905 = vadd.f32 %v3841, 1.0
        %v3906 = vadd.f32 %v3842, 1.0
        %v3907 = vadd.f32 %v3843, 1.0
        %v3908 = vadd.f32 %v3844, 1.0
        %v3909 = vadd.f32 %v3845, 1.0
        %v3910 = vadd.f32 %v3846, 1.0
        %v3911 = vadd.f32 %v3847, 1.0
        %v3912 = vadd.f32 %v3848, 1.0
        %v3913 = vadd.f32 %v3849, 1.0
        %v3914 = vadd.f32 %v3850, 1.0
        %v3915 = vadd.f32 %v3851, 1.0
        %v3916 = vadd.f32 %v3852, 1.0
        %v3917 = vadd.f32 %v3853, 1.0
        %v3918 = vadd.f32 %v3854, 1.0
        %v3919 = vadd.f32 %v3855, 1.0
        %v3920 = vadd.f32 %v3856, 1.0
        %v3921 = vadd.f32 %v3857, 1.0
        %v3922 = vadd.f32 %v3858, 1.0
        %v3923 = vadd.f32 %v3859, 1.0
        %v3924 = vadd.f32 %v3860, 1.0
        %v3925 = vmul.f32 %v3669, %v3861
        %v3926 = vmul.f32 %v3670, %v3862
        %v3927 = vmul.f32 %v3671, %v3863
        %v3928 = vmul.f32 %v3672, %v3864
        %v3929 = vmul.f32 %v3673, %v3865
        %v3930 = vmul.f32 %v3674, %v3866
        %v3931 = vmul.f32 %v3675, %v3867
        %v3932 = vmul.f32 %v3676, %v3868
        %v3933 = vmul.f32 %v3677, %v3869
        %v3934 = vmul.f32 %v3678, %v3870
        %v3935 = vmul.f32 %v3679, %v3871
        %v3936 = vmul.f32 %v3680, %v3872
        %v3937 = vmul.f32 %v3681, %v3873
        %v3938 = vmul.f32 %v3682, %v3874
        %v3939 = vmul.f32 %v3683, %v3875
        %v3940 = vmul.f32 %v3684, %v3876
        %v3941 = vmul.f32 %v3685, %v3877
        %v3942 = vmul.f32 %v3686, %v3878
        %v3943 = vmul.f32 %v3687, %v3879
        %v3944 = vmul.f32 %v3688, %v3880
        %v3945 = vmul.f32 %v3689, %v3881
        %v3946 = vmul.f32 %v3690, %v3882
        %v3947 = vmul.f32 %v3691, %v3883
        %v3948 = vmul.f32 %v3692, %v3884
        %v3949 = vmul.f32 %v3693, %v3885
        %v3950 = vmul.f32 %v3694, %v3886
        %v3951 = vmul.f32 %v3695, %v3887
        %v3952 = vmul.f32 %v3696, %v3888
        %v3953 = vmul.f32 %v3697, %v3889
        %v3954 = vmul.f32 %v3698, %v3890
        %v3955 = vmul.f32 %v3699, %v3891
        %v3956 = vmul.f32 %v3700, %v3892
        %v3957 = vmul.f32 %v3701, %v3893
        %v3958 = vmul.f32 %v3702, %v3894
        %v3959 = vmul.f32 %v3703, %v3895
        %v3960 = vmul.f32 %v3704, %v3896
        %v3961 = vmul.f32 %v3705, %v3897
        %v3962 = vmul.f32 %v3706, %v3898
        %v3963 = vmul.f32 %v3707, %v3899
        %v3964 = vmul.f32 %v3708, %v3900
        %v3965 = vmul.f32 %v3709, %v3901
        %v3966 = vmul.f32 %v3710, %v3902
        %v3967 = vmul.f32 %v3711, %v3903
        %v3968 = vmul.f32 %v3712, %v3904
        %v3969 = vmul.f32 %v3713, %v3905
        %v3970 = vmul.f32 %v3714, %v3906
        %v3971 = vmul.f32 %v3715, %v3907
        %v3972 = vmul.f32 %v3716, %v3908
        %v3973 = vmul.f32 %v3717, %v3909
        %v3974 = vmul.f32 %v3718, %v3910
        %v3975 = vmul.f32 %v3719, %v3911
        %v3976 = vmul.f32 %v3720, %v3912
        %v3977 = vmul.f32 %v3721, %v3913
        %v3978 = vmul.f32 %v3722, %v3914
        %v3979 = vmul.f32 %v3723, %v3915
        %v3980 = vmul.f32 %v3724, %v3916
        %v3981 = vmul.f32 %v3725, %v3917
        %v3982 = vmul.f32 %v3726, %v3918
        %v3983 = vmul.f32 %v3727, %v3919
        %v3984 = vmul.f32 %v3728, %v3920
        %v3985 = vmul.f32 %v3729, %v3921
        %v3986 = vmul.f32 %v3730, %v3922
        %v3987 = vmul.f32 %v3731, %v3923
        %v3988 = vmul.f32 %v3732, %v3924
        %v3989 = vld [vmem:[#allocation16] sm:$0xff]
        %v3990 = vld [vmem:[#allocation16 + $0x8] sm:$0xff]
        %v3991 = vld [vmem:[#allocation16 + $0x10] sm:$0xff]
        %v3992 = vld [vmem:[#allocation16 + $0x18] sm:$0xff]
        %v3993 = vld [vmem:[#allocation16 + $0x20] sm:$0xff]
        %v3994 = vld [vmem:[#allocation16 + $0x28] sm:$0xff]
        %v3995 = vld [vmem:[#allocation16 + $0x30] sm:$0xff]
        %v3996 = vld [vmem:[#allocation16 + $0x38] sm:$0xff]
        %v3997 = vld [vmem:[#allocation16 + $0x40] sm:$0xff]
        %v3998 = vld [vmem:[#allocation16 + $0x48] sm:$0xff]
        %v3999 = vld [vmem:[#allocation16 + $0x50] sm:$0xff]
        %v4000 = vld [vmem:[#allocation16 + $0x58] sm:$0xff]
        %v4001 = vld [vmem:[#allocation16 + $0x60] sm:$0xff]
        %v4002 = vld [vmem:[#allocation16 + $0x68] sm:$0xff]
        %v4003 = vld [vmem:[#allocation16 + $0x70] sm:$0xff]
        %v4004 = vld [vmem:[#allocation16 + $0x78] sm:$0xff]
        %v4005 = vld [vmem:[#allocation16 + $0x80] sm:$0xff]
        %v4006 = vld [vmem:[#allocation16 + $0x88] sm:$0xff]
        %v4007 = vld [vmem:[#allocation16 + $0x90] sm:$0xff]
        %v4008 = vld [vmem:[#allocation16 + $0x98] sm:$0xff]
        %v4009 = vld [vmem:[#allocation16 + $0xa0] sm:$0xff]
        %v4010 = vld [vmem:[#allocation16 + $0xa8] sm:$0xff]
        %v4011 = vld [vmem:[#allocation16 + $0xb0] sm:$0xff]
        %v4012 = vld [vmem:[#allocation16 + $0xb8] sm:$0xff]
        %v4013 = vld [vmem:[#allocation16 + $0xc0] sm:$0xff]
        %v4014 = vld [vmem:[#allocation16 + $0xc8] sm:$0xff]
        %v4015 = vld [vmem:[#allocation16 + $0xd0] sm:$0xff]
        %v4016 = vld [vmem:[#allocation16 + $0xd8] sm:$0xff]
        %v4017 = vld [vmem:[#allocation16 + $0xe0] sm:$0xff]
        %v4018 = vld [vmem:[#allocation16 + $0xe8] sm:$0xff]
        %v4019 = vld [vmem:[#allocation16 + $0xf0] sm:$0xff]
        %v4020 = vld [vmem:[#allocation16 + $0xf8] sm:$0xff]
        %v4021 = vld [vmem:[#allocation16 + $0x100] sm:$0xff]
        %v4022 = vld [vmem:[#allocation16 + $0x108] sm:$0xff]
        %v4023 = vld [vmem:[#allocation16 + $0x110] sm:$0xff]
        %v4024 = vld [vmem:[#allocation16 + $0x118] sm:$0xff]
        %v4025 = vld [vmem:[#allocation16 + $0x120] sm:$0xff]
        %v4026 = vld [vmem:[#allocation16 + $0x128] sm:$0xff]
        %v4027 = vld [vmem:[#allocation16 + $0x130] sm:$0xff]
        %v4028 = vld [vmem:[#allocation16 + $0x138] sm:$0xff]
        %v4029 = vld [vmem:[#allocation16 + $0x140] sm:$0xff]
        %v4030 = vld [vmem:[#allocation16 + $0x148] sm:$0xff]
        %v4031 = vld [vmem:[#allocation16 + $0x150] sm:$0xff]
        %v4032 = vld [vmem:[#allocation16 + $0x158] sm:$0xff]
        %v4033 = vld [vmem:[#allocation16 + $0x160] sm:$0xff]
        %v4034 = vld [vmem:[#allocation16 + $0x168] sm:$0xff]
        %v4035 = vld [vmem:[#allocation16 + $0x170] sm:$0xff]
        %v4036 = vld [vmem:[#allocation16 + $0x178] sm:$0xff]
        %v4037 = vld [vmem:[#allocation16 + $0x180] sm:$0xff]
        %v4038 = vld [vmem:[#allocation16 + $0x188] sm:$0xff]
        %v4039 = vld [vmem:[#allocation16 + $0x190] sm:$0xff]
        %v4040 = vld [vmem:[#allocation16 + $0x198] sm:$0xff]
        %v4041 = vld [vmem:[#allocation16 + $0x1a0] sm:$0xff]
        %v4042 = vld [vmem:[#allocation16 + $0x1a8] sm:$0xff]
        %v4043 = vld [vmem:[#allocation16 + $0x1b0] sm:$0xff]
        %v4044 = vld [vmem:[#allocation16 + $0x1b8] sm:$0xff]
        %v4045 = vld [vmem:[#allocation16 + $0x1c0] sm:$0xff]
        %v4046 = vld [vmem:[#allocation16 + $0x1c8] sm:$0xff]
        %v4047 = vld [vmem:[#allocation16 + $0x1d0] sm:$0xff]
        %v4048 = vld [vmem:[#allocation16 + $0x1d8] sm:$0xff]
        %v4049 = vld [vmem:[#allocation16 + $0x1e0] sm:$0xff]
        %v4050 = vld [vmem:[#allocation16 + $0x1e8] sm:$0xff]
        %v4051 = vld [vmem:[#allocation16 + $0x1f0] sm:$0xff]
        %v4052 = vld [vmem:[#allocation16 + $0x1f8] sm:$0xff]
        %v4053 = vld [vmem:[%s13] sm:$0x1]
        %v4055 = vlaneseq
        %v4056 = vshrl.u32 %v4055, 7
        %v4057 = vsub.s32 0, %v4056
        %v4058 = vrot.slane %v4053, %v4057
        %4060 = vmatprep.subr.mxu0 0.0
        %4061 = vmatpush1.msra.mxu0 %v4004
        %4062 = vmatprep.subr.mxu0 0.0
        %4063 = vmatpush1.msra.mxu0 %v4003
        %4064 = vmatprep.subr.mxu0 0.0
        %4065 = vmatpush1.msra.mxu0 %v4002
        %4066 = vmatprep.subr.mxu0 0.0
        %4067 = vmatpush1.msra.mxu0 %v4001
        %4068 = vmatprep.subr.mxu0 0.0
        %4069 = vmatpush1.msra.mxu0 %v4000
        %4070 = vmatprep.subr.mxu0 0.0
        %4071 = vmatpush1.msra.mxu0 %v3999
        %4072 = vmatprep.subr.mxu0 0.0
        %4073 = vmatpush1.msra.mxu0 %v3998
        %4074 = vmatprep.subr.mxu0 0.0
        %4075 = vmatpush1.msra.mxu0 %v3997
        %4076 = vmatprep.subr.mxu0 0.0
        %4077 = vmatpush1.msra.mxu0 %v3996
        %4078 = vmatprep.subr.mxu0 0.0
        %4079 = vmatpush1.msra.mxu0 %v3995
        %4080 = vmatprep.subr.mxu0 0.0
        %4081 = vmatpush1.msra.mxu0 %v3994
        %4082 = vmatprep.subr.mxu0 0.0
        %4083 = vmatpush1.msra.mxu0 %v3993
        %4084 = vmatprep.subr.mxu0 0.0
        %4085 = vmatpush1.msra.mxu0 %v3992
        %4086 = vmatprep.subr.mxu0 0.0
        %4087 = vmatpush1.msra.mxu0 %v3991
        %4088 = vmatprep.subr.mxu0 0.0
        %4089 = vmatpush1.msra.mxu0 %v3990
        %4090 = vmatprep.subr.mxu0 0.0
        %4091 = vmatpush1.msra.mxu0 %v3989
        %4092 = vmatprep.subr.mxu0 0.0
        %4093 = vmatpush2.msra.mxu0 %v4020
        %4094 = vmatprep.subr.mxu0 0.0
        %4095 = vmatpush2.msra.mxu0 %v4019
        %4096 = vmatprep.subr.mxu0 0.0
        %4097 = vmatpush2.msra.mxu0 %v4018
        %4098 = vmatprep.subr.mxu0 0.0
        %4099 = vmatpush2.msra.mxu0 %v4017
        %4100 = vmatprep.subr.mxu0 0.0
        %4101 = vmatpush2.msra.mxu0 %v4016
        %4102 = vmatprep.subr.mxu0 0.0
        %4103 = vmatpush2.msra.mxu0 %v4015
        %4104 = vmatprep.subr.mxu0 0.0
        %4105 = vmatpush2.msra.mxu0 %v4014
        %4106 = vmatprep.subr.mxu0 0.0
        %4107 = vmatpush2.msra.mxu0 %v4013
        %4108 = vmatprep.subr.mxu0 0.0
        %4109 = vmatpush2.msra.mxu0 %v4012
        %4110 = vmatprep.subr.mxu0 0.0
        %4111 = vmatpush2.msra.mxu0 %v4011
        %4112 = vmatprep.subr.mxu0 0.0
        %4113 = vmatpush2.msra.mxu0 %v4010
        %4114 = vmatprep.subr.mxu0 0.0
        %4115 = vmatpush2.msra.mxu0 %v4009
        %4116 = vmatprep.subr.mxu0 0.0
        %4117 = vmatpush2.msra.mxu0 %v4008
        %4118 = vmatprep.subr.mxu0 0.0
        %4119 = vmatpush2.msra.mxu0 %v4007
        %4120 = vmatprep.subr.mxu0 0.0
        %4121 = vmatpush2.msra.mxu0 %v4006
        %4122 = vmatprep.subr.mxu0 0.0
        %4123 = vmatpush2.msra.mxu0 %v4005
        %4124 = vmatprep.mubr.f32.mxu0 %v3926
        %4125 = vmatmul.mubr.f32.gmra.mxu0 %v3925
        %v4126 = vpop.f32.mrf.mxu0
        %v4127 = vadd.f32 %v4058, %v4126
        %v4128 = vpop.f32.mrf.mxu0
        %4129 = vmatprep.mubr.f32.mxu0 %v3930
        %4130 = vmatmul.mubr.f32.gmra.mxu0 %v3929
        %v4131 = vpop.f32.mrf.mxu0
        %v4132 = vadd.f32 %v4058, %v4131
        %v4133 = vpop.f32.mrf.mxu0
        %4134 = vmatprep.mubr.f32.mxu0 %v3934
        %4135 = vmatmul.mubr.f32.gmra.mxu0 %v3933
        %v4136 = vpop.f32.mrf.mxu0
        %v4137 = vadd.f32 %v4058, %v4136
        %v4138 = vpop.f32.mrf.mxu0
        %4139 = vmatprep.mubr.f32.mxu0 %v3938
        %4140 = vmatmul.mubr.f32.gmra.mxu0 %v3937
        %v4141 = vpop.f32.mrf.mxu0
        %v4142 = vadd.f32 %v4058, %v4141
        %v4143 = vpop.f32.mrf.mxu0
        %4144 = vmatprep.mubr.f32.mxu0 %v3942
        %4145 = vmatmul.mubr.f32.gmra.mxu0 %v3941
        %v4146 = vpop.f32.mrf.mxu0
        %v4147 = vadd.f32 %v4058, %v4146
        %v4148 = vpop.f32.mrf.mxu0
        %4149 = vmatprep.mubr.f32.mxu0 %v3946
        %4150 = vmatmul.mubr.f32.gmra.mxu0 %v3945
        %v4151 = vpop.f32.mrf.mxu0
        %v4152 = vadd.f32 %v4058, %v4151
        %v4153 = vpop.f32.mrf.mxu0
        %4154 = vmatprep.mubr.f32.mxu0 %v3950
        %4155 = vmatmul.mubr.f32.gmra.mxu0 %v3949
        %v4156 = vpop.f32.mrf.mxu0
        %v4157 = vadd.f32 %v4058, %v4156
        %v4158 = vpop.f32.mrf.mxu0
        %4159 = vmatprep.mubr.f32.mxu0 %v3954
        %4160 = vmatmul.mubr.f32.gmra.mxu0 %v3953
        %v4161 = vpop.f32.mrf.mxu0
        %v4162 = vadd.f32 %v4058, %v4161
        %v4163 = vpop.f32.mrf.mxu0
        %4164 = vmatprep.mubr.f32.mxu0 %v3958
        %4165 = vmatmul.mubr.f32.gmra.mxu0 %v3957
        %v4166 = vpop.f32.mrf.mxu0
        %v4167 = vadd.f32 %v4058, %v4166
        %v4168 = vpop.f32.mrf.mxu0
        %4169 = vmatprep.mubr.f32.mxu0 %v3962
        %4170 = vmatmul.mubr.f32.gmra.mxu0 %v3961
        %v4171 = vpop.f32.mrf.mxu0
        %v4172 = vadd.f32 %v4058, %v4171
        %v4173 = vpop.f32.mrf.mxu0
        %4174 = vmatprep.mubr.f32.mxu0 %v3966
        %4175 = vmatmul.mubr.f32.gmra.mxu0 %v3965
        %v4176 = vpop.f32.mrf.mxu0
        %v4177 = vadd.f32 %v4058, %v4176
        %v4178 = vpop.f32.mrf.mxu0
        %4179 = vmatprep.mubr.f32.mxu0 %v3970
        %4180 = vmatmul.mubr.f32.gmra.mxu0 %v3969
        %v4181 = vpop.f32.mrf.mxu0
        %v4182 = vadd.f32 %v4058, %v4181
        %v4183 = vpop.f32.mrf.mxu0
        %4184 = vmatprep.mubr.f32.mxu0 %v3974
        %4185 = vmatmul.mubr.f32.gmra.mxu0 %v3973
        %v4186 = vpop.f32.mrf.mxu0
        %v4187 = vadd.f32 %v4058, %v4186
        %v4188 = vpop.f32.mrf.mxu0
        %4189 = vmatprep.mubr.f32.mxu0 %v3978
        %4190 = vmatmul.mubr.f32.gmra.mxu0 %v3977
        %v4191 = vpop.f32.mrf.mxu0
        %v4192 = vadd.f32 %v4058, %v4191
        %v4193 = vpop.f32.mrf.mxu0
        %4194 = vmatprep.mubr.f32.mxu0 %v3982
        %4195 = vmatmul.mubr.f32.gmra.mxu0 %v3981
        %v4196 = vpop.f32.mrf.mxu0
        %v4197 = vadd.f32 %v4058, %v4196
        %v4198 = vpop.f32.mrf.mxu0
        %4199 = vmatprep.mubr.f32.mxu0 %v3986
        %4200 = vmatmul.mubr.f32.gmra.mxu0 %v3985
        %v4201 = vpop.f32.mrf.mxu0
        %v4202 = vadd.f32 %v4058, %v4201
        %v4203 = vpop.f32.mrf.mxu0
        %4204 = vdwg.mxu0
        %4205 = vmatprep.subr.mxu0 0.0
        %4206 = vmatpush1.msra.mxu0 %v4036
        %4207 = vmatprep.subr.mxu0 0.0
        %4208 = vmatpush1.msra.mxu0 %v4035
        %4209 = vmatprep.subr.mxu0 0.0
        %4210 = vmatpush1.msra.mxu0 %v4034
        %4211 = vmatprep.subr.mxu0 0.0
        %4212 = vmatpush1.msra.mxu0 %v4033
        %4213 = vmatprep.subr.mxu0 0.0
        %4214 = vmatpush1.msra.mxu0 %v4032
        %4215 = vmatprep.subr.mxu0 0.0
        %4216 = vmatpush1.msra.mxu0 %v4031
        %4217 = vmatprep.subr.mxu0 0.0
        %4218 = vmatpush1.msra.mxu0 %v4030
        %4219 = vmatprep.subr.mxu0 0.0
        %4220 = vmatpush1.msra.mxu0 %v4029
        %4221 = vmatprep.subr.mxu0 0.0
        %4222 = vmatpush1.msra.mxu0 %v4028
        %4223 = vmatprep.subr.mxu0 0.0
        %4224 = vmatpush1.msra.mxu0 %v4027
        %4225 = vmatprep.subr.mxu0 0.0
        %4226 = vmatpush1.msra.mxu0 %v4026
        %4227 = vmatprep.subr.mxu0 0.0
        %4228 = vmatpush1.msra.mxu0 %v4025
        %4229 = vmatprep.subr.mxu0 0.0
        %4230 = vmatpush1.msra.mxu0 %v4024
        %4231 = vmatprep.subr.mxu0 0.0
        %4232 = vmatpush1.msra.mxu0 %v4023
        %4233 = vmatprep.subr.mxu0 0.0
        %4234 = vmatpush1.msra.mxu0 %v4022
        %4235 = vmatprep.subr.mxu0 0.0
        %4236 = vmatpush1.msra.mxu0 %v4021
        %4237 = vmatprep.subr.mxu0 0.0
        %4238 = vmatpush2.msra.mxu0 %v4052
        %4239 = vmatprep.subr.mxu0 0.0
        %4240 = vmatpush2.msra.mxu0 %v4051
        %4241 = vmatprep.subr.mxu0 0.0
        %4242 = vmatpush2.msra.mxu0 %v4050
        %4243 = vmatprep.subr.mxu0 0.0
        %4244 = vmatpush2.msra.mxu0 %v4049
        %4245 = vmatprep.subr.mxu0 0.0
        %4246 = vmatpush2.msra.mxu0 %v4048
        %4247 = vmatprep.subr.mxu0 0.0
        %4248 = vmatpush2.msra.mxu0 %v4047
        %4249 = vmatprep.subr.mxu0 0.0
        %4250 = vmatpush2.msra.mxu0 %v4046
        %4251 = vmatprep.subr.mxu0 0.0
        %4252 = vmatpush2.msra.mxu0 %v4045
        %4253 = vmatprep.subr.mxu0 0.0
        %4254 = vmatpush2.msra.mxu0 %v4044
        %4255 = vmatprep.subr.mxu0 0.0
        %4256 = vmatpush2.msra.mxu0 %v4043
        %4257 = vmatprep.subr.mxu0 0.0
        %4258 = vmatpush2.msra.mxu0 %v4042
        %4259 = vmatprep.subr.mxu0 0.0
        %4260 = vmatpush2.msra.mxu0 %v4041
        %4261 = vmatprep.subr.mxu0 0.0
        %4262 = vmatpush2.msra.mxu0 %v4040
        %4263 = vmatprep.subr.mxu0 0.0
        %4264 = vmatpush2.msra.mxu0 %v4039
        %4265 = vmatprep.subr.mxu0 0.0
        %4266 = vmatpush2.msra.mxu0 %v4038
        %4267 = vmatprep.subr.mxu0 0.0
        %4268 = vmatpush2.msra.mxu0 %v4037
        %4269 = vmatprep.mubr.f32.mxu0 %v3928
        %4270 = vmatmul.mubr.f32.gmra.mxu0 %v3927
        %v4271 = vpop.f32.mrf.mxu0
        %v4272 = vadd.f32 %v4127, %v4271
        %v4273 = vpop.f32.mrf.mxu0
        %4274 = vmatprep.mubr.f32.mxu0 %v3932
        %4275 = vmatmul.mubr.f32.gmra.mxu0 %v3931
        %v4276 = vpop.f32.mrf.mxu0
        %v4277 = vadd.f32 %v4132, %v4276
        %v4278 = vpop.f32.mrf.mxu0
        %4279 = vmatprep.mubr.f32.mxu0 %v3936
        %4280 = vmatmul.mubr.f32.gmra.mxu0 %v3935
        %v4281 = vpop.f32.mrf.mxu0
        %v4282 = vadd.f32 %v4137, %v4281
        %v4283 = vpop.f32.mrf.mxu0
        %4284 = vmatprep.mubr.f32.mxu0 %v3940
        %4285 = vmatmul.mubr.f32.gmra.mxu0 %v3939
        %v4286 = vpop.f32.mrf.mxu0
        %v4287 = vadd.f32 %v4142, %v4286
        %v4288 = vpop.f32.mrf.mxu0
        %4289 = vmatprep.mubr.f32.mxu0 %v3944
        %4290 = vmatmul.mubr.f32.gmra.mxu0 %v3943
        %v4291 = vpop.f32.mrf.mxu0
        %v4292 = vadd.f32 %v4147, %v4291
        %v4293 = vpop.f32.mrf.mxu0
        %4294 = vmatprep.mubr.f32.mxu0 %v3948
        %4295 = vmatmul.mubr.f32.gmra.mxu0 %v3947
        %v4296 = vpop.f32.mrf.mxu0
        %v4297 = vadd.f32 %v4152, %v4296
        %v4298 = vpop.f32.mrf.mxu0
        %4299 = vmatprep.mubr.f32.mxu0 %v3952
        %4300 = vmatmul.mubr.f32.gmra.mxu0 %v3951
        %v4301 = vpop.f32.mrf.mxu0
        %v4302 = vadd.f32 %v4157, %v4301
        %v4303 = vpop.f32.mrf.mxu0
        %4304 = vmatprep.mubr.f32.mxu0 %v3956
        %4305 = vmatmul.mubr.f32.gmra.mxu0 %v3955
        %v4306 = vpop.f32.mrf.mxu0
        %v4307 = vadd.f32 %v4162, %v4306
        %v4308 = vpop.f32.mrf.mxu0
        %4309 = vmatprep.mubr.f32.mxu0 %v3960
        %4310 = vmatmul.mubr.f32.gmra.mxu0 %v3959
        %v4311 = vpop.f32.mrf.mxu0
        %v4312 = vadd.f32 %v4167, %v4311
        %v4313 = vpop.f32.mrf.mxu0
        %4314 = vmatprep.mubr.f32.mxu0 %v3964
        %4315 = vmatmul.mubr.f32.gmra.mxu0 %v3963
        %v4316 = vpop.f32.mrf.mxu0
        %v4317 = vadd.f32 %v4172, %v4316
        %v4318 = vpop.f32.mrf.mxu0
        %4319 = vmatprep.mubr.f32.mxu0 %v3968
        %4320 = vmatmul.mubr.f32.gmra.mxu0 %v3967
        %v4321 = vpop.f32.mrf.mxu0
        %v4322 = vadd.f32 %v4177, %v4321
        %v4323 = vpop.f32.mrf.mxu0
        %4324 = vmatprep.mubr.f32.mxu0 %v3972
        %4325 = vmatmul.mubr.f32.gmra.mxu0 %v3971
        %v4326 = vpop.f32.mrf.mxu0
        %v4327 = vadd.f32 %v4182, %v4326
        %v4328 = vpop.f32.mrf.mxu0
        %4329 = vmatprep.mubr.f32.mxu0 %v3976
        %4330 = vmatmul.mubr.f32.gmra.mxu0 %v3975
        %v4331 = vpop.f32.mrf.mxu0
        %v4332 = vadd.f32 %v4187, %v4331
        %v4333 = vpop.f32.mrf.mxu0
        %4334 = vmatprep.mubr.f32.mxu0 %v3980
        %4335 = vmatmul.mubr.f32.gmra.mxu0 %v3979
        %v4336 = vpop.f32.mrf.mxu0
        %v4337 = vadd.f32 %v4192, %v4336
        %v4338 = vpop.f32.mrf.mxu0
        %4339 = vmatprep.mubr.f32.mxu0 %v3984
        %4340 = vmatmul.mubr.f32.gmra.mxu0 %v3983
        %v4341 = vpop.f32.mrf.mxu0
        %v4342 = vadd.f32 %v4197, %v4341
        %v4343 = vpop.f32.mrf.mxu0
        %4344 = vmatprep.mubr.f32.mxu0 %v3988
        %4345 = vmatmul.mubr.f32.gmra.mxu0 %v3987
        %v4346 = vpop.f32.mrf.mxu0
        %v4347 = vadd.f32 %v4202, %v4346
        %v4348 = vpop.f32.mrf.mxu0
        %4349 = vdwg.mxu0
        %v4350 = vadd.f32 %v4272, %v3245
        %v4351 = vadd.f32 %v4277, %v3246
        %v4352 = vadd.f32 %v4282, %v3247
        %v4353 = vadd.f32 %v4287, %v3248
        %v4354 = vadd.f32 %v4292, %v3249
        %v4355 = vadd.f32 %v4297, %v3250
        %v4356 = vadd.f32 %v4302, %v3251
        %v4357 = vadd.f32 %v4307, %v3252
        %v4358 = vadd.f32 %v4312, %v3253
        %v4359 = vadd.f32 %v4317, %v3254
        %v4360 = vadd.f32 %v4322, %v3255
        %v4361 = vadd.f32 %v4327, %v3256
        %v4362 = vadd.f32 %v4332, %v3257
        %v4363 = vadd.f32 %v4337, %v3258
        %v4364 = vadd.f32 %v4342, %v3259
        %v4365 = vadd.f32 %v4347, %v3260
        %4366 = vadd.xlane.f32.xlu0 %v4350
        %v4367 = vpop.xlane.xlu0 %4366
        %4368 = vadd.xlane.f32.xlu0 %v4351
        %v4369 = vpop.xlane.xlu0 %4368
        %4370 = vadd.xlane.f32.xlu0 %v4352
        %v4371 = vpop.xlane.xlu0 %4370
        %4372 = vadd.xlane.f32.xlu0 %v4353
        %v4373 = vpop.xlane.xlu0 %4372
        %4374 = vadd.xlane.f32.xlu0 %v4354
        %v4375 = vpop.xlane.xlu0 %4374
        %4376 = vadd.xlane.f32.xlu0 %v4355
        %v4377 = vpop.xlane.xlu0 %4376
        %4378 = vadd.xlane.f32.xlu0 %v4356
        %v4379 = vpop.xlane.xlu0 %4378
        %4380 = vadd.xlane.f32.xlu0 %v4357
        %v4381 = vpop.xlane.xlu0 %4380
        %4382 = vadd.xlane.f32.xlu0 %v4358
        %v4383 = vpop.xlane.xlu0 %4382
        %4384 = vadd.xlane.f32.xlu0 %v4359
        %v4385 = vpop.xlane.xlu0 %4384
        %4386 = vadd.xlane.f32.xlu0 %v4360
        %v4387 = vpop.xlane.xlu0 %4386
        %4388 = vadd.xlane.f32.xlu0 %v4361
        %v4389 = vpop.xlane.xlu0 %4388
        %4390 = vadd.xlane.f32.xlu0 %v4362
        %v4391 = vpop.xlane.xlu0 %4390
        %4392 = vadd.xlane.f32.xlu0 %v4363
        %v4393 = vpop.xlane.xlu0 %4392
        %4394 = vadd.xlane.f32.xlu0 %v4364
        %v4395 = vpop.xlane.xlu0 %4394
        %4396 = vadd.xlane.f32.xlu0 %v4365
        %v4397 = vpop.xlane.xlu0 %4396
        %v4398 = vmul.f32 %v4367, %v3070
        %v4399 = vmul.f32 %v4369, %v3070
        %v4400 = vmul.f32 %v4371, %v3070
        %v4401 = vmul.f32 %v4373, %v3070
        %v4402 = vmul.f32 %v4375, %v3070
        %v4403 = vmul.f32 %v4377, %v3070
        %v4404 = vmul.f32 %v4379, %v3070
        %v4405 = vmul.f32 %v4381, %v3070
        %v4406 = vmul.f32 %v4383, %v3070
        %v4407 = vmul.f32 %v4385, %v3070
        %v4408 = vmul.f32 %v4387, %v3070
        %v4409 = vmul.f32 %v4389, %v3070
        %v4410 = vmul.f32 %v4391, %v3070
        %v4411 = vmul.f32 %v4393, %v3070
        %v4412 = vmul.f32 %v4395, %v3070
        %v4413 = vmul.f32 %v4397, %v3070
        %v4414 = vsub.f32 %v4350, %v4398
        %v4415 = vsub.f32 %v4351, %v4399
        %v4416 = vsub.f32 %v4352, %v4400
        %v4417 = vsub.f32 %v4353, %v4401
        %v4418 = vsub.f32 %v4354, %v4402
        %v4419 = vsub.f32 %v4355, %v4403
        %v4420 = vsub.f32 %v4356, %v4404
        %v4421 = vsub.f32 %v4357, %v4405
        %v4422 = vsub.f32 %v4358, %v4406
        %v4423 = vsub.f32 %v4359, %v4407
        %v4424 = vsub.f32 %v4360, %v4408
        %v4425 = vsub.f32 %v4361, %v4409
        %v4426 = vsub.f32 %v4362, %v4410
        %v4427 = vsub.f32 %v4363, %v4411
        %v4428 = vsub.f32 %v4364, %v4412
        %v4429 = vsub.f32 %v4365, %v4413
        %v4430 = vmul.f32 %v4414, %v4414
        %v4431 = vmul.f32 %v4415, %v4415
        %v4432 = vmul.f32 %v4416, %v4416
        %v4433 = vmul.f32 %v4417, %v4417
        %v4434 = vmul.f32 %v4418, %v4418
        %v4435 = vmul.f32 %v4419, %v4419
        %v4436 = vmul.f32 %v4420, %v4420
        %v4437 = vmul.f32 %v4421, %v4421
        %v4438 = vmul.f32 %v4422, %v4422
        %v4439 = vmul.f32 %v4423, %v4423
        %v4440 = vmul.f32 %v4424, %v4424
        %v4441 = vmul.f32 %v4425, %v4425
        %v4442 = vmul.f32 %v4426, %v4426
        %v4443 = vmul.f32 %v4427, %v4427
        %v4444 = vmul.f32 %v4428, %v4428
        %v4445 = vmul.f32 %v4429, %v4429
        %4446 = vadd.xlane.f32.xlu0 %v4430
        %v4447 = vpop.xlane.xlu0 %4446
        %4448 = vadd.xlane.f32.xlu0 %v4431
        %v4449 = vpop.xlane.xlu0 %4448
        %4450 = vadd.xlane.f32.xlu0 %v4432
        %v4451 = vpop.xlane.xlu0 %4450
        %4452 = vadd.xlane.f32.xlu0 %v4433
        %v4453 = vpop.xlane.xlu0 %4452
        %4454 = vadd.xlane.f32.xlu0 %v4434
        %v4455 = vpop.xlane.xlu0 %4454
        %4456 = vadd.xlane.f32.xlu0 %v4435
        %v4457 = vpop.xlane.xlu0 %4456
        %4458 = vadd.xlane.f32.xlu0 %v4436
        %v4459 = vpop.xlane.xlu0 %4458
        %4460 = vadd.xlane.f32.xlu0 %v4437
        %v4461 = vpop.xlane.xlu0 %4460
        %4462 = vadd.xlane.f32.xlu0 %v4438
        %v4463 = vpop.xlane.xlu0 %4462
        %4464 = vadd.xlane.f32.xlu0 %v4439
        %v4465 = vpop.xlane.xlu0 %4464
        %4466 = vadd.xlane.f32.xlu0 %v4440
        %v4467 = vpop.xlane.xlu0 %4466
        %4468 = vadd.xlane.f32.xlu0 %v4441
        %v4469 = vpop.xlane.xlu0 %4468
        %4470 = vadd.xlane.f32.xlu0 %v4442
        %v4471 = vpop.xlane.xlu0 %4470
        %4472 = vadd.xlane.f32.xlu0 %v4443
        %v4473 = vpop.xlane.xlu0 %4472
        %4474 = vadd.xlane.f32.xlu0 %v4444
        %v4475 = vpop.xlane.xlu0 %4474
        %4476 = vadd.xlane.f32.xlu0 %v4445
        %v4477 = vpop.xlane.xlu0 %4476
        %v4478 = vmul.f32 %v4447, %v3070
        %v4479 = vmul.f32 %v4449, %v3070
        %v4480 = vmul.f32 %v4451, %v3070
        %v4481 = vmul.f32 %v4453, %v3070
        %v4482 = vmul.f32 %v4455, %v3070
        %v4483 = vmul.f32 %v4457, %v3070
        %v4484 = vmul.f32 %v4459, %v3070
        %v4485 = vmul.f32 %v4461, %v3070
        %v4486 = vmul.f32 %v4463, %v3070
        %v4487 = vmul.f32 %v4465, %v3070
        %v4488 = vmul.f32 %v4467, %v3070
        %v4489 = vmul.f32 %v4469, %v3070
        %v4490 = vmul.f32 %v4471, %v3070
        %v4491 = vmul.f32 %v4473, %v3070
        %v4492 = vmul.f32 %v4475, %v3070
        %v4493 = vmul.f32 %v4477, %v3070
        %v4494 = vadd.f32 %v4478, 1e-12
        %v4495 = vadd.f32 %v4479, 1e-12
        %v4496 = vadd.f32 %v4480, 1e-12
        %v4497 = vadd.f32 %v4481, 1e-12
        %v4498 = vadd.f32 %v4482, 1e-12
        %v4499 = vadd.f32 %v4483, 1e-12
        %v4500 = vadd.f32 %v4484, 1e-12
        %v4501 = vadd.f32 %v4485, 1e-12
        %v4502 = vadd.f32 %v4486, 1e-12
        %v4503 = vadd.f32 %v4487, 1e-12
        %v4504 = vadd.f32 %v4488, 1e-12
        %v4505 = vadd.f32 %v4489, 1e-12
        %v4506 = vadd.f32 %v4490, 1e-12
        %v4507 = vadd.f32 %v4491, 1e-12
        %v4508 = vadd.f32 %v4492, 1e-12
        %v4509 = vadd.f32 %v4493, 1e-12
        %v4510 = vrsqrt.pop %v4494
        %v4511 = vrsqrt.pop %v4495
        %v4512 = vrsqrt.pop %v4496
        %v4513 = vrsqrt.pop %v4497
        %v4514 = vrsqrt.pop %v4498
        %v4515 = vrsqrt.pop %v4499
        %v4516 = vrsqrt.pop %v4500
        %v4517 = vrsqrt.pop %v4501
        %v4518 = vrsqrt.pop %v4502
        %v4519 = vrsqrt.pop %v4503
        %v4520 = vrsqrt.pop %v4504
        %v4521 = vrsqrt.pop %v4505
        %v4522 = vrsqrt.pop %v4506
        %v4523 = vrsqrt.pop %v4507
        %v4524 = vrsqrt.pop %v4508
        %v4525 = vrsqrt.pop %v4509
        %v4526 = vmul.f32 %v4414, %v4510
        %v4527 = vmul.f32 %v4415, %v4511
        %v4528 = vmul.f32 %v4416, %v4512
        %v4529 = vmul.f32 %v4417, %v4513
        %v4530 = vmul.f32 %v4418, %v4514
        %v4531 = vmul.f32 %v4419, %v4515
        %v4532 = vmul.f32 %v4420, %v4516
        %v4533 = vmul.f32 %v4421, %v4517
        %v4534 = vmul.f32 %v4422, %v4518
        %v4535 = vmul.f32 %v4423, %v4519
        %v4536 = vmul.f32 %v4424, %v4520
        %v4537 = vmul.f32 %v4425, %v4521
        %v4538 = vmul.f32 %v4426, %v4522
        %v4539 = vmul.f32 %v4427, %v4523
        %v4540 = vmul.f32 %v4428, %v4524
        %v4541 = vmul.f32 %v4429, %v4525
        %v4542 = vld [vmem:[%s14] sm:$0x1]
        %v4544 = vlaneseq
        %v4545 = vshrl.u32 %v4544, 7
        %v4546 = vsub.s32 0, %v4545
        %v4547 = vrot.slane %v4542, %v4546
        %v4549 = vmul.f32 %v4526, %v4547
        %v4550 = vmul.f32 %v4527, %v4547
        %v4551 = vmul.f32 %v4528, %v4547
        %v4552 = vmul.f32 %v4529, %v4547
        %v4553 = vmul.f32 %v4530, %v4547
        %v4554 = vmul.f32 %v4531, %v4547
        %v4555 = vmul.f32 %v4532, %v4547
        %v4556 = vmul.f32 %v4533, %v4547
        %v4557 = vmul.f32 %v4534, %v4547
        %v4558 = vmul.f32 %v4535, %v4547
        %v4559 = vmul.f32 %v4536, %v4547
        %v4560 = vmul.f32 %v4537, %v4547
        %v4561 = vmul.f32 %v4538, %v4547
        %v4562 = vmul.f32 %v4539, %v4547
        %v4563 = vmul.f32 %v4540, %v4547
        %v4564 = vmul.f32 %v4541, %v4547
        %v4565 = vld [vmem:[%s15] sm:$0x1]
        %v4567 = vlaneseq
        %v4568 = vshrl.u32 %v4567, 7
        %v4569 = vsub.s32 0, %v4568
        %v4570 = vrot.slane %v4565, %v4569
        %v4572 = vadd.f32 %v4549, %v4570
        %v4573 = vadd.f32 %v4550, %v4570
        %v4574 = vadd.f32 %v4551, %v4570
        %v4575 = vadd.f32 %v4552, %v4570
        %v4576 = vadd.f32 %v4553, %v4570
        %v4577 = vadd.f32 %v4554, %v4570
        %v4578 = vadd.f32 %v4555, %v4570
        %v4579 = vadd.f32 %v4556, %v4570
        %v4580 = vadd.f32 %v4557, %v4570
        %v4581 = vadd.f32 %v4558, %v4570
        %v4582 = vadd.f32 %v4559, %v4570
        %v4583 = vadd.f32 %v4560, %v4570
        %v4584 = vadd.f32 %v4561, %v4570
        %v4585 = vadd.f32 %v4562, %v4570
        %v4586 = vadd.f32 %v4563, %v4570
        %v4587 = vadd.f32 %v4564, %v4570
        %4588 = vst [vmem:[%s663] sm:$0xff] %v4572
        %4589 = vst [vmem:[%s663 + $0x8] sm:$0xff] %v4573
        %4590 = vst [vmem:[%s663 + $0x10] sm:$0xff] %v4574
        %4591 = vst [vmem:[%s663 + $0x18] sm:$0xff] %v4575
        %4592 = vst [vmem:[%s663 + $0x20] sm:$0xff] %v4576
        %4593 = vst [vmem:[%s663 + $0x28] sm:$0xff] %v4577
        %4594 = vst [vmem:[%s663 + $0x30] sm:$0xff] %v4578
        %4595 = vst [vmem:[%s663 + $0x38] sm:$0xff] %v4579
        %4596 = vst [vmem:[%s663 + $0x40] sm:$0xff] %v4580
        %4597 = vst [vmem:[%s663 + $0x48] sm:$0xff] %v4581
        %4598 = vst [vmem:[%s663 + $0x50] sm:$0xff] %v4582
        %4599 = vst [vmem:[%s663 + $0x58] sm:$0xff] %v4583
        %4600 = vst [vmem:[%s663 + $0x60] sm:$0xff] %v4584
        %4601 = vst [vmem:[%s663 + $0x68] sm:$0xff] %v4585
        %4602 = vst [vmem:[%s663 + $0x70] sm:$0xff] %v4586
        %4603 = vst [vmem:[%s663 + $0x78] sm:$0xff] %v4587
        %s4604 = sand.u32 %s406, 1
        %s4605 = scalar_lea.sflag [#allocation7], %s4604
        %s4606 = sand.u32 %s406, 1
        %s4607 = smul.addr %s4606, 128
        %s4608 = scalar_lea.vmem [#allocation17], %s4607
        // Predicated region
        $region117: #{tpu_custom_call.1} parent=83 // pred_check
          %p4609 = pneg %p416
        $region118: #{tpu_custom_call.1} parent=83 // pred_check_branch
          %4611 = sbr.rel (%p4609) target = $region120
        $region119: #{tpu_custom_call.1} parent=83 // pred_region
          %s4612 = smul.u32 16, %s43
          %s4614 = ssub.s32 2048, 2048
          %4615 = vsyncadd %s4605, %s4614
          %s4616 = smul.addr %s42, 32
          %s4617 = sadd.s32 %s4612, %s4616
          %s4618 = smul.addr %s4617, 128
          %s4619 = scalar_lea.hbm %s16, %s4618
          %s4620 = sshll.u32 %s4608, 4
          %s4621 = int_to_ptr.vmem [resolvable:$true] %s4620
          %4626 = dma.vmem_to_hbm [thread:$0]  %s4621, 2048, %s4619, %s4605, 128, 128, 8
        $region120: #{tpu_custom_call.1} parent=83 // pred_fallthru
          _
      $region84: #{tpu_custom_call.1} parent=5 // pred_fallthru
        _
      %p4627 = scmp.le.s32.totalorder 2, %s33
      // Predicated region
      $region121: #{tpu_custom_call.1} parent=5 // pred_check
        %p4628 = pneg %p4627
      $region122: #{tpu_custom_call.1} parent=5 // pred_check_branch
        %4630 = sbr.rel (%p4628) target = $region124
      $region123: #{tpu_custom_call.1} parent=5 // pred_region
        %s4631 = ssub.s32 %s33, 2
        // Predicated region
        $region125: #{tpu_custom_call.1} parent=123 // pred_check
          %p4632 = pneg %p422
        $region126: #{tpu_custom_call.1} parent=123 // pred_check_branch
          %4634 = sbr.rel (%p4632) target = $region128
        $region127: #{tpu_custom_call.1} parent=123 // pred_region
          %s4635 = sand.u32 %s407, 1
          %s4636 = scalar_lea.sflag [#allocation7], %s4635
          %s4637 = sand.u32 %s407, 1
          %s4638 = smul.addr %s4637, 128
          %s4639 = scalar_lea.vmem [#allocation17], %s4638
          %4640 = dma.done %s4636, 2048
        $region128: #{tpu_custom_call.1} parent=123 // pred_fallthru
          _
      $region124: #{tpu_custom_call.1} parent=5 // pred_fallthru
        _
    $region6: #{tpu_custom_call.1} parent=1 // loop_footer
      %s37 = sadd.s32 1, %s33
    $region7: #{tpu_custom_call.1} parent=1 // loop_footer_branch
      %32 = sbr.rel target = $region3
    $region8: #{tpu_custom_call.1} parent=1 // loop_exit
      _
    %4641 = vsyncpa [#allocation6], 1
    %s4642 = scalar_lea.sflag [#allocation6], 1
    %4643 = vsyncpa %s4642, 1
    %4644 = vsyncpa [#allocation9], 1
    %s4645 = scalar_lea.sflag [#allocation9], 1
    %4646 = vsyncpa %s4645, 1
    %4647 = vsyncpa [#allocation12], 1
    %4648 = vsyncpa [#allocation15], 1
    %4649 = vsyncpa [#allocation7], 1
    %s4650 = scalar_lea.sflag [#allocation7], 1
    %4651 = vsyncpa %s4650, 1

// kernel: tpu_custom_call.1
$region0: #{tpu_custom_call.1}
  #allocation0 [shape = 'u32[]', space=smem, size = 0x4, offset = 0x4, fixed_abs, tag = 'smem constant byte address 0x4 - core index']
  #allocation1 [shape = 'u32[144,128]{1,0:T(1,128)}', space=vmem, size = 0x12000, scoped, tag = 'internal scratch']
  #allocation2 [shape = 'f32[128,256]{1,0:T(8,128)}', space=vmem, size = 0x20000, scoped, tag = 'scratch operand']
  #allocation3 [shape = 'f32[256,128]{1,0:T(8,128)}', space=vmem, size = 0x20000, scoped, tag = 'scratch operand']
  #allocation4 [shape = 'f32[128,128]{1,0:T(8,128)}', space=vmem, size = 0x10000, scoped, tag = 'scratch operand']
  %s0 = inlined_call_operand.hbm [shape: f32[2,256,128], index: 0, kind: input, shape index: {}]
  %s1 = inlined_call_operand.hbm [shape: f32[2,1,256], index: 1, kind: input, shape index: {}]
  %s2 = inlined_call_operand.hbm [shape: f32[128,128], index: 2, kind: input, shape index: {}]
  %s3 = inlined_call_operand.vmem [shape: f32[1,128], index: 3, kind: input, shape index: {}]
  %s4 = inlined_call_operand.hbm [shape: f32[128,256], index: 4, kind: input, shape index: {}]
  %s5 = inlined_call_operand.vmem [shape: f32[1,256], index: 5, kind: input, shape index: {}]
  %s6 = inlined_call_operand.hbm [shape: f32[128,128], index: 6, kind: input, shape index: {}]
  %s7 = inlined_call_operand.vmem [shape: f32[1,128], index: 7, kind: input, shape index: {}]
  %s8 = inlined_call_operand.vmem [shape: f32[1,128], index: 8, kind: input, shape index: {}]
  %s9 = inlined_call_operand.vmem [shape: f32[1,128], index: 9, kind: input, shape index: {}]
  %s10 = inlined_call_operand.hbm [shape: f32[128,512], index: 10, kind: input, shape index: {}]
  %s11 = inlined_call_operand.vmem [shape: f32[1,512], index: 11, kind: input, shape index: {}]
  %s12 = inlined_call_operand.hbm [shape: f32[512,128], index: 12, kind: input, shape index: {}]
  %s13 = inlined_call_operand.vmem [shape: f32[1,128], index: 13, kind: input, shape index: {}]
  %s14 = inlined_call_operand.vmem [shape: f32[1,128], index: 14, kind: input, shape index: {}]
  %s15 = inlined_call_operand.vmem [shape: f32[1,128], index: 15, kind: input, shape index: {}]
  %s16 = inlined_call_operand.hbm [shape: f32[2,256,128], index: 16, kind: output, shape index: {}]
  %s17 = sld [smem:[#allocation0]]
  $region129: #{tpu_custom_call.1} parent=0
    _
  %s19 = ssub.s32 1, %s17
  %s20 = scalar_select 0, %s19, %s17
  $region1: #{tpu_custom_call.1} parent=0
    #allocation5 [shape = 'u8[262144]{0}', space=vmem, size = 0x40000, scoped, tag = 'input window, operand 0']
    #allocation6 [shape = 's32[2]{0}', space=sflag, size = 0x8, scoped, tag = 'scoped memory for tpu_custom_call.1']
    #allocation7 [shape = 's32[2]{0}', space=sflag, size = 0x8, scoped, tag = 'scoped memory for tpu_custom_call.1']
    #allocation8 [shape = 'u8[2048]{0}', space=vmem, size = 0x800, scoped, tag = 'input window, operand 1']
    #allocation9 [shape = 's32[2]{0}', space=sflag, size = 0x8, scoped, tag = 'scoped memory for tpu_custom_call.1']
    #allocation10 [shape = 'u8[65536]{0}', space=vmem, size = 0x10000, scoped, tag = 'input window, operand 2, single buffered']
    #allocation11 [shape = 'u8[131072]{0}', space=vmem, size = 0x20000, scoped, tag = 'input window, operand 4, single buffered']
    #allocation12 [shape = 's32[1]{0}', space=sflag, size = 0x4, scoped, tag = 'scoped memory for tpu_custom_call.1']
    #allocation13 [shape = 'u8[65536]{0}', space=vmem, size = 0x10000, scoped, tag = 'input window, operand 6, single buffered']
    #allocation14 [shape = 'u8[262144]{0}', space=vmem, size = 0x40000, scoped, tag = 'input window, operand 10, single buffered']
    #allocation15 [shape = 's32[1]{0}', space=sflag, size = 0x4, scoped, tag = 'scoped memory for tpu_custom_call.1']
    #allocation16 [shape = 'u8[262144]{0}', space=vmem, size = 0x40000, scoped, tag = 'input window, operand 12, single buffered']
    #allocation17 [shape = 'u8[131072]{0}', space=vmem, size = 0x20000, scoped, tag = 'output window, operand 0']
    %21 = vsyncpa [#allocation6], 0
    %s22 = scalar_lea.sflag [#allocation6], 1
    %23 = vsyncpa %s22, 0
    %24 = vsyncpa [#allocation9], 0
    %s25 = scalar_lea.sflag [#allocation9], 1
    %26 = vsyncpa %s25, 0
    %27 = vsyncpa [#allocation12], 0
    %28 = vsyncpa [#allocation15], 0
    %29 = vsyncpa [#allocation7], 0
    %s30 = scalar_lea.sflag [#allocation7], 1
    %31 = vsyncpa %s30, 0
    loop: start=0, step=1, limit=6
    $region2: #{tpu_custom_call.1} parent=1 // loop_pre_header
      _
    $region3: #{tpu_custom_call.1} parent=1 // loop_header
      %s33 = sphi 0, %s37
      %p34 = scmp.ge.s32.totalorder %s33, 6
      %s40 = sphi 0, %s52
      %s41 = sphi 0, %s48
      %s42 = sphi 0, %s40
      %s43 = sphi 0, %s41
      %s44 = sphi 0, %s42
      %s45 = sphi 0, %s43
      %s55 = sphi 0, %s57
      %s58 = sphi 0, %s55
      %s59 = sphi 0, %s58
      %s75 = sphi 0, %s59
      %s81 = sphi 0, %s83
      %s84 = sphi 0, %s81
      %s85 = sphi 0, %s84
      %s101 = sphi 0, %s85
      %s105 = sphi 0, %s105
      %s107 = sphi 0, %s105
      %s108 = sphi 0, %s107
      %s122 = sphi 0, %s108
      %s126 = sphi 0, %s126
      %s128 = sphi 0, %s126
      %s129 = sphi 0, %s128
      %s143 = sphi 0, %s129
      %s147 = sphi 0, %s147
      %s149 = sphi 0, %s147
      %s150 = sphi 0, %s149
      %s164 = sphi 0, %s150
      %s168 = sphi 0, %s168
      %s170 = sphi 0, %s168
      %s171 = sphi 0, %s170
      %s185 = sphi 0, %s171
      %s189 = sphi 0, %s189
      %s191 = sphi 0, %s189
      %s192 = sphi 0, %s191
      %s206 = sphi 0, %s192
      %s210 = sphi 0, %s210
      %s212 = sphi 0, %s210
      %s213 = sphi 0, %s212
      %s227 = sphi 0, %s213
      %s231 = sphi 0, %s231
      %s233 = sphi 0, %s231
      %s234 = sphi 0, %s233
      %s248 = sphi 0, %s234
      %s252 = sphi 0, %s252
      %s254 = sphi 0, %s252
      %s255 = sphi 0, %s254
      %s269 = sphi 0, %s255
      %s273 = sphi 0, %s273
      %s275 = sphi 0, %s273
      %s276 = sphi 0, %s275
      %s290 = sphi 0, %s276
      %s294 = sphi 0, %s294
      %s296 = sphi 0, %s294
      %s297 = sphi 0, %s296
      %s311 = sphi 0, %s297
      %s315 = sphi 0, %s315
      %s317 = sphi 0, %s315
      %s318 = sphi 0, %s317
      %s332 = sphi 0, %s318
      %s336 = sphi 0, %s336
      %s338 = sphi 0, %s336
      %s339 = sphi 0, %s338
      %s353 = sphi 0, %s339
      %s357 = sphi 0, %s357
      %s359 = sphi 0, %s357
      %s360 = sphi 0, %s359
      %s374 = sphi 0, %s360
      %s378 = sphi 0, %s378
      %s380 = sphi 0, %s378
      %s381 = sphi 0, %s380
      %s395 = sphi 0, %s381
      %s403 = sphi 0, %s405
      %s406 = sphi 0, %s403
      %s407 = sphi 0, %s406
      %s423 = sphi 0, %s407
    $region4: #{tpu_custom_call.1} parent=1 // loop_header_branch
      %36 = sbr.rel (%p34) target = $region8
    $region5: #{tpu_custom_call.1} parent=1 // loop_body
      %s38 = ssub.s32 %s33, 1
      %s39 = ssub.s32 %s33, 2
      %s46 = sadd.s32 1, %s41
      %p47 = scmp.ge.s32.totalorder %s46, 2
      %s48 = scalar_select %p47, 0, %s46
      %s49 = sadd.s32 1, %s40
      %s50 = scalar_select %p47, %s49, %s40
      %p51 = scmp.ge.s32.totalorder %s50, 2
      %s52 = scalar_select %p51, 0, %s50
      %s53 = ssub.s32 %s40, %s52
      %p54 = scmp.eq.s32.totalorder %s53, 0
      %s56 = sadd.s32 %s55, 1
      %s57 = scalar_select %p54, %s55, %s56
      %p60 = pneg %p54
      %p61 = scmp.eq.s32.totalorder %s33, 3
      %p62 = por %p60, %p61
      %p63 = scmp.ne.s32.totalorder %s55, %s58
      %p64 = scmp.eq.s32.totalorder %s33, 0
      %p65 = por %p63, %p64
      %p66 = scmp.ne.s32.totalorder %s55, %s58
      %p67 = scmp.eq.s32.totalorder %s38, 3
      %p68 = por %p66, %p67
      %p69 = scmp.ne.s32.totalorder %s58, %s59
      %p70 = scmp.eq.s32.totalorder %s38, 0
      %p71 = por %p69, %p70
      %p72 = scmp.ne.s32.totalorder %s58, %s59
      %p73 = scmp.eq.s32.totalorder %s39, 3
      %p74 = por %p72, %p73
      %p76 = scmp.ne.s32.totalorder %s59, %s75
      %p77 = scmp.eq.s32.totalorder %s39, 0
      %p78 = por %p76, %p77
      %s79 = ssub.s32 %s40, %s52
      %p80 = scmp.eq.s32.totalorder %s79, 0
      %s82 = sadd.s32 %s81, 1
      %s83 = scalar_select %p80, %s81, %s82
      %p86 = pneg %p80
      %p87 = scmp.eq.s32.totalorder %s33, 3
      %p88 = por %p86, %p87
      %p89 = scmp.ne.s32.totalorder %s81, %s84
      %p90 = scmp.eq.s32.totalorder %s33, 0
      %p91 = por %p89, %p90
      %p92 = scmp.ne.s32.totalorder %s81, %s84
      %p93 = scmp.eq.s32.totalorder %s38, 3
      %p94 = por %p92, %p93
      %p95 = scmp.ne.s32.totalorder %s84, %s85
      %p96 = scmp.eq.s32.totalorder %s38, 0
      %p97 = por %p95, %p96
      %p98 = scmp.ne.s32.totalorder %s84, %s85
      %p99 = scmp.eq.s32.totalorder %s39, 3
      %p100 = por %p98, %p99
      %p102 = scmp.ne.s32.totalorder %s85, %s101
      %p103 = scmp.eq.s32.totalorder %s39, 0
      %p104 = por %p102, %p103
      %s106 = sadd.s32 %s105, 1
      %p109 = scmp.eq.s32.totalorder %s33, 3
      %p110 = scmp.ne.s32.totalorder %s105, %s107
      %p111 = scmp.eq.s32.totalorder %s33, 0
      %p112 = por %p110, %p111
      %p113 = scmp.ne.s32.totalorder %s105, %s107
      %p114 = scmp.eq.s32.totalorder %s38, 3
      %p115 = por %p113, %p114
      %p116 = scmp.ne.s32.totalorder %s107, %s108
      %p117 = scmp.eq.s32.totalorder %s38, 0
      %p118 = por %p116, %p117
      %p119 = scmp.ne.s32.totalorder %s107, %s108
      %p120 = scmp.eq.s32.totalorder %s39, 3
      %p121 = por %p119, %p120
      %p123 = scmp.ne.s32.totalorder %s108, %s122
      %p124 = scmp.eq.s32.totalorder %s39, 0
      %p125 = por %p123, %p124
      %s127 = sadd.s32 %s126, 1
      %p130 = scmp.eq.s32.totalorder %s33, 3
      %p131 = scmp.ne.s32.totalorder %s126, %s128
      %p132 = scmp.eq.s32.totalorder %s33, 0
      %p133 = por %p131, %p132
      %p134 = scmp.ne.s32.totalorder %s126, %s128
      %p135 = scmp.eq.s32.totalorder %s38, 3
      %p136 = por %p134, %p135
      %p137 = scmp.ne.s32.totalorder %s128, %s129
      %p138 = scmp.eq.s32.totalorder %s38, 0
      %p139 = por %p137, %p138
      %p140 = scmp.ne.s32.totalorder %s128, %s129
      %p141 = scmp.eq.s32.totalorder %s39, 3
      %p142 = por %p140, %p141
      %p144 = scmp.ne.s32.totalorder %s129, %s143
      %p145 = scmp.eq.s32.totalorder %s39, 0
      %p146 = por %p144, %p145
      %s148 = sadd.s32 %s147, 1
      %p151 = scmp.eq.s32.totalorder %s33, 3
      %p152 = scmp.ne.s32.totalorder %s147, %s149
      %p153 = scmp.eq.s32.totalorder %s33, 0
      %p154 = por %p152, %p153
      %p155 = scmp.ne.s32.totalorder %s147, %s149
      %p156 = scmp.eq.s32.totalorder %s38, 3
      %p157 = por %p155, %p156
      %p158 = scmp.ne.s32.totalorder %s149, %s150
      %p159 = scmp.eq.s32.totalorder %s38, 0
      %p160 = por %p158, %p159
      %p161 = scmp.ne.s32.totalorder %s149, %s150
      %p162 = scmp.eq.s32.totalorder %s39, 3
      %p163 = por %p161, %p162
      %p165 = scmp.ne.s32.totalorder %s150, %s164
      %p166 = scmp.eq.s32.totalorder %s39, 0
      %p167 = por %p165, %p166
      %s169 = sadd.s32 %s168, 1
      %p172 = scmp.eq.s32.totalorder %s33, 3
      %p173 = scmp.ne.s32.totalorder %s168, %s170
      %p174 = scmp.eq.s32.totalorder %s33, 0
      %p175 = por %p173, %p174
      %p176 = scmp.ne.s32.totalorder %s168, %s170
      %p177 = scmp.eq.s32.totalorder %s38, 3
      %p178 = por %p176, %p177
      %p179 = scmp.ne.s32.totalorder %s170, %s171
      %p180 = scmp.eq.s32.totalorder %s38, 0
      %p181 = por %p179, %p180
      %p182 = scmp.ne.s32.totalorder %s170, %s171
      %p183 = scmp.eq.s32.totalorder %s39, 3
      %p184 = por %p182, %p183
      %p186 = scmp.ne.s32.totalorder %s171, %s185
      %p187 = scmp.eq.s32.totalorder %s39, 0
      %p188 = por %p186, %p187
      %s190 = sadd.s32 %s189, 1
      %p193 = scmp.eq.s32.totalorder %s33, 3
      %p194 = scmp.ne.s32.totalorder %s189, %s191
      %p195 = scmp.eq.s32.totalorder %s33, 0
      %p196 = por %p194, %p195
      %p197 = scmp.ne.s32.totalorder %s189, %s191
      %p198 = scmp.eq.s32.totalorder %s38, 3
      %p199 = por %p197, %p198
      %p200 = scmp.ne.s32.totalorder %s191, %s192
      %p201 = scmp.eq.s32.totalorder %s38, 0
      %p202 = por %p200, %p201
      %p203 = scmp.ne.s32.totalorder %s191, %s192
      %p204 = scmp.eq.s32.totalorder %s39, 3
      %p205 = por %p203, %p204
      %p207 = scmp.ne.s32.totalorder %s192, %s206
      %p208 = scmp.eq.s32.totalorder %s39, 0
      %p209 = por %p207, %p208
      %s211 = sadd.s32 %s210, 1
      %p214 = scmp.eq.s32.totalorder %s33, 3
      %p215 = scmp.ne.s32.totalorder %s210, %s212
      %p216 = scmp.eq.s32.totalorder %s33, 0
      %p217 = por %p215, %p216
      %p218 = scmp.ne.s32.totalorder %s210, %s212
      %p219 = scmp.eq.s32.totalorder %s38, 3
      %p220 = por %p218, %p219
      %p221 = scmp.ne.s32.totalorder %s212, %s213
      %p222 = scmp.eq.s32.totalorder %s38, 0
      %p223 = por %p221, %p222
      %p224 = scmp.ne.s32.totalorder %s212, %s213
      %p225 = scmp.eq.s32.totalorder %s39, 3
      %p226 = por %p224, %p225
      %p228 = scmp.ne.s32.totalorder %s213, %s227
      %p229 = scmp.eq.s32.totalorder %s39, 0
      %p230 = por %p228, %p229
      %s232 = sadd.s32 %s231, 1
      %p235 = scmp.eq.s32.totalorder %s33, 3
      %p236 = scmp.ne.s32.totalorder %s231, %s233
      %p237 = scmp.eq.s32.totalorder %s33, 0
      %p238 = por %p236, %p237
      %p239 = scmp.ne.s32.totalorder %s231, %s233
      %p240 = scmp.eq.s32.totalorder %s38, 3
      %p241 = por %p239, %p240
      %p242 = scmp.ne.s32.totalorder %s233, %s234
      %p243 = scmp.eq.s32.totalorder %s38, 0
      %p244 = por %p242, %p243
      %p245 = scmp.ne.s32.totalorder %s233, %s234
      %p246 = scmp.eq.s32.totalorder %s39, 3
      %p247 = por %p245, %p246
      %p249 = scmp.ne.s32.totalorder %s234, %s248
      %p250 = scmp.eq.s32.totalorder %s39, 0
      %p251 = por %p249, %p250
      %s253 = sadd.s32 %s252, 1
      %p256 = scmp.eq.s32.totalorder %s33, 3
      %p257 = scmp.ne.s32.totalorder %s252, %s254
      %p258 = scmp.eq.s32.totalorder %s33, 0
      %p259 = por %p257, %p258
      %p260 = scmp.ne.s32.totalorder %s252, %s254
      %p261 = scmp.eq.s32.totalorder %s38, 3
      %p262 = por %p260, %p261
      %p263 = scmp.ne.s32.totalorder %s254, %s255
      %p264 = scmp.eq.s32.totalorder %s38, 0
      %p265 = por %p263, %p264
      %p266 = scmp.ne.s32.totalorder %s254, %s255
      %p267 = scmp.eq.s32.totalorder %s39, 3
      %p268 = por %p266, %p267
      %p270 = scmp.ne.s32.totalorder %s255, %s269
      %p271 = scmp.eq.s32.totalorder %s39, 0
      %p272 = por %p270, %p271
      %s274 = sadd.s32 %s273, 1
      %p277 = scmp.eq.s32.totalorder %s33, 3
      %p278 = scmp.ne.s32.totalorder %s273, %s275
      %p279 = scmp.eq.s32.totalorder %s33, 0
      %p280 = por %p278, %p279
      %p281 = scmp.ne.s32.totalorder %s273, %s275
      %p282 = scmp.eq.s32.totalorder %s38, 3
      %p283 = por %p281, %p282
      %p284 = scmp.ne.s32.totalorder %s275, %s276
      %p285 = scmp.eq.s32.totalorder %s38, 0
      %p286 = por %p284, %p285
      %p287 = scmp.ne.s32.totalorder %s275, %s276
      %p288 = scmp.eq.s32.totalorder %s39, 3
      %p289 = por %p287, %p288
      %p291 = scmp.ne.s32.totalorder %s276, %s290
      %p292 = scmp.eq.s32.totalorder %s39, 0
      %p293 = por %p291, %p292
      %s295 = sadd.s32 %s294, 1
      %p298 = scmp.eq.s32.totalorder %s33, 3
      %p299 = scmp.ne.s32.totalorder %s294, %s296
      %p300 = scmp.eq.s32.totalorder %s33, 0
      %p301 = por %p299, %p300
      %p302 = scmp.ne.s32.totalorder %s294, %s296
      %p303 = scmp.eq.s32.totalorder %s38, 3
      %p304 = por %p302, %p303
      %p305 = scmp.ne.s32.totalorder %s296, %s297
      %p306 = scmp.eq.s32.totalorder %s38, 0
      %p307 = por %p305, %p306
      %p308 = scmp.ne.s32.totalorder %s296, %s297
      %p309 = scmp.eq.s32.totalorder %s39, 3
      %p310 = por %p308, %p309
      %p312 = scmp.ne.s32.totalorder %s297, %s311
      %p313 = scmp.eq.s32.totalorder %s39, 0
      %p314 = por %p312, %p313
      %s316 = sadd.s32 %s315, 1
      %p319 = scmp.eq.s32.totalorder %s33, 3
      %p320 = scmp.ne.s32.totalorder %s315, %s317
      %p321 = scmp.eq.s32.totalorder %s33, 0
      %p322 = por %p320, %p321
      %p323 = scmp.ne.s32.totalorder %s315, %s317
      %p324 = scmp.eq.s32.totalorder %s38, 3
      %p325 = por %p323, %p324
      %p326 = scmp.ne.s32.totalorder %s317, %s318
      %p327 = scmp.eq.s32.totalorder %s38, 0
      %p328 = por %p326, %p327
      %p329 = scmp.ne.s32.totalorder %s317, %s318
      %p330 = scmp.eq.s32.totalorder %s39, 3
      %p331 = por %p329, %p330
      %p333 = scmp.ne.s32.totalorder %s318, %s332
      %p334 = scmp.eq.s32.totalorder %s39, 0
      %p335 = por %p333, %p334
      %s337 = sadd.s32 %s336, 1
      %p340 = scmp.eq.s32.totalorder %s33, 3
      %p341 = scmp.ne.s32.totalorder %s336, %s338
      %p342 = scmp.eq.s32.totalorder %s33, 0
      %p343 = por %p341, %p342
      %p344 = scmp.ne.s32.totalorder %s336, %s338
      %p345 = scmp.eq.s32.totalorder %s38, 3
      %p346 = por %p344, %p345
      %p347 = scmp.ne.s32.totalorder %s338, %s339
      %p348 = scmp.eq.s32.totalorder %s38, 0
      %p349 = por %p347, %p348
      %p350 = scmp.ne.s32.totalorder %s338, %s339
      %p351 = scmp.eq.s32.totalorder %s39, 3
      %p352 = por %p350, %p351
      %p354 = scmp.ne.s32.totalorder %s339, %s353
      %p355 = scmp.eq.s32.totalorder %s39, 0
      %p356 = por %p354, %p355
      %s358 = sadd.s32 %s357, 1
      %p361 = scmp.eq.s32.totalorder %s33, 3
      %p362 = scmp.ne.s32.totalorder %s357, %s359
      %p363 = scmp.eq.s32.totalorder %s33, 0
      %p364 = por %p362, %p363
      %p365 = scmp.ne.s32.totalorder %s357, %s359
      %p366 = scmp.eq.s32.totalorder %s38, 3
      %p367 = por %p365, %p366
      %p368 = scmp.ne.s32.totalorder %s359, %s360
      %p369 = scmp.eq.s32.totalorder %s38, 0
      %p370 = por %p368, %p369
      %p371 = scmp.ne.s32.totalorder %s359, %s360
      %p372 = scmp.eq.s32.totalorder %s39, 3
      %p373 = por %p371, %p372
      %p375 = scmp.ne.s32.totalorder %s360, %s374
      %p376 = scmp.eq.s32.totalorder %s39, 0
      %p377 = por %p375, %p376
      %s379 = sadd.s32 %s378, 1
      %p382 = scmp.eq.s32.totalorder %s33, 3
      %p383 = scmp.ne.s32.totalorder %s378, %s380
      %p384 = scmp.eq.s32.totalorder %s33, 0
      %p385 = por %p383, %p384
      %p386 = scmp.ne.s32.totalorder %s378, %s380
      %p387 = scmp.eq.s32.totalorder %s38, 3
      %p388 = por %p386, %p387
      %p389 = scmp.ne.s32.totalorder %s380, %s381
      %p390 = scmp.eq.s32.totalorder %s38, 0
      %p391 = por %p389, %p390
      %p392 = scmp.ne.s32.totalorder %s380, %s381
      %p393 = scmp.eq.s32.totalorder %s39, 3
      %p394 = por %p392, %p393
      %p396 = scmp.ne.s32.totalorder %s381, %s395
      %p397 = scmp.eq.s32.totalorder %s39, 0
      %p398 = por %p396, %p397
      %s399 = ssub.s32 %s40, %s52
      %s400 = ssub.s32 %s41, %s48
      %s401 = sor.u32 %s399, %s400
      %p402 = scmp.eq.s32.totalorder %s401, 0
      %s404 = sadd.s32 %s403, 1
      %s405 = scalar_select %p402, %s403, %s404
      %p408 = pneg %p402
      %p409 = scmp.eq.s32.totalorder %s33, 3
      %p410 = por %p408, %p409
      %p411 = scmp.ne.s32.totalorder %s403, %s406
      %p412 = scmp.eq.s32.totalorder %s33, 0
      %p413 = por %p411, %p412
      %p414 = scmp.ne.s32.totalorder %s403, %s406
      %p415 = scmp.eq.s32.totalorder %s38, 3
      %p416 = por %p414, %p415
      %p417 = scmp.ne.s32.totalorder %s406, %s407
      %p418 = scmp.eq.s32.totalorder %s38, 0
      %p419 = por %p417, %p418
      %p420 = scmp.ne.s32.totalorder %s406, %s407
      %p421 = scmp.eq.s32.totalorder %s39, 3
      %p422 = por %p420, %p421
      %p424 = scmp.ne.s32.totalorder %s407, %s423
      %p425 = scmp.eq.s32.totalorder %s39, 0
      %p426 = por %p424, %p425
      %p427 = scmp.le.s32.totalorder 1, %s33
      %p428 = scmp.lt.s32.totalorder %s33, 5
      %p429 = pnand %p427, %p428
      %p430 = pneg %p429
      // Predicated region
      $region9: #{tpu_custom_call.1} parent=5 // pred_check
        _
      $region10: #{tpu_custom_call.1} parent=5 // pred_check_branch
        %432 = sbr.rel (%p429) target = $region12
      $region11: #{tpu_custom_call.1} parent=5 // pred_region
        %s433 = ssub.s32 %s33, 1
        // Predicated region
        $region13: #{tpu_custom_call.1} parent=11 // pred_check
          %p434 = pneg %p118
        $region14: #{tpu_custom_call.1} parent=11 // pred_check_branch
          %436 = sbr.rel (%p434) target = $region16
        $region15: #{tpu_custom_call.1} parent=11 // pred_region
          %s438 = ssub.s32 2048, 2048
          %439 = vsyncadd [#allocation9], %s438
          %s440 = sshll.u32 [#allocation10], 4
          %s441 = int_to_ptr.vmem [resolvable:$true] %s440
          %446 = dma.hbm_to_vmem [thread:$0]  %s2, 2048, %s441, [#allocation9], 128, 128, 8
        $region16: #{tpu_custom_call.1} parent=11 // pred_fallthru
          _
        // Predicated region
        $region17: #{tpu_custom_call.1} parent=11 // pred_check
          %p447 = pneg %p139
        $region18: #{tpu_custom_call.1} parent=11 // pred_check_branch
          %449 = sbr.rel (%p447) target = $region20
        $region19: #{tpu_custom_call.1} parent=11 // pred_region
          _
        $region20: #{tpu_custom_call.1} parent=11 // pred_fallthru
          _
        // Predicated region
        $region21: #{tpu_custom_call.1} parent=11 // pred_check
          %p450 = pneg %p160
        $region22: #{tpu_custom_call.1} parent=11 // pred_check_branch
          %452 = sbr.rel (%p450) target = $region24
        $region23: #{tpu_custom_call.1} parent=11 // pred_region
          %s454 = ssub.s32 4096, 4096
          %455 = vsyncadd [#allocation12], %s454
          %s456 = sshll.u32 [#allocation11], 4
          %s457 = int_to_ptr.vmem [resolvable:$true] %s456
          %462 = dma.hbm_to_vmem [thread:$0]  %s4, 4096, %s457, [#allocation12], 256, 256, 16
        $region24: #{tpu_custom_call.1} parent=11 // pred_fallthru
          _
        // Predicated region
        $region25: #{tpu_custom_call.1} parent=11 // pred_check
          %p463 = pneg %p181
        $region26: #{tpu_custom_call.1} parent=11 // pred_check_branch
          %465 = sbr.rel (%p463) target = $region28
        $region27: #{tpu_custom_call.1} parent=11 // pred_region
          _
        $region28: #{tpu_custom_call.1} parent=11 // pred_fallthru
          _
        // Predicated region
        $region29: #{tpu_custom_call.1} parent=11 // pred_check
          %p466 = pneg %p202
        $region30: #{tpu_custom_call.1} parent=11 // pred_check_branch
          %468 = sbr.rel (%p466) target = $region32
        $region31: #{tpu_custom_call.1} parent=11 // pred_region
          %s470 = ssub.s32 2048, 2048
          %471 = vsyncadd [#allocation12], %s470
          %s472 = sshll.u32 [#allocation13], 4
          %s473 = int_to_ptr.vmem [resolvable:$true] %s472
          %478 = dma.hbm_to_vmem [thread:$0]  %s6, 2048, %s473, [#allocation12], 128, 128, 8
        $region32: #{tpu_custom_call.1} parent=11 // pred_fallthru
          _
        // Predicated region
        $region33: #{tpu_custom_call.1} parent=11 // pred_check
          %p479 = pneg %p223
        $region34: #{tpu_custom_call.1} parent=11 // pred_check_branch
          %481 = sbr.rel (%p479) target = $region36
        $region35: #{tpu_custom_call.1} parent=11 // pred_region
          _
        $region36: #{tpu_custom_call.1} parent=11 // pred_fallthru
          _
        // Predicated region
        $region37: #{tpu_custom_call.1} parent=11 // pred_check
          %p482 = pneg %p244
        $region38: #{tpu_custom_call.1} parent=11 // pred_check_branch
          %484 = sbr.rel (%p482) target = $region40
        $region39: #{tpu_custom_call.1} parent=11 // pred_region
          _
        $region40: #{tpu_custom_call.1} parent=11 // pred_fallthru
          _
        // Predicated region
        $region41: #{tpu_custom_call.1} parent=11 // pred_check
          %p485 = pneg %p265
        $region42: #{tpu_custom_call.1} parent=11 // pred_check_branch
          %487 = sbr.rel (%p485) target = $region44
        $region43: #{tpu_custom_call.1} parent=11 // pred_region
          _
        $region44: #{tpu_custom_call.1} parent=11 // pred_fallthru
          _
        // Predicated region
        $region45: #{tpu_custom_call.1} parent=11 // pred_check
          %p488 = pneg %p286
        $region46: #{tpu_custom_call.1} parent=11 // pred_check_branch
          %490 = sbr.rel (%p488) target = $region48
        $region47: #{tpu_custom_call.1} parent=11 // pred_region
          %s492 = ssub.s32 8192, 8192
          %493 = vsyncadd [#allocation15], %s492
          %s494 = sshll.u32 [#allocation14], 4
          %s495 = int_to_ptr.vmem [resolvable:$true] %s494
          %500 = dma.hbm_to_vmem [thread:$0]  %s10, 8192, %s495, [#allocation15], 512, 512, 32
        $region48: #{tpu_custom_call.1} parent=11 // pred_fallthru
          _
        // Predicated region
        $region49: #{tpu_custom_call.1} parent=11 // pred_check
          %p501 = pneg %p307
        $region50: #{tpu_custom_call.1} parent=11 // pred_check_branch
          %503 = sbr.rel (%p501) target = $region52
        $region51: #{tpu_custom_call.1} parent=11 // pred_region
          _
        $region52: #{tpu_custom_call.1} parent=11 // pred_fallthru
          _
        // Predicated region
        $region53: #{tpu_custom_call.1} parent=11 // pred_check
          %p504 = pneg %p328
        $region54: #{tpu_custom_call.1} parent=11 // pred_check_branch
          %506 = sbr.rel (%p504) target = $region56
        $region55: #{tpu_custom_call.1} parent=11 // pred_region
          %s508 = ssub.s32 8192, 8192
          %509 = vsyncadd [#allocation15], %s508
          %s510 = sshll.u32 [#allocation16], 4
          %s511 = int_to_ptr.vmem [resolvable:$true] %s510
          %516 = dma.hbm_to_vmem [thread:$0]  %s12, 8192, %s511, [#allocation15], 128, 128, 8
        $region56: #{tpu_custom_call.1} parent=11 // pred_fallthru
          _
        // Predicated region
        $region57: #{tpu_custom_call.1} parent=11 // pred_check
          %p517 = pneg %p349
        $region58: #{tpu_custom_call.1} parent=11 // pred_check_branch
          %519 = sbr.rel (%p517) target = $region60
        $region59: #{tpu_custom_call.1} parent=11 // pred_region
          _
        $region60: #{tpu_custom_call.1} parent=11 // pred_fallthru
          _
        // Predicated region
        $region61: #{tpu_custom_call.1} parent=11 // pred_check
          %p520 = pneg %p370
        $region62: #{tpu_custom_call.1} parent=11 // pred_check_branch
          %522 = sbr.rel (%p520) target = $region64
        $region63: #{tpu_custom_call.1} parent=11 // pred_region
          _
        $region64: #{tpu_custom_call.1} parent=11 // pred_fallthru
          _
        // Predicated region
        $region65: #{tpu_custom_call.1} parent=11 // pred_check
          %p523 = pneg %p391
        $region66: #{tpu_custom_call.1} parent=11 // pred_check_branch
          %525 = sbr.rel (%p523) target = $region68
        $region67: #{tpu_custom_call.1} parent=11 // pred_region
          _
        $region68: #{tpu_custom_call.1} parent=11 // pred_fallthru
          _
      $region12: #{tpu_custom_call.1} parent=5 // pred_fallthru
        _
      %p526 = scmp.lt.s32.totalorder %s33, 4
      // Predicated region
      $region69: #{tpu_custom_call.1} parent=5 // pred_check
        %p527 = pneg %p526
      $region70: #{tpu_custom_call.1} parent=5 // pred_check_branch
        %529 = sbr.rel (%p527) target = $region72
      $region71: #{tpu_custom_call.1} parent=5 // pred_region
        // Predicated region
        $region73: #{tpu_custom_call.1} parent=71 // pred_check
          %p530 = pneg %p65
        $region74: #{tpu_custom_call.1} parent=71 // pred_check_branch
          %532 = sbr.rel (%p530) target = $region76
        $region75: #{tpu_custom_call.1} parent=71 // pred_region
          %s533 = sand.u32 %s55, 1
          %s534 = scalar_lea.sflag [#allocation6], %s533
          %s535 = sand.u32 %s55, 1
          %s536 = smul.addr %s535, 256
          %s537 = scalar_lea.vmem [#allocation5], %s536
          %s539 = ssub.s32 4096, 4096
          %540 = vsyncadd %s534, %s539
          %s541 = smul.addr %s40, 32
          %s542 = smul.addr %s541, 128
          %s543 = scalar_lea.hbm %s0, %s542
          %s544 = sshll.u32 %s537, 4
          %s545 = int_to_ptr.vmem [resolvable:$true] %s544
          %550 = dma.hbm_to_vmem [thread:$0]  %s543, 4096, %s545, %s534, 128, 128, 8
        $region76: #{tpu_custom_call.1} parent=71 // pred_fallthru
          _
        // Predicated region
        $region77: #{tpu_custom_call.1} parent=71 // pred_check
          %p551 = pneg %p91
        $region78: #{tpu_custom_call.1} parent=71 // pred_check_branch
          %553 = sbr.rel (%p551) target = $region80
        $region79: #{tpu_custom_call.1} parent=71 // pred_region
          %s554 = sand.u32 %s33, 1
          %s555 = scalar_lea.sflag [#allocation9], %s554
          %s556 = sand.u32 %s81, 1
          %s557 = smul.addr %s556, 2
          %s558 = scalar_lea.vmem [#allocation8], %s557
          %s560 = ssub.s32 32, 32
          %561 = vsyncadd %s555, %s560
          %s562 = smul.addr %s40, 2
          %s563 = smul.addr %s562, 16
          %s564 = scalar_lea.hbm %s1, %s563
          %s566 = sshll.u32 %s558, 4
          %s567 = int_to_ptr.vmem [resolvable:$true] %s566
          %569 = dma.hbm_to_vmem [thread:$0]  %s564, 32, %s567, %s555
        $region80: #{tpu_custom_call.1} parent=71 // pred_fallthru
          _
      $region72: #{tpu_custom_call.1} parent=5 // pred_fallthru
        _
      %p570 = scmp.le.s32.totalorder 1, %s33
      %p571 = scmp.lt.s32.totalorder %s33, 5
      %p572 = pnand %p570, %p571
      %p573 = pneg %p572
      // Predicated region
      $region81: #{tpu_custom_call.1} parent=5 // pred_check
        _
      $region82: #{tpu_custom_call.1} parent=5 // pred_check_branch
        %575 = sbr.rel (%p572) target = $region84
      $region83: #{tpu_custom_call.1} parent=5 // pred_region
        %s576 = ssub.s32 %s33, 1
        %s577 = sand.u32 %s58, 1
        %s578 = scalar_lea.sflag [#allocation6], %s577
        %s579 = sand.u32 %s58, 1
        %s580 = smul.addr %s579, 256
        %s581 = scalar_lea.vmem [#allocation5], %s580
        // Predicated region
        $region85: #{tpu_custom_call.1} parent=83 // pred_check
          %p582 = pneg %p71
        $region86: #{tpu_custom_call.1} parent=83 // pred_check_branch
          %584 = sbr.rel (%p582) target = $region88
        $region87: #{tpu_custom_call.1} parent=83 // pred_region
          %585 = dma.done %s578, 4096
        $region88: #{tpu_custom_call.1} parent=83 // pred_fallthru
          _
        %s586 = sand.u32 %s38, 1
        %s587 = scalar_lea.sflag [#allocation9], %s586
        %s588 = sand.u32 %s84, 1
        %s589 = smul.addr %s588, 2
        %s590 = scalar_lea.vmem [#allocation8], %s589
        // Predicated region
        $region89: #{tpu_custom_call.1} parent=83 // pred_check
          %p591 = pneg %p97
        $region90: #{tpu_custom_call.1} parent=83 // pred_check_branch
          %593 = sbr.rel (%p591) target = $region92
        $region91: #{tpu_custom_call.1} parent=83 // pred_region
          %594 = dma.done %s587, 32
        $region92: #{tpu_custom_call.1} parent=83 // pred_fallthru
          _
        // Predicated region
        $region93: #{tpu_custom_call.1} parent=83 // pred_check
          %p595 = pneg %p118
        $region94: #{tpu_custom_call.1} parent=83 // pred_check_branch
          %597 = sbr.rel (%p595) target = $region96
        $region95: #{tpu_custom_call.1} parent=83 // pred_region
          %598 = dma.done [#allocation9], 2048
        $region96: #{tpu_custom_call.1} parent=83 // pred_fallthru
          _
        // Predicated region
        $region97: #{tpu_custom_call.1} parent=83 // pred_check
          %p599 = pneg %p160
        $region98: #{tpu_custom_call.1} parent=83 // pred_check_branch
          %601 = sbr.rel (%p599) target = $region100
        $region99: #{tpu_custom_call.1} parent=83 // pred_region
          %602 = dma.done [#allocation12], 4096
        $region100: #{tpu_custom_call.1} parent=83 // pred_fallthru
          _
        // Predicated region
        $region101: #{tpu_custom_call.1} parent=83 // pred_check
          %p603 = pneg %p202
        $region102: #{tpu_custom_call.1} parent=83 // pred_check_branch
          %605 = sbr.rel (%p603) target = $region104
        $region103: #{tpu_custom_call.1} parent=83 // pred_region
          %606 = dma.done [#allocation12], 2048
        $region104: #{tpu_custom_call.1} parent=83 // pred_fallthru
          _
        // Predicated region
        $region105: #{tpu_custom_call.1} parent=83 // pred_check
          %p607 = pneg %p286
        $region106: #{tpu_custom_call.1} parent=83 // pred_check_branch
          %609 = sbr.rel (%p607) target = $region108
        $region107: #{tpu_custom_call.1} parent=83 // pred_region
          %610 = dma.done [#allocation15], 8192
        $region108: #{tpu_custom_call.1} parent=83 // pred_fallthru
          _
        // Predicated region
        $region109: #{tpu_custom_call.1} parent=83 // pred_check
          %p611 = pneg %p328
        $region110: #{tpu_custom_call.1} parent=83 // pred_check_branch
          %613 = sbr.rel (%p611) target = $region112
        $region111: #{tpu_custom_call.1} parent=83 // pred_region
          %614 = dma.done [#allocation15], 8192
        $region112: #{tpu_custom_call.1} parent=83 // pred_fallthru
          _
        %s615 = sand.u32 %s58, 1
        %s616 = scalar_lea.sflag [#allocation6], %s615
        %s617 = sand.u32 %s58, 1
        %s618 = smul.addr %s617, 256
        %s619 = scalar_lea.vmem [#allocation5], %s618
        %p620 = pneg %p71
        %p621 = pneg %p68
        %s622 = sand.u32 %s38, 1
        %s623 = scalar_lea.sflag [#allocation9], %s622
        %s624 = sand.u32 %s84, 1
        %s625 = smul.addr %s624, 2
        %s626 = scalar_lea.vmem [#allocation8], %s625
        %p627 = pneg %p97
        %p628 = pneg %p94
        %p629 = pneg %p118
        %p630 = pneg %p115
        %p631 = pneg %p139
        %p632 = pneg %p136
        %p633 = pneg %p160
        %p634 = pneg %p157
        %p635 = pneg %p181
        %p636 = pneg %p178
        %p637 = pneg %p202
        %p638 = pneg %p199
        %p639 = pneg %p223
        %p640 = pneg %p220
        %p641 = pneg %p244
        %p642 = pneg %p241
        %p643 = pneg %p265
        %p644 = pneg %p262
        %p645 = pneg %p286
        %p646 = pneg %p283
        %p647 = pneg %p307
        %p648 = pneg %p304
        %p649 = pneg %p328
        %p650 = pneg %p325
        %p651 = pneg %p349
        %p652 = pneg %p346
        %p653 = pneg %p370
        %p654 = pneg %p367
        %p655 = pneg %p391
        %p656 = pneg %p388
        %p657 = pneg %p419
        %p658 = pneg %p416
        %s659 = sand.u32 %s406, 1
        %s660 = scalar_lea.sflag [#allocation7], %s659
        %s661 = sand.u32 %s406, 1
        %s662 = smul.addr %s661, 128
        %s663 = scalar_lea.vmem [#allocation17], %s662
        %s664 = smul.u32 16, %s43
        %p665 = scmp.eq.s32.totalorder %s43, 0
        // Predicated region
        $region113: #{tpu_custom_call.1} parent=83 // pred_check
          %p666 = pneg %p665
        $region114: #{tpu_custom_call.1} parent=83 // pred_check_branch
          %668 = sbr.rel (%p666) target = $region116
        $region115: #{tpu_custom_call.1} parent=83 // pred_region
          %v669 = vld [vmem:[%s581] sm:$0xff]
          %v670 = vld [vmem:[%s581 + $0x8] sm:$0xff]
          %v671 = vld [vmem:[%s581 + $0x10] sm:$0xff]
          %v672 = vld [vmem:[%s581 + $0x18] sm:$0xff]
          %v673 = vld [vmem:[%s581 + $0x20] sm:$0xff]
          %v674 = vld [vmem:[%s581 + $0x28] sm:$0xff]
          %v675 = vld [vmem:[%s581 + $0x30] sm:$0xff]
          %v676 = vld [vmem:[%s581 + $0x38] sm:$0xff]
          %v677 = vld [vmem:[%s581 + $0x40] sm:$0xff]
          %v678 = vld [vmem:[%s581 + $0x48] sm:$0xff]
          %v679 = vld [vmem:[%s581 + $0x50] sm:$0xff]
          %v680 = vld [vmem:[%s581 + $0x58] sm:$0xff]
          %v681 = vld [vmem:[%s581 + $0x60] sm:$0xff]
          %v682 = vld [vmem:[%s581 + $0x68] sm:$0xff]
          %v683 = vld [vmem:[%s581 + $0x70] sm:$0xff]
          %v684 = vld [vmem:[%s581 + $0x78] sm:$0xff]
          %v685 = vld [vmem:[%s581 + $0x80] sm:$0xff]
          %v686 = vld [vmem:[%s581 + $0x88] sm:$0xff]
          %v687 = vld [vmem:[%s581 + $0x90] sm:$0xff]
          %v688 = vld [vmem:[%s581 + $0x98] sm:$0xff]
          %v689 = vld [vmem:[%s581 + $0xa0] sm:$0xff]
          %v690 = vld [vmem:[%s581 + $0xa8] sm:$0xff]
          %v691 = vld [vmem:[%s581 + $0xb0] sm:$0xff]
          %v692 = vld [vmem:[%s581 + $0xb8] sm:$0xff]
          %v693 = vld [vmem:[%s581 + $0xc0] sm:$0xff]
          %v694 = vld [vmem:[%s581 + $0xc8] sm:$0xff]
          %v695 = vld [vmem:[%s581 + $0xd0] sm:$0xff]
          %v696 = vld [vmem:[%s581 + $0xd8] sm:$0xff]
          %v697 = vld [vmem:[%s581 + $0xe0] sm:$0xff]
          %v698 = vld [vmem:[%s581 + $0xe8] sm:$0xff]
          %v699 = vld [vmem:[%s581 + $0xf0] sm:$0xff]
          %v700 = vld [vmem:[%s581 + $0xf8] sm:$0xff]
          %v701 = vld [vmem:[#allocation11] sm:$0xff]
          %v702 = vld [vmem:[#allocation11 + $0x8] sm:$0xff]
          %v703 = vld [vmem:[#allocation11 + $0x10] sm:$0xff]
          %v704 = vld [vmem:[#allocation11 + $0x18] sm:$0xff]
          %v705 = vld [vmem:[#allocation11 + $0x20] sm:$0xff]
          %v706 = vld [vmem:[#allocation11 + $0x28] sm:$0xff]
          %v707 = vld [vmem:[#allocation11 + $0x30] sm:$0xff]
          %v708 = vld [vmem:[#allocation11 + $0x38] sm:$0xff]
          %v709 = vld [vmem:[#allocation11 + $0x40] sm:$0xff]
          %v710 = vld [vmem:[#allocation11 + $0x48] sm:$0xff]
          %v711 = vld [vmem:[#allocation11 + $0x50] sm:$0xff]
          %v712 = vld [vmem:[#allocation11 + $0x58] sm:$0xff]
          %v713 = vld [vmem:[#allocation11 + $0x60] sm:$0xff]
          %v714 = vld [vmem:[#allocation11 + $0x68] sm:$0xff]
          %v715 = vld [vmem:[#allocation11 + $0x70] sm:$0xff]
          %v716 = vld [vmem:[#allocation11 + $0x78] sm:$0xff]
          %v717 = vld [vmem:[#allocation11 + $0x80] sm:$0xff]
          %v718 = vld [vmem:[#allocation11 + $0x88] sm:$0xff]
          %v719 = vld [vmem:[#allocation11 + $0x90] sm:$0xff]
          %v720 = vld [vmem:[#allocation11 + $0x98] sm:$0xff]
          %v721 = vld [vmem:[#allocation11 + $0xa0] sm:$0xff]
          %v722 = vld [vmem:[#allocation11 + $0xa8] sm:$0xff]
          %v723 = vld [vmem:[#allocation11 + $0xb0] sm:$0xff]
          %v724 = vld [vmem:[#allocation11 + $0xb8] sm:$0xff]
          %v725 = vld [vmem:[#allocation11 + $0xc0] sm:$0xff]
          %v726 = vld [vmem:[#allocation11 + $0xc8] sm:$0xff]
          %v727 = vld [vmem:[#allocation11 + $0xd0] sm:$0xff]
          %v728 = vld [vmem:[#allocation11 + $0xd8] sm:$0xff]
          %v729 = vld [vmem:[#allocation11 + $0xe0] sm:$0xff]
          %v730 = vld [vmem:[#allocation11 + $0xe8] sm:$0xff]
          %v731 = vld [vmem:[#allocation11 + $0xf0] sm:$0xff]
          %v732 = vld [vmem:[#allocation11 + $0xf8] sm:$0xff]
          %v733 = vld [vmem:[%s5] sm:$0x3]
          %v735 = vlaneseq
          %v736 = vshrl.u32 %v735, 7
          %v737 = vsub.s32 0, %v736
          %v738 = vrot.slane %v733, %v737
          %v739 = vlaneseq
          %v740 = vshrl.u32 %v739, 7
          %v741 = vsub.s32 1, %v740
          %v742 = vrot.slane %v733, %v741
          %745 = vmatprep.subr.mxu0 %v732
          %746 = vmatpush1.msra.mxu0 %v731
          %747 = vmatprep.subr.mxu0 %v730
          %748 = vmatpush1.msra.mxu0 %v729
          %749 = vmatprep.subr.mxu0 %v728
          %750 = vmatpush1.msra.mxu0 %v727
          %751 = vmatprep.subr.mxu0 %v726
          %752 = vmatpush1.msra.mxu0 %v725
          %753 = vmatprep.subr.mxu0 %v724
          %754 = vmatpush1.msra.mxu0 %v723
          %755 = vmatprep.subr.mxu0 %v722
          %756 = vmatpush1.msra.mxu0 %v721
          %757 = vmatprep.subr.mxu0 %v720
          %758 = vmatpush1.msra.mxu0 %v719
          %759 = vmatprep.subr.mxu0 %v718
          %760 = vmatpush1.msra.mxu0 %v717
          %761 = vmatprep.subr.mxu0 %v716
          %762 = vmatpush1.msra.mxu0 %v715
          %763 = vmatprep.subr.mxu0 %v714
          %764 = vmatpush1.msra.mxu0 %v713
          %765 = vmatprep.subr.mxu0 %v712
          %766 = vmatpush1.msra.mxu0 %v711
          %767 = vmatprep.subr.mxu0 %v710
          %768 = vmatpush1.msra.mxu0 %v709
          %769 = vmatprep.subr.mxu0 %v708
          %770 = vmatpush1.msra.mxu0 %v707
          %771 = vmatprep.subr.mxu0 %v706
          %772 = vmatpush1.msra.mxu0 %v705
          %773 = vmatprep.subr.mxu0 %v704
          %774 = vmatpush1.msra.mxu0 %v703
          %775 = vmatprep.subr.mxu0 %v702
          %776 = vmatpush1.msra.mxu0 %v701
          %777 = vmatprep.subr.mxu0 0.0
          %778 = vmatpush2.msra.mxu0 0.0
          %779 = vmatprep.subr.mxu0 0.0
          %780 = vmatpush2.msra.mxu0 0.0
          %781 = vmatprep.subr.mxu0 0.0
          %782 = vmatpush2.msra.mxu0 0.0
          %783 = vmatprep.subr.mxu0 0.0
          %784 = vmatpush2.msra.mxu0 0.0
          %785 = vmatprep.subr.mxu0 0.0
          %786 = vmatpush2.msra.mxu0 0.0
          %787 = vmatprep.subr.mxu0 0.0
          %788 = vmatpush2.msra.mxu0 0.0
          %789 = vmatprep.subr.mxu0 0.0
          %790 = vmatpush2.msra.mxu0 0.0
          %791 = vmatprep.subr.mxu0 0.0
          %792 = vmatpush2.msra.mxu0 0.0
          %793 = vmatprep.subr.mxu0 0.0
          %794 = vmatpush2.msra.mxu0 0.0
          %795 = vmatprep.subr.mxu0 0.0
          %796 = vmatpush2.msra.mxu0 0.0
          %797 = vmatprep.subr.mxu0 0.0
          %798 = vmatpush2.msra.mxu0 0.0
          %799 = vmatprep.subr.mxu0 0.0
          %800 = vmatpush2.msra.mxu0 0.0
          %801 = vmatprep.subr.mxu0 0.0
          %802 = vmatpush2.msra.mxu0 0.0
          %803 = vmatprep.subr.mxu0 0.0
          %804 = vmatpush2.msra.mxu0 0.0
          %805 = vmatprep.subr.mxu0 0.0
          %806 = vmatpush2.msra.mxu0 0.0
          %807 = vmatprep.subr.mxu0 0.0
          %808 = vmatpush2.msra.mxu0 0.0
          %809 = vmatprep.mubr.f32.mxu0 0.0
          %810 = vmatmul.mubr.f32.gmra.mxu0 %v669
          %v811 = vpop.f32.mrf.mxu0
          %v812 = vadd.f32 %v738, %v811
          %v813 = vpop.f32.mrf.mxu0
          %v814 = vadd.f32 %v742, %v813
          %815 = vmatprep.mubr.f32.mxu0 0.0
          %816 = vmatmul.mubr.f32.gmra.mxu0 %v670
          %v817 = vpop.f32.mrf.mxu0
          %v818 = vadd.f32 %v738, %v817
          %v819 = vpop.f32.mrf.mxu0
          %v820 = vadd.f32 %v742, %v819
          %821 = vmatprep.mubr.f32.mxu0 0.0
          %822 = vmatmul.mubr.f32.gmra.mxu0 %v671
          %v823 = vpop.f32.mrf.mxu0
          %v824 = vadd.f32 %v738, %v823
          %v825 = vpop.f32.mrf.mxu0
          %v826 = vadd.f32 %v742, %v825
          %827 = vmatprep.mubr.f32.mxu0 0.0
          %828 = vmatmul.mubr.f32.gmra.mxu0 %v672
          %v829 = vpop.f32.mrf.mxu0
          %v830 = vadd.f32 %v738, %v829
          %v831 = vpop.f32.mrf.mxu0
          %v832 = vadd.f32 %v742, %v831
          %833 = vmatprep.mubr.f32.mxu0 0.0
          %834 = vmatmul.mubr.f32.gmra.mxu0 %v673
          %v835 = vpop.f32.mrf.mxu0
          %v836 = vadd.f32 %v738, %v835
          %v837 = vpop.f32.mrf.mxu0
          %v838 = vadd.f32 %v742, %v837
          %839 = vmatprep.mubr.f32.mxu0 0.0
          %840 = vmatmul.mubr.f32.gmra.mxu0 %v674
          %v841 = vpop.f32.mrf.mxu0
          %v842 = vadd.f32 %v738, %v841
          %v843 = vpop.f32.mrf.mxu0
          %v844 = vadd.f32 %v742, %v843
          %845 = vmatprep.mubr.f32.mxu0 0.0
          %846 = vmatmul.mubr.f32.gmra.mxu0 %v675
          %v847 = vpop.f32.mrf.mxu0
          %v848 = vadd.f32 %v738, %v847
          %v849 = vpop.f32.mrf.mxu0
          %v850 = vadd.f32 %v742, %v849
          %851 = vmatprep.mubr.f32.mxu0 0.0
          %852 = vmatmul.mubr.f32.gmra.mxu0 %v676
          %v853 = vpop.f32.mrf.mxu0
          %v854 = vadd.f32 %v738, %v853
          %v855 = vpop.f32.mrf.mxu0
          %v856 = vadd.f32 %v742, %v855
          %857 = vmatprep.mubr.f32.mxu0 0.0
          %858 = vmatmul.mubr.f32.gmra.mxu0 %v677
          %v859 = vpop.f32.mrf.mxu0
          %v860 = vadd.f32 %v738, %v859
          %v861 = vpop.f32.mrf.mxu0
          %v862 = vadd.f32 %v742, %v861
          %863 = vmatprep.mubr.f32.mxu0 0.0
          %864 = vmatmul.mubr.f32.gmra.mxu0 %v678
          %v865 = vpop.f32.mrf.mxu0
          %v866 = vadd.f32 %v738, %v865
          %v867 = vpop.f32.mrf.mxu0
          %v868 = vadd.f32 %v742, %v867
          %869 = vmatprep.mubr.f32.mxu0 0.0
          %870 = vmatmul.mubr.f32.gmra.mxu0 %v679
          %v871 = vpop.f32.mrf.mxu0
          %v872 = vadd.f32 %v738, %v871
          %v873 = vpop.f32.mrf.mxu0
          %v874 = vadd.f32 %v742, %v873
          %875 = vmatprep.mubr.f32.mxu0 0.0
          %876 = vmatmul.mubr.f32.gmra.mxu0 %v680
          %v877 = vpop.f32.mrf.mxu0
          %v878 = vadd.f32 %v738, %v877
          %v879 = vpop.f32.mrf.mxu0
          %v880 = vadd.f32 %v742, %v879
          %881 = vmatprep.mubr.f32.mxu0 0.0
          %882 = vmatmul.mubr.f32.gmra.mxu0 %v681
          %v883 = vpop.f32.mrf.mxu0
          %v884 = vadd.f32 %v738, %v883
          %v885 = vpop.f32.mrf.mxu0
          %v886 = vadd.f32 %v742, %v885
          %887 = vmatprep.mubr.f32.mxu0 0.0
          %888 = vmatmul.mubr.f32.gmra.mxu0 %v682
          %v889 = vpop.f32.mrf.mxu0
          %v890 = vadd.f32 %v738, %v889
          %v891 = vpop.f32.mrf.mxu0
          %v892 = vadd.f32 %v742, %v891
          %893 = vmatprep.mubr.f32.mxu0 0.0
          %894 = vmatmul.mubr.f32.gmra.mxu0 %v683
          %v895 = vpop.f32.mrf.mxu0
          %v896 = vadd.f32 %v738, %v895
          %v897 = vpop.f32.mrf.mxu0
          %v898 = vadd.f32 %v742, %v897
          %899 = vmatprep.mubr.f32.mxu0 0.0
          %900 = vmatmul.mubr.f32.gmra.mxu0 %v684
          %v901 = vpop.f32.mrf.mxu0
          %v902 = vadd.f32 %v738, %v901
          %v903 = vpop.f32.mrf.mxu0
          %v904 = vadd.f32 %v742, %v903
          %905 = vmatprep.mubr.f32.mxu0 0.0
          %906 = vmatmul.mubr.f32.gmra.mxu0 %v685
          %v907 = vpop.f32.mrf.mxu0
          %v908 = vadd.f32 %v738, %v907
          %v909 = vpop.f32.mrf.mxu0
          %v910 = vadd.f32 %v742, %v909
          %911 = vmatprep.mubr.f32.mxu0 0.0
          %912 = vmatmul.mubr.f32.gmra.mxu0 %v686
          %v913 = vpop.f32.mrf.mxu0
          %v914 = vadd.f32 %v738, %v913
          %v915 = vpop.f32.mrf.mxu0
          %v916 = vadd.f32 %v742, %v915
          %917 = vmatprep.mubr.f32.mxu0 0.0
          %918 = vmatmul.mubr.f32.gmra.mxu0 %v687
          %v919 = vpop.f32.mrf.mxu0
          %v920 = vadd.f32 %v738, %v919
          %v921 = vpop.f32.mrf.mxu0
          %v922 = vadd.f32 %v742, %v921
          %923 = vmatprep.mubr.f32.mxu0 0.0
          %924 = vmatmul.mubr.f32.gmra.mxu0 %v688
          %v925 = vpop.f32.mrf.mxu0
          %v926 = vadd.f32 %v738, %v925
          %v927 = vpop.f32.mrf.mxu0
          %v928 = vadd.f32 %v742, %v927
          %929 = vmatprep.mubr.f32.mxu0 0.0
          %930 = vmatmul.mubr.f32.gmra.mxu0 %v689
          %v931 = vpop.f32.mrf.mxu0
          %v932 = vadd.f32 %v738, %v931
          %v933 = vpop.f32.mrf.mxu0
          %v934 = vadd.f32 %v742, %v933
          %935 = vmatprep.mubr.f32.mxu0 0.0
          %936 = vmatmul.mubr.f32.gmra.mxu0 %v690
          %v937 = vpop.f32.mrf.mxu0
          %v938 = vadd.f32 %v738, %v937
          %v939 = vpop.f32.mrf.mxu0
          %v940 = vadd.f32 %v742, %v939
          %941 = vmatprep.mubr.f32.mxu0 0.0
          %942 = vmatmul.mubr.f32.gmra.mxu0 %v691
          %v943 = vpop.f32.mrf.mxu0
          %v944 = vadd.f32 %v738, %v943
          %v945 = vpop.f32.mrf.mxu0
          %v946 = vadd.f32 %v742, %v945
          %947 = vmatprep.mubr.f32.mxu0 0.0
          %948 = vmatmul.mubr.f32.gmra.mxu0 %v692
          %v949 = vpop.f32.mrf.mxu0
          %v950 = vadd.f32 %v738, %v949
          %v951 = vpop.f32.mrf.mxu0
          %v952 = vadd.f32 %v742, %v951
          %953 = vmatprep.mubr.f32.mxu0 0.0
          %954 = vmatmul.mubr.f32.gmra.mxu0 %v693
          %v955 = vpop.f32.mrf.mxu0
          %v956 = vadd.f32 %v738, %v955
          %v957 = vpop.f32.mrf.mxu0
          %v958 = vadd.f32 %v742, %v957
          %959 = vmatprep.mubr.f32.mxu0 0.0
          %960 = vmatmul.mubr.f32.gmra.mxu0 %v694
          %v961 = vpop.f32.mrf.mxu0
          %v962 = vadd.f32 %v738, %v961
          %v963 = vpop.f32.mrf.mxu0
          %v964 = vadd.f32 %v742, %v963
          %965 = vmatprep.mubr.f32.mxu0 0.0
          %966 = vmatmul.mubr.f32.gmra.mxu0 %v695
          %v967 = vpop.f32.mrf.mxu0
          %v968 = vadd.f32 %v738, %v967
          %v969 = vpop.f32.mrf.mxu0
          %v970 = vadd.f32 %v742, %v969
          %971 = vmatprep.mubr.f32.mxu0 0.0
          %972 = vmatmul.mubr.f32.gmra.mxu0 %v696
          %v973 = vpop.f32.mrf.mxu0
          %v974 = vadd.f32 %v738, %v973
          %v975 = vpop.f32.mrf.mxu0
          %v976 = vadd.f32 %v742, %v975
          %977 = vmatprep.mubr.f32.mxu0 0.0
          %978 = vmatmul.mubr.f32.gmra.mxu0 %v697
          %v979 = vpop.f32.mrf.mxu0
          %v980 = vadd.f32 %v738, %v979
          %v981 = vpop.f32.mrf.mxu0
          %v982 = vadd.f32 %v742, %v981
          %983 = vmatprep.mubr.f32.mxu0 0.0
          %984 = vmatmul.mubr.f32.gmra.mxu0 %v698
          %v985 = vpop.f32.mrf.mxu0
          %v986 = vadd.f32 %v738, %v985
          %v987 = vpop.f32.mrf.mxu0
          %v988 = vadd.f32 %v742, %v987
          %989 = vmatprep.mubr.f32.mxu0 0.0
          %990 = vmatmul.mubr.f32.gmra.mxu0 %v699
          %v991 = vpop.f32.mrf.mxu0
          %v992 = vadd.f32 %v738, %v991
          %v993 = vpop.f32.mrf.mxu0
          %v994 = vadd.f32 %v742, %v993
          %995 = vmatprep.mubr.f32.mxu0 0.0
          %996 = vmatmul.mubr.f32.gmra.mxu0 %v700
          %v997 = vpop.f32.mrf.mxu0
          %v998 = vadd.f32 %v738, %v997
          %v999 = vpop.f32.mrf.mxu0
          %v1000 = vadd.f32 %v742, %v999
          %1001 = vdwg.mxu0
          %1002 = vxpose.xlu0.b32.start [1/16] %v812, 128
          %1003 = vxpose.xlu0.b32.cont [2/16] %v818, 128
          %1004 = vxpose.xlu0.b32.cont [3/16] %v824, 128
          %1005 = vxpose.xlu0.b32.cont [4/16] %v830, 128
          %1006 = vxpose.xlu0.b32.cont [5/16] %v836, 128
          %1007 = vxpose.xlu0.b32.cont [6/16] %v842, 128
          %1008 = vxpose.xlu0.b32.cont [7/16] %v848, 128
          %1009 = vxpose.xlu0.b32.cont [8/16] %v854, 128
          %1010 = vxpose.xlu0.b32.cont [9/16] %v860, 128
          %1011 = vxpose.xlu0.b32.cont [10/16] %v866, 128
          %1012 = vxpose.xlu0.b32.cont [11/16] %v872, 128
          %1013 = vxpose.xlu0.b32.cont [12/16] %v878, 128
          %1014 = vxpose.xlu0.b32.cont [13/16] %v884, 128
          %1015 = vxpose.xlu0.b32.cont [14/16] %v890, 128
          %1016 = vxpose.xlu0.b32.cont [15/16] %v896, 128
          %1017 = vxpose.xlu0.b32.end [16/16] %v902, 128
          %v1018 = vpop.trf.xlu0
          %v1019 = vpop.trf.xlu0
          %v1020 = vpop.trf.xlu0
          %v1021 = vpop.trf.xlu0
          %v1022 = vpop.trf.xlu0
          %v1023 = vpop.trf.xlu0
          %v1024 = vpop.trf.xlu0
          %v1025 = vpop.trf.xlu0
          %v1026 = vpop.trf.xlu0
          %v1027 = vpop.trf.xlu0
          %v1028 = vpop.trf.xlu0
          %v1029 = vpop.trf.xlu0
          %v1030 = vpop.trf.xlu0
          %v1031 = vpop.trf.xlu0
          %v1032 = vpop.trf.xlu0
          %v1033 = vpop.trf.xlu0
          %1034 = vxpose.xlu0.b32.start [1/16] %v908, 128
          %1035 = vxpose.xlu0.b32.cont [2/16] %v914, 128
          %1036 = vxpose.xlu0.b32.cont [3/16] %v920, 128
          %1037 = vxpose.xlu0.b32.cont [4/16] %v926, 128
          %1038 = vxpose.xlu0.b32.cont [5/16] %v932, 128
          %1039 = vxpose.xlu0.b32.cont [6/16] %v938, 128
          %1040 = vxpose.xlu0.b32.cont [7/16] %v944, 128
          %1041 = vxpose.xlu0.b32.cont [8/16] %v950, 128
          %1042 = vxpose.xlu0.b32.cont [9/16] %v956, 128
          %1043 = vxpose.xlu0.b32.cont [10/16] %v962, 128
          %1044 = vxpose.xlu0.b32.cont [11/16] %v968, 128
          %1045 = vxpose.xlu0.b32.cont [12/16] %v974, 128
          %1046 = vxpose.xlu0.b32.cont [13/16] %v980, 128
          %1047 = vxpose.xlu0.b32.cont [14/16] %v986, 128
          %1048 = vxpose.xlu0.b32.cont [15/16] %v992, 128
          %1049 = vxpose.xlu0.b32.end [16/16] %v998, 128
          %v1050 = vpop.trf.xlu0
          %v1051 = vpop.trf.xlu0
          %v1052 = vpop.trf.xlu0
          %v1053 = vpop.trf.xlu0
          %v1054 = vpop.trf.xlu0
          %v1055 = vpop.trf.xlu0
          %v1056 = vpop.trf.xlu0
          %v1057 = vpop.trf.xlu0
          %v1058 = vpop.trf.xlu0
          %v1059 = vpop.trf.xlu0
          %v1060 = vpop.trf.xlu0
          %v1061 = vpop.trf.xlu0
          %v1062 = vpop.trf.xlu0
          %v1063 = vpop.trf.xlu0
          %v1064 = vpop.trf.xlu0
          %v1065 = vpop.trf.xlu0
          %1066 = vst [vmem:[#allocation2] sm:$0xff] %v1018
          %1067 = vst [vmem:[#allocation2 + $0x8] sm:$0xff] %v1050
          %1068 = vst [vmem:[#allocation2 + $0x10] sm:$0xff] %v1019
          %1069 = vst [vmem:[#allocation2 + $0x18] sm:$0xff] %v1051
          %1070 = vst [vmem:[#allocation2 + $0x20] sm:$0xff] %v1020
          %1071 = vst [vmem:[#allocation2 + $0x28] sm:$0xff] %v1052
          %1072 = vst [vmem:[#allocation2 + $0x30] sm:$0xff] %v1021
          %1073 = vst [vmem:[#allocation2 + $0x38] sm:$0xff] %v1053
          %1074 = vst [vmem:[#allocation2 + $0x40] sm:$0xff] %v1022
          %1075 = vst [vmem:[#allocation2 + $0x48] sm:$0xff] %v1054
          %1076 = vst [vmem:[#allocation2 + $0x50] sm:$0xff] %v1023
          %1077 = vst [vmem:[#allocation2 + $0x58] sm:$0xff] %v1055
          %1078 = vst [vmem:[#allocation2 + $0x60] sm:$0xff] %v1024
          %1079 = vst [vmem:[#allocation2 + $0x68] sm:$0xff] %v1056
          %1080 = vst [vmem:[#allocation2 + $0x70] sm:$0xff] %v1025
          %1081 = vst [vmem:[#allocation2 + $0x78] sm:$0xff] %v1057
          %1082 = vst [vmem:[#allocation2 + $0x80] sm:$0xff] %v1026
          %1083 = vst [vmem:[#allocation2 + $0x88] sm:$0xff] %v1058
          %1084 = vst [vmem:[#allocation2 + $0x90] sm:$0xff] %v1027
          %1085 = vst [vmem:[#allocation2 + $0x98] sm:$0xff] %v1059
          %1086 = vst [vmem:[#allocation2 + $0xa0] sm:$0xff] %v1028
          %1087 = vst [vmem:[#allocation2 + $0xa8] sm:$0xff] %v1060
          %1088 = vst [vmem:[#allocation2 + $0xb0] sm:$0xff] %v1029
          %1089 = vst [vmem:[#allocation2 + $0xb8] sm:$0xff] %v1061
          %1090 = vst [vmem:[#allocation2 + $0xc0] sm:$0xff] %v1030
          %1091 = vst [vmem:[#allocation2 + $0xc8] sm:$0xff] %v1062
          %1092 = vst [vmem:[#allocation2 + $0xd0] sm:$0xff] %v1031
          %1093 = vst [vmem:[#allocation2 + $0xd8] sm:$0xff] %v1063
          %1094 = vst [vmem:[#allocation2 + $0xe0] sm:$0xff] %v1032
          %1095 = vst [vmem:[#allocation2 + $0xe8] sm:$0xff] %v1064
          %1096 = vst [vmem:[#allocation2 + $0xf0] sm:$0xff] %v1033
          %1097 = vst [vmem:[#allocation2 + $0xf8] sm:$0xff] %v1065
          %1098 = vst [vmem:[#allocation3] sm:$0xff] %v814
          %1099 = vst [vmem:[#allocation3 + $0x8] sm:$0xff] %v820
          %1100 = vst [vmem:[#allocation3 + $0x10] sm:$0xff] %v826
          %1101 = vst [vmem:[#allocation3 + $0x18] sm:$0xff] %v832
          %1102 = vst [vmem:[#allocation3 + $0x20] sm:$0xff] %v838
          %1103 = vst [vmem:[#allocation3 + $0x28] sm:$0xff] %v844
          %1104 = vst [vmem:[#allocation3 + $0x30] sm:$0xff] %v850
          %1105 = vst [vmem:[#allocation3 + $0x38] sm:$0xff] %v856
          %1106 = vst [vmem:[#allocation3 + $0x40] sm:$0xff] %v862
          %1107 = vst [vmem:[#allocation3 + $0x48] sm:$0xff] %v868
          %1108 = vst [vmem:[#allocation3 + $0x50] sm:$0xff] %v874
          %1109 = vst [vmem:[#allocation3 + $0x58] sm:$0xff] %v880
          %1110 = vst [vmem:[#allocation3 + $0x60] sm:$0xff] %v886
          %1111 = vst [vmem:[#allocation3 + $0x68] sm:$0xff] %v892
          %1112 = vst [vmem:[#allocation3 + $0x70] sm:$0xff] %v898
          %1113 = vst [vmem:[#allocation3 + $0x78] sm:$0xff] %v904
          %1114 = vst [vmem:[#allocation3 + $0x80] sm:$0xff] %v910
          %1115 = vst [vmem:[#allocation3 + $0x88] sm:$0xff] %v916
          %1116 = vst [vmem:[#allocation3 + $0x90] sm:$0xff] %v922
          %1117 = vst [vmem:[#allocation3 + $0x98] sm:$0xff] %v928
          %1118 = vst [vmem:[#allocation3 + $0xa0] sm:$0xff] %v934
          %1119 = vst [vmem:[#allocation3 + $0xa8] sm:$0xff] %v940
          %1120 = vst [vmem:[#allocation3 + $0xb0] sm:$0xff] %v946
          %1121 = vst [vmem:[#allocation3 + $0xb8] sm:$0xff] %v952
          %1122 = vst [vmem:[#allocation3 + $0xc0] sm:$0xff] %v958
          %1123 = vst [vmem:[#allocation3 + $0xc8] sm:$0xff] %v964
          %1124 = vst [vmem:[#allocation3 + $0xd0] sm:$0xff] %v970
          %1125 = vst [vmem:[#allocation3 + $0xd8] sm:$0xff] %v976
          %1126 = vst [vmem:[#allocation3 + $0xe0] sm:$0xff] %v982
          %1127 = vst [vmem:[#allocation3 + $0xe8] sm:$0xff] %v988
          %1128 = vst [vmem:[#allocation3 + $0xf0] sm:$0xff] %v994
          %1129 = vst [vmem:[#allocation3 + $0xf8] sm:$0xff] %v1000
        $region116: #{tpu_custom_call.1} parent=83 // pred_fallthru
          _
        %s1130 = smul.u32 %s43, 128
        %s1131 = scalar_lea.vmem %s581, %s1130 [#allocation5]
        %v1132 = vld [vmem:[%s1131] sm:$0xff]
        %v1133 = vld [vmem:[%s1131 + $0x8] sm:$0xff]
        %v1134 = vld [vmem:[%s1131 + $0x10] sm:$0xff]
        %v1135 = vld [vmem:[%s1131 + $0x18] sm:$0xff]
        %v1136 = vld [vmem:[%s1131 + $0x20] sm:$0xff]
        %v1137 = vld [vmem:[%s1131 + $0x28] sm:$0xff]
        %v1138 = vld [vmem:[%s1131 + $0x30] sm:$0xff]
        %v1139 = vld [vmem:[%s1131 + $0x38] sm:$0xff]
        %v1140 = vld [vmem:[%s1131 + $0x40] sm:$0xff]
        %v1141 = vld [vmem:[%s1131 + $0x48] sm:$0xff]
        %v1142 = vld [vmem:[%s1131 + $0x50] sm:$0xff]
        %v1143 = vld [vmem:[%s1131 + $0x58] sm:$0xff]
        %v1144 = vld [vmem:[%s1131 + $0x60] sm:$0xff]
        %v1145 = vld [vmem:[%s1131 + $0x68] sm:$0xff]
        %v1146 = vld [vmem:[%s1131 + $0x70] sm:$0xff]
        %v1147 = vld [vmem:[%s1131 + $0x78] sm:$0xff]
        %v1148 = vld [vmem:[#allocation10] sm:$0xff]
        %v1149 = vld [vmem:[#allocation10 + $0x8] sm:$0xff]
        %v1150 = vld [vmem:[#allocation10 + $0x10] sm:$0xff]
        %v1151 = vld [vmem:[#allocation10 + $0x18] sm:$0xff]
        %v1152 = vld [vmem:[#allocation10 + $0x20] sm:$0xff]
        %v1153 = vld [vmem:[#allocation10 + $0x28] sm:$0xff]
        %v1154 = vld [vmem:[#allocation10 + $0x30] sm:$0xff]
        %v1155 = vld [vmem:[#allocation10 + $0x38] sm:$0xff]
        %v1156 = vld [vmem:[#allocation10 + $0x40] sm:$0xff]
        %v1157 = vld [vmem:[#allocation10 + $0x48] sm:$0xff]
        %v1158 = vld [vmem:[#allocation10 + $0x50] sm:$0xff]
        %v1159 = vld [vmem:[#allocation10 + $0x58] sm:$0xff]
        %v1160 = vld [vmem:[#allocation10 + $0x60] sm:$0xff]
        %v1161 = vld [vmem:[#allocation10 + $0x68] sm:$0xff]
        %v1162 = vld [vmem:[#allocation10 + $0x70] sm:$0xff]
        %v1163 = vld [vmem:[#allocation10 + $0x78] sm:$0xff]
        %v1164 = vld [vmem:[%s3] sm:$0x1]
        %v1166 = vlaneseq
        %v1167 = vshrl.u32 %v1166, 7
        %v1168 = vsub.s32 0, %v1167
        %v1169 = vrot.slane %v1164, %v1168
        %1171 = vmatprep.subr.mxu0 0.0
        %1172 = vmatpush1.msra.mxu0 %v1163
        %1173 = vmatprep.subr.mxu0 0.0
        %1174 = vmatpush1.msra.mxu0 %v1162
        %1175 = vmatprep.subr.mxu0 0.0
        %1176 = vmatpush1.msra.mxu0 %v1161
        %1177 = vmatprep.subr.mxu0 0.0
        %1178 = vmatpush1.msra.mxu0 %v1160
        %1179 = vmatprep.subr.mxu0 0.0
        %1180 = vmatpush1.msra.mxu0 %v1159
        %1181 = vmatprep.subr.mxu0 0.0
        %1182 = vmatpush1.msra.mxu0 %v1158
        %1183 = vmatprep.subr.mxu0 0.0
        %1184 = vmatpush1.msra.mxu0 %v1157
        %1185 = vmatprep.subr.mxu0 0.0
        %1186 = vmatpush1.msra.mxu0 %v1156
        %1187 = vmatprep.subr.mxu0 0.0
        %1188 = vmatpush1.msra.mxu0 %v1155
        %1189 = vmatprep.subr.mxu0 0.0
        %1190 = vmatpush1.msra.mxu0 %v1154
        %1191 = vmatprep.subr.mxu0 0.0
        %1192 = vmatpush1.msra.mxu0 %v1153
        %1193 = vmatprep.subr.mxu0 0.0
        %1194 = vmatpush1.msra.mxu0 %v1152
        %1195 = vmatprep.subr.mxu0 0.0
        %1196 = vmatpush1.msra.mxu0 %v1151
        %1197 = vmatprep.subr.mxu0 0.0
        %1198 = vmatpush1.msra.mxu0 %v1150
        %1199 = vmatprep.subr.mxu0 0.0
        %1200 = vmatpush1.msra.mxu0 %v1149
        %1201 = vmatprep.subr.mxu0 0.0
        %1202 = vmatpush1.msra.mxu0 %v1148
        %1203 = vmatprep.subr.mxu0 0.0
        %1204 = vmatpush2.msra.mxu0 0.0
        %1205 = vmatprep.subr.mxu0 0.0
        %1206 = vmatpush2.msra.mxu0 0.0
        %1207 = vmatprep.subr.mxu0 0.0
        %1208 = vmatpush2.msra.mxu0 0.0
        %1209 = vmatprep.subr.mxu0 0.0
        %1210 = vmatpush2.msra.mxu0 0.0
        %1211 = vmatprep.subr.mxu0 0.0
        %1212 = vmatpush2.msra.mxu0 0.0
        %1213 = vmatprep.subr.mxu0 0.0
        %1214 = vmatpush2.msra.mxu0 0.0
        %1215 = vmatprep.subr.mxu0 0.0
        %1216 = vmatpush2.msra.mxu0 0.0
        %1217 = vmatprep.subr.mxu0 0.0
        %1218 = vmatpush2.msra.mxu0 0.0
        %1219 = vmatprep.subr.mxu0 0.0
        %1220 = vmatpush2.msra.mxu0 0.0
        %1221 = vmatprep.subr.mxu0 0.0
        %1222 = vmatpush2.msra.mxu0 0.0
        %1223 = vmatprep.subr.mxu0 0.0
        %1224 = vmatpush2.msra.mxu0 0.0
        %1225 = vmatprep.subr.mxu0 0.0
        %1226 = vmatpush2.msra.mxu0 0.0
        %1227 = vmatprep.subr.mxu0 0.0
        %1228 = vmatpush2.msra.mxu0 0.0
        %1229 = vmatprep.subr.mxu0 0.0
        %1230 = vmatpush2.msra.mxu0 0.0
        %1231 = vmatprep.subr.mxu0 0.0
        %1232 = vmatpush2.msra.mxu0 0.0
        %1233 = vmatprep.subr.mxu0 0.0
        %1234 = vmatpush2.msra.mxu0 0.0
        %1235 = vmatprep.mubr.f32.mxu0 0.0
        %1236 = vmatmul.mubr.f32.gmra.mxu0 %v1132
        %v1237 = vpop.f32.mrf.mxu0
        %v1238 = vadd.f32 %v1169, %v1237
        %v1239 = vpop.f32.mrf.mxu0
        %1240 = vmatprep.mubr.f32.mxu0 0.0
        %1241 = vmatmul.mubr.f32.gmra.mxu0 %v1133
        %v1242 = vpop.f32.mrf.mxu0
        %v1243 = vadd.f32 %v1169, %v1242
        %v1244 = vpop.f32.mrf.mxu0
        %1245 = vmatprep.mubr.f32.mxu0 0.0
        %1246 = vmatmul.mubr.f32.gmra.mxu0 %v1134
        %v1247 = vpop.f32.mrf.mxu0
        %v1248 = vadd.f32 %v1169, %v1247
        %v1249 = vpop.f32.mrf.mxu0
        %1250 = vmatprep.mubr.f32.mxu0 0.0
        %1251 = vmatmul.mubr.f32.gmra.mxu0 %v1135
        %v1252 = vpop.f32.mrf.mxu0
        %v1253 = vadd.f32 %v1169, %v1252
        %v1254 = vpop.f32.mrf.mxu0
        %1255 = vmatprep.mubr.f32.mxu0 0.0
        %1256 = vmatmul.mubr.f32.gmra.mxu0 %v1136
        %v1257 = vpop.f32.mrf.mxu0
        %v1258 = vadd.f32 %v1169, %v1257
        %v1259 = vpop.f32.mrf.mxu0
        %1260 = vmatprep.mubr.f32.mxu0 0.0
        %1261 = vmatmul.mubr.f32.gmra.mxu0 %v1137
        %v1262 = vpop.f32.mrf.mxu0
        %v1263 = vadd.f32 %v1169, %v1262
        %v1264 = vpop.f32.mrf.mxu0
        %1265 = vmatprep.mubr.f32.mxu0 0.0
        %1266 = vmatmul.mubr.f32.gmra.mxu0 %v1138
        %v1267 = vpop.f32.mrf.mxu0
        %v1268 = vadd.f32 %v1169, %v1267
        %v1269 = vpop.f32.mrf.mxu0
        %1270 = vmatprep.mubr.f32.mxu0 0.0
        %1271 = vmatmul.mubr.f32.gmra.mxu0 %v1139
        %v1272 = vpop.f32.mrf.mxu0
        %v1273 = vadd.f32 %v1169, %v1272
        %v1274 = vpop.f32.mrf.mxu0
        %1275 = vmatprep.mubr.f32.mxu0 0.0
        %1276 = vmatmul.mubr.f32.gmra.mxu0 %v1140
        %v1277 = vpop.f32.mrf.mxu0
        %v1278 = vadd.f32 %v1169, %v1277
        %v1279 = vpop.f32.mrf.mxu0
        %1280 = vmatprep.mubr.f32.mxu0 0.0
        %1281 = vmatmul.mubr.f32.gmra.mxu0 %v1141
        %v1282 = vpop.f32.mrf.mxu0
        %v1283 = vadd.f32 %v1169, %v1282
        %v1284 = vpop.f32.mrf.mxu0
        %1285 = vmatprep.mubr.f32.mxu0 0.0
        %1286 = vmatmul.mubr.f32.gmra.mxu0 %v1142
        %v1287 = vpop.f32.mrf.mxu0
        %v1288 = vadd.f32 %v1169, %v1287
        %v1289 = vpop.f32.mrf.mxu0
        %1290 = vmatprep.mubr.f32.mxu0 0.0
        %1291 = vmatmul.mubr.f32.gmra.mxu0 %v1143
        %v1292 = vpop.f32.mrf.mxu0
        %v1293 = vadd.f32 %v1169, %v1292
        %v1294 = vpop.f32.mrf.mxu0
        %1295 = vmatprep.mubr.f32.mxu0 0.0
        %1296 = vmatmul.mubr.f32.gmra.mxu0 %v1144
        %v1297 = vpop.f32.mrf.mxu0
        %v1298 = vadd.f32 %v1169, %v1297
        %v1299 = vpop.f32.mrf.mxu0
        %1300 = vmatprep.mubr.f32.mxu0 0.0
        %1301 = vmatmul.mubr.f32.gmra.mxu0 %v1145
        %v1302 = vpop.f32.mrf.mxu0
        %v1303 = vadd.f32 %v1169, %v1302
        %v1304 = vpop.f32.mrf.mxu0
        %1305 = vmatprep.mubr.f32.mxu0 0.0
        %1306 = vmatmul.mubr.f32.gmra.mxu0 %v1146
        %v1307 = vpop.f32.mrf.mxu0
        %v1308 = vadd.f32 %v1169, %v1307
        %v1309 = vpop.f32.mrf.mxu0
        %1310 = vmatprep.mubr.f32.mxu0 0.0
        %1311 = vmatmul.mubr.f32.gmra.mxu0 %v1147
        %v1312 = vpop.f32.mrf.mxu0
        %v1313 = vadd.f32 %v1169, %v1312
        %v1314 = vpop.f32.mrf.mxu0
        %1315 = vdwg.mxu0
        %v1316 = vmul.f32 %v1238, 0.125
        %v1317 = vmul.f32 %v1243, 0.125
        %v1318 = vmul.f32 %v1248, 0.125
        %v1319 = vmul.f32 %v1253, 0.125
        %v1320 = vmul.f32 %v1258, 0.125
        %v1321 = vmul.f32 %v1263, 0.125
        %v1322 = vmul.f32 %v1268, 0.125
        %v1323 = vmul.f32 %v1273, 0.125
        %v1324 = vmul.f32 %v1278, 0.125
        %v1325 = vmul.f32 %v1283, 0.125
        %v1326 = vmul.f32 %v1288, 0.125
        %v1327 = vmul.f32 %v1293, 0.125
        %v1328 = vmul.f32 %v1298, 0.125
        %v1329 = vmul.f32 %v1303, 0.125
        %v1330 = vmul.f32 %v1308, 0.125
        %v1331 = vmul.f32 %v1313, 0.125
        %v1332 = vld [vmem:[%s590] sm:$0x3]
        %v1333 = vmul.f32 %v1332, 0.125
        %v1335 = vlaneseq
        %v1336 = vshrl.u32 %v1335, 7
        %v1337 = vsub.s32 0, %v1336
        %v1338 = vrot.slane %v1333, %v1337
        %v1339 = vlaneseq
        %v1340 = vshrl.u32 %v1339, 7
        %v1341 = vsub.s32 1, %v1340
        %v1342 = vrot.slane %v1333, %v1341
        %v1345 = vld [vmem:[#allocation2] sm:$0xff]
        %v1346 = vld [vmem:[#allocation2 + $0x8] sm:$0xff]
        %v1347 = vld [vmem:[#allocation2 + $0x10] sm:$0xff]
        %v1348 = vld [vmem:[#allocation2 + $0x18] sm:$0xff]
        %v1349 = vld [vmem:[#allocation2 + $0x20] sm:$0xff]
        %v1350 = vld [vmem:[#allocation2 + $0x28] sm:$0xff]
        %v1351 = vld [vmem:[#allocation2 + $0x30] sm:$0xff]
        %v1352 = vld [vmem:[#allocation2 + $0x38] sm:$0xff]
        %v1353 = vld [vmem:[#allocation2 + $0x40] sm:$0xff]
        %v1354 = vld [vmem:[#allocation2 + $0x48] sm:$0xff]
        %v1355 = vld [vmem:[#allocation2 + $0x50] sm:$0xff]
        %v1356 = vld [vmem:[#allocation2 + $0x58] sm:$0xff]
        %v1357 = vld [vmem:[#allocation2 + $0x60] sm:$0xff]
        %v1358 = vld [vmem:[#allocation2 + $0x68] sm:$0xff]
        %v1359 = vld [vmem:[#allocation2 + $0x70] sm:$0xff]
        %v1360 = vld [vmem:[#allocation2 + $0x78] sm:$0xff]
        %v1361 = vld [vmem:[#allocation3] sm:$0xff]
        %v1362 = vld [vmem:[#allocation3 + $0x8] sm:$0xff]
        %v1363 = vld [vmem:[#allocation3 + $0x10] sm:$0xff]
        %v1364 = vld [vmem:[#allocation3 + $0x18] sm:$0xff]
        %v1365 = vld [vmem:[#allocation3 + $0x20] sm:$0xff]
        %v1366 = vld [vmem:[#allocation3 + $0x28] sm:$0xff]
        %v1367 = vld [vmem:[#allocation3 + $0x30] sm:$0xff]
        %v1368 = vld [vmem:[#allocation3 + $0x38] sm:$0xff]
        %v1369 = vld [vmem:[#allocation3 + $0x40] sm:$0xff]
        %v1370 = vld [vmem:[#allocation3 + $0x48] sm:$0xff]
        %v1371 = vld [vmem:[#allocation3 + $0x50] sm:$0xff]
        %v1372 = vld [vmem:[#allocation3 + $0x58] sm:$0xff]
        %v1373 = vld [vmem:[#allocation3 + $0x60] sm:$0xff]
        %v1374 = vld [vmem:[#allocation3 + $0x68] sm:$0xff]
        %v1375 = vld [vmem:[#allocation3 + $0x70] sm:$0xff]
        %v1376 = vld [vmem:[#allocation3 + $0x78] sm:$0xff]
        %v1377 = vld [vmem:[#allocation3 + $0x80] sm:$0xff]
        %v1378 = vld [vmem:[#allocation3 + $0x88] sm:$0xff]
        %v1379 = vld [vmem:[#allocation3 + $0x90] sm:$0xff]
        %v1380 = vld [vmem:[#allocation3 + $0x98] sm:$0xff]
        %v1381 = vld [vmem:[#allocation3 + $0xa0] sm:$0xff]
        %v1382 = vld [vmem:[#allocation3 + $0xa8] sm:$0xff]
        %v1383 = vld [vmem:[#allocation3 + $0xb0] sm:$0xff]
        %v1384 = vld [vmem:[#allocation3 + $0xb8] sm:$0xff]
        %v1385 = vld [vmem:[#allocation3 + $0xc0] sm:$0xff]
        %v1386 = vld [vmem:[#allocation3 + $0xc8] sm:$0xff]
        %v1387 = vld [vmem:[#allocation3 + $0xd0] sm:$0xff]
        %v1388 = vld [vmem:[#allocation3 + $0xd8] sm:$0xff]
        %v1389 = vld [vmem:[#allocation3 + $0xe0] sm:$0xff]
        %v1390 = vld [vmem:[#allocation3 + $0xe8] sm:$0xff]
        %v1391 = vld [vmem:[#allocation3 + $0xf0] sm:$0xff]
        %v1392 = vld [vmem:[#allocation3 + $0xf8] sm:$0xff]
        %vm1393 = vcmask 523264
        %v1395 = vsel %vm1393, %v1316, 0
        %v1398 = vsel %vm1393, %v1317, 0
        %v1401 = vsel %vm1393, %v1318, 0
        %v1404 = vsel %vm1393, %v1319, 0
        %v1407 = vsel %vm1393, %v1320, 0
        %v1410 = vsel %vm1393, %v1321, 0
        %v1413 = vsel %vm1393, %v1322, 0
        %v1416 = vsel %vm1393, %v1323, 0
        %v1419 = vsel %vm1393, %v1324, 0
        %v1422 = vsel %vm1393, %v1325, 0
        %v1425 = vsel %vm1393, %v1326, 0
        %v1428 = vsel %vm1393, %v1327, 0
        %v1431 = vsel %vm1393, %v1328, 0
        %v1434 = vsel %vm1393, %v1329, 0
        %v1437 = vsel %vm1393, %v1330, 0
        %v1440 = vsel %vm1393, %v1331, 0
        %1442 = vmatprep.subr.mxu0 0.0
        %1443 = vmatpush1.msra.mxu0 0.0
        %1444 = vmatprep.subr.mxu0 0.0
        %1445 = vmatpush1.msra.mxu0 0.0
        %1446 = vmatprep.subr.mxu0 0.0
        %1447 = vmatpush1.msra.mxu0 0.0
        %1448 = vmatprep.subr.mxu0 0.0
        %1449 = vmatpush1.msra.mxu0 0.0
        %1450 = vmatprep.subr.mxu0 0.0
        %1451 = vmatpush1.msra.mxu0 0.0
        %1452 = vmatprep.subr.mxu0 0.0
        %1453 = vmatpush1.msra.mxu0 0.0
        %1454 = vmatprep.subr.mxu0 0.0
        %1455 = vmatpush1.msra.mxu0 0.0
        %1456 = vmatprep.subr.mxu0 0.0
        %1457 = vmatpush1.msra.mxu0 0.0
        %1458 = vmatprep.subr.mxu0 %v1360
        %1459 = vmatpush1.msra.mxu0 %v1359
        %1460 = vmatprep.subr.mxu0 %v1358
        %1461 = vmatpush1.msra.mxu0 %v1357
        %1462 = vmatprep.subr.mxu0 %v1356
        %1463 = vmatpush1.msra.mxu0 %v1355
        %1464 = vmatprep.subr.mxu0 %v1354
        %1465 = vmatpush1.msra.mxu0 %v1353
        %1466 = vmatprep.subr.mxu0 %v1352
        %1467 = vmatpush1.msra.mxu0 %v1351
        %1468 = vmatprep.subr.mxu0 %v1350
        %1469 = vmatpush1.msra.mxu0 %v1349
        %1470 = vmatprep.subr.mxu0 %v1348
        %1471 = vmatpush1.msra.mxu0 %v1347
        %1472 = vmatprep.subr.mxu0 %v1346
        %1473 = vmatpush1.msra.mxu0 %v1345
        %1474 = vmatprep.subr.mxu0 0.0
        %1475 = vmatpush2.msra.mxu0 0.0
        %1476 = vmatprep.subr.mxu0 0.0
        %1477 = vmatpush2.msra.mxu0 0.0
        %1478 = vmatprep.subr.mxu0 0.0
        %1479 = vmatpush2.msra.mxu0 0.0
        %1480 = vmatprep.subr.mxu0 0.0
        %1481 = vmatpush2.msra.mxu0 0.0
        %1482 = vmatprep.subr.mxu0 0.0
        %1483 = vmatpush2.msra.mxu0 0.0
        %1484 = vmatprep.subr.mxu0 0.0
        %1485 = vmatpush2.msra.mxu0 0.0
        %1486 = vmatprep.subr.mxu0 0.0
        %1487 = vmatpush2.msra.mxu0 0.0
        %1488 = vmatprep.subr.mxu0 0.0
        %1489 = vmatpush2.msra.mxu0 0.0
        %1490 = vmatprep.subr.mxu0 0.0
        %1491 = vmatpush2.msra.mxu0 0.0
        %1492 = vmatprep.subr.mxu0 0.0
        %1493 = vmatpush2.msra.mxu0 0.0
        %1494 = vmatprep.subr.mxu0 0.0
        %1495 = vmatpush2.msra.mxu0 0.0
        %1496 = vmatprep.subr.mxu0 0.0
        %1497 = vmatpush2.msra.mxu0 0.0
        %1498 = vmatprep.subr.mxu0 0.0
        %1499 = vmatpush2.msra.mxu0 0.0
        %1500 = vmatprep.subr.mxu0 0.0
        %1501 = vmatpush2.msra.mxu0 0.0
        %1502 = vmatprep.subr.mxu0 0.0
        %1503 = vmatpush2.msra.mxu0 0.0
        %1504 = vmatprep.subr.mxu0 0.0
        %1505 = vmatpush2.msra.mxu0 0.0
        %1506 = vmatprep.mubr.f32.mxu0 0.0
        %1507 = vmatmul.mubr.f32.gmra.mxu0 %v1395
        %v1508 = vpop.f32.mrf.mxu0
        %v1509 = vadd.f32 %v1338, %v1508
        %v1510 = vpop.f32.mrf.mxu0
        %v1511 = vadd.f32 %v1342, %v1510
        %1512 = vmatprep.mubr.f32.mxu0 0.0
        %1513 = vmatmul.mubr.f32.gmra.mxu0 %v1398
        %v1514 = vpop.f32.mrf.mxu0
        %v1515 = vadd.f32 %v1338, %v1514
        %v1516 = vpop.f32.mrf.mxu0
        %v1517 = vadd.f32 %v1342, %v1516
        %1518 = vmatprep.mubr.f32.mxu0 0.0
        %1519 = vmatmul.mubr.f32.gmra.mxu0 %v1401
        %v1520 = vpop.f32.mrf.mxu0
        %v1521 = vadd.f32 %v1338, %v1520
        %v1522 = vpop.f32.mrf.mxu0
        %v1523 = vadd.f32 %v1342, %v1522
        %1524 = vmatprep.mubr.f32.mxu0 0.0
        %1525 = vmatmul.mubr.f32.gmra.mxu0 %v1404
        %v1526 = vpop.f32.mrf.mxu0
        %v1527 = vadd.f32 %v1338, %v1526
        %v1528 = vpop.f32.mrf.mxu0
        %v1529 = vadd.f32 %v1342, %v1528
        %1530 = vmatprep.mubr.f32.mxu0 0.0
        %1531 = vmatmul.mubr.f32.gmra.mxu0 %v1407
        %v1532 = vpop.f32.mrf.mxu0
        %v1533 = vadd.f32 %v1338, %v1532
        %v1534 = vpop.f32.mrf.mxu0
        %v1535 = vadd.f32 %v1342, %v1534
        %1536 = vmatprep.mubr.f32.mxu0 0.0
        %1537 = vmatmul.mubr.f32.gmra.mxu0 %v1410
        %v1538 = vpop.f32.mrf.mxu0
        %v1539 = vadd.f32 %v1338, %v1538
        %v1540 = vpop.f32.mrf.mxu0
        %v1541 = vadd.f32 %v1342, %v1540
        %1542 = vmatprep.mubr.f32.mxu0 0.0
        %1543 = vmatmul.mubr.f32.gmra.mxu0 %v1413
        %v1544 = vpop.f32.mrf.mxu0
        %v1545 = vadd.f32 %v1338, %v1544
        %v1546 = vpop.f32.mrf.mxu0
        %v1547 = vadd.f32 %v1342, %v1546
        %1548 = vmatprep.mubr.f32.mxu0 0.0
        %1549 = vmatmul.mubr.f32.gmra.mxu0 %v1416
        %v1550 = vpop.f32.mrf.mxu0
        %v1551 = vadd.f32 %v1338, %v1550
        %v1552 = vpop.f32.mrf.mxu0
        %v1553 = vadd.f32 %v1342, %v1552
        %1554 = vmatprep.mubr.f32.mxu0 0.0
        %1555 = vmatmul.mubr.f32.gmra.mxu0 %v1419
        %v1556 = vpop.f32.mrf.mxu0
        %v1557 = vadd.f32 %v1338, %v1556
        %v1558 = vpop.f32.mrf.mxu0
        %v1559 = vadd.f32 %v1342, %v1558
        %1560 = vmatprep.mubr.f32.mxu0 0.0
        %1561 = vmatmul.mubr.f32.gmra.mxu0 %v1422
        %v1562 = vpop.f32.mrf.mxu0
        %v1563 = vadd.f32 %v1338, %v1562
        %v1564 = vpop.f32.mrf.mxu0
        %v1565 = vadd.f32 %v1342, %v1564
        %1566 = vmatprep.mubr.f32.mxu0 0.0
        %1567 = vmatmul.mubr.f32.gmra.mxu0 %v1425
        %v1568 = vpop.f32.mrf.mxu0
        %v1569 = vadd.f32 %v1338, %v1568
        %v1570 = vpop.f32.mrf.mxu0
        %v1571 = vadd.f32 %v1342, %v1570
        %1572 = vmatprep.mubr.f32.mxu0 0.0
        %1573 = vmatmul.mubr.f32.gmra.mxu0 %v1428
        %v1574 = vpop.f32.mrf.mxu0
        %v1575 = vadd.f32 %v1338, %v1574
        %v1576 = vpop.f32.mrf.mxu0
        %v1577 = vadd.f32 %v1342, %v1576
        %1578 = vmatprep.mubr.f32.mxu0 0.0
        %1579 = vmatmul.mubr.f32.gmra.mxu0 %v1431
        %v1580 = vpop.f32.mrf.mxu0
        %v1581 = vadd.f32 %v1338, %v1580
        %v1582 = vpop.f32.mrf.mxu0
        %v1583 = vadd.f32 %v1342, %v1582
        %1584 = vmatprep.mubr.f32.mxu0 0.0
        %1585 = vmatmul.mubr.f32.gmra.mxu0 %v1434
        %v1586 = vpop.f32.mrf.mxu0
        %v1587 = vadd.f32 %v1338, %v1586
        %v1588 = vpop.f32.mrf.mxu0
        %v1589 = vadd.f32 %v1342, %v1588
        %1590 = vmatprep.mubr.f32.mxu0 0.0
        %1591 = vmatmul.mubr.f32.gmra.mxu0 %v1437
        %v1592 = vpop.f32.mrf.mxu0
        %v1593 = vadd.f32 %v1338, %v1592
        %v1594 = vpop.f32.mrf.mxu0
        %v1595 = vadd.f32 %v1342, %v1594
        %1596 = vmatprep.mubr.f32.mxu0 0.0
        %1597 = vmatmul.mubr.f32.gmra.mxu0 %v1440
        %v1598 = vpop.f32.mrf.mxu0
        %v1599 = vadd.f32 %v1338, %v1598
        %v1600 = vpop.f32.mrf.mxu0
        %v1601 = vadd.f32 %v1342, %v1600
        %1602 = vdwg.mxu0
        %v1603 = vmax.f32 %v1509, %v1511
        %1604 = vmax.xlane.f32.xlu0 %v1603
        %v1605 = vpop.xlane.xlu0 %1604
        %v1606 = vmax.f32 %v1515, %v1517
        %1607 = vmax.xlane.f32.xlu0 %v1606
        %v1608 = vpop.xlane.xlu0 %1607
        %v1609 = vmax.f32 %v1521, %v1523
        %1610 = vmax.xlane.f32.xlu0 %v1609
        %v1611 = vpop.xlane.xlu0 %1610
        %v1612 = vmax.f32 %v1527, %v1529
        %1613 = vmax.xlane.f32.xlu0 %v1612
        %v1614 = vpop.xlane.xlu0 %1613
        %v1615 = vmax.f32 %v1533, %v1535
        %1616 = vmax.xlane.f32.xlu0 %v1615
        %v1617 = vpop.xlane.xlu0 %1616
        %v1618 = vmax.f32 %v1539, %v1541
        %1619 = vmax.xlane.f32.xlu0 %v1618
        %v1620 = vpop.xlane.xlu0 %1619
        %v1621 = vmax.f32 %v1545, %v1547
        %1622 = vmax.xlane.f32.xlu0 %v1621
        %v1623 = vpop.xlane.xlu0 %1622
        %v1624 = vmax.f32 %v1551, %v1553
        %1625 = vmax.xlane.f32.xlu0 %v1624
        %v1626 = vpop.xlane.xlu0 %1625
        %v1627 = vmax.f32 %v1557, %v1559
        %1628 = vmax.xlane.f32.xlu0 %v1627
        %v1629 = vpop.xlane.xlu0 %1628
        %v1630 = vmax.f32 %v1563, %v1565
        %1631 = vmax.xlane.f32.xlu0 %v1630
        %v1632 = vpop.xlane.xlu0 %1631
        %v1633 = vmax.f32 %v1569, %v1571
        %1634 = vmax.xlane.f32.xlu0 %v1633
        %v1635 = vpop.xlane.xlu0 %1634
        %v1636 = vmax.f32 %v1575, %v1577
        %1637 = vmax.xlane.f32.xlu0 %v1636
        %v1638 = vpop.xlane.xlu0 %1637
        %v1639 = vmax.f32 %v1581, %v1583
        %1640 = vmax.xlane.f32.xlu0 %v1639
        %v1641 = vpop.xlane.xlu0 %1640
        %v1642 = vmax.f32 %v1587, %v1589
        %1643 = vmax.xlane.f32.xlu0 %v1642
        %v1644 = vpop.xlane.xlu0 %1643
        %v1645 = vmax.f32 %v1593, %v1595
        %1646 = vmax.xlane.f32.xlu0 %v1645
        %v1647 = vpop.xlane.xlu0 %1646
        %v1648 = vmax.f32 %v1599, %v1601
        %1649 = vmax.xlane.f32.xlu0 %v1648
        %v1650 = vpop.xlane.xlu0 %1649
        %v1651 = vsub.f32 %v1509, %v1605
        %v1652 = vsub.f32 %v1511, %v1605
        %v1653 = vsub.f32 %v1515, %v1608
        %v1654 = vsub.f32 %v1517, %v1608
        %v1655 = vsub.f32 %v1521, %v1611
        %v1656 = vsub.f32 %v1523, %v1611
        %v1657 = vsub.f32 %v1527, %v1614
        %v1658 = vsub.f32 %v1529, %v1614
        %v1659 = vsub.f32 %v1533, %v1617
        %v1660 = vsub.f32 %v1535, %v1617
        %v1661 = vsub.f32 %v1539, %v1620
        %v1662 = vsub.f32 %v1541, %v1620
        %v1663 = vsub.f32 %v1545, %v1623
        %v1664 = vsub.f32 %v1547, %v1623
        %v1665 = vsub.f32 %v1551, %v1626
        %v1666 = vsub.f32 %v1553, %v1626
        %v1667 = vsub.f32 %v1557, %v1629
        %v1668 = vsub.f32 %v1559, %v1629
        %v1669 = vsub.f32 %v1563, %v1632
        %v1670 = vsub.f32 %v1565, %v1632
        %v1671 = vsub.f32 %v1569, %v1635
        %v1672 = vsub.f32 %v1571, %v1635
        %v1673 = vsub.f32 %v1575, %v1638
        %v1674 = vsub.f32 %v1577, %v1638
        %v1675 = vsub.f32 %v1581, %v1641
        %v1676 = vsub.f32 %v1583, %v1641
        %v1677 = vsub.f32 %v1587, %v1644
        %v1678 = vsub.f32 %v1589, %v1644
        %v1679 = vsub.f32 %v1593, %v1647
        %v1680 = vsub.f32 %v1595, %v1647
        %v1681 = vsub.f32 %v1599, %v1650
        %v1682 = vsub.f32 %v1601, %v1650
        %v1683 = vmul.f32 %v1651, 1.442695
        %v1684 = vpow.pop %v1683
        %v1685 = vmul.f32 %v1652, 1.442695
        %v1686 = vpow.pop %v1685
        %v1687 = vmul.f32 %v1653, 1.442695
        %v1688 = vpow.pop %v1687
        %v1689 = vmul.f32 %v1654, 1.442695
        %v1690 = vpow.pop %v1689
        %v1691 = vmul.f32 %v1655, 1.442695
        %v1692 = vpow.pop %v1691
        %v1693 = vmul.f32 %v1656, 1.442695
        %v1694 = vpow.pop %v1693
        %v1695 = vmul.f32 %v1657, 1.442695
        %v1696 = vpow.pop %v1695
        %v1697 = vmul.f32 %v1658, 1.442695
        %v1698 = vpow.pop %v1697
        %v1699 = vmul.f32 %v1659, 1.442695
        %v1700 = vpow.pop %v1699
        %v1701 = vmul.f32 %v1660, 1.442695
        %v1702 = vpow.pop %v1701
        %v1703 = vmul.f32 %v1661, 1.442695
        %v1704 = vpow.pop %v1703
        %v1705 = vmul.f32 %v1662, 1.442695
        %v1706 = vpow.pop %v1705
        %v1707 = vmul.f32 %v1663, 1.442695
        %v1708 = vpow.pop %v1707
        %v1709 = vmul.f32 %v1664, 1.442695
        %v1710 = vpow.pop %v1709
        %v1711 = vmul.f32 %v1665, 1.442695
        %v1712 = vpow.pop %v1711
        %v1713 = vmul.f32 %v1666, 1.442695
        %v1714 = vpow.pop %v1713
        %v1715 = vmul.f32 %v1667, 1.442695
        %v1716 = vpow.pop %v1715
        %v1717 = vmul.f32 %v1668, 1.442695
        %v1718 = vpow.pop %v1717
        %v1719 = vmul.f32 %v1669, 1.442695
        %v1720 = vpow.pop %v1719
        %v1721 = vmul.f32 %v1670, 1.442695
        %v1722 = vpow.pop %v1721
        %v1723 = vmul.f32 %v1671, 1.442695
        %v1724 = vpow.pop %v1723
        %v1725 = vmul.f32 %v1672, 1.442695
        %v1726 = vpow.pop %v1725
        %v1727 = vmul.f32 %v1673, 1.442695
        %v1728 = vpow.pop %v1727
        %v1729 = vmul.f32 %v1674, 1.442695
        %v1730 = vpow.pop %v1729
        %v1731 = vmul.f32 %v1675, 1.442695
        %v1732 = vpow.pop %v1731
        %v1733 = vmul.f32 %v1676, 1.442695
        %v1734 = vpow.pop %v1733
        %v1735 = vmul.f32 %v1677, 1.442695
        %v1736 = vpow.pop %v1735
        %v1737 = vmul.f32 %v1678, 1.442695
        %v1738 = vpow.pop %v1737
        %v1739 = vmul.f32 %v1679, 1.442695
        %v1740 = vpow.pop %v1739
        %v1741 = vmul.f32 %v1680, 1.442695
        %v1742 = vpow.pop %v1741
        %v1743 = vmul.f32 %v1681, 1.442695
        %v1744 = vpow.pop %v1743
        %v1745 = vmul.f32 %v1682, 1.442695
        %v1746 = vpow.pop %v1745
        %v1747 = vadd.f32 %v1684, %v1686
        %1748 = vadd.xlane.f32.xlu0 %v1747
        %v1749 = vpop.xlane.xlu0 %1748
        %v1750 = vadd.f32 %v1688, %v1690
        %1751 = vadd.xlane.f32.xlu0 %v1750
        %v1752 = vpop.xlane.xlu0 %1751
        %v1753 = vadd.f32 %v1692, %v1694
        %1754 = vadd.xlane.f32.xlu0 %v1753
        %v1755 = vpop.xlane.xlu0 %1754
        %v1756 = vadd.f32 %v1696, %v1698
        %1757 = vadd.xlane.f32.xlu0 %v1756
        %v1758 = vpop.xlane.xlu0 %1757
        %v1759 = vadd.f32 %v1700, %v1702
        %1760 = vadd.xlane.f32.xlu0 %v1759
        %v1761 = vpop.xlane.xlu0 %1760
        %v1762 = vadd.f32 %v1704, %v1706
        %1763 = vadd.xlane.f32.xlu0 %v1762
        %v1764 = vpop.xlane.xlu0 %1763
        %v1765 = vadd.f32 %v1708, %v1710
        %1766 = vadd.xlane.f32.xlu0 %v1765
        %v1767 = vpop.xlane.xlu0 %1766
        %v1768 = vadd.f32 %v1712, %v1714
        %1769 = vadd.xlane.f32.xlu0 %v1768
        %v1770 = vpop.xlane.xlu0 %1769
        %v1771 = vadd.f32 %v1716, %v1718
        %1772 = vadd.xlane.f32.xlu0 %v1771
        %v1773 = vpop.xlane.xlu0 %1772
        %v1774 = vadd.f32 %v1720, %v1722
        %1775 = vadd.xlane.f32.xlu0 %v1774
        %v1776 = vpop.xlane.xlu0 %1775
        %v1777 = vadd.f32 %v1724, %v1726
        %1778 = vadd.xlane.f32.xlu0 %v1777
        %v1779 = vpop.xlane.xlu0 %1778
        %v1780 = vadd.f32 %v1728, %v1730
        %1781 = vadd.xlane.f32.xlu0 %v1780
        %v1782 = vpop.xlane.xlu0 %1781
        %v1783 = vadd.f32 %v1732, %v1734
        %1784 = vadd.xlane.f32.xlu0 %v1783
        %v1785 = vpop.xlane.xlu0 %1784
        %v1786 = vadd.f32 %v1736, %v1738
        %1787 = vadd.xlane.f32.xlu0 %v1786
        %v1788 = vpop.xlane.xlu0 %1787
        %v1789 = vadd.f32 %v1740, %v1742
        %1790 = vadd.xlane.f32.xlu0 %v1789
        %v1791 = vpop.xlane.xlu0 %1790
        %v1792 = vadd.f32 %v1744, %v1746
        %1793 = vadd.xlane.f32.xlu0 %v1792
        %v1794 = vpop.xlane.xlu0 %1793
        %v1795 = vrcp.pop %v1749
        %v1796 = vrcp.pop %v1752
        %v1797 = vrcp.pop %v1755
        %v1798 = vrcp.pop %v1758
        %v1799 = vrcp.pop %v1761
        %v1800 = vrcp.pop %v1764
        %v1801 = vrcp.pop %v1767
        %v1802 = vrcp.pop %v1770
        %v1803 = vrcp.pop %v1773
        %v1804 = vrcp.pop %v1776
        %v1805 = vrcp.pop %v1779
        %v1806 = vrcp.pop %v1782
        %v1807 = vrcp.pop %v1785
        %v1808 = vrcp.pop %v1788
        %v1809 = vrcp.pop %v1791
        %v1810 = vrcp.pop %v1794
        %v1811 = vmul.f32 %v1684, %v1795
        %v1812 = vmul.f32 %v1686, %v1795
        %v1813 = vmul.f32 %v1688, %v1796
        %v1814 = vmul.f32 %v1690, %v1796
        %v1815 = vmul.f32 %v1692, %v1797
        %v1816 = vmul.f32 %v1694, %v1797
        %v1817 = vmul.f32 %v1696, %v1798
        %v1818 = vmul.f32 %v1698, %v1798
        %v1819 = vmul.f32 %v1700, %v1799
        %v1820 = vmul.f32 %v1702, %v1799
        %v1821 = vmul.f32 %v1704, %v1800
        %v1822 = vmul.f32 %v1706, %v1800
        %v1823 = vmul.f32 %v1708, %v1801
        %v1824 = vmul.f32 %v1710, %v1801
        %v1825 = vmul.f32 %v1712, %v1802
        %v1826 = vmul.f32 %v1714, %v1802
        %v1827 = vmul.f32 %v1716, %v1803
        %v1828 = vmul.f32 %v1718, %v1803
        %v1829 = vmul.f32 %v1720, %v1804
        %v1830 = vmul.f32 %v1722, %v1804
        %v1831 = vmul.f32 %v1724, %v1805
        %v1832 = vmul.f32 %v1726, %v1805
        %v1833 = vmul.f32 %v1728, %v1806
        %v1834 = vmul.f32 %v1730, %v1806
        %v1835 = vmul.f32 %v1732, %v1807
        %v1836 = vmul.f32 %v1734, %v1807
        %v1837 = vmul.f32 %v1736, %v1808
        %v1838 = vmul.f32 %v1738, %v1808
        %v1839 = vmul.f32 %v1740, %v1809
        %v1840 = vmul.f32 %v1742, %v1809
        %v1841 = vmul.f32 %v1744, %v1810
        %v1842 = vmul.f32 %v1746, %v1810
        %1843 = vmatprep.subr.mxu0 0.0
        %1844 = vmatpush1.msra.mxu0 %v1376
        %1845 = vmatprep.subr.mxu0 0.0
        %1846 = vmatpush1.msra.mxu0 %v1375
        %1847 = vmatprep.subr.mxu0 0.0
        %1848 = vmatpush1.msra.mxu0 %v1374
        %1849 = vmatprep.subr.mxu0 0.0
        %1850 = vmatpush1.msra.mxu0 %v1373
        %1851 = vmatprep.subr.mxu0 0.0
        %1852 = vmatpush1.msra.mxu0 %v1372
        %1853 = vmatprep.subr.mxu0 0.0
        %1854 = vmatpush1.msra.mxu0 %v1371
        %1855 = vmatprep.subr.mxu0 0.0
        %1856 = vmatpush1.msra.mxu0 %v1370
        %1857 = vmatprep.subr.mxu0 0.0
        %1858 = vmatpush1.msra.mxu0 %v1369
        %1859 = vmatprep.subr.mxu0 0.0
        %1860 = vmatpush1.msra.mxu0 %v1368
        %1861 = vmatprep.subr.mxu0 0.0
        %1862 = vmatpush1.msra.mxu0 %v1367
        %1863 = vmatprep.subr.mxu0 0.0
        %1864 = vmatpush1.msra.mxu0 %v1366
        %1865 = vmatprep.subr.mxu0 0.0
        %1866 = vmatpush1.msra.mxu0 %v1365
        %1867 = vmatprep.subr.mxu0 0.0
        %1868 = vmatpush1.msra.mxu0 %v1364
        %1869 = vmatprep.subr.mxu0 0.0
        %1870 = vmatpush1.msra.mxu0 %v1363
        %1871 = vmatprep.subr.mxu0 0.0
        %1872 = vmatpush1.msra.mxu0 %v1362
        %1873 = vmatprep.subr.mxu0 0.0
        %1874 = vmatpush1.msra.mxu0 %v1361
        %1875 = vmatprep.subr.mxu0 0.0
        %1876 = vmatpush2.msra.mxu0 %v1392
        %1877 = vmatprep.subr.mxu0 0.0
        %1878 = vmatpush2.msra.mxu0 %v1391
        %1879 = vmatprep.subr.mxu0 0.0
        %1880 = vmatpush2.msra.mxu0 %v1390
        %1881 = vmatprep.subr.mxu0 0.0
        %1882 = vmatpush2.msra.mxu0 %v1389
        %1883 = vmatprep.subr.mxu0 0.0
        %1884 = vmatpush2.msra.mxu0 %v1388
        %1885 = vmatprep.subr.mxu0 0.0
        %1886 = vmatpush2.msra.mxu0 %v1387
        %1887 = vmatprep.subr.mxu0 0.0
        %1888 = vmatpush2.msra.mxu0 %v1386
        %1889 = vmatprep.subr.mxu0 0.0
        %1890 = vmatpush2.msra.mxu0 %v1385
        %1891 = vmatprep.subr.mxu0 0.0
        %1892 = vmatpush2.msra.mxu0 %v1384
        %1893 = vmatprep.subr.mxu0 0.0
        %1894 = vmatpush2.msra.mxu0 %v1383
        %1895 = vmatprep.subr.mxu0 0.0
        %1896 = vmatpush2.msra.mxu0 %v1382
        %1897 = vmatprep.subr.mxu0 0.0
        %1898 = vmatpush2.msra.mxu0 %v1381
        %1899 = vmatprep.subr.mxu0 0.0
        %1900 = vmatpush2.msra.mxu0 %v1380
        %1901 = vmatprep.subr.mxu0 0.0
        %1902 = vmatpush2.msra.mxu0 %v1379
        %1903 = vmatprep.subr.mxu0 0.0
        %1904 = vmatpush2.msra.mxu0 %v1378
        %1905 = vmatprep.subr.mxu0 0.0
        %1906 = vmatpush2.msra.mxu0 %v1377
        %1907 = vmatprep.mubr.f32.mxu0 %v1812
        %1908 = vmatmul.mubr.f32.gmra.mxu0 %v1811
        %v1909 = vpop.f32.mrf.mxu0
        %v1910 = vadd.f32 0.0, %v1909
        %v1911 = vpop.f32.mrf.mxu0
        %1912 = vmatprep.mubr.f32.mxu0 %v1814
        %1913 = vmatmul.mubr.f32.gmra.mxu0 %v1813
        %v1914 = vpop.f32.mrf.mxu0
        %v1915 = vadd.f32 0.0, %v1914
        %v1916 = vpop.f32.mrf.mxu0
        %1917 = vmatprep.mubr.f32.mxu0 %v1816
        %1918 = vmatmul.mubr.f32.gmra.mxu0 %v1815
        %v1919 = vpop.f32.mrf.mxu0
        %v1920 = vadd.f32 0.0, %v1919
        %v1921 = vpop.f32.mrf.mxu0
        %1922 = vmatprep.mubr.f32.mxu0 %v1818
        %1923 = vmatmul.mubr.f32.gmra.mxu0 %v1817
        %v1924 = vpop.f32.mrf.mxu0
        %v1925 = vadd.f32 0.0, %v1924
        %v1926 = vpop.f32.mrf.mxu0
        %1927 = vmatprep.mubr.f32.mxu0 %v1820
        %1928 = vmatmul.mubr.f32.gmra.mxu0 %v1819
        %v1929 = vpop.f32.mrf.mxu0
        %v1930 = vadd.f32 0.0, %v1929
        %v1931 = vpop.f32.mrf.mxu0
        %1932 = vmatprep.mubr.f32.mxu0 %v1822
        %1933 = vmatmul.mubr.f32.gmra.mxu0 %v1821
        %v1934 = vpop.f32.mrf.mxu0
        %v1935 = vadd.f32 0.0, %v1934
        %v1936 = vpop.f32.mrf.mxu0
        %1937 = vmatprep.mubr.f32.mxu0 %v1824
        %1938 = vmatmul.mubr.f32.gmra.mxu0 %v1823
        %v1939 = vpop.f32.mrf.mxu0
        %v1940 = vadd.f32 0.0, %v1939
        %v1941 = vpop.f32.mrf.mxu0
        %1942 = vmatprep.mubr.f32.mxu0 %v1826
        %1943 = vmatmul.mubr.f32.gmra.mxu0 %v1825
        %v1944 = vpop.f32.mrf.mxu0
        %v1945 = vadd.f32 0.0, %v1944
        %v1946 = vpop.f32.mrf.mxu0
        %1947 = vmatprep.mubr.f32.mxu0 %v1828
        %1948 = vmatmul.mubr.f32.gmra.mxu0 %v1827
        %v1949 = vpop.f32.mrf.mxu0
        %v1950 = vadd.f32 0.0, %v1949
        %v1951 = vpop.f32.mrf.mxu0
        %1952 = vmatprep.mubr.f32.mxu0 %v1830
        %1953 = vmatmul.mubr.f32.gmra.mxu0 %v1829
        %v1954 = vpop.f32.mrf.mxu0
        %v1955 = vadd.f32 0.0, %v1954
        %v1956 = vpop.f32.mrf.mxu0
        %1957 = vmatprep.mubr.f32.mxu0 %v1832
        %1958 = vmatmul.mubr.f32.gmra.mxu0 %v1831
        %v1959 = vpop.f32.mrf.mxu0
        %v1960 = vadd.f32 0.0, %v1959
        %v1961 = vpop.f32.mrf.mxu0
        %1962 = vmatprep.mubr.f32.mxu0 %v1834
        %1963 = vmatmul.mubr.f32.gmra.mxu0 %v1833
        %v1964 = vpop.f32.mrf.mxu0
        %v1965 = vadd.f32 0.0, %v1964
        %v1966 = vpop.f32.mrf.mxu0
        %1967 = vmatprep.mubr.f32.mxu0 %v1836
        %1968 = vmatmul.mubr.f32.gmra.mxu0 %v1835
        %v1969 = vpop.f32.mrf.mxu0
        %v1970 = vadd.f32 0.0, %v1969
        %v1971 = vpop.f32.mrf.mxu0
        %1972 = vmatprep.mubr.f32.mxu0 %v1838
        %1973 = vmatmul.mubr.f32.gmra.mxu0 %v1837
        %v1974 = vpop.f32.mrf.mxu0
        %v1975 = vadd.f32 0.0, %v1974
        %v1976 = vpop.f32.mrf.mxu0
        %1977 = vmatprep.mubr.f32.mxu0 %v1840
        %1978 = vmatmul.mubr.f32.gmra.mxu0 %v1839
        %v1979 = vpop.f32.mrf.mxu0
        %v1980 = vadd.f32 0.0, %v1979
        %v1981 = vpop.f32.mrf.mxu0
        %1982 = vmatprep.mubr.f32.mxu0 %v1842
        %1983 = vmatmul.mubr.f32.gmra.mxu0 %v1841
        %v1984 = vpop.f32.mrf.mxu0
        %v1985 = vadd.f32 0.0, %v1984
        %v1986 = vpop.f32.mrf.mxu0
        %1987 = vdwg.mxu0
        %v1988 = vld [vmem:[#allocation2 + $0x80] sm:$0xff]
        %v1989 = vld [vmem:[#allocation2 + $0x88] sm:$0xff]
        %v1990 = vld [vmem:[#allocation2 + $0x90] sm:$0xff]
        %v1991 = vld [vmem:[#allocation2 + $0x98] sm:$0xff]
        %v1992 = vld [vmem:[#allocation2 + $0xa0] sm:$0xff]
        %v1993 = vld [vmem:[#allocation2 + $0xa8] sm:$0xff]
        %v1994 = vld [vmem:[#allocation2 + $0xb0] sm:$0xff]
        %v1995 = vld [vmem:[#allocation2 + $0xb8] sm:$0xff]
        %v1996 = vld [vmem:[#allocation2 + $0xc0] sm:$0xff]
        %v1997 = vld [vmem:[#allocation2 + $0xc8] sm:$0xff]
        %v1998 = vld [vmem:[#allocation2 + $0xd0] sm:$0xff]
        %v1999 = vld [vmem:[#allocation2 + $0xd8] sm:$0xff]
        %v2000 = vld [vmem:[#allocation2 + $0xe0] sm:$0xff]
        %v2001 = vld [vmem:[#allocation2 + $0xe8] sm:$0xff]
        %v2002 = vld [vmem:[#allocation2 + $0xf0] sm:$0xff]
        %v2003 = vld [vmem:[#allocation2 + $0xf8] sm:$0xff]
        %2004 = vrot.lane.b32.xlu0 %v1316, 64
        %v2005 = vpop.permute.xlu0 %2004
        %2006 = vrot.lane.b32.xlu0 %v1317, 64
        %v2007 = vpop.permute.xlu0 %2006
        %2008 = vrot.lane.b32.xlu0 %v1318, 64
        %v2009 = vpop.permute.xlu0 %2008
        %2010 = vrot.lane.b32.xlu0 %v1319, 64
        %v2011 = vpop.permute.xlu0 %2010
        %2012 = vrot.lane.b32.xlu0 %v1320, 64
        %v2013 = vpop.permute.xlu0 %2012
        %2014 = vrot.lane.b32.xlu0 %v1321, 64
        %v2015 = vpop.permute.xlu0 %2014
        %2016 = vrot.lane.b32.xlu0 %v1322, 64
        %v2017 = vpop.permute.xlu0 %2016
        %2018 = vrot.lane.b32.xlu0 %v1323, 64
        %v2019 = vpop.permute.xlu0 %2018
        %2020 = vrot.lane.b32.xlu0 %v1324, 64
        %v2021 = vpop.permute.xlu0 %2020
        %2022 = vrot.lane.b32.xlu0 %v1325, 64
        %v2023 = vpop.permute.xlu0 %2022
        %2024 = vrot.lane.b32.xlu0 %v1326, 64
        %v2025 = vpop.permute.xlu0 %2024
        %2026 = vrot.lane.b32.xlu0 %v1327, 64
        %v2027 = vpop.permute.xlu0 %2026
        %2028 = vrot.lane.b32.xlu0 %v1328, 64
        %v2029 = vpop.permute.xlu0 %2028
        %2030 = vrot.lane.b32.xlu0 %v1329, 64
        %v2031 = vpop.permute.xlu0 %2030
        %2032 = vrot.lane.b32.xlu0 %v1330, 64
        %v2033 = vpop.permute.xlu0 %2032
        %2034 = vrot.lane.b32.xlu0 %v1331, 64
        %v2035 = vpop.permute.xlu0 %2034
        %v2036 = vsel %vm1393, %v2005, 0
        %v2038 = vsel %vm1393, %v2007, 0
        %v2040 = vsel %vm1393, %v2009, 0
        %v2042 = vsel %vm1393, %v2011, 0
        %v2044 = vsel %vm1393, %v2013, 0
        %v2046 = vsel %vm1393, %v2015, 0
        %v2048 = vsel %vm1393, %v2017, 0
        %v2050 = vsel %vm1393, %v2019, 0
        %v2052 = vsel %vm1393, %v2021, 0
        %v2054 = vsel %vm1393, %v2023, 0
        %v2056 = vsel %vm1393, %v2025, 0
        %v2058 = vsel %vm1393, %v2027, 0
        %v2060 = vsel %vm1393, %v2029, 0
        %v2062 = vsel %vm1393, %v2031, 0
        %v2064 = vsel %vm1393, %v2033, 0
        %v2066 = vsel %vm1393, %v2035, 0
        %2068 = vmatprep.subr.mxu0 0.0
        %2069 = vmatpush1.msra.mxu0 0.0
        %2070 = vmatprep.subr.mxu0 0.0
        %2071 = vmatpush1.msra.mxu0 0.0
        %2072 = vmatprep.subr.mxu0 0.0
        %2073 = vmatpush1.msra.mxu0 0.0
        %2074 = vmatprep.subr.mxu0 0.0
        %2075 = vmatpush1.msra.mxu0 0.0
        %2076 = vmatprep.subr.mxu0 0.0
        %2077 = vmatpush1.msra.mxu0 0.0
        %2078 = vmatprep.subr.mxu0 0.0
        %2079 = vmatpush1.msra.mxu0 0.0
        %2080 = vmatprep.subr.mxu0 0.0
        %2081 = vmatpush1.msra.mxu0 0.0
        %2082 = vmatprep.subr.mxu0 0.0
        %2083 = vmatpush1.msra.mxu0 0.0
        %2084 = vmatprep.subr.mxu0 %v2003
        %2085 = vmatpush1.msra.mxu0 %v2002
        %2086 = vmatprep.subr.mxu0 %v2001
        %2087 = vmatpush1.msra.mxu0 %v2000
        %2088 = vmatprep.subr.mxu0 %v1999
        %2089 = vmatpush1.msra.mxu0 %v1998
        %2090 = vmatprep.subr.mxu0 %v1997
        %2091 = vmatpush1.msra.mxu0 %v1996
        %2092 = vmatprep.subr.mxu0 %v1995
        %2093 = vmatpush1.msra.mxu0 %v1994
        %2094 = vmatprep.subr.mxu0 %v1993
        %2095 = vmatpush1.msra.mxu0 %v1992
        %2096 = vmatprep.subr.mxu0 %v1991
        %2097 = vmatpush1.msra.mxu0 %v1990
        %2098 = vmatprep.subr.mxu0 %v1989
        %2099 = vmatpush1.msra.mxu0 %v1988
        %2100 = vmatprep.subr.mxu0 0.0
        %2101 = vmatpush2.msra.mxu0 0.0
        %2102 = vmatprep.subr.mxu0 0.0
        %2103 = vmatpush2.msra.mxu0 0.0
        %2104 = vmatprep.subr.mxu0 0.0
        %2105 = vmatpush2.msra.mxu0 0.0
        %2106 = vmatprep.subr.mxu0 0.0
        %2107 = vmatpush2.msra.mxu0 0.0
        %2108 = vmatprep.subr.mxu0 0.0
        %2109 = vmatpush2.msra.mxu0 0.0
        %2110 = vmatprep.subr.mxu0 0.0
        %2111 = vmatpush2.msra.mxu0 0.0
        %2112 = vmatprep.subr.mxu0 0.0
        %2113 = vmatpush2.msra.mxu0 0.0
        %2114 = vmatprep.subr.mxu0 0.0
        %2115 = vmatpush2.msra.mxu0 0.0
        %2116 = vmatprep.subr.mxu0 0.0
        %2117 = vmatpush2.msra.mxu0 0.0
        %2118 = vmatprep.subr.mxu0 0.0
        %2119 = vmatpush2.msra.mxu0 0.0
        %2120 = vmatprep.subr.mxu0 0.0
        %2121 = vmatpush2.msra.mxu0 0.0
        %2122 = vmatprep.subr.mxu0 0.0
        %2123 = vmatpush2.msra.mxu0 0.0
        %2124 = vmatprep.subr.mxu0 0.0
        %2125 = vmatpush2.msra.mxu0 0.0
        %2126 = vmatprep.subr.mxu0 0.0
        %2127 = vmatpush2.msra.mxu0 0.0
        %2128 = vmatprep.subr.mxu0 0.0
        %2129 = vmatpush2.msra.mxu0 0.0
        %2130 = vmatprep.subr.mxu0 0.0
        %2131 = vmatpush2.msra.mxu0 0.0
        %2132 = vmatprep.mubr.f32.mxu0 0.0
        %2133 = vmatmul.mubr.f32.gmra.mxu0 %v2036
        %v2134 = vpop.f32.mrf.mxu0
        %v2135 = vadd.f32 %v1338, %v2134
        %v2136 = vpop.f32.mrf.mxu0
        %v2137 = vadd.f32 %v1342, %v2136
        %2138 = vmatprep.mubr.f32.mxu0 0.0
        %2139 = vmatmul.mubr.f32.gmra.mxu0 %v2038
        %v2140 = vpop.f32.mrf.mxu0
        %v2141 = vadd.f32 %v1338, %v2140
        %v2142 = vpop.f32.mrf.mxu0
        %v2143 = vadd.f32 %v1342, %v2142
        %2144 = vmatprep.mubr.f32.mxu0 0.0
        %2145 = vmatmul.mubr.f32.gmra.mxu0 %v2040
        %v2146 = vpop.f32.mrf.mxu0
        %v2147 = vadd.f32 %v1338, %v2146
        %v2148 = vpop.f32.mrf.mxu0
        %v2149 = vadd.f32 %v1342, %v2148
        %2150 = vmatprep.mubr.f32.mxu0 0.0
        %2151 = vmatmul.mubr.f32.gmra.mxu0 %v2042
        %v2152 = vpop.f32.mrf.mxu0
        %v2153 = vadd.f32 %v1338, %v2152
        %v2154 = vpop.f32.mrf.mxu0
        %v2155 = vadd.f32 %v1342, %v2154
        %2156 = vmatprep.mubr.f32.mxu0 0.0
        %2157 = vmatmul.mubr.f32.gmra.mxu0 %v2044
        %v2158 = vpop.f32.mrf.mxu0
        %v2159 = vadd.f32 %v1338, %v2158
        %v2160 = vpop.f32.mrf.mxu0
        %v2161 = vadd.f32 %v1342, %v2160
        %2162 = vmatprep.mubr.f32.mxu0 0.0
        %2163 = vmatmul.mubr.f32.gmra.mxu0 %v2046
        %v2164 = vpop.f32.mrf.mxu0
        %v2165 = vadd.f32 %v1338, %v2164
        %v2166 = vpop.f32.mrf.mxu0
        %v2167 = vadd.f32 %v1342, %v2166
        %2168 = vmatprep.mubr.f32.mxu0 0.0
        %2169 = vmatmul.mubr.f32.gmra.mxu0 %v2048
        %v2170 = vpop.f32.mrf.mxu0
        %v2171 = vadd.f32 %v1338, %v2170
        %v2172 = vpop.f32.mrf.mxu0
        %v2173 = vadd.f32 %v1342, %v2172
        %2174 = vmatprep.mubr.f32.mxu0 0.0
        %2175 = vmatmul.mubr.f32.gmra.mxu0 %v2050
        %v2176 = vpop.f32.mrf.mxu0
        %v2177 = vadd.f32 %v1338, %v2176
        %v2178 = vpop.f32.mrf.mxu0
        %v2179 = vadd.f32 %v1342, %v2178
        %2180 = vmatprep.mubr.f32.mxu0 0.0
        %2181 = vmatmul.mubr.f32.gmra.mxu0 %v2052
        %v2182 = vpop.f32.mrf.mxu0
        %v2183 = vadd.f32 %v1338, %v2182
        %v2184 = vpop.f32.mrf.mxu0
        %v2185 = vadd.f32 %v1342, %v2184
        %2186 = vmatprep.mubr.f32.mxu0 0.0
        %2187 = vmatmul.mubr.f32.gmra.mxu0 %v2054
        %v2188 = vpop.f32.mrf.mxu0
        %v2189 = vadd.f32 %v1338, %v2188
        %v2190 = vpop.f32.mrf.mxu0
        %v2191 = vadd.f32 %v1342, %v2190
        %2192 = vmatprep.mubr.f32.mxu0 0.0
        %2193 = vmatmul.mubr.f32.gmra.mxu0 %v2056
        %v2194 = vpop.f32.mrf.mxu0
        %v2195 = vadd.f32 %v1338, %v2194
        %v2196 = vpop.f32.mrf.mxu0
        %v2197 = vadd.f32 %v1342, %v2196
        %2198 = vmatprep.mubr.f32.mxu0 0.0
        %2199 = vmatmul.mubr.f32.gmra.mxu0 %v2058
        %v2200 = vpop.f32.mrf.mxu0
        %v2201 = vadd.f32 %v1338, %v2200
        %v2202 = vpop.f32.mrf.mxu0
        %v2203 = vadd.f32 %v1342, %v2202
        %2204 = vmatprep.mubr.f32.mxu0 0.0
        %2205 = vmatmul.mubr.f32.gmra.mxu0 %v2060
        %v2206 = vpop.f32.mrf.mxu0
        %v2207 = vadd.f32 %v1338, %v2206
        %v2208 = vpop.f32.mrf.mxu0
        %v2209 = vadd.f32 %v1342, %v2208
        %2210 = vmatprep.mubr.f32.mxu0 0.0
        %2211 = vmatmul.mubr.f32.gmra.mxu0 %v2062
        %v2212 = vpop.f32.mrf.mxu0
        %v2213 = vadd.f32 %v1338, %v2212
        %v2214 = vpop.f32.mrf.mxu0
        %v2215 = vadd.f32 %v1342, %v2214
        %2216 = vmatprep.mubr.f32.mxu0 0.0
        %2217 = vmatmul.mubr.f32.gmra.mxu0 %v2064
        %v2218 = vpop.f32.mrf.mxu0
        %v2219 = vadd.f32 %v1338, %v2218
        %v2220 = vpop.f32.mrf.mxu0
        %v2221 = vadd.f32 %v1342, %v2220
        %2222 = vmatprep.mubr.f32.mxu0 0.0
        %2223 = vmatmul.mubr.f32.gmra.mxu0 %v2066
        %v2224 = vpop.f32.mrf.mxu0
        %v2225 = vadd.f32 %v1338, %v2224
        %v2226 = vpop.f32.mrf.mxu0
        %v2227 = vadd.f32 %v1342, %v2226
        %2228 = vdwg.mxu0
        %v2229 = vmax.f32 %v2135, %v2137
        %2230 = vmax.xlane.f32.xlu0 %v2229
        %v2231 = vpop.xlane.xlu0 %2230
        %v2232 = vmax.f32 %v2141, %v2143
        %2233 = vmax.xlane.f32.xlu0 %v2232
        %v2234 = vpop.xlane.xlu0 %2233
        %v2235 = vmax.f32 %v2147, %v2149
        %2236 = vmax.xlane.f32.xlu0 %v2235
        %v2237 = vpop.xlane.xlu0 %2236
        %v2238 = vmax.f32 %v2153, %v2155
        %2239 = vmax.xlane.f32.xlu0 %v2238
        %v2240 = vpop.xlane.xlu0 %2239
        %v2241 = vmax.f32 %v2159, %v2161
        %2242 = vmax.xlane.f32.xlu0 %v2241
        %v2243 = vpop.xlane.xlu0 %2242
        %v2244 = vmax.f32 %v2165, %v2167
        %2245 = vmax.xlane.f32.xlu0 %v2244
        %v2246 = vpop.xlane.xlu0 %2245
        %v2247 = vmax.f32 %v2171, %v2173
        %2248 = vmax.xlane.f32.xlu0 %v2247
        %v2249 = vpop.xlane.xlu0 %2248
        %v2250 = vmax.f32 %v2177, %v2179
        %2251 = vmax.xlane.f32.xlu0 %v2250
        %v2252 = vpop.xlane.xlu0 %2251
        %v2253 = vmax.f32 %v2183, %v2185
        %2254 = vmax.xlane.f32.xlu0 %v2253
        %v2255 = vpop.xlane.xlu0 %2254
        %v2256 = vmax.f32 %v2189, %v2191
        %2257 = vmax.xlane.f32.xlu0 %v2256
        %v2258 = vpop.xlane.xlu0 %2257
        %v2259 = vmax.f32 %v2195, %v2197
        %2260 = vmax.xlane.f32.xlu0 %v2259
        %v2261 = vpop.xlane.xlu0 %2260
        %v2262 = vmax.f32 %v2201, %v2203
        %2263 = vmax.xlane.f32.xlu0 %v2262
        %v2264 = vpop.xlane.xlu0 %2263
        %v2265 = vmax.f32 %v2207, %v2209
        %2266 = vmax.xlane.f32.xlu0 %v2265
        %v2267 = vpop.xlane.xlu0 %2266
        %v2268 = vmax.f32 %v2213, %v2215
        %2269 = vmax.xlane.f32.xlu0 %v2268
        %v2270 = vpop.xlane.xlu0 %2269
        %v2271 = vmax.f32 %v2219, %v2221
        %2272 = vmax.xlane.f32.xlu0 %v2271
        %v2273 = vpop.xlane.xlu0 %2272
        %v2274 = vmax.f32 %v2225, %v2227
        %2275 = vmax.xlane.f32.xlu0 %v2274
        %v2276 = vpop.xlane.xlu0 %2275
        %v2277 = vsub.f32 %v2135, %v2231
        %v2278 = vsub.f32 %v2137, %v2231
        %v2279 = vsub.f32 %v2141, %v2234
        %v2280 = vsub.f32 %v2143, %v2234
        %v2281 = vsub.f32 %v2147, %v2237
        %v2282 = vsub.f32 %v2149, %v2237
        %v2283 = vsub.f32 %v2153, %v2240
        %v2284 = vsub.f32 %v2155, %v2240
        %v2285 = vsub.f32 %v2159, %v2243
        %v2286 = vsub.f32 %v2161, %v2243
        %v2287 = vsub.f32 %v2165, %v2246
        %v2288 = vsub.f32 %v2167, %v2246
        %v2289 = vsub.f32 %v2171, %v2249
        %v2290 = vsub.f32 %v2173, %v2249
        %v2291 = vsub.f32 %v2177, %v2252
        %v2292 = vsub.f32 %v2179, %v2252
        %v2293 = vsub.f32 %v2183, %v2255
        %v2294 = vsub.f32 %v2185, %v2255
        %v2295 = vsub.f32 %v2189, %v2258
        %v2296 = vsub.f32 %v2191, %v2258
        %v2297 = vsub.f32 %v2195, %v2261
        %v2298 = vsub.f32 %v2197, %v2261
        %v2299 = vsub.f32 %v2201, %v2264
        %v2300 = vsub.f32 %v2203, %v2264
        %v2301 = vsub.f32 %v2207, %v2267
        %v2302 = vsub.f32 %v2209, %v2267
        %v2303 = vsub.f32 %v2213, %v2270
        %v2304 = vsub.f32 %v2215, %v2270
        %v2305 = vsub.f32 %v2219, %v2273
        %v2306 = vsub.f32 %v2221, %v2273
        %v2307 = vsub.f32 %v2225, %v2276
        %v2308 = vsub.f32 %v2227, %v2276
        %v2309 = vmul.f32 %v2277, 1.442695
        %v2310 = vpow.pop %v2309
        %v2311 = vmul.f32 %v2278, 1.442695
        %v2312 = vpow.pop %v2311
        %v2313 = vmul.f32 %v2279, 1.442695
        %v2314 = vpow.pop %v2313
        %v2315 = vmul.f32 %v2280, 1.442695
        %v2316 = vpow.pop %v2315
        %v2317 = vmul.f32 %v2281, 1.442695
        %v2318 = vpow.pop %v2317
        %v2319 = vmul.f32 %v2282, 1.442695
        %v2320 = vpow.pop %v2319
        %v2321 = vmul.f32 %v2283, 1.442695
        %v2322 = vpow.pop %v2321
        %v2323 = vmul.f32 %v2284, 1.442695
        %v2324 = vpow.pop %v2323
        %v2325 = vmul.f32 %v2285, 1.442695
        %v2326 = vpow.pop %v2325
        %v2327 = vmul.f32 %v2286, 1.442695
        %v2328 = vpow.pop %v2327
        %v2329 = vmul.f32 %v2287, 1.442695
        %v2330 = vpow.pop %v2329
        %v2331 = vmul.f32 %v2288, 1.442695
        %v2332 = vpow.pop %v2331
        %v2333 = vmul.f32 %v2289, 1.442695
        %v2334 = vpow.pop %v2333
        %v2335 = vmul.f32 %v2290, 1.442695
        %v2336 = vpow.pop %v2335
        %v2337 = vmul.f32 %v2291, 1.442695
        %v2338 = vpow.pop %v2337
        %v2339 = vmul.f32 %v2292, 1.442695
        %v2340 = vpow.pop %v2339
        %v2341 = vmul.f32 %v2293, 1.442695
        %v2342 = vpow.pop %v2341
        %v2343 = vmul.f32 %v2294, 1.442695
        %v2344 = vpow.pop %v2343
        %v2345 = vmul.f32 %v2295, 1.442695
        %v2346 = vpow.pop %v2345
        %v2347 = vmul.f32 %v2296, 1.442695
        %v2348 = vpow.pop %v2347
        %v2349 = vmul.f32 %v2297, 1.442695
        %v2350 = vpow.pop %v2349
        %v2351 = vmul.f32 %v2298, 1.442695
        %v2352 = vpow.pop %v2351
        %v2353 = vmul.f32 %v2299, 1.442695
        %v2354 = vpow.pop %v2353
        %v2355 = vmul.f32 %v2300, 1.442695
        %v2356 = vpow.pop %v2355
        %v2357 = vmul.f32 %v2301, 1.442695
        %v2358 = vpow.pop %v2357
        %v2359 = vmul.f32 %v2302, 1.442695
        %v2360 = vpow.pop %v2359
        %v2361 = vmul.f32 %v2303, 1.442695
        %v2362 = vpow.pop %v2361
        %v2363 = vmul.f32 %v2304, 1.442695
        %v2364 = vpow.pop %v2363
        %v2365 = vmul.f32 %v2305, 1.442695
        %v2366 = vpow.pop %v2365
        %v2367 = vmul.f32 %v2306, 1.442695
        %v2368 = vpow.pop %v2367
        %v2369 = vmul.f32 %v2307, 1.442695
        %v2370 = vpow.pop %v2369
        %v2371 = vmul.f32 %v2308, 1.442695
        %v2372 = vpow.pop %v2371
        %v2373 = vadd.f32 %v2310, %v2312
        %2374 = vadd.xlane.f32.xlu0 %v2373
        %v2375 = vpop.xlane.xlu0 %2374
        %v2376 = vadd.f32 %v2314, %v2316
        %2377 = vadd.xlane.f32.xlu0 %v2376
        %v2378 = vpop.xlane.xlu0 %2377
        %v2379 = vadd.f32 %v2318, %v2320
        %2380 = vadd.xlane.f32.xlu0 %v2379
        %v2381 = vpop.xlane.xlu0 %2380
        %v2382 = vadd.f32 %v2322, %v2324
        %2383 = vadd.xlane.f32.xlu0 %v2382
        %v2384 = vpop.xlane.xlu0 %2383
        %v2385 = vadd.f32 %v2326, %v2328
        %2386 = vadd.xlane.f32.xlu0 %v2385
        %v2387 = vpop.xlane.xlu0 %2386
        %v2388 = vadd.f32 %v2330, %v2332
        %2389 = vadd.xlane.f32.xlu0 %v2388
        %v2390 = vpop.xlane.xlu0 %2389
        %v2391 = vadd.f32 %v2334, %v2336
        %2392 = vadd.xlane.f32.xlu0 %v2391
        %v2393 = vpop.xlane.xlu0 %2392
        %v2394 = vadd.f32 %v2338, %v2340
        %2395 = vadd.xlane.f32.xlu0 %v2394
        %v2396 = vpop.xlane.xlu0 %2395
        %v2397 = vadd.f32 %v2342, %v2344
        %2398 = vadd.xlane.f32.xlu0 %v2397
        %v2399 = vpop.xlane.xlu0 %2398
        %v2400 = vadd.f32 %v2346, %v2348
        %2401 = vadd.xlane.f32.xlu0 %v2400
        %v2402 = vpop.xlane.xlu0 %2401
        %v2403 = vadd.f32 %v2350, %v2352
        %2404 = vadd.xlane.f32.xlu0 %v2403
        %v2405 = vpop.xlane.xlu0 %2404
        %v2406 = vadd.f32 %v2354, %v2356
        %2407 = vadd.xlane.f32.xlu0 %v2406
        %v2408 = vpop.xlane.xlu0 %2407
        %v2409 = vadd.f32 %v2358, %v2360
        %2410 = vadd.xlane.f32.xlu0 %v2409
        %v2411 = vpop.xlane.xlu0 %2410
        %v2412 = vadd.f32 %v2362, %v2364
        %2413 = vadd.xlane.f32.xlu0 %v2412
        %v2414 = vpop.xlane.xlu0 %2413
        %v2415 = vadd.f32 %v2366, %v2368
        %2416 = vadd.xlane.f32.xlu0 %v2415
        %v2417 = vpop.xlane.xlu0 %2416
        %v2418 = vadd.f32 %v2370, %v2372
        %2419 = vadd.xlane.f32.xlu0 %v2418
        %v2420 = vpop.xlane.xlu0 %2419
        %v2421 = vrcp.pop %v2375
        %v2422 = vrcp.pop %v2378
        %v2423 = vrcp.pop %v2381
        %v2424 = vrcp.pop %v2384
        %v2425 = vrcp.pop %v2387
        %v2426 = vrcp.pop %v2390
        %v2427 = vrcp.pop %v2393
        %v2428 = vrcp.pop %v2396
        %v2429 = vrcp.pop %v2399
        %v2430 = vrcp.pop %v2402
        %v2431 = vrcp.pop %v2405
        %v2432 = vrcp.pop %v2408
        %v2433 = vrcp.pop %v2411
        %v2434 = vrcp.pop %v2414
        %v2435 = vrcp.pop %v2417
        %v2436 = vrcp.pop %v2420
        %v2437 = vmul.f32 %v2310, %v2421
        %v2438 = vmul.f32 %v2312, %v2421
        %v2439 = vmul.f32 %v2314, %v2422
        %v2440 = vmul.f32 %v2316, %v2422
        %v2441 = vmul.f32 %v2318, %v2423
        %v2442 = vmul.f32 %v2320, %v2423
        %v2443 = vmul.f32 %v2322, %v2424
        %v2444 = vmul.f32 %v2324, %v2424
        %v2445 = vmul.f32 %v2326, %v2425
        %v2446 = vmul.f32 %v2328, %v2425
        %v2447 = vmul.f32 %v2330, %v2426
        %v2448 = vmul.f32 %v2332, %v2426
        %v2449 = vmul.f32 %v2334, %v2427
        %v2450 = vmul.f32 %v2336, %v2427
        %v2451 = vmul.f32 %v2338, %v2428
        %v2452 = vmul.f32 %v2340, %v2428
        %v2453 = vmul.f32 %v2342, %v2429
        %v2454 = vmul.f32 %v2344, %v2429
        %v2455 = vmul.f32 %v2346, %v2430
        %v2456 = vmul.f32 %v2348, %v2430
        %v2457 = vmul.f32 %v2350, %v2431
        %v2458 = vmul.f32 %v2352, %v2431
        %v2459 = vmul.f32 %v2354, %v2432
        %v2460 = vmul.f32 %v2356, %v2432
        %v2461 = vmul.f32 %v2358, %v2433
        %v2462 = vmul.f32 %v2360, %v2433
        %v2463 = vmul.f32 %v2362, %v2434
        %v2464 = vmul.f32 %v2364, %v2434
        %v2465 = vmul.f32 %v2366, %v2435
        %v2466 = vmul.f32 %v2368, %v2435
        %v2467 = vmul.f32 %v2370, %v2436
        %v2468 = vmul.f32 %v2372, %v2436
        %2501 = vrot.lane.b32.xlu0 %v1361, 64
        %v2502 = vpop.permute.xlu0 %2501
        %2503 = vrot.lane.b32.xlu0 %v1362, 64
        %v2504 = vpop.permute.xlu0 %2503
        %2505 = vrot.lane.b32.xlu0 %v1363, 64
        %v2506 = vpop.permute.xlu0 %2505
        %2507 = vrot.lane.b32.xlu0 %v1364, 64
        %v2508 = vpop.permute.xlu0 %2507
        %2509 = vrot.lane.b32.xlu0 %v1365, 64
        %v2510 = vpop.permute.xlu0 %2509
        %2511 = vrot.lane.b32.xlu0 %v1366, 64
        %v2512 = vpop.permute.xlu0 %2511
        %2513 = vrot.lane.b32.xlu0 %v1367, 64
        %v2514 = vpop.permute.xlu0 %2513
        %2515 = vrot.lane.b32.xlu0 %v1368, 64
        %v2516 = vpop.permute.xlu0 %2515
        %2517 = vrot.lane.b32.xlu0 %v1369, 64
        %v2518 = vpop.permute.xlu0 %2517
        %2519 = vrot.lane.b32.xlu0 %v1370, 64
        %v2520 = vpop.permute.xlu0 %2519
        %2521 = vrot.lane.b32.xlu0 %v1371, 64
        %v2522 = vpop.permute.xlu0 %2521
        %2523 = vrot.lane.b32.xlu0 %v1372, 64
        %v2524 = vpop.permute.xlu0 %2523
        %2525 = vrot.lane.b32.xlu0 %v1373, 64
        %v2526 = vpop.permute.xlu0 %2525
        %2527 = vrot.lane.b32.xlu0 %v1374, 64
        %v2528 = vpop.permute.xlu0 %2527
        %2529 = vrot.lane.b32.xlu0 %v1375, 64
        %v2530 = vpop.permute.xlu0 %2529
        %2531 = vrot.lane.b32.xlu0 %v1376, 64
        %v2532 = vpop.permute.xlu0 %2531
        %2533 = vrot.lane.b32.xlu0 %v1377, 64
        %v2534 = vpop.permute.xlu0 %2533
        %2535 = vrot.lane.b32.xlu0 %v1378, 64
        %v2536 = vpop.permute.xlu0 %2535
        %2537 = vrot.lane.b32.xlu0 %v1379, 64
        %v2538 = vpop.permute.xlu0 %2537
        %2539 = vrot.lane.b32.xlu0 %v1380, 64
        %v2540 = vpop.permute.xlu0 %2539
        %2541 = vrot.lane.b32.xlu0 %v1381, 64
        %v2542 = vpop.permute.xlu0 %2541
        %2543 = vrot.lane.b32.xlu0 %v1382, 64
        %v2544 = vpop.permute.xlu0 %2543
        %2545 = vrot.lane.b32.xlu0 %v1383, 64
        %v2546 = vpop.permute.xlu0 %2545
        %2547 = vrot.lane.b32.xlu0 %v1384, 64
        %v2548 = vpop.permute.xlu0 %2547
        %2549 = vrot.lane.b32.xlu0 %v1385, 64
        %v2550 = vpop.permute.xlu0 %2549
        %2551 = vrot.lane.b32.xlu0 %v1386, 64
        %v2552 = vpop.permute.xlu0 %2551
        %2553 = vrot.lane.b32.xlu0 %v1387, 64
        %v2554 = vpop.permute.xlu0 %2553
        %2555 = vrot.lane.b32.xlu0 %v1388, 64
        %v2556 = vpop.permute.xlu0 %2555
        %2557 = vrot.lane.b32.xlu0 %v1389, 64
        %v2558 = vpop.permute.xlu0 %2557
        %2559 = vrot.lane.b32.xlu0 %v1390, 64
        %v2560 = vpop.permute.xlu0 %2559
        %2561 = vrot.lane.b32.xlu0 %v1391, 64
        %v2562 = vpop.permute.xlu0 %2561
        %2563 = vrot.lane.b32.xlu0 %v1392, 64
        %v2564 = vpop.permute.xlu0 %2563
        %2597 = vmatprep.subr.mxu0 0.0
        %2598 = vmatpush1.msra.mxu0 %v2532
        %2599 = vmatprep.subr.mxu0 0.0
        %2600 = vmatpush1.msra.mxu0 %v2530
        %2601 = vmatprep.subr.mxu0 0.0
        %2602 = vmatpush1.msra.mxu0 %v2528
        %2603 = vmatprep.subr.mxu0 0.0
        %2604 = vmatpush1.msra.mxu0 %v2526
        %2605 = vmatprep.subr.mxu0 0.0
        %2606 = vmatpush1.msra.mxu0 %v2524
        %2607 = vmatprep.subr.mxu0 0.0
        %2608 = vmatpush1.msra.mxu0 %v2522
        %2609 = vmatprep.subr.mxu0 0.0
        %2610 = vmatpush1.msra.mxu0 %v2520
        %2611 = vmatprep.subr.mxu0 0.0
        %2612 = vmatpush1.msra.mxu0 %v2518
        %2613 = vmatprep.subr.mxu0 0.0
        %2614 = vmatpush1.msra.mxu0 %v2516
        %2615 = vmatprep.subr.mxu0 0.0
        %2616 = vmatpush1.msra.mxu0 %v2514
        %2617 = vmatprep.subr.mxu0 0.0
        %2618 = vmatpush1.msra.mxu0 %v2512
        %2619 = vmatprep.subr.mxu0 0.0
        %2620 = vmatpush1.msra.mxu0 %v2510
        %2621 = vmatprep.subr.mxu0 0.0
        %2622 = vmatpush1.msra.mxu0 %v2508
        %2623 = vmatprep.subr.mxu0 0.0
        %2624 = vmatpush1.msra.mxu0 %v2506
        %2625 = vmatprep.subr.mxu0 0.0
        %2626 = vmatpush1.msra.mxu0 %v2504
        %2627 = vmatprep.subr.mxu0 0.0
        %2628 = vmatpush1.msra.mxu0 %v2502
        %2629 = vmatprep.subr.mxu0 0.0
        %2630 = vmatpush2.msra.mxu0 %v2564
        %2631 = vmatprep.subr.mxu0 0.0
        %2632 = vmatpush2.msra.mxu0 %v2562
        %2633 = vmatprep.subr.mxu0 0.0
        %2634 = vmatpush2.msra.mxu0 %v2560
        %2635 = vmatprep.subr.mxu0 0.0
        %2636 = vmatpush2.msra.mxu0 %v2558
        %2637 = vmatprep.subr.mxu0 0.0
        %2638 = vmatpush2.msra.mxu0 %v2556
        %2639 = vmatprep.subr.mxu0 0.0
        %2640 = vmatpush2.msra.mxu0 %v2554
        %2641 = vmatprep.subr.mxu0 0.0
        %2642 = vmatpush2.msra.mxu0 %v2552
        %2643 = vmatprep.subr.mxu0 0.0
        %2644 = vmatpush2.msra.mxu0 %v2550
        %2645 = vmatprep.subr.mxu0 0.0
        %2646 = vmatpush2.msra.mxu0 %v2548
        %2647 = vmatprep.subr.mxu0 0.0
        %2648 = vmatpush2.msra.mxu0 %v2546
        %2649 = vmatprep.subr.mxu0 0.0
        %2650 = vmatpush2.msra.mxu0 %v2544
        %2651 = vmatprep.subr.mxu0 0.0
        %2652 = vmatpush2.msra.mxu0 %v2542
        %2653 = vmatprep.subr.mxu0 0.0
        %2654 = vmatpush2.msra.mxu0 %v2540
        %2655 = vmatprep.subr.mxu0 0.0
        %2656 = vmatpush2.msra.mxu0 %v2538
        %2657 = vmatprep.subr.mxu0 0.0
        %2658 = vmatpush2.msra.mxu0 %v2536
        %2659 = vmatprep.subr.mxu0 0.0
        %2660 = vmatpush2.msra.mxu0 %v2534
        %2661 = vmatprep.mubr.f32.mxu0 %v2438
        %2662 = vmatmul.mubr.f32.gmra.mxu0 %v2437
        %v2663 = vpop.f32.mrf.mxu0
        %v2664 = vadd.f32 0.0, %v2663
        %v2665 = vpop.f32.mrf.mxu0
        %2666 = vmatprep.mubr.f32.mxu0 %v2440
        %2667 = vmatmul.mubr.f32.gmra.mxu0 %v2439
        %v2668 = vpop.f32.mrf.mxu0
        %v2669 = vadd.f32 0.0, %v2668
        %v2670 = vpop.f32.mrf.mxu0
        %2671 = vmatprep.mubr.f32.mxu0 %v2442
        %2672 = vmatmul.mubr.f32.gmra.mxu0 %v2441
        %v2673 = vpop.f32.mrf.mxu0
        %v2674 = vadd.f32 0.0, %v2673
        %v2675 = vpop.f32.mrf.mxu0
        %2676 = vmatprep.mubr.f32.mxu0 %v2444
        %2677 = vmatmul.mubr.f32.gmra.mxu0 %v2443
        %v2678 = vpop.f32.mrf.mxu0
        %v2679 = vadd.f32 0.0, %v2678
        %v2680 = vpop.f32.mrf.mxu0
        %2681 = vmatprep.mubr.f32.mxu0 %v2446
        %2682 = vmatmul.mubr.f32.gmra.mxu0 %v2445
        %v2683 = vpop.f32.mrf.mxu0
        %v2684 = vadd.f32 0.0, %v2683
        %v2685 = vpop.f32.mrf.mxu0
        %2686 = vmatprep.mubr.f32.mxu0 %v2448
        %2687 = vmatmul.mubr.f32.gmra.mxu0 %v2447
        %v2688 = vpop.f32.mrf.mxu0
        %v2689 = vadd.f32 0.0, %v2688
        %v2690 = vpop.f32.mrf.mxu0
        %2691 = vmatprep.mubr.f32.mxu0 %v2450
        %2692 = vmatmul.mubr.f32.gmra.mxu0 %v2449
        %v2693 = vpop.f32.mrf.mxu0
        %v2694 = vadd.f32 0.0, %v2693
        %v2695 = vpop.f32.mrf.mxu0
        %2696 = vmatprep.mubr.f32.mxu0 %v2452
        %2697 = vmatmul.mubr.f32.gmra.mxu0 %v2451
        %v2698 = vpop.f32.mrf.mxu0
        %v2699 = vadd.f32 0.0, %v2698
        %v2700 = vpop.f32.mrf.mxu0
        %2701 = vmatprep.mubr.f32.mxu0 %v2454
        %2702 = vmatmul.mubr.f32.gmra.mxu0 %v2453
        %v2703 = vpop.f32.mrf.mxu0
        %v2704 = vadd.f32 0.0, %v2703
        %v2705 = vpop.f32.mrf.mxu0
        %2706 = vmatprep.mubr.f32.mxu0 %v2456
        %2707 = vmatmul.mubr.f32.gmra.mxu0 %v2455
        %v2708 = vpop.f32.mrf.mxu0
        %v2709 = vadd.f32 0.0, %v2708
        %v2710 = vpop.f32.mrf.mxu0
        %2711 = vmatprep.mubr.f32.mxu0 %v2458
        %2712 = vmatmul.mubr.f32.gmra.mxu0 %v2457
        %v2713 = vpop.f32.mrf.mxu0
        %v2714 = vadd.f32 0.0, %v2713
        %v2715 = vpop.f32.mrf.mxu0
        %2716 = vmatprep.mubr.f32.mxu0 %v2460
        %2717 = vmatmul.mubr.f32.gmra.mxu0 %v2459
        %v2718 = vpop.f32.mrf.mxu0
        %v2719 = vadd.f32 0.0, %v2718
        %v2720 = vpop.f32.mrf.mxu0
        %2721 = vmatprep.mubr.f32.mxu0 %v2462
        %2722 = vmatmul.mubr.f32.gmra.mxu0 %v2461
        %v2723 = vpop.f32.mrf.mxu0
        %v2724 = vadd.f32 0.0, %v2723
        %v2725 = vpop.f32.mrf.mxu0
        %2726 = vmatprep.mubr.f32.mxu0 %v2464
        %2727 = vmatmul.mubr.f32.gmra.mxu0 %v2463
        %v2728 = vpop.f32.mrf.mxu0
        %v2729 = vadd.f32 0.0, %v2728
        %v2730 = vpop.f32.mrf.mxu0
        %2731 = vmatprep.mubr.f32.mxu0 %v2466
        %2732 = vmatmul.mubr.f32.gmra.mxu0 %v2465
        %v2733 = vpop.f32.mrf.mxu0
        %v2734 = vadd.f32 0.0, %v2733
        %v2735 = vpop.f32.mrf.mxu0
        %2736 = vmatprep.mubr.f32.mxu0 %v2468
        %2737 = vmatmul.mubr.f32.gmra.mxu0 %v2467
        %v2738 = vpop.f32.mrf.mxu0
        %v2739 = vadd.f32 0.0, %v2738
        %v2740 = vpop.f32.mrf.mxu0
        %2741 = vdwg.mxu0
        %2758 = vrot.lane.b32.xlu0 %v2664, 64
        %v2759 = vpop.permute.xlu0 %2758
        %2760 = vrot.lane.b32.xlu0 %v2669, 64
        %v2761 = vpop.permute.xlu0 %2760
        %2762 = vrot.lane.b32.xlu0 %v2674, 64
        %v2763 = vpop.permute.xlu0 %2762
        %2764 = vrot.lane.b32.xlu0 %v2679, 64
        %v2765 = vpop.permute.xlu0 %2764
        %2766 = vrot.lane.b32.xlu0 %v2684, 64
        %v2767 = vpop.permute.xlu0 %2766
        %2768 = vrot.lane.b32.xlu0 %v2689, 64
        %v2769 = vpop.permute.xlu0 %2768
        %2770 = vrot.lane.b32.xlu0 %v2694, 64
        %v2771 = vpop.permute.xlu0 %2770
        %2772 = vrot.lane.b32.xlu0 %v2699, 64
        %v2773 = vpop.permute.xlu0 %2772
        %2774 = vrot.lane.b32.xlu0 %v2704, 64
        %v2775 = vpop.permute.xlu0 %2774
        %2776 = vrot.lane.b32.xlu0 %v2709, 64
        %v2777 = vpop.permute.xlu0 %2776
        %2778 = vrot.lane.b32.xlu0 %v2714, 64
        %v2779 = vpop.permute.xlu0 %2778
        %2780 = vrot.lane.b32.xlu0 %v2719, 64
        %v2781 = vpop.permute.xlu0 %2780
        %2782 = vrot.lane.b32.xlu0 %v2724, 64
        %v2783 = vpop.permute.xlu0 %2782
        %2784 = vrot.lane.b32.xlu0 %v2729, 64
        %v2785 = vpop.permute.xlu0 %2784
        %2786 = vrot.lane.b32.xlu0 %v2734, 64
        %v2787 = vpop.permute.xlu0 %2786
        %2788 = vrot.lane.b32.xlu0 %v2739, 64
        %v2789 = vpop.permute.xlu0 %2788
        %v2806 = vsel %vm1393, %v1910, %v2759
        %v2807 = vsel %vm1393, %v1915, %v2761
        %v2808 = vsel %vm1393, %v1920, %v2763
        %v2809 = vsel %vm1393, %v1925, %v2765
        %v2810 = vsel %vm1393, %v1930, %v2767
        %v2811 = vsel %vm1393, %v1935, %v2769
        %v2812 = vsel %vm1393, %v1940, %v2771
        %v2813 = vsel %vm1393, %v1945, %v2773
        %v2814 = vsel %vm1393, %v1950, %v2775
        %v2815 = vsel %vm1393, %v1955, %v2777
        %v2816 = vsel %vm1393, %v1960, %v2779
        %v2817 = vsel %vm1393, %v1965, %v2781
        %v2818 = vsel %vm1393, %v1970, %v2783
        %v2819 = vsel %vm1393, %v1975, %v2785
        %v2820 = vsel %vm1393, %v1980, %v2787
        %v2821 = vsel %vm1393, %v1985, %v2789
        %2822 = vst [vmem:[#allocation4] sm:$0xff] %v2806
        %2823 = vst [vmem:[#allocation4 + $0x8] sm:$0xff] %v2807
        %2824 = vst [vmem:[#allocation4 + $0x10] sm:$0xff] %v2808
        %2825 = vst [vmem:[#allocation4 + $0x18] sm:$0xff] %v2809
        %2826 = vst [vmem:[#allocation4 + $0x20] sm:$0xff] %v2810
        %2827 = vst [vmem:[#allocation4 + $0x28] sm:$0xff] %v2811
        %2828 = vst [vmem:[#allocation4 + $0x30] sm:$0xff] %v2812
        %2829 = vst [vmem:[#allocation4 + $0x38] sm:$0xff] %v2813
        %2830 = vst [vmem:[#allocation4 + $0x40] sm:$0xff] %v2814
        %2831 = vst [vmem:[#allocation4 + $0x48] sm:$0xff] %v2815
        %2832 = vst [vmem:[#allocation4 + $0x50] sm:$0xff] %v2816
        %2833 = vst [vmem:[#allocation4 + $0x58] sm:$0xff] %v2817
        %2834 = vst [vmem:[#allocation4 + $0x60] sm:$0xff] %v2818
        %2835 = vst [vmem:[#allocation4 + $0x68] sm:$0xff] %v2819
        %2836 = vst [vmem:[#allocation4 + $0x70] sm:$0xff] %v2820
        %2837 = vst [vmem:[#allocation4 + $0x78] sm:$0xff] %v2821
        %v2838 = vld [vmem:[#allocation4] sm:$0xff]
        %v2839 = vld [vmem:[#allocation4 + $0x8] sm:$0xff]
        %v2840 = vld [vmem:[#allocation4 + $0x10] sm:$0xff]
        %v2841 = vld [vmem:[#allocation4 + $0x18] sm:$0xff]
        %v2842 = vld [vmem:[#allocation4 + $0x20] sm:$0xff]
        %v2843 = vld [vmem:[#allocation4 + $0x28] sm:$0xff]
        %v2844 = vld [vmem:[#allocation4 + $0x30] sm:$0xff]
        %v2845 = vld [vmem:[#allocation4 + $0x38] sm:$0xff]
        %v2846 = vld [vmem:[#allocation4 + $0x40] sm:$0xff]
        %v2847 = vld [vmem:[#allocation4 + $0x48] sm:$0xff]
        %v2848 = vld [vmem:[#allocation4 + $0x50] sm:$0xff]
        %v2849 = vld [vmem:[#allocation4 + $0x58] sm:$0xff]
        %v2850 = vld [vmem:[#allocation4 + $0x60] sm:$0xff]
        %v2851 = vld [vmem:[#allocation4 + $0x68] sm:$0xff]
        %v2852 = vld [vmem:[#allocation4 + $0x70] sm:$0xff]
        %v2853 = vld [vmem:[#allocation4 + $0x78] sm:$0xff]
        %v2854 = vld [vmem:[#allocation13] sm:$0xff]
        %v2855 = vld [vmem:[#allocation13 + $0x8] sm:$0xff]
        %v2856 = vld [vmem:[#allocation13 + $0x10] sm:$0xff]
        %v2857 = vld [vmem:[#allocation13 + $0x18] sm:$0xff]
        %v2858 = vld [vmem:[#allocation13 + $0x20] sm:$0xff]
        %v2859 = vld [vmem:[#allocation13 + $0x28] sm:$0xff]
        %v2860 = vld [vmem:[#allocation13 + $0x30] sm:$0xff]
        %v2861 = vld [vmem:[#allocation13 + $0x38] sm:$0xff]
        %v2862 = vld [vmem:[#allocation13 + $0x40] sm:$0xff]
        %v2863 = vld [vmem:[#allocation13 + $0x48] sm:$0xff]
        %v2864 = vld [vmem:[#allocation13 + $0x50] sm:$0xff]
        %v2865 = vld [vmem:[#allocation13 + $0x58] sm:$0xff]
        %v2866 = vld [vmem:[#allocation13 + $0x60] sm:$0xff]
        %v2867 = vld [vmem:[#allocation13 + $0x68] sm:$0xff]
        %v2868 = vld [vmem:[#allocation13 + $0x70] sm:$0xff]
        %v2869 = vld [vmem:[#allocation13 + $0x78] sm:$0xff]
        %v2870 = vld [vmem:[%s7] sm:$0x1]
        %v2872 = vlaneseq
        %v2873 = vshrl.u32 %v2872, 7
        %v2874 = vsub.s32 0, %v2873
        %v2875 = vrot.slane %v2870, %v2874
        %2877 = vmatprep.subr.mxu0 0.0
        %2878 = vmatpush1.msra.mxu0 %v2869
        %2879 = vmatprep.subr.mxu0 0.0
        %2880 = vmatpush1.msra.mxu0 %v2868
        %2881 = vmatprep.subr.mxu0 0.0
        %2882 = vmatpush1.msra.mxu0 %v2867
        %2883 = vmatprep.subr.mxu0 0.0
        %2884 = vmatpush1.msra.mxu0 %v2866
        %2885 = vmatprep.subr.mxu0 0.0
        %2886 = vmatpush1.msra.mxu0 %v2865
        %2887 = vmatprep.subr.mxu0 0.0
        %2888 = vmatpush1.msra.mxu0 %v2864
        %2889 = vmatprep.subr.mxu0 0.0
        %2890 = vmatpush1.msra.mxu0 %v2863
        %2891 = vmatprep.subr.mxu0 0.0
        %2892 = vmatpush1.msra.mxu0 %v2862
        %2893 = vmatprep.subr.mxu0 0.0
        %2894 = vmatpush1.msra.mxu0 %v2861
        %2895 = vmatprep.subr.mxu0 0.0
        %2896 = vmatpush1.msra.mxu0 %v2860
        %2897 = vmatprep.subr.mxu0 0.0
        %2898 = vmatpush1.msra.mxu0 %v2859
        %2899 = vmatprep.subr.mxu0 0.0
        %2900 = vmatpush1.msra.mxu0 %v2858
        %2901 = vmatprep.subr.mxu0 0.0
        %2902 = vmatpush1.msra.mxu0 %v2857
        %2903 = vmatprep.subr.mxu0 0.0
        %2904 = vmatpush1.msra.mxu0 %v2856
        %2905 = vmatprep.subr.mxu0 0.0
        %2906 = vmatpush1.msra.mxu0 %v2855
        %2907 = vmatprep.subr.mxu0 0.0
        %2908 = vmatpush1.msra.mxu0 %v2854
        %2909 = vmatprep.subr.mxu0 0.0
        %2910 = vmatpush2.msra.mxu0 0.0
        %2911 = vmatprep.subr.mxu0 0.0
        %2912 = vmatpush2.msra.mxu0 0.0
        %2913 = vmatprep.subr.mxu0 0.0
        %2914 = vmatpush2.msra.mxu0 0.0
        %2915 = vmatprep.subr.mxu0 0.0
        %2916 = vmatpush2.msra.mxu0 0.0
        %2917 = vmatprep.subr.mxu0 0.0
        %2918 = vmatpush2.msra.mxu0 0.0
        %2919 = vmatprep.subr.mxu0 0.0
        %2920 = vmatpush2.msra.mxu0 0.0
        %2921 = vmatprep.subr.mxu0 0.0
        %2922 = vmatpush2.msra.mxu0 0.0
        %2923 = vmatprep.subr.mxu0 0.0
        %2924 = vmatpush2.msra.mxu0 0.0
        %2925 = vmatprep.subr.mxu0 0.0
        %2926 = vmatpush2.msra.mxu0 0.0
        %2927 = vmatprep.subr.mxu0 0.0
        %2928 = vmatpush2.msra.mxu0 0.0
        %2929 = vmatprep.subr.mxu0 0.0
        %2930 = vmatpush2.msra.mxu0 0.0
        %2931 = vmatprep.subr.mxu0 0.0
        %2932 = vmatpush2.msra.mxu0 0.0
        %2933 = vmatprep.subr.mxu0 0.0
        %2934 = vmatpush2.msra.mxu0 0.0
        %2935 = vmatprep.subr.mxu0 0.0
        %2936 = vmatpush2.msra.mxu0 0.0
        %2937 = vmatprep.subr.mxu0 0.0
        %2938 = vmatpush2.msra.mxu0 0.0
        %2939 = vmatprep.subr.mxu0 0.0
        %2940 = vmatpush2.msra.mxu0 0.0
        %2941 = vmatprep.mubr.f32.mxu0 0.0
        %2942 = vmatmul.mubr.f32.gmra.mxu0 %v2838
        %v2943 = vpop.f32.mrf.mxu0
        %v2944 = vadd.f32 %v2875, %v2943
        %v2945 = vpop.f32.mrf.mxu0
        %2946 = vmatprep.mubr.f32.mxu0 0.0
        %2947 = vmatmul.mubr.f32.gmra.mxu0 %v2839
        %v2948 = vpop.f32.mrf.mxu0
        %v2949 = vadd.f32 %v2875, %v2948
        %v2950 = vpop.f32.mrf.mxu0
        %2951 = vmatprep.mubr.f32.mxu0 0.0
        %2952 = vmatmul.mubr.f32.gmra.mxu0 %v2840
        %v2953 = vpop.f32.mrf.mxu0
        %v2954 = vadd.f32 %v2875, %v2953
        %v2955 = vpop.f32.mrf.mxu0
        %2956 = vmatprep.mubr.f32.mxu0 0.0
        %2957 = vmatmul.mubr.f32.gmra.mxu0 %v2841
        %v2958 = vpop.f32.mrf.mxu0
        %v2959 = vadd.f32 %v2875, %v2958
        %v2960 = vpop.f32.mrf.mxu0
        %2961 = vmatprep.mubr.f32.mxu0 0.0
        %2962 = vmatmul.mubr.f32.gmra.mxu0 %v2842
        %v2963 = vpop.f32.mrf.mxu0
        %v2964 = vadd.f32 %v2875, %v2963
        %v2965 = vpop.f32.mrf.mxu0
        %2966 = vmatprep.mubr.f32.mxu0 0.0
        %2967 = vmatmul.mubr.f32.gmra.mxu0 %v2843
        %v2968 = vpop.f32.mrf.mxu0
        %v2969 = vadd.f32 %v2875, %v2968
        %v2970 = vpop.f32.mrf.mxu0
        %2971 = vmatprep.mubr.f32.mxu0 0.0
        %2972 = vmatmul.mubr.f32.gmra.mxu0 %v2844
        %v2973 = vpop.f32.mrf.mxu0
        %v2974 = vadd.f32 %v2875, %v2973
        %v2975 = vpop.f32.mrf.mxu0
        %2976 = vmatprep.mubr.f32.mxu0 0.0
        %2977 = vmatmul.mubr.f32.gmra.mxu0 %v2845
        %v2978 = vpop.f32.mrf.mxu0
        %v2979 = vadd.f32 %v2875, %v2978
        %v2980 = vpop.f32.mrf.mxu0
        %2981 = vmatprep.mubr.f32.mxu0 0.0
        %2982 = vmatmul.mubr.f32.gmra.mxu0 %v2846
        %v2983 = vpop.f32.mrf.mxu0
        %v2984 = vadd.f32 %v2875, %v2983
        %v2985 = vpop.f32.mrf.mxu0
        %2986 = vmatprep.mubr.f32.mxu0 0.0
        %2987 = vmatmul.mubr.f32.gmra.mxu0 %v2847
        %v2988 = vpop.f32.mrf.mxu0
        %v2989 = vadd.f32 %v2875, %v2988
        %v2990 = vpop.f32.mrf.mxu0
        %2991 = vmatprep.mubr.f32.mxu0 0.0
        %2992 = vmatmul.mubr.f32.gmra.mxu0 %v2848
        %v2993 = vpop.f32.mrf.mxu0
        %v2994 = vadd.f32 %v2875, %v2993
        %v2995 = vpop.f32.mrf.mxu0
        %2996 = vmatprep.mubr.f32.mxu0 0.0
        %2997 = vmatmul.mubr.f32.gmra.mxu0 %v2849
        %v2998 = vpop.f32.mrf.mxu0
        %v2999 = vadd.f32 %v2875, %v2998
        %v3000 = vpop.f32.mrf.mxu0
        %3001 = vmatprep.mubr.f32.mxu0 0.0
        %3002 = vmatmul.mubr.f32.gmra.mxu0 %v2850
        %v3003 = vpop.f32.mrf.mxu0
        %v3004 = vadd.f32 %v2875, %v3003
        %v3005 = vpop.f32.mrf.mxu0
        %3006 = vmatprep.mubr.f32.mxu0 0.0
        %3007 = vmatmul.mubr.f32.gmra.mxu0 %v2851
        %v3008 = vpop.f32.mrf.mxu0
        %v3009 = vadd.f32 %v2875, %v3008
        %v3010 = vpop.f32.mrf.mxu0
        %3011 = vmatprep.mubr.f32.mxu0 0.0
        %3012 = vmatmul.mubr.f32.gmra.mxu0 %v2852
        %v3013 = vpop.f32.mrf.mxu0
        %v3014 = vadd.f32 %v2875, %v3013
        %v3015 = vpop.f32.mrf.mxu0
        %3016 = vmatprep.mubr.f32.mxu0 0.0
        %3017 = vmatmul.mubr.f32.gmra.mxu0 %v2853
        %v3018 = vpop.f32.mrf.mxu0
        %v3019 = vadd.f32 %v2875, %v3018
        %v3020 = vpop.f32.mrf.mxu0
        %3021 = vdwg.mxu0
        %v3022 = vadd.f32 %v2944, %v1132
        %v3023 = vadd.f32 %v2949, %v1133
        %v3024 = vadd.f32 %v2954, %v1134
        %v3025 = vadd.f32 %v2959, %v1135
        %v3026 = vadd.f32 %v2964, %v1136
        %v3027 = vadd.f32 %v2969, %v1137
        %v3028 = vadd.f32 %v2974, %v1138
        %v3029 = vadd.f32 %v2979, %v1139
        %v3030 = vadd.f32 %v2984, %v1140
        %v3031 = vadd.f32 %v2989, %v1141
        %v3032 = vadd.f32 %v2994, %v1142
        %v3033 = vadd.f32 %v2999, %v1143
        %v3034 = vadd.f32 %v3004, %v1144
        %v3035 = vadd.f32 %v3009, %v1145
        %v3036 = vadd.f32 %v3014, %v1146
        %v3037 = vadd.f32 %v3019, %v1147
        %3038 = vadd.xlane.f32.xlu0 %v3022
        %v3039 = vpop.xlane.xlu0 %3038
        %3040 = vadd.xlane.f32.xlu0 %v3023
        %v3041 = vpop.xlane.xlu0 %3040
        %3042 = vadd.xlane.f32.xlu0 %v3024
        %v3043 = vpop.xlane.xlu0 %3042
        %3044 = vadd.xlane.f32.xlu0 %v3025
        %v3045 = vpop.xlane.xlu0 %3044
        %3046 = vadd.xlane.f32.xlu0 %v3026
        %v3047 = vpop.xlane.xlu0 %3046
        %3048 = vadd.xlane.f32.xlu0 %v3027
        %v3049 = vpop.xlane.xlu0 %3048
        %3050 = vadd.xlane.f32.xlu0 %v3028
        %v3051 = vpop.xlane.xlu0 %3050
        %3052 = vadd.xlane.f32.xlu0 %v3029
        %v3053 = vpop.xlane.xlu0 %3052
        %3054 = vadd.xlane.f32.xlu0 %v3030
        %v3055 = vpop.xlane.xlu0 %3054
        %3056 = vadd.xlane.f32.xlu0 %v3031
        %v3057 = vpop.xlane.xlu0 %3056
        %3058 = vadd.xlane.f32.xlu0 %v3032
        %v3059 = vpop.xlane.xlu0 %3058
        %3060 = vadd.xlane.f32.xlu0 %v3033
        %v3061 = vpop.xlane.xlu0 %3060
        %3062 = vadd.xlane.f32.xlu0 %v3034
        %v3063 = vpop.xlane.xlu0 %3062
        %3064 = vadd.xlane.f32.xlu0 %v3035
        %v3065 = vpop.xlane.xlu0 %3064
        %3066 = vadd.xlane.f32.xlu0 %v3036
        %v3067 = vpop.xlane.xlu0 %3066
        %3068 = vadd.xlane.f32.xlu0 %v3037
        %v3069 = vpop.xlane.xlu0 %3068
        %v3070 = vrcp.pop 128.0
        %v3071 = vmul.f32 %v3039, %v3070
        %v3072 = vmul.f32 %v3041, %v3070
        %v3073 = vmul.f32 %v3043, %v3070
        %v3074 = vmul.f32 %v3045, %v3070
        %v3075 = vmul.f32 %v3047, %v3070
        %v3076 = vmul.f32 %v3049, %v3070
        %v3077 = vmul.f32 %v3051, %v3070
        %v3078 = vmul.f32 %v3053, %v3070
        %v3079 = vmul.f32 %v3055, %v3070
        %v3080 = vmul.f32 %v3057, %v3070
        %v3081 = vmul.f32 %v3059, %v3070
        %v3082 = vmul.f32 %v3061, %v3070
        %v3083 = vmul.f32 %v3063, %v3070
        %v3084 = vmul.f32 %v3065, %v3070
        %v3085 = vmul.f32 %v3067, %v3070
        %v3086 = vmul.f32 %v3069, %v3070
        %v3087 = vsub.f32 %v3022, %v3071
        %v3088 = vsub.f32 %v3023, %v3072
        %v3089 = vsub.f32 %v3024, %v3073
        %v3090 = vsub.f32 %v3025, %v3074
        %v3091 = vsub.f32 %v3026, %v3075
        %v3092 = vsub.f32 %v3027, %v3076
        %v3093 = vsub.f32 %v3028, %v3077
        %v3094 = vsub.f32 %v3029, %v3078
        %v3095 = vsub.f32 %v3030, %v3079
        %v3096 = vsub.f32 %v3031, %v3080
        %v3097 = vsub.f32 %v3032, %v3081
        %v3098 = vsub.f32 %v3033, %v3082
        %v3099 = vsub.f32 %v3034, %v3083
        %v3100 = vsub.f32 %v3035, %v3084
        %v3101 = vsub.f32 %v3036, %v3085
        %v3102 = vsub.f32 %v3037, %v3086
        %v3103 = vmul.f32 %v3087, %v3087
        %v3104 = vmul.f32 %v3088, %v3088
        %v3105 = vmul.f32 %v3089, %v3089
        %v3106 = vmul.f32 %v3090, %v3090
        %v3107 = vmul.f32 %v3091, %v3091
        %v3108 = vmul.f32 %v3092, %v3092
        %v3109 = vmul.f32 %v3093, %v3093
        %v3110 = vmul.f32 %v3094, %v3094
        %v3111 = vmul.f32 %v3095, %v3095
        %v3112 = vmul.f32 %v3096, %v3096
        %v3113 = vmul.f32 %v3097, %v3097
        %v3114 = vmul.f32 %v3098, %v3098
        %v3115 = vmul.f32 %v3099, %v3099
        %v3116 = vmul.f32 %v3100, %v3100
        %v3117 = vmul.f32 %v3101, %v3101
        %v3118 = vmul.f32 %v3102, %v3102
        %3119 = vadd.xlane.f32.xlu0 %v3103
        %v3120 = vpop.xlane.xlu0 %3119
        %3121 = vadd.xlane.f32.xlu0 %v3104
        %v3122 = vpop.xlane.xlu0 %3121
        %3123 = vadd.xlane.f32.xlu0 %v3105
        %v3124 = vpop.xlane.xlu0 %3123
        %3125 = vadd.xlane.f32.xlu0 %v3106
        %v3126 = vpop.xlane.xlu0 %3125
        %3127 = vadd.xlane.f32.xlu0 %v3107
        %v3128 = vpop.xlane.xlu0 %3127
        %3129 = vadd.xlane.f32.xlu0 %v3108
        %v3130 = vpop.xlane.xlu0 %3129
        %3131 = vadd.xlane.f32.xlu0 %v3109
        %v3132 = vpop.xlane.xlu0 %3131
        %3133 = vadd.xlane.f32.xlu0 %v3110
        %v3134 = vpop.xlane.xlu0 %3133
        %3135 = vadd.xlane.f32.xlu0 %v3111
        %v3136 = vpop.xlane.xlu0 %3135
        %3137 = vadd.xlane.f32.xlu0 %v3112
        %v3138 = vpop.xlane.xlu0 %3137
        %3139 = vadd.xlane.f32.xlu0 %v3113
        %v3140 = vpop.xlane.xlu0 %3139
        %3141 = vadd.xlane.f32.xlu0 %v3114
        %v3142 = vpop.xlane.xlu0 %3141
        %3143 = vadd.xlane.f32.xlu0 %v3115
        %v3144 = vpop.xlane.xlu0 %3143
        %3145 = vadd.xlane.f32.xlu0 %v3116
        %v3146 = vpop.xlane.xlu0 %3145
        %3147 = vadd.xlane.f32.xlu0 %v3117
        %v3148 = vpop.xlane.xlu0 %3147
        %3149 = vadd.xlane.f32.xlu0 %v3118
        %v3150 = vpop.xlane.xlu0 %3149
        %v3151 = vmul.f32 %v3120, %v3070
        %v3152 = vmul.f32 %v3122, %v3070
        %v3153 = vmul.f32 %v3124, %v3070
        %v3154 = vmul.f32 %v3126, %v3070
        %v3155 = vmul.f32 %v3128, %v3070
        %v3156 = vmul.f32 %v3130, %v3070
        %v3157 = vmul.f32 %v3132, %v3070
        %v3158 = vmul.f32 %v3134, %v3070
        %v3159 = vmul.f32 %v3136, %v3070
        %v3160 = vmul.f32 %v3138, %v3070
        %v3161 = vmul.f32 %v3140, %v3070
        %v3162 = vmul.f32 %v3142, %v3070
        %v3163 = vmul.f32 %v3144, %v3070
        %v3164 = vmul.f32 %v3146, %v3070
        %v3165 = vmul.f32 %v3148, %v3070
        %v3166 = vmul.f32 %v3150, %v3070
        %v3167 = vadd.f32 %v3151, 1e-12
        %v3168 = vadd.f32 %v3152, 1e-12
        %v3169 = vadd.f32 %v3153, 1e-12
        %v3170 = vadd.f32 %v3154, 1e-12
        %v3171 = vadd.f32 %v3155, 1e-12
        %v3172 = vadd.f32 %v3156, 1e-12
        %v3173 = vadd.f32 %v3157, 1e-12
        %v3174 = vadd.f32 %v3158, 1e-12
        %v3175 = vadd.f32 %v3159, 1e-12
        %v3176 = vadd.f32 %v3160, 1e-12
        %v3177 = vadd.f32 %v3161, 1e-12
        %v3178 = vadd.f32 %v3162, 1e-12
        %v3179 = vadd.f32 %v3163, 1e-12
        %v3180 = vadd.f32 %v3164, 1e-12
        %v3181 = vadd.f32 %v3165, 1e-12
        %v3182 = vadd.f32 %v3166, 1e-12
        %v3183 = vrsqrt.pop %v3167
        %v3184 = vrsqrt.pop %v3168
        %v3185 = vrsqrt.pop %v3169
        %v3186 = vrsqrt.pop %v3170
        %v3187 = vrsqrt.pop %v3171
        %v3188 = vrsqrt.pop %v3172
        %v3189 = vrsqrt.pop %v3173
        %v3190 = vrsqrt.pop %v3174
        %v3191 = vrsqrt.pop %v3175
        %v3192 = vrsqrt.pop %v3176
        %v3193 = vrsqrt.pop %v3177
        %v3194 = vrsqrt.pop %v3178
        %v3195 = vrsqrt.pop %v3179
        %v3196 = vrsqrt.pop %v3180
        %v3197 = vrsqrt.pop %v3181
        %v3198 = vrsqrt.pop %v3182
        %v3199 = vmul.f32 %v3087, %v3183
        %v3200 = vmul.f32 %v3088, %v3184
        %v3201 = vmul.f32 %v3089, %v3185
        %v3202 = vmul.f32 %v3090, %v3186
        %v3203 = vmul.f32 %v3091, %v3187
        %v3204 = vmul.f32 %v3092, %v3188
        %v3205 = vmul.f32 %v3093, %v3189
        %v3206 = vmul.f32 %v3094, %v3190
        %v3207 = vmul.f32 %v3095, %v3191
        %v3208 = vmul.f32 %v3096, %v3192
        %v3209 = vmul.f32 %v3097, %v3193
        %v3210 = vmul.f32 %v3098, %v3194
        %v3211 = vmul.f32 %v3099, %v3195
        %v3212 = vmul.f32 %v3100, %v3196
        %v3213 = vmul.f32 %v3101, %v3197
        %v3214 = vmul.f32 %v3102, %v3198
        %v3215 = vld [vmem:[%s8] sm:$0x1]
        %v3217 = vlaneseq
        %v3218 = vshrl.u32 %v3217, 7
        %v3219 = vsub.s32 0, %v3218
        %v3220 = vrot.slane %v3215, %v3219
        %v3222 = vmul.f32 %v3199, %v3220
        %v3223 = vmul.f32 %v3200, %v3220
        %v3224 = vmul.f32 %v3201, %v3220
        %v3225 = vmul.f32 %v3202, %v3220
        %v3226 = vmul.f32 %v3203, %v3220
        %v3227 = vmul.f32 %v3204, %v3220
        %v3228 = vmul.f32 %v3205, %v3220
        %v3229 = vmul.f32 %v3206, %v3220
        %v3230 = vmul.f32 %v3207, %v3220
        %v3231 = vmul.f32 %v3208, %v3220
        %v3232 = vmul.f32 %v3209, %v3220
        %v3233 = vmul.f32 %v3210, %v3220
        %v3234 = vmul.f32 %v3211, %v3220
        %v3235 = vmul.f32 %v3212, %v3220
        %v3236 = vmul.f32 %v3213, %v3220
        %v3237 = vmul.f32 %v3214, %v3220
        %v3238 = vld [vmem:[%s9] sm:$0x1]
        %v3240 = vlaneseq
        %v3241 = vshrl.u32 %v3240, 7
        %v3242 = vsub.s32 0, %v3241
        %v3243 = vrot.slane %v3238, %v3242
        %v3245 = vadd.f32 %v3222, %v3243
        %v3246 = vadd.f32 %v3223, %v3243
        %v3247 = vadd.f32 %v3224, %v3243
        %v3248 = vadd.f32 %v3225, %v3243
        %v3249 = vadd.f32 %v3226, %v3243
        %v3250 = vadd.f32 %v3227, %v3243
        %v3251 = vadd.f32 %v3228, %v3243
        %v3252 = vadd.f32 %v3229, %v3243
        %v3253 = vadd.f32 %v3230, %v3243
        %v3254 = vadd.f32 %v3231, %v3243
        %v3255 = vadd.f32 %v3232, %v3243
        %v3256 = vadd.f32 %v3233, %v3243
        %v3257 = vadd.f32 %v3234, %v3243
        %v3258 = vadd.f32 %v3235, %v3243
        %v3259 = vadd.f32 %v3236, %v3243
        %v3260 = vadd.f32 %v3237, %v3243
        %v3261 = vld [vmem:[#allocation14] sm:$0xff]
        %v3262 = vld [vmem:[#allocation14 + $0x8] sm:$0xff]
        %v3263 = vld [vmem:[#allocation14 + $0x10] sm:$0xff]
        %v3264 = vld [vmem:[#allocation14 + $0x18] sm:$0xff]
        %v3265 = vld [vmem:[#allocation14 + $0x20] sm:$0xff]
        %v3266 = vld [vmem:[#allocation14 + $0x28] sm:$0xff]
        %v3267 = vld [vmem:[#allocation14 + $0x30] sm:$0xff]
        %v3268 = vld [vmem:[#allocation14 + $0x38] sm:$0xff]
        %v3269 = vld [vmem:[#allocation14 + $0x40] sm:$0xff]
        %v3270 = vld [vmem:[#allocation14 + $0x48] sm:$0xff]
        %v3271 = vld [vmem:[#allocation14 + $0x50] sm:$0xff]
        %v3272 = vld [vmem:[#allocation14 + $0x58] sm:$0xff]
        %v3273 = vld [vmem:[#allocation14 + $0x60] sm:$0xff]
        %v3274 = vld [vmem:[#allocation14 + $0x68] sm:$0xff]
        %v3275 = vld [vmem:[#allocation14 + $0x70] sm:$0xff]
        %v3276 = vld [vmem:[#allocation14 + $0x78] sm:$0xff]
        %v3277 = vld [vmem:[#allocation14 + $0x80] sm:$0xff]
        %v3278 = vld [vmem:[#allocation14 + $0x88] sm:$0xff]
        %v3279 = vld [vmem:[#allocation14 + $0x90] sm:$0xff]
        %v3280 = vld [vmem:[#allocation14 + $0x98] sm:$0xff]
        %v3281 = vld [vmem:[#allocation14 + $0xa0] sm:$0xff]
        %v3282 = vld [vmem:[#allocation14 + $0xa8] sm:$0xff]
        %v3283 = vld [vmem:[#allocation14 + $0xb0] sm:$0xff]
        %v3284 = vld [vmem:[#allocation14 + $0xb8] sm:$0xff]
        %v3285 = vld [vmem:[#allocation14 + $0xc0] sm:$0xff]
        %v3286 = vld [vmem:[#allocation14 + $0xc8] sm:$0xff]
        %v3287 = vld [vmem:[#allocation14 + $0xd0] sm:$0xff]
        %v3288 = vld [vmem:[#allocation14 + $0xd8] sm:$0xff]
        %v3289 = vld [vmem:[#allocation14 + $0xe0] sm:$0xff]
        %v3290 = vld [vmem:[#allocation14 + $0xe8] sm:$0xff]
        %v3291 = vld [vmem:[#allocation14 + $0xf0] sm:$0xff]
        %v3292 = vld [vmem:[#allocation14 + $0xf8] sm:$0xff]
        %v3293 = vld [vmem:[#allocation14 + $0x100] sm:$0xff]
        %v3294 = vld [vmem:[#allocation14 + $0x108] sm:$0xff]
        %v3295 = vld [vmem:[#allocation14 + $0x110] sm:$0xff]
        %v3296 = vld [vmem:[#allocation14 + $0x118] sm:$0xff]
        %v3297 = vld [vmem:[#allocation14 + $0x120] sm:$0xff]
        %v3298 = vld [vmem:[#allocation14 + $0x128] sm:$0xff]
        %v3299 = vld [vmem:[#allocation14 + $0x130] sm:$0xff]
        %v3300 = vld [vmem:[#allocation14 + $0x138] sm:$0xff]
        %v3301 = vld [vmem:[#allocation14 + $0x140] sm:$0xff]
        %v3302 = vld [vmem:[#allocation14 + $0x148] sm:$0xff]
        %v3303 = vld [vmem:[#allocation14 + $0x150] sm:$0xff]
        %v3304 = vld [vmem:[#allocation14 + $0x158] sm:$0xff]
        %v3305 = vld [vmem:[#allocation14 + $0x160] sm:$0xff]
        %v3306 = vld [vmem:[#allocation14 + $0x168] sm:$0xff]
        %v3307 = vld [vmem:[#allocation14 + $0x170] sm:$0xff]
        %v3308 = vld [vmem:[#allocation14 + $0x178] sm:$0xff]
        %v3309 = vld [vmem:[#allocation14 + $0x180] sm:$0xff]
        %v3310 = vld [vmem:[#allocation14 + $0x188] sm:$0xff]
        %v3311 = vld [vmem:[#allocation14 + $0x190] sm:$0xff]
        %v3312 = vld [vmem:[#allocation14 + $0x198] sm:$0xff]
        %v3313 = vld [vmem:[#allocation14 + $0x1a0] sm:$0xff]
        %v3314 = vld [vmem:[#allocation14 + $0x1a8] sm:$0xff]
        %v3315 = vld [vmem:[#allocation14 + $0x1b0] sm:$0xff]
        %v3316 = vld [vmem:[#allocation14 + $0x1b8] sm:$0xff]
        %v3317 = vld [vmem:[#allocation14 + $0x1c0] sm:$0xff]
        %v3318 = vld [vmem:[#allocation14 + $0x1c8] sm:$0xff]
        %v3319 = vld [vmem:[#allocation14 + $0x1d0] sm:$0xff]
        %v3320 = vld [vmem:[#allocation14 + $0x1d8] sm:$0xff]
        %v3321 = vld [vmem:[#allocation14 + $0x1e0] sm:$0xff]
        %v3322 = vld [vmem:[#allocation14 + $0x1e8] sm:$0xff]
        %v3323 = vld [vmem:[#allocation14 + $0x1f0] sm:$0xff]
        %v3324 = vld [vmem:[#allocation14 + $0x1f8] sm:$0xff]
        %v3325 = vld [vmem:[%s11] sm:$0xf]
        %v3327 = vlaneseq
        %v3328 = vshrl.u32 %v3327, 7
        %v3329 = vsub.s32 0, %v3328
        %v3330 = vrot.slane %v3325, %v3329
        %v3331 = vlaneseq
        %v3332 = vshrl.u32 %v3331, 7
        %v3333 = vsub.s32 1, %v3332
        %v3334 = vrot.slane %v3325, %v3333
        %v3335 = vlaneseq
        %v3336 = vshrl.u32 %v3335, 7
        %v3337 = vsub.s32 2, %v3336
        %v3338 = vrot.slane %v3325, %v3337
        %v3339 = vlaneseq
        %v3340 = vshrl.u32 %v3339, 7
        %v3341 = vsub.s32 3, %v3340
        %v3342 = vrot.slane %v3325, %v3341
        %3347 = vmatprep.subr.mxu0 %v3322
        %3348 = vmatpush1.msra.mxu0 %v3321
        %3349 = vmatprep.subr.mxu0 %v3318
        %3350 = vmatpush1.msra.mxu0 %v3317
        %3351 = vmatprep.subr.mxu0 %v3314
        %3352 = vmatpush1.msra.mxu0 %v3313
        %3353 = vmatprep.subr.mxu0 %v3310
        %3354 = vmatpush1.msra.mxu0 %v3309
        %3355 = vmatprep.subr.mxu0 %v3306
        %3356 = vmatpush1.msra.mxu0 %v3305
        %3357 = vmatprep.subr.mxu0 %v3302
        %3358 = vmatpush1.msra.mxu0 %v3301
        %3359 = vmatprep.subr.mxu0 %v3298
        %3360 = vmatpush1.msra.mxu0 %v3297
        %3361 = vmatprep.subr.mxu0 %v3294
        %3362 = vmatpush1.msra.mxu0 %v3293
        %3363 = vmatprep.subr.mxu0 %v3290
        %3364 = vmatpush1.msra.mxu0 %v3289
        %3365 = vmatprep.subr.mxu0 %v3286
        %3366 = vmatpush1.msra.mxu0 %v3285
        %3367 = vmatprep.subr.mxu0 %v3282
        %3368 = vmatpush1.msra.mxu0 %v3281
        %3369 = vmatprep.subr.mxu0 %v3278
        %3370 = vmatpush1.msra.mxu0 %v3277
        %3371 = vmatprep.subr.mxu0 %v3274
        %3372 = vmatpush1.msra.mxu0 %v3273
        %3373 = vmatprep.subr.mxu0 %v3270
        %3374 = vmatpush1.msra.mxu0 %v3269
        %3375 = vmatprep.subr.mxu0 %v3266
        %3376 = vmatpush1.msra.mxu0 %v3265
        %3377 = vmatprep.subr.mxu0 %v3262
        %3378 = vmatpush1.msra.mxu0 %v3261
        %3379 = vmatprep.subr.mxu0 0.0
        %3380 = vmatpush2.msra.mxu0 0.0
        %3381 = vmatprep.subr.mxu0 0.0
        %3382 = vmatpush2.msra.mxu0 0.0
        %3383 = vmatprep.subr.mxu0 0.0
        %3384 = vmatpush2.msra.mxu0 0.0
        %3385 = vmatprep.subr.mxu0 0.0
        %3386 = vmatpush2.msra.mxu0 0.0
        %3387 = vmatprep.subr.mxu0 0.0
        %3388 = vmatpush2.msra.mxu0 0.0
        %3389 = vmatprep.subr.mxu0 0.0
        %3390 = vmatpush2.msra.mxu0 0.0
        %3391 = vmatprep.subr.mxu0 0.0
        %3392 = vmatpush2.msra.mxu0 0.0
        %3393 = vmatprep.subr.mxu0 0.0
        %3394 = vmatpush2.msra.mxu0 0.0
        %3395 = vmatprep.subr.mxu0 0.0
        %3396 = vmatpush2.msra.mxu0 0.0
        %3397 = vmatprep.subr.mxu0 0.0
        %3398 = vmatpush2.msra.mxu0 0.0
        %3399 = vmatprep.subr.mxu0 0.0
        %3400 = vmatpush2.msra.mxu0 0.0
        %3401 = vmatprep.subr.mxu0 0.0
        %3402 = vmatpush2.msra.mxu0 0.0
        %3403 = vmatprep.subr.mxu0 0.0
        %3404 = vmatpush2.msra.mxu0 0.0
        %3405 = vmatprep.subr.mxu0 0.0
        %3406 = vmatpush2.msra.mxu0 0.0
        %3407 = vmatprep.subr.mxu0 0.0
        %3408 = vmatpush2.msra.mxu0 0.0
        %3409 = vmatprep.subr.mxu0 0.0
        %3410 = vmatpush2.msra.mxu0 0.0
        %3411 = vmatprep.mubr.f32.mxu0 0.0
        %3412 = vmatmul.mubr.f32.gmra.mxu0 %v3245
        %v3413 = vpop.f32.mrf.mxu0
        %v3414 = vadd.f32 %v3330, %v3413
        %v3415 = vpop.f32.mrf.mxu0
        %v3416 = vadd.f32 %v3334, %v3415
        %3417 = vmatprep.mubr.f32.mxu0 0.0
        %3418 = vmatmul.mubr.f32.gmra.mxu0 %v3246
        %v3419 = vpop.f32.mrf.mxu0
        %v3420 = vadd.f32 %v3330, %v3419
        %v3421 = vpop.f32.mrf.mxu0
        %v3422 = vadd.f32 %v3334, %v3421
        %3423 = vmatprep.mubr.f32.mxu0 0.0
        %3424 = vmatmul.mubr.f32.gmra.mxu0 %v3247
        %v3425 = vpop.f32.mrf.mxu0
        %v3426 = vadd.f32 %v3330, %v3425
        %v3427 = vpop.f32.mrf.mxu0
        %v3428 = vadd.f32 %v3334, %v3427
        %3429 = vmatprep.mubr.f32.mxu0 0.0
        %3430 = vmatmul.mubr.f32.gmra.mxu0 %v3248
        %v3431 = vpop.f32.mrf.mxu0
        %v3432 = vadd.f32 %v3330, %v3431
        %v3433 = vpop.f32.mrf.mxu0
        %v3434 = vadd.f32 %v3334, %v3433
        %3435 = vmatprep.mubr.f32.mxu0 0.0
        %3436 = vmatmul.mubr.f32.gmra.mxu0 %v3249
        %v3437 = vpop.f32.mrf.mxu0
        %v3438 = vadd.f32 %v3330, %v3437
        %v3439 = vpop.f32.mrf.mxu0
        %v3440 = vadd.f32 %v3334, %v3439
        %3441 = vmatprep.mubr.f32.mxu0 0.0
        %3442 = vmatmul.mubr.f32.gmra.mxu0 %v3250
        %v3443 = vpop.f32.mrf.mxu0
        %v3444 = vadd.f32 %v3330, %v3443
        %v3445 = vpop.f32.mrf.mxu0
        %v3446 = vadd.f32 %v3334, %v3445
        %3447 = vmatprep.mubr.f32.mxu0 0.0
        %3448 = vmatmul.mubr.f32.gmra.mxu0 %v3251
        %v3449 = vpop.f32.mrf.mxu0
        %v3450 = vadd.f32 %v3330, %v3449
        %v3451 = vpop.f32.mrf.mxu0
        %v3452 = vadd.f32 %v3334, %v3451
        %3453 = vmatprep.mubr.f32.mxu0 0.0
        %3454 = vmatmul.mubr.f32.gmra.mxu0 %v3252
        %v3455 = vpop.f32.mrf.mxu0
        %v3456 = vadd.f32 %v3330, %v3455
        %v3457 = vpop.f32.mrf.mxu0
        %v3458 = vadd.f32 %v3334, %v3457
        %3459 = vmatprep.mubr.f32.mxu0 0.0
        %3460 = vmatmul.mubr.f32.gmra.mxu0 %v3253
        %v3461 = vpop.f32.mrf.mxu0
        %v3462 = vadd.f32 %v3330, %v3461
        %v3463 = vpop.f32.mrf.mxu0
        %v3464 = vadd.f32 %v3334, %v3463
        %3465 = vmatprep.mubr.f32.mxu0 0.0
        %3466 = vmatmul.mubr.f32.gmra.mxu0 %v3254
        %v3467 = vpop.f32.mrf.mxu0
        %v3468 = vadd.f32 %v3330, %v3467
        %v3469 = vpop.f32.mrf.mxu0
        %v3470 = vadd.f32 %v3334, %v3469
        %3471 = vmatprep.mubr.f32.mxu0 0.0
        %3472 = vmatmul.mubr.f32.gmra.mxu0 %v3255
        %v3473 = vpop.f32.mrf.mxu0
        %v3474 = vadd.f32 %v3330, %v3473
        %v3475 = vpop.f32.mrf.mxu0
        %v3476 = vadd.f32 %v3334, %v3475
        %3477 = vmatprep.mubr.f32.mxu0 0.0
        %3478 = vmatmul.mubr.f32.gmra.mxu0 %v3256
        %v3479 = vpop.f32.mrf.mxu0
        %v3480 = vadd.f32 %v3330, %v3479
        %v3481 = vpop.f32.mrf.mxu0
        %v3482 = vadd.f32 %v3334, %v3481
        %3483 = vmatprep.mubr.f32.mxu0 0.0
        %3484 = vmatmul.mubr.f32.gmra.mxu0 %v3257
        %v3485 = vpop.f32.mrf.mxu0
        %v3486 = vadd.f32 %v3330, %v3485
        %v3487 = vpop.f32.mrf.mxu0
        %v3488 = vadd.f32 %v3334, %v3487
        %3489 = vmatprep.mubr.f32.mxu0 0.0
        %3490 = vmatmul.mubr.f32.gmra.mxu0 %v3258
        %v3491 = vpop.f32.mrf.mxu0
        %v3492 = vadd.f32 %v3330, %v3491
        %v3493 = vpop.f32.mrf.mxu0
        %v3494 = vadd.f32 %v3334, %v3493
        %3495 = vmatprep.mubr.f32.mxu0 0.0
        %3496 = vmatmul.mubr.f32.gmra.mxu0 %v3259
        %v3497 = vpop.f32.mrf.mxu0
        %v3498 = vadd.f32 %v3330, %v3497
        %v3499 = vpop.f32.mrf.mxu0
        %v3500 = vadd.f32 %v3334, %v3499
        %3501 = vmatprep.mubr.f32.mxu0 0.0
        %3502 = vmatmul.mubr.f32.gmra.mxu0 %v3260
        %v3503 = vpop.f32.mrf.mxu0
        %v3504 = vadd.f32 %v3330, %v3503
        %v3505 = vpop.f32.mrf.mxu0
        %v3506 = vadd.f32 %v3334, %v3505
        %3507 = vdwg.mxu0
        %3508 = vmatprep.subr.mxu0 %v3324
        %3509 = vmatpush1.msra.mxu0 %v3323
        %3510 = vmatprep.subr.mxu0 %v3320
        %3511 = vmatpush1.msra.mxu0 %v3319
        %3512 = vmatprep.subr.mxu0 %v3316
        %3513 = vmatpush1.msra.mxu0 %v3315
        %3514 = vmatprep.subr.mxu0 %v3312
        %3515 = vmatpush1.msra.mxu0 %v3311
        %3516 = vmatprep.subr.mxu0 %v3308
        %3517 = vmatpush1.msra.mxu0 %v3307
        %3518 = vmatprep.subr.mxu0 %v3304
        %3519 = vmatpush1.msra.mxu0 %v3303
        %3520 = vmatprep.subr.mxu0 %v3300
        %3521 = vmatpush1.msra.mxu0 %v3299
        %3522 = vmatprep.subr.mxu0 %v3296
        %3523 = vmatpush1.msra.mxu0 %v3295
        %3524 = vmatprep.subr.mxu0 %v3292
        %3525 = vmatpush1.msra.mxu0 %v3291
        %3526 = vmatprep.subr.mxu0 %v3288
        %3527 = vmatpush1.msra.mxu0 %v3287
        %3528 = vmatprep.subr.mxu0 %v3284
        %3529 = vmatpush1.msra.mxu0 %v3283
        %3530 = vmatprep.subr.mxu0 %v3280
        %3531 = vmatpush1.msra.mxu0 %v3279
        %3532 = vmatprep.subr.mxu0 %v3276
        %3533 = vmatpush1.msra.mxu0 %v3275
        %3534 = vmatprep.subr.mxu0 %v3272
        %3535 = vmatpush1.msra.mxu0 %v3271
        %3536 = vmatprep.subr.mxu0 %v3268
        %3537 = vmatpush1.msra.mxu0 %v3267
        %3538 = vmatprep.subr.mxu0 %v3264
        %3539 = vmatpush1.msra.mxu0 %v3263
        %3540 = vmatprep.subr.mxu0 0.0
        %3541 = vmatpush2.msra.mxu0 0.0
        %3542 = vmatprep.subr.mxu0 0.0
        %3543 = vmatpush2.msra.mxu0 0.0
        %3544 = vmatprep.subr.mxu0 0.0
        %3545 = vmatpush2.msra.mxu0 0.0
        %3546 = vmatprep.subr.mxu0 0.0
        %3547 = vmatpush2.msra.mxu0 0.0
        %3548 = vmatprep.subr.mxu0 0.0
        %3549 = vmatpush2.msra.mxu0 0.0
        %3550 = vmatprep.subr.mxu0 0.0
        %3551 = vmatpush2.msra.mxu0 0.0
        %3552 = vmatprep.subr.mxu0 0.0
        %3553 = vmatpush2.msra.mxu0 0.0
        %3554 = vmatprep.subr.mxu0 0.0
        %3555 = vmatpush2.msra.mxu0 0.0
        %3556 = vmatprep.subr.mxu0 0.0
        %3557 = vmatpush2.msra.mxu0 0.0
        %3558 = vmatprep.subr.mxu0 0.0
        %3559 = vmatpush2.msra.mxu0 0.0
        %3560 = vmatprep.subr.mxu0 0.0
        %3561 = vmatpush2.msra.mxu0 0.0
        %3562 = vmatprep.subr.mxu0 0.0
        %3563 = vmatpush2.msra.mxu0 0.0
        %3564 = vmatprep.subr.mxu0 0.0
        %3565 = vmatpush2.msra.mxu0 0.0
        %3566 = vmatprep.subr.mxu0 0.0
        %3567 = vmatpush2.msra.mxu0 0.0
        %3568 = vmatprep.subr.mxu0 0.0
        %3569 = vmatpush2.msra.mxu0 0.0
        %3570 = vmatprep.subr.mxu0 0.0
        %3571 = vmatpush2.msra.mxu0 0.0
        %3572 = vmatprep.mubr.f32.mxu0 0.0
        %3573 = vmatmul.mubr.f32.gmra.mxu0 %v3245
        %v3574 = vpop.f32.mrf.mxu0
        %v3575 = vadd.f32 %v3338, %v3574
        %v3576 = vpop.f32.mrf.mxu0
        %v3577 = vadd.f32 %v3342, %v3576
        %3578 = vmatprep.mubr.f32.mxu0 0.0
        %3579 = vmatmul.mubr.f32.gmra.mxu0 %v3246
        %v3580 = vpop.f32.mrf.mxu0
        %v3581 = vadd.f32 %v3338, %v3580
        %v3582 = vpop.f32.mrf.mxu0
        %v3583 = vadd.f32 %v3342, %v3582
        %3584 = vmatprep.mubr.f32.mxu0 0.0
        %3585 = vmatmul.mubr.f32.gmra.mxu0 %v3247
        %v3586 = vpop.f32.mrf.mxu0
        %v3587 = vadd.f32 %v3338, %v3586
        %v3588 = vpop.f32.mrf.mxu0
        %v3589 = vadd.f32 %v3342, %v3588
        %3590 = vmatprep.mubr.f32.mxu0 0.0
        %3591 = vmatmul.mubr.f32.gmra.mxu0 %v3248
        %v3592 = vpop.f32.mrf.mxu0
        %v3593 = vadd.f32 %v3338, %v3592
        %v3594 = vpop.f32.mrf.mxu0
        %v3595 = vadd.f32 %v3342, %v3594
        %3596 = vmatprep.mubr.f32.mxu0 0.0
        %3597 = vmatmul.mubr.f32.gmra.mxu0 %v3249
        %v3598 = vpop.f32.mrf.mxu0
        %v3599 = vadd.f32 %v3338, %v3598
        %v3600 = vpop.f32.mrf.mxu0
        %v3601 = vadd.f32 %v3342, %v3600
        %3602 = vmatprep.mubr.f32.mxu0 0.0
        %3603 = vmatmul.mubr.f32.gmra.mxu0 %v3250
        %v3604 = vpop.f32.mrf.mxu0
        %v3605 = vadd.f32 %v3338, %v3604
        %v3606 = vpop.f32.mrf.mxu0
        %v3607 = vadd.f32 %v3342, %v3606
        %3608 = vmatprep.mubr.f32.mxu0 0.0
        %3609 = vmatmul.mubr.f32.gmra.mxu0 %v3251
        %v3610 = vpop.f32.mrf.mxu0
        %v3611 = vadd.f32 %v3338, %v3610
        %v3612 = vpop.f32.mrf.mxu0
        %v3613 = vadd.f32 %v3342, %v3612
        %3614 = vmatprep.mubr.f32.mxu0 0.0
        %3615 = vmatmul.mubr.f32.gmra.mxu0 %v3252
        %v3616 = vpop.f32.mrf.mxu0
        %v3617 = vadd.f32 %v3338, %v3616
        %v3618 = vpop.f32.mrf.mxu0
        %v3619 = vadd.f32 %v3342, %v3618
        %3620 = vmatprep.mubr.f32.mxu0 0.0
        %3621 = vmatmul.mubr.f32.gmra.mxu0 %v3253
        %v3622 = vpop.f32.mrf.mxu0
        %v3623 = vadd.f32 %v3338, %v3622
        %v3624 = vpop.f32.mrf.mxu0
        %v3625 = vadd.f32 %v3342, %v3624
        %3626 = vmatprep.mubr.f32.mxu0 0.0
        %3627 = vmatmul.mubr.f32.gmra.mxu0 %v3254
        %v3628 = vpop.f32.mrf.mxu0
        %v3629 = vadd.f32 %v3338, %v3628
        %v3630 = vpop.f32.mrf.mxu0
        %v3631 = vadd.f32 %v3342, %v3630
        %3632 = vmatprep.mubr.f32.mxu0 0.0
        %3633 = vmatmul.mubr.f32.gmra.mxu0 %v3255
        %v3634 = vpop.f32.mrf.mxu0
        %v3635 = vadd.f32 %v3338, %v3634
        %v3636 = vpop.f32.mrf.mxu0
        %v3637 = vadd.f32 %v3342, %v3636
        %3638 = vmatprep.mubr.f32.mxu0 0.0
        %3639 = vmatmul.mubr.f32.gmra.mxu0 %v3256
        %v3640 = vpop.f32.mrf.mxu0
        %v3641 = vadd.f32 %v3338, %v3640
        %v3642 = vpop.f32.mrf.mxu0
        %v3643 = vadd.f32 %v3342, %v3642
        %3644 = vmatprep.mubr.f32.mxu0 0.0
        %3645 = vmatmul.mubr.f32.gmra.mxu0 %v3257
        %v3646 = vpop.f32.mrf.mxu0
        %v3647 = vadd.f32 %v3338, %v3646
        %v3648 = vpop.f32.mrf.mxu0
        %v3649 = vadd.f32 %v3342, %v3648
        %3650 = vmatprep.mubr.f32.mxu0 0.0
        %3651 = vmatmul.mubr.f32.gmra.mxu0 %v3258
        %v3652 = vpop.f32.mrf.mxu0
        %v3653 = vadd.f32 %v3338, %v3652
        %v3654 = vpop.f32.mrf.mxu0
        %v3655 = vadd.f32 %v3342, %v3654
        %3656 = vmatprep.mubr.f32.mxu0 0.0
        %3657 = vmatmul.mubr.f32.gmra.mxu0 %v3259
        %v3658 = vpop.f32.mrf.mxu0
        %v3659 = vadd.f32 %v3338, %v3658
        %v3660 = vpop.f32.mrf.mxu0
        %v3661 = vadd.f32 %v3342, %v3660
        %3662 = vmatprep.mubr.f32.mxu0 0.0
        %3663 = vmatmul.mubr.f32.gmra.mxu0 %v3260
        %v3664 = vpop.f32.mrf.mxu0
        %v3665 = vadd.f32 %v3338, %v3664
        %v3666 = vpop.f32.mrf.mxu0
        %v3667 = vadd.f32 %v3342, %v3666
        %3668 = vdwg.mxu0
        %v3669 = vmul.f32 %v3414, 0.5
        %v3670 = vmul.f32 %v3416, 0.5
        %v3671 = vmul.f32 %v3575, 0.5
        %v3672 = vmul.f32 %v3577, 0.5
        %v3673 = vmul.f32 %v3420, 0.5
        %v3674 = vmul.f32 %v3422, 0.5
        %v3675 = vmul.f32 %v3581, 0.5
        %v3676 = vmul.f32 %v3583, 0.5
        %v3677 = vmul.f32 %v3426, 0.5
        %v3678 = vmul.f32 %v3428, 0.5
        %v3679 = vmul.f32 %v3587, 0.5
        %v3680 = vmul.f32 %v3589, 0.5
        %v3681 = vmul.f32 %v3432, 0.5
        %v3682 = vmul.f32 %v3434, 0.5
        %v3683 = vmul.f32 %v3593, 0.5
        %v3684 = vmul.f32 %v3595, 0.5
        %v3685 = vmul.f32 %v3438, 0.5
        %v3686 = vmul.f32 %v3440, 0.5
        %v3687 = vmul.f32 %v3599, 0.5
        %v3688 = vmul.f32 %v3601, 0.5
        %v3689 = vmul.f32 %v3444, 0.5
        %v3690 = vmul.f32 %v3446, 0.5
        %v3691 = vmul.f32 %v3605, 0.5
        %v3692 = vmul.f32 %v3607, 0.5
        %v3693 = vmul.f32 %v3450, 0.5
        %v3694 = vmul.f32 %v3452, 0.5
        %v3695 = vmul.f32 %v3611, 0.5
        %v3696 = vmul.f32 %v3613, 0.5
        %v3697 = vmul.f32 %v3456, 0.5
        %v3698 = vmul.f32 %v3458, 0.5
        %v3699 = vmul.f32 %v3617, 0.5
        %v3700 = vmul.f32 %v3619, 0.5
        %v3701 = vmul.f32 %v3462, 0.5
        %v3702 = vmul.f32 %v3464, 0.5
        %v3703 = vmul.f32 %v3623, 0.5
        %v3704 = vmul.f32 %v3625, 0.5
        %v3705 = vmul.f32 %v3468, 0.5
        %v3706 = vmul.f32 %v3470, 0.5
        %v3707 = vmul.f32 %v3629, 0.5
        %v3708 = vmul.f32 %v3631, 0.5
        %v3709 = vmul.f32 %v3474, 0.5
        %v3710 = vmul.f32 %v3476, 0.5
        %v3711 = vmul.f32 %v3635, 0.5
        %v3712 = vmul.f32 %v3637, 0.5
        %v3713 = vmul.f32 %v3480, 0.5
        %v3714 = vmul.f32 %v3482, 0.5
        %v3715 = vmul.f32 %v3641, 0.5
        %v3716 = vmul.f32 %v3643, 0.5
        %v3717 = vmul.f32 %v3486, 0.5
        %v3718 = vmul.f32 %v3488, 0.5
        %v3719 = vmul.f32 %v3647, 0.5
        %v3720 = vmul.f32 %v3649, 0.5
        %v3721 = vmul.f32 %v3492, 0.5
        %v3722 = vmul.f32 %v3494, 0.5
        %v3723 = vmul.f32 %v3653, 0.5
        %v3724 = vmul.f32 %v3655, 0.5
        %v3725 = vmul.f32 %v3498, 0.5
        %v3726 = vmul.f32 %v3500, 0.5
        %v3727 = vmul.f32 %v3659, 0.5
        %v3728 = vmul.f32 %v3661, 0.5
        %v3729 = vmul.f32 %v3504, 0.5
        %v3730 = vmul.f32 %v3506, 0.5
        %v3731 = vmul.f32 %v3665, 0.5
        %v3732 = vmul.f32 %v3667, 0.5
        %v3733 = vmul.f32 %v3414, 0.70710677
        %v3734 = vmul.f32 %v3416, 0.70710677
        %v3735 = vmul.f32 %v3575, 0.70710677
        %v3736 = vmul.f32 %v3577, 0.70710677
        %v3737 = vmul.f32 %v3420, 0.70710677
        %v3738 = vmul.f32 %v3422, 0.70710677
        %v3739 = vmul.f32 %v3581, 0.70710677
        %v3740 = vmul.f32 %v3583, 0.70710677
        %v3741 = vmul.f32 %v3426, 0.70710677
        %v3742 = vmul.f32 %v3428, 0.70710677
        %v3743 = vmul.f32 %v3587, 0.70710677
        %v3744 = vmul.f32 %v3589, 0.70710677
        %v3745 = vmul.f32 %v3432, 0.70710677
        %v3746 = vmul.f32 %v3434, 0.70710677
        %v3747 = vmul.f32 %v3593, 0.70710677
        %v3748 = vmul.f32 %v3595, 0.70710677
        %v3749 = vmul.f32 %v3438, 0.70710677
        %v3750 = vmul.f32 %v3440, 0.70710677
        %v3751 = vmul.f32 %v3599, 0.70710677
        %v3752 = vmul.f32 %v3601, 0.70710677
        %v3753 = vmul.f32 %v3444, 0.70710677
        %v3754 = vmul.f32 %v3446, 0.70710677
        %v3755 = vmul.f32 %v3605, 0.70710677
        %v3756 = vmul.f32 %v3607, 0.70710677
        %v3757 = vmul.f32 %v3450, 0.70710677
        %v3758 = vmul.f32 %v3452, 0.70710677
        %v3759 = vmul.f32 %v3611, 0.70710677
        %v3760 = vmul.f32 %v3613, 0.70710677
        %v3761 = vmul.f32 %v3456, 0.70710677
        %v3762 = vmul.f32 %v3458, 0.70710677
        %v3763 = vmul.f32 %v3617, 0.70710677
        %v3764 = vmul.f32 %v3619, 0.70710677
        %v3765 = vmul.f32 %v3462, 0.70710677
        %v3766 = vmul.f32 %v3464, 0.70710677
        %v3767 = vmul.f32 %v3623, 0.70710677
        %v3768 = vmul.f32 %v3625, 0.70710677
        %v3769 = vmul.f32 %v3468, 0.70710677
        %v3770 = vmul.f32 %v3470, 0.70710677
        %v3771 = vmul.f32 %v3629, 0.70710677
        %v3772 = vmul.f32 %v3631, 0.70710677
        %v3773 = vmul.f32 %v3474, 0.70710677
        %v3774 = vmul.f32 %v3476, 0.70710677
        %v3775 = vmul.f32 %v3635, 0.70710677
        %v3776 = vmul.f32 %v3637, 0.70710677
        %v3777 = vmul.f32 %v3480, 0.70710677
        %v3778 = vmul.f32 %v3482, 0.70710677
        %v3779 = vmul.f32 %v3641, 0.70710677
        %v3780 = vmul.f32 %v3643, 0.70710677
        %v3781 = vmul.f32 %v3486, 0.70710677
        %v3782 = vmul.f32 %v3488, 0.70710677
        %v3783 = vmul.f32 %v3647, 0.70710677
        %v3784 = vmul.f32 %v3649, 0.70710677
        %v3785 = vmul.f32 %v3492, 0.70710677
        %v3786 = vmul.f32 %v3494, 0.70710677
        %v3787 = vmul.f32 %v3653, 0.70710677
        %v3788 = vmul.f32 %v3655, 0.70710677
        %v3789 = vmul.f32 %v3498, 0.70710677
        %v3790 = vmul.f32 %v3500, 0.70710677
        %v3791 = vmul.f32 %v3659, 0.70710677
        %v3792 = vmul.f32 %v3661, 0.70710677
        %v3793 = vmul.f32 %v3504, 0.70710677
        %v3794 = vmul.f32 %v3506, 0.70710677
        %v3795 = vmul.f32 %v3665, 0.70710677
        %v3796 = vmul.f32 %v3667, 0.70710677
        %v3797 = verf.f32.pop %v3733
        %v3798 = verf.f32.pop %v3734
        %v3799 = verf.f32.pop %v3735
        %v3800 = verf.f32.pop %v3736
        %v3801 = verf.f32.pop %v3737
        %v3802 = verf.f32.pop %v3738
        %v3803 = verf.f32.pop %v3739
        %v3804 = verf.f32.pop %v3740
        %v3805 = verf.f32.pop %v3741
        %v3806 = verf.f32.pop %v3742
        %v3807 = verf.f32.pop %v3743
        %v3808 = verf.f32.pop %v3744
        %v3809 = verf.f32.pop %v3745
        %v3810 = verf.f32.pop %v3746
        %v3811 = verf.f32.pop %v3747
        %v3812 = verf.f32.pop %v3748
        %v3813 = verf.f32.pop %v3749
        %v3814 = verf.f32.pop %v3750
        %v3815 = verf.f32.pop %v3751
        %v3816 = verf.f32.pop %v3752
        %v3817 = verf.f32.pop %v3753
        %v3818 = verf.f32.pop %v3754
        %v3819 = verf.f32.pop %v3755
        %v3820 = verf.f32.pop %v3756
        %v3821 = verf.f32.pop %v3757
        %v3822 = verf.f32.pop %v3758
        %v3823 = verf.f32.pop %v3759
        %v3824 = verf.f32.pop %v3760
        %v3825 = verf.f32.pop %v3761
        %v3826 = verf.f32.pop %v3762
        %v3827 = verf.f32.pop %v3763
        %v3828 = verf.f32.pop %v3764
        %v3829 = verf.f32.pop %v3765
        %v3830 = verf.f32.pop %v3766
        %v3831 = verf.f32.pop %v3767
        %v3832 = verf.f32.pop %v3768
        %v3833 = verf.f32.pop %v3769
        %v3834 = verf.f32.pop %v3770
        %v3835 = verf.f32.pop %v3771
        %v3836 = verf.f32.pop %v3772
        %v3837 = verf.f32.pop %v3773
        %v3838 = verf.f32.pop %v3774
        %v3839 = verf.f32.pop %v3775
        %v3840 = verf.f32.pop %v3776
        %v3841 = verf.f32.pop %v3777
        %v3842 = verf.f32.pop %v3778
        %v3843 = verf.f32.pop %v3779
        %v3844 = verf.f32.pop %v3780
        %v3845 = verf.f32.pop %v3781
        %v3846 = verf.f32.pop %v3782
        %v3847 = verf.f32.pop %v3783
        %v3848 = verf.f32.pop %v3784
        %v3849 = verf.f32.pop %v3785
        %v3850 = verf.f32.pop %v3786
        %v3851 = verf.f32.pop %v3787
        %v3852 = verf.f32.pop %v3788
        %v3853 = verf.f32.pop %v3789
        %v3854 = verf.f32.pop %v3790
        %v3855 = verf.f32.pop %v3791
        %v3856 = verf.f32.pop %v3792
        %v3857 = verf.f32.pop %v3793
        %v3858 = verf.f32.pop %v3794
        %v3859 = verf.f32.pop %v3795
        %v3860 = verf.f32.pop %v3796
        %v3861 = vadd.f32 %v3797, 1.0
        %v3862 = vadd.f32 %v3798, 1.0
        %v3863 = vadd.f32 %v3799, 1.0
        %v3864 = vadd.f32 %v3800, 1.0
        %v3865 = vadd.f32 %v3801, 1.0
        %v3866 = vadd.f32 %v3802, 1.0
        %v3867 = vadd.f32 %v3803, 1.0
        %v3868 = vadd.f32 %v3804, 1.0
        %v3869 = vadd.f32 %v3805, 1.0
        %v3870 = vadd.f32 %v3806, 1.0
        %v3871 = vadd.f32 %v3807, 1.0
        %v3872 = vadd.f32 %v3808, 1.0
        %v3873 = vadd.f32 %v3809, 1.0
        %v3874 = vadd.f32 %v3810, 1.0
        %v3875 = vadd.f32 %v3811, 1.0
        %v3876 = vadd.f32 %v3812, 1.0
        %v3877 = vadd.f32 %v3813, 1.0
        %v3878 = vadd.f32 %v3814, 1.0
        %v3879 = vadd.f32 %v3815, 1.0
        %v3880 = vadd.f32 %v3816, 1.0
        %v3881 = vadd.f32 %v3817, 1.0
        %v3882 = vadd.f32 %v3818, 1.0
        %v3883 = vadd.f32 %v3819, 1.0
        %v3884 = vadd.f32 %v3820, 1.0
        %v3885 = vadd.f32 %v3821, 1.0
        %v3886 = vadd.f32 %v3822, 1.0
        %v3887 = vadd.f32 %v3823, 1.0
        %v3888 = vadd.f32 %v3824, 1.0
        %v3889 = vadd.f32 %v3825, 1.0
        %v3890 = vadd.f32 %v3826, 1.0
        %v3891 = vadd.f32 %v3827, 1.0
        %v3892 = vadd.f32 %v3828, 1.0
        %v3893 = vadd.f32 %v3829, 1.0
        %v3894 = vadd.f32 %v3830, 1.0
        %v3895 = vadd.f32 %v3831, 1.0
        %v3896 = vadd.f32 %v3832, 1.0
        %v3897 = vadd.f32 %v3833, 1.0
        %v3898 = vadd.f32 %v3834, 1.0
        %v3899 = vadd.f32 %v3835, 1.0
        %v3900 = vadd.f32 %v3836, 1.0
        %v3901 = vadd.f32 %v3837, 1.0
        %v3902 = vadd.f32 %v3838, 1.0
        %v3903 = vadd.f32 %v3839, 1.0
        %v3904 = vadd.f32 %v3840, 1.0
        %v3905 = vadd.f32 %v3841, 1.0
        %v3906 = vadd.f32 %v3842, 1.0
        %v3907 = vadd.f32 %v3843, 1.0
        %v3908 = vadd.f32 %v3844, 1.0
        %v3909 = vadd.f32 %v3845, 1.0
        %v3910 = vadd.f32 %v3846, 1.0
        %v3911 = vadd.f32 %v3847, 1.0
        %v3912 = vadd.f32 %v3848, 1.0
        %v3913 = vadd.f32 %v3849, 1.0
        %v3914 = vadd.f32 %v3850, 1.0
        %v3915 = vadd.f32 %v3851, 1.0
        %v3916 = vadd.f32 %v3852, 1.0
        %v3917 = vadd.f32 %v3853, 1.0
        %v3918 = vadd.f32 %v3854, 1.0
        %v3919 = vadd.f32 %v3855, 1.0
        %v3920 = vadd.f32 %v3856, 1.0
        %v3921 = vadd.f32 %v3857, 1.0
        %v3922 = vadd.f32 %v3858, 1.0
        %v3923 = vadd.f32 %v3859, 1.0
        %v3924 = vadd.f32 %v3860, 1.0
        %v3925 = vmul.f32 %v3669, %v3861
        %v3926 = vmul.f32 %v3670, %v3862
        %v3927 = vmul.f32 %v3671, %v3863
        %v3928 = vmul.f32 %v3672, %v3864
        %v3929 = vmul.f32 %v3673, %v3865
        %v3930 = vmul.f32 %v3674, %v3866
        %v3931 = vmul.f32 %v3675, %v3867
        %v3932 = vmul.f32 %v3676, %v3868
        %v3933 = vmul.f32 %v3677, %v3869
        %v3934 = vmul.f32 %v3678, %v3870
        %v3935 = vmul.f32 %v3679, %v3871
        %v3936 = vmul.f32 %v3680, %v3872
        %v3937 = vmul.f32 %v3681, %v3873
        %v3938 = vmul.f32 %v3682, %v3874
        %v3939 = vmul.f32 %v3683, %v3875
        %v3940 = vmul.f32 %v3684, %v3876
        %v3941 = vmul.f32 %v3685, %v3877
        %v3942 = vmul.f32 %v3686, %v3878
        %v3943 = vmul.f32 %v3687, %v3879
        %v3944 = vmul.f32 %v3688, %v3880
        %v3945 = vmul.f32 %v3689, %v3881
        %v3946 = vmul.f32 %v3690, %v3882
        %v3947 = vmul.f32 %v3691, %v3883
        %v3948 = vmul.f32 %v3692, %v3884
        %v3949 = vmul.f32 %v3693, %v3885
        %v3950 = vmul.f32 %v3694, %v3886
        %v3951 = vmul.f32 %v3695, %v3887
        %v3952 = vmul.f32 %v3696, %v3888
        %v3953 = vmul.f32 %v3697, %v3889
        %v3954 = vmul.f32 %v3698, %v3890
        %v3955 = vmul.f32 %v3699, %v3891
        %v3956 = vmul.f32 %v3700, %v3892
        %v3957 = vmul.f32 %v3701, %v3893
        %v3958 = vmul.f32 %v3702, %v3894
        %v3959 = vmul.f32 %v3703, %v3895
        %v3960 = vmul.f32 %v3704, %v3896
        %v3961 = vmul.f32 %v3705, %v3897
        %v3962 = vmul.f32 %v3706, %v3898
        %v3963 = vmul.f32 %v3707, %v3899
        %v3964 = vmul.f32 %v3708, %v3900
        %v3965 = vmul.f32 %v3709, %v3901
        %v3966 = vmul.f32 %v3710, %v3902
        %v3967 = vmul.f32 %v3711, %v3903
        %v3968 = vmul.f32 %v3712, %v3904
        %v3969 = vmul.f32 %v3713, %v3905
        %v3970 = vmul.f32 %v3714, %v3906
        %v3971 = vmul.f32 %v3715, %v3907
        %v3972 = vmul.f32 %v3716, %v3908
        %v3973 = vmul.f32 %v3717, %v3909
        %v3974 = vmul.f32 %v3718, %v3910
        %v3975 = vmul.f32 %v3719, %v3911
        %v3976 = vmul.f32 %v3720, %v3912
        %v3977 = vmul.f32 %v3721, %v3913
        %v3978 = vmul.f32 %v3722, %v3914
        %v3979 = vmul.f32 %v3723, %v3915
        %v3980 = vmul.f32 %v3724, %v3916
        %v3981 = vmul.f32 %v3725, %v3917
        %v3982 = vmul.f32 %v3726, %v3918
        %v3983 = vmul.f32 %v3727, %v3919
        %v3984 = vmul.f32 %v3728, %v3920
        %v3985 = vmul.f32 %v3729, %v3921
        %v3986 = vmul.f32 %v3730, %v3922
        %v3987 = vmul.f32 %v3731, %v3923
        %v3988 = vmul.f32 %v3732, %v3924
        %v3989 = vld [vmem:[#allocation16] sm:$0xff]
        %v3990 = vld [vmem:[#allocation16 + $0x8] sm:$0xff]
        %v3991 = vld [vmem:[#allocation16 + $0x10] sm:$0xff]
        %v3992 = vld [vmem:[#allocation16 + $0x18] sm:$0xff]
        %v3993 = vld [vmem:[#allocation16 + $0x20] sm:$0xff]
        %v3994 = vld [vmem:[#allocation16 + $0x28] sm:$0xff]
        %v3995 = vld [vmem:[#allocation16 + $0x30] sm:$0xff]
        %v3996 = vld [vmem:[#allocation16 + $0x38] sm:$0xff]
        %v3997 = vld [vmem:[#allocation16 + $0x40] sm:$0xff]
        %v3998 = vld [vmem:[#allocation16 + $0x48] sm:$0xff]
        %v3999 = vld [vmem:[#allocation16 + $0x50] sm:$0xff]
        %v4000 = vld [vmem:[#allocation16 + $0x58] sm:$0xff]
        %v4001 = vld [vmem:[#allocation16 + $0x60] sm:$0xff]
        %v4002 = vld [vmem:[#allocation16 + $0x68] sm:$0xff]
        %v4003 = vld [vmem:[#allocation16 + $0x70] sm:$0xff]
        %v4004 = vld [vmem:[#allocation16 + $0x78] sm:$0xff]
        %v4005 = vld [vmem:[#allocation16 + $0x80] sm:$0xff]
        %v4006 = vld [vmem:[#allocation16 + $0x88] sm:$0xff]
        %v4007 = vld [vmem:[#allocation16 + $0x90] sm:$0xff]
        %v4008 = vld [vmem:[#allocation16 + $0x98] sm:$0xff]
        %v4009 = vld [vmem:[#allocation16 + $0xa0] sm:$0xff]
        %v4010 = vld [vmem:[#allocation16 + $0xa8] sm:$0xff]
        %v4011 = vld [vmem:[#allocation16 + $0xb0] sm:$0xff]
        %v4012 = vld [vmem:[#allocation16 + $0xb8] sm:$0xff]
        %v4013 = vld [vmem:[#allocation16 + $0xc0] sm:$0xff]
        %v4014 = vld [vmem:[#allocation16 + $0xc8] sm:$0xff]
        %v4015 = vld [vmem:[#allocation16 + $0xd0] sm:$0xff]
        %v4016 = vld [vmem:[#allocation16 + $0xd8] sm:$0xff]
        %v4017 = vld [vmem:[#allocation16 + $0xe0] sm:$0xff]
        %v4018 = vld [vmem:[#allocation16 + $0xe8] sm:$0xff]
        %v4019 = vld [vmem:[#allocation16 + $0xf0] sm:$0xff]
        %v4020 = vld [vmem:[#allocation16 + $0xf8] sm:$0xff]
        %v4021 = vld [vmem:[#allocation16 + $0x100] sm:$0xff]
        %v4022 = vld [vmem:[#allocation16 + $0x108] sm:$0xff]
        %v4023 = vld [vmem:[#allocation16 + $0x110] sm:$0xff]
        %v4024 = vld [vmem:[#allocation16 + $0x118] sm:$0xff]
        %v4025 = vld [vmem:[#allocation16 + $0x120] sm:$0xff]
        %v4026 = vld [vmem:[#allocation16 + $0x128] sm:$0xff]
        %v4027 = vld [vmem:[#allocation16 + $0x130] sm:$0xff]
        %v4028 = vld [vmem:[#allocation16 + $0x138] sm:$0xff]
        %v4029 = vld [vmem:[#allocation16 + $0x140] sm:$0xff]
        %v4030 = vld [vmem:[#allocation16 + $0x148] sm:$0xff]
        %v4031 = vld [vmem:[#allocation16 + $0x150] sm:$0xff]
        %v4032 = vld [vmem:[#allocation16 + $0x158] sm:$0xff]
        %v4033 = vld [vmem:[#allocation16 + $0x160] sm:$0xff]
        %v4034 = vld [vmem:[#allocation16 + $0x168] sm:$0xff]
        %v4035 = vld [vmem:[#allocation16 + $0x170] sm:$0xff]
        %v4036 = vld [vmem:[#allocation16 + $0x178] sm:$0xff]
        %v4037 = vld [vmem:[#allocation16 + $0x180] sm:$0xff]
        %v4038 = vld [vmem:[#allocation16 + $0x188] sm:$0xff]
        %v4039 = vld [vmem:[#allocation16 + $0x190] sm:$0xff]
        %v4040 = vld [vmem:[#allocation16 + $0x198] sm:$0xff]
        %v4041 = vld [vmem:[#allocation16 + $0x1a0] sm:$0xff]
        %v4042 = vld [vmem:[#allocation16 + $0x1a8] sm:$0xff]
        %v4043 = vld [vmem:[#allocation16 + $0x1b0] sm:$0xff]
        %v4044 = vld [vmem:[#allocation16 + $0x1b8] sm:$0xff]
        %v4045 = vld [vmem:[#allocation16 + $0x1c0] sm:$0xff]
        %v4046 = vld [vmem:[#allocation16 + $0x1c8] sm:$0xff]
        %v4047 = vld [vmem:[#allocation16 + $0x1d0] sm:$0xff]
        %v4048 = vld [vmem:[#allocation16 + $0x1d8] sm:$0xff]
        %v4049 = vld [vmem:[#allocation16 + $0x1e0] sm:$0xff]
        %v4050 = vld [vmem:[#allocation16 + $0x1e8] sm:$0xff]
        %v4051 = vld [vmem:[#allocation16 + $0x1f0] sm:$0xff]
        %v4052 = vld [vmem:[#allocation16 + $0x1f8] sm:$0xff]
        %v4053 = vld [vmem:[%s13] sm:$0x1]
        %v4055 = vlaneseq
        %v4056 = vshrl.u32 %v4055, 7
        %v4057 = vsub.s32 0, %v4056
        %v4058 = vrot.slane %v4053, %v4057
        %4060 = vmatprep.subr.mxu0 0.0
        %4061 = vmatpush1.msra.mxu0 %v4004
        %4062 = vmatprep.subr.mxu0 0.0
        %4063 = vmatpush1.msra.mxu0 %v4003
        %4064 = vmatprep.subr.mxu0 0.0
        %4065 = vmatpush1.msra.mxu0 %v4002
        %4066 = vmatprep.subr.mxu0 0.0
        %4067 = vmatpush1.msra.mxu0 %v4001
        %4068 = vmatprep.subr.mxu0 0.0
        %4069 = vmatpush1.msra.mxu0 %v4000
        %4070 = vmatprep.subr.mxu0 0.0
        %4071 = vmatpush1.msra.mxu0 %v3999
        %4072 = vmatprep.subr.mxu0 0.0
        %4073 = vmatpush1.msra.mxu0 %v3998
        %4074 = vmatprep.subr.mxu0 0.0
        %4075 = vmatpush1.msra.mxu0 %v3997
        %4076 = vmatprep.subr.mxu0 0.0
        %4077 = vmatpush1.msra.mxu0 %v3996
        %4078 = vmatprep.subr.mxu0 0.0
        %4079 = vmatpush1.msra.mxu0 %v3995
        %4080 = vmatprep.subr.mxu0 0.0
        %4081 = vmatpush1.msra.mxu0 %v3994
        %4082 = vmatprep.subr.mxu0 0.0
        %4083 = vmatpush1.msra.mxu0 %v3993
        %4084 = vmatprep.subr.mxu0 0.0
        %4085 = vmatpush1.msra.mxu0 %v3992
        %4086 = vmatprep.subr.mxu0 0.0
        %4087 = vmatpush1.msra.mxu0 %v3991
        %4088 = vmatprep.subr.mxu0 0.0
        %4089 = vmatpush1.msra.mxu0 %v3990
        %4090 = vmatprep.subr.mxu0 0.0
        %4091 = vmatpush1.msra.mxu0 %v3989
        %4092 = vmatprep.subr.mxu0 0.0
        %4093 = vmatpush2.msra.mxu0 %v4020
        %4094 = vmatprep.subr.mxu0 0.0
        %4095 = vmatpush2.msra.mxu0 %v4019
        %4096 = vmatprep.subr.mxu0 0.0
        %4097 = vmatpush2.msra.mxu0 %v4018
        %4098 = vmatprep.subr.mxu0 0.0
        %4099 = vmatpush2.msra.mxu0 %v4017
        %4100 = vmatprep.subr.mxu0 0.0
        %4101 = vmatpush2.msra.mxu0 %v4016
        %4102 = vmatprep.subr.mxu0 0.0
        %4103 = vmatpush2.msra.mxu0 %v4015
        %4104 = vmatprep.subr.mxu0 0.0
        %4105 = vmatpush2.msra.mxu0 %v4014
        %4106 = vmatprep.subr.mxu0 0.0
        %4107 = vmatpush2.msra.mxu0 %v4013
        %4108 = vmatprep.subr.mxu0 0.0
        %4109 = vmatpush2.msra.mxu0 %v4012
        %4110 = vmatprep.subr.mxu0 0.0
        %4111 = vmatpush2.msra.mxu0 %v4011
        %4112 = vmatprep.subr.mxu0 0.0
        %4113 = vmatpush2.msra.mxu0 %v4010
        %4114 = vmatprep.subr.mxu0 0.0
        %4115 = vmatpush2.msra.mxu0 %v4009
        %4116 = vmatprep.subr.mxu0 0.0
        %4117 = vmatpush2.msra.mxu0 %v4008
        %4118 = vmatprep.subr.mxu0 0.0
        %4119 = vmatpush2.msra.mxu0 %v4007
        %4120 = vmatprep.subr.mxu0 0.0
        %4121 = vmatpush2.msra.mxu0 %v4006
        %4122 = vmatprep.subr.mxu0 0.0
        %4123 = vmatpush2.msra.mxu0 %v4005
        %4124 = vmatprep.mubr.f32.mxu0 %v3926
        %4125 = vmatmul.mubr.f32.gmra.mxu0 %v3925
        %v4126 = vpop.f32.mrf.mxu0
        %v4127 = vadd.f32 %v4058, %v4126
        %v4128 = vpop.f32.mrf.mxu0
        %4129 = vmatprep.mubr.f32.mxu0 %v3930
        %4130 = vmatmul.mubr.f32.gmra.mxu0 %v3929
        %v4131 = vpop.f32.mrf.mxu0
        %v4132 = vadd.f32 %v4058, %v4131
        %v4133 = vpop.f32.mrf.mxu0
        %4134 = vmatprep.mubr.f32.mxu0 %v3934
        %4135 = vmatmul.mubr.f32.gmra.mxu0 %v3933
        %v4136 = vpop.f32.mrf.mxu0
        %v4137 = vadd.f32 %v4058, %v4136
        %v4138 = vpop.f32.mrf.mxu0
        %4139 = vmatprep.mubr.f32.mxu0 %v3938
        %4140 = vmatmul.mubr.f32.gmra.mxu0 %v3937
        %v4141 = vpop.f32.mrf.mxu0
        %v4142 = vadd.f32 %v4058, %v4141
        %v4143 = vpop.f32.mrf.mxu0
        %4144 = vmatprep.mubr.f32.mxu0 %v3942
        %4145 = vmatmul.mubr.f32.gmra.mxu0 %v3941
        %v4146 = vpop.f32.mrf.mxu0
        %v4147 = vadd.f32 %v4058, %v4146
        %v4148 = vpop.f32.mrf.mxu0
        %4149 = vmatprep.mubr.f32.mxu0 %v3946
        %4150 = vmatmul.mubr.f32.gmra.mxu0 %v3945
        %v4151 = vpop.f32.mrf.mxu0
        %v4152 = vadd.f32 %v4058, %v4151
        %v4153 = vpop.f32.mrf.mxu0
        %4154 = vmatprep.mubr.f32.mxu0 %v3950
        %4155 = vmatmul.mubr.f32.gmra.mxu0 %v3949
        %v4156 = vpop.f32.mrf.mxu0
        %v4157 = vadd.f32 %v4058, %v4156
        %v4158 = vpop.f32.mrf.mxu0
        %4159 = vmatprep.mubr.f32.mxu0 %v3954
        %4160 = vmatmul.mubr.f32.gmra.mxu0 %v3953
        %v4161 = vpop.f32.mrf.mxu0
        %v4162 = vadd.f32 %v4058, %v4161
        %v4163 = vpop.f32.mrf.mxu0
        %4164 = vmatprep.mubr.f32.mxu0 %v3958
        %4165 = vmatmul.mubr.f32.gmra.mxu0 %v3957
        %v4166 = vpop.f32.mrf.mxu0
        %v4167 = vadd.f32 %v4058, %v4166
        %v4168 = vpop.f32.mrf.mxu0
        %4169 = vmatprep.mubr.f32.mxu0 %v3962
        %4170 = vmatmul.mubr.f32.gmra.mxu0 %v3961
        %v4171 = vpop.f32.mrf.mxu0
        %v4172 = vadd.f32 %v4058, %v4171
        %v4173 = vpop.f32.mrf.mxu0
        %4174 = vmatprep.mubr.f32.mxu0 %v3966
        %4175 = vmatmul.mubr.f32.gmra.mxu0 %v3965
        %v4176 = vpop.f32.mrf.mxu0
        %v4177 = vadd.f32 %v4058, %v4176
        %v4178 = vpop.f32.mrf.mxu0
        %4179 = vmatprep.mubr.f32.mxu0 %v3970
        %4180 = vmatmul.mubr.f32.gmra.mxu0 %v3969
        %v4181 = vpop.f32.mrf.mxu0
        %v4182 = vadd.f32 %v4058, %v4181
        %v4183 = vpop.f32.mrf.mxu0
        %4184 = vmatprep.mubr.f32.mxu0 %v3974
        %4185 = vmatmul.mubr.f32.gmra.mxu0 %v3973
        %v4186 = vpop.f32.mrf.mxu0
        %v4187 = vadd.f32 %v4058, %v4186
        %v4188 = vpop.f32.mrf.mxu0
        %4189 = vmatprep.mubr.f32.mxu0 %v3978
        %4190 = vmatmul.mubr.f32.gmra.mxu0 %v3977
        %v4191 = vpop.f32.mrf.mxu0
        %v4192 = vadd.f32 %v4058, %v4191
        %v4193 = vpop.f32.mrf.mxu0
        %4194 = vmatprep.mubr.f32.mxu0 %v3982
        %4195 = vmatmul.mubr.f32.gmra.mxu0 %v3981
        %v4196 = vpop.f32.mrf.mxu0
        %v4197 = vadd.f32 %v4058, %v4196
        %v4198 = vpop.f32.mrf.mxu0
        %4199 = vmatprep.mubr.f32.mxu0 %v3986
        %4200 = vmatmul.mubr.f32.gmra.mxu0 %v3985
        %v4201 = vpop.f32.mrf.mxu0
        %v4202 = vadd.f32 %v4058, %v4201
        %v4203 = vpop.f32.mrf.mxu0
        %4204 = vdwg.mxu0
        %4205 = vmatprep.subr.mxu0 0.0
        %4206 = vmatpush1.msra.mxu0 %v4036
        %4207 = vmatprep.subr.mxu0 0.0
        %4208 = vmatpush1.msra.mxu0 %v4035
        %4209 = vmatprep.subr.mxu0 0.0
        %4210 = vmatpush1.msra.mxu0 %v4034
        %4211 = vmatprep.subr.mxu0 0.0
        %4212 = vmatpush1.msra.mxu0 %v4033
        %4213 = vmatprep.subr.mxu0 0.0
        %4214 = vmatpush1.msra.mxu0 %v4032
        %4215 = vmatprep.subr.mxu0 0.0
        %4216 = vmatpush1.msra.mxu0 %v4031
        %4217 = vmatprep.subr.mxu0 0.0
        %4218 = vmatpush1.msra.mxu0 %v4030
        %4219 = vmatprep.subr.mxu0 0.0
        %4220 = vmatpush1.msra.mxu0 %v4029
        %4221 = vmatprep.subr.mxu0 0.0
        %4222 = vmatpush1.msra.mxu0 %v4028
        %4223 = vmatprep.subr.mxu0 0.0
        %4224 = vmatpush1.msra.mxu0 %v4027
        %4225 = vmatprep.subr.mxu0 0.0
        %4226 = vmatpush1.msra.mxu0 %v4026
        %4227 = vmatprep.subr.mxu0 0.0
        %4228 = vmatpush1.msra.mxu0 %v4025
        %4229 = vmatprep.subr.mxu0 0.0
        %4230 = vmatpush1.msra.mxu0 %v4024
        %4231 = vmatprep.subr.mxu0 0.0
        %4232 = vmatpush1.msra.mxu0 %v4023
        %4233 = vmatprep.subr.mxu0 0.0
        %4234 = vmatpush1.msra.mxu0 %v4022
        %4235 = vmatprep.subr.mxu0 0.0
        %4236 = vmatpush1.msra.mxu0 %v4021
        %4237 = vmatprep.subr.mxu0 0.0
        %4238 = vmatpush2.msra.mxu0 %v4052
        %4239 = vmatprep.subr.mxu0 0.0
        %4240 = vmatpush2.msra.mxu0 %v4051
        %4241 = vmatprep.subr.mxu0 0.0
        %4242 = vmatpush2.msra.mxu0 %v4050
        %4243 = vmatprep.subr.mxu0 0.0
        %4244 = vmatpush2.msra.mxu0 %v4049
        %4245 = vmatprep.subr.mxu0 0.0
        %4246 = vmatpush2.msra.mxu0 %v4048
        %4247 = vmatprep.subr.mxu0 0.0
        %4248 = vmatpush2.msra.mxu0 %v4047
        %4249 = vmatprep.subr.mxu0 0.0
        %4250 = vmatpush2.msra.mxu0 %v4046
        %4251 = vmatprep.subr.mxu0 0.0
        %4252 = vmatpush2.msra.mxu0 %v4045
        %4253 = vmatprep.subr.mxu0 0.0
        %4254 = vmatpush2.msra.mxu0 %v4044
        %4255 = vmatprep.subr.mxu0 0.0
        %4256 = vmatpush2.msra.mxu0 %v4043
        %4257 = vmatprep.subr.mxu0 0.0
        %4258 = vmatpush2.msra.mxu0 %v4042
        %4259 = vmatprep.subr.mxu0 0.0
        %4260 = vmatpush2.msra.mxu0 %v4041
        %4261 = vmatprep.subr.mxu0 0.0
        %4262 = vmatpush2.msra.mxu0 %v4040
        %4263 = vmatprep.subr.mxu0 0.0
        %4264 = vmatpush2.msra.mxu0 %v4039
        %4265 = vmatprep.subr.mxu0 0.0
        %4266 = vmatpush2.msra.mxu0 %v4038
        %4267 = vmatprep.subr.mxu0 0.0
        %4268 = vmatpush2.msra.mxu0 %v4037
        %4269 = vmatprep.mubr.f32.mxu0 %v3928
        %4270 = vmatmul.mubr.f32.gmra.mxu0 %v3927
        %v4271 = vpop.f32.mrf.mxu0
        %v4272 = vadd.f32 %v4127, %v4271
        %v4273 = vpop.f32.mrf.mxu0
        %4274 = vmatprep.mubr.f32.mxu0 %v3932
        %4275 = vmatmul.mubr.f32.gmra.mxu0 %v3931
        %v4276 = vpop.f32.mrf.mxu0
        %v4277 = vadd.f32 %v4132, %v4276
        %v4278 = vpop.f32.mrf.mxu0
        %4279 = vmatprep.mubr.f32.mxu0 %v3936
        %4280 = vmatmul.mubr.f32.gmra.mxu0 %v3935
        %v4281 = vpop.f32.mrf.mxu0
        %v4282 = vadd.f32 %v4137, %v4281
        %v4283 = vpop.f32.mrf.mxu0
        %4284 = vmatprep.mubr.f32.mxu0 %v3940
        %4285 = vmatmul.mubr.f32.gmra.mxu0 %v3939
        %v4286 = vpop.f32.mrf.mxu0
        %v4287 = vadd.f32 %v4142, %v4286
        %v4288 = vpop.f32.mrf.mxu0
        %4289 = vmatprep.mubr.f32.mxu0 %v3944
        %4290 = vmatmul.mubr.f32.gmra.mxu0 %v3943
        %v4291 = vpop.f32.mrf.mxu0
        %v4292 = vadd.f32 %v4147, %v4291
        %v4293 = vpop.f32.mrf.mxu0
        %4294 = vmatprep.mubr.f32.mxu0 %v3948
        %4295 = vmatmul.mubr.f32.gmra.mxu0 %v3947
        %v4296 = vpop.f32.mrf.mxu0
        %v4297 = vadd.f32 %v4152, %v4296
        %v4298 = vpop.f32.mrf.mxu0
        %4299 = vmatprep.mubr.f32.mxu0 %v3952
        %4300 = vmatmul.mubr.f32.gmra.mxu0 %v3951
        %v4301 = vpop.f32.mrf.mxu0
        %v4302 = vadd.f32 %v4157, %v4301
        %v4303 = vpop.f32.mrf.mxu0
        %4304 = vmatprep.mubr.f32.mxu0 %v3956
        %4305 = vmatmul.mubr.f32.gmra.mxu0 %v3955
        %v4306 = vpop.f32.mrf.mxu0
        %v4307 = vadd.f32 %v4162, %v4306
        %v4308 = vpop.f32.mrf.mxu0
        %4309 = vmatprep.mubr.f32.mxu0 %v3960
        %4310 = vmatmul.mubr.f32.gmra.mxu0 %v3959
        %v4311 = vpop.f32.mrf.mxu0
        %v4312 = vadd.f32 %v4167, %v4311
        %v4313 = vpop.f32.mrf.mxu0
        %4314 = vmatprep.mubr.f32.mxu0 %v3964
        %4315 = vmatmul.mubr.f32.gmra.mxu0 %v3963
        %v4316 = vpop.f32.mrf.mxu0
        %v4317 = vadd.f32 %v4172, %v4316
        %v4318 = vpop.f32.mrf.mxu0
        %4319 = vmatprep.mubr.f32.mxu0 %v3968
        %4320 = vmatmul.mubr.f32.gmra.mxu0 %v3967
        %v4321 = vpop.f32.mrf.mxu0
        %v4322 = vadd.f32 %v4177, %v4321
        %v4323 = vpop.f32.mrf.mxu0
        %4324 = vmatprep.mubr.f32.mxu0 %v3972
        %4325 = vmatmul.mubr.f32.gmra.mxu0 %v3971
        %v4326 = vpop.f32.mrf.mxu0
        %v4327 = vadd.f32 %v4182, %v4326
        %v4328 = vpop.f32.mrf.mxu0
        %4329 = vmatprep.mubr.f32.mxu0 %v3976
        %4330 = vmatmul.mubr.f32.gmra.mxu0 %v3975
        %v4331 = vpop.f32.mrf.mxu0
        %v4332 = vadd.f32 %v4187, %v4331
        %v4333 = vpop.f32.mrf.mxu0
        %4334 = vmatprep.mubr.f32.mxu0 %v3980
        %4335 = vmatmul.mubr.f32.gmra.mxu0 %v3979
        %v4336 = vpop.f32.mrf.mxu0
        %v4337 = vadd.f32 %v4192, %v4336
        %v4338 = vpop.f32.mrf.mxu0
        %4339 = vmatprep.mubr.f32.mxu0 %v3984
        %4340 = vmatmul.mubr.f32.gmra.mxu0 %v3983
        %v4341 = vpop.f32.mrf.mxu0
        %v4342 = vadd.f32 %v4197, %v4341
        %v4343 = vpop.f32.mrf.mxu0
        %4344 = vmatprep.mubr.f32.mxu0 %v3988
        %4345 = vmatmul.mubr.f32.gmra.mxu0 %v3987
        %v4346 = vpop.f32.mrf.mxu0
        %v4347 = vadd.f32 %v4202, %v4346
        %v4348 = vpop.f32.mrf.mxu0
        %4349 = vdwg.mxu0
        %v4350 = vadd.f32 %v4272, %v3245
        %v4351 = vadd.f32 %v4277, %v3246
        %v4352 = vadd.f32 %v4282, %v3247
        %v4353 = vadd.f32 %v4287, %v3248
        %v4354 = vadd.f32 %v4292, %v3249
        %v4355 = vadd.f32 %v4297, %v3250
        %v4356 = vadd.f32 %v4302, %v3251
        %v4357 = vadd.f32 %v4307, %v3252
        %v4358 = vadd.f32 %v4312, %v3253
        %v4359 = vadd.f32 %v4317, %v3254
        %v4360 = vadd.f32 %v4322, %v3255
        %v4361 = vadd.f32 %v4327, %v3256
        %v4362 = vadd.f32 %v4332, %v3257
        %v4363 = vadd.f32 %v4337, %v3258
        %v4364 = vadd.f32 %v4342, %v3259
        %v4365 = vadd.f32 %v4347, %v3260
        %4366 = vadd.xlane.f32.xlu0 %v4350
        %v4367 = vpop.xlane.xlu0 %4366
        %4368 = vadd.xlane.f32.xlu0 %v4351
        %v4369 = vpop.xlane.xlu0 %4368
        %4370 = vadd.xlane.f32.xlu0 %v4352
        %v4371 = vpop.xlane.xlu0 %4370
        %4372 = vadd.xlane.f32.xlu0 %v4353
        %v4373 = vpop.xlane.xlu0 %4372
        %4374 = vadd.xlane.f32.xlu0 %v4354
        %v4375 = vpop.xlane.xlu0 %4374
        %4376 = vadd.xlane.f32.xlu0 %v4355
        %v4377 = vpop.xlane.xlu0 %4376
        %4378 = vadd.xlane.f32.xlu0 %v4356
        %v4379 = vpop.xlane.xlu0 %4378
        %4380 = vadd.xlane.f32.xlu0 %v4357
        %v4381 = vpop.xlane.xlu0 %4380
        %4382 = vadd.xlane.f32.xlu0 %v4358
        %v4383 = vpop.xlane.xlu0 %4382
        %4384 = vadd.xlane.f32.xlu0 %v4359
        %v4385 = vpop.xlane.xlu0 %4384
        %4386 = vadd.xlane.f32.xlu0 %v4360
        %v4387 = vpop.xlane.xlu0 %4386
        %4388 = vadd.xlane.f32.xlu0 %v4361
        %v4389 = vpop.xlane.xlu0 %4388
        %4390 = vadd.xlane.f32.xlu0 %v4362
        %v4391 = vpop.xlane.xlu0 %4390
        %4392 = vadd.xlane.f32.xlu0 %v4363
        %v4393 = vpop.xlane.xlu0 %4392
        %4394 = vadd.xlane.f32.xlu0 %v4364
        %v4395 = vpop.xlane.xlu0 %4394
        %4396 = vadd.xlane.f32.xlu0 %v4365
        %v4397 = vpop.xlane.xlu0 %4396
        %v4398 = vmul.f32 %v4367, %v3070
        %v4399 = vmul.f32 %v4369, %v3070
        %v4400 = vmul.f32 %v4371, %v3070
        %v4401 = vmul.f32 %v4373, %v3070
        %v4402 = vmul.f32 %v4375, %v3070
        %v4403 = vmul.f32 %v4377, %v3070
        %v4404 = vmul.f32 %v4379, %v3070
        %v4405 = vmul.f32 %v4381, %v3070
        %v4406 = vmul.f32 %v4383, %v3070
        %v4407 = vmul.f32 %v4385, %v3070
        %v4408 = vmul.f32 %v4387, %v3070
        %v4409 = vmul.f32 %v4389, %v3070
        %v4410 = vmul.f32 %v4391, %v3070
        %v4411 = vmul.f32 %v4393, %v3070
        %v4412 = vmul.f32 %v4395, %v3070
        %v4413 = vmul.f32 %v4397, %v3070
        %v4414 = vsub.f32 %v4350, %v4398
        %v4415 = vsub.f32 %v4351, %v4399
        %v4416 = vsub.f32 %v4352, %v4400
        %v4417 = vsub.f32 %v4353, %v4401
        %v4418 = vsub.f32 %v4354, %v4402
        %v4419 = vsub.f32 %v4355, %v4403
        %v4420 = vsub.f32 %v4356, %v4404
        %v4421 = vsub.f32 %v4357, %v4405
        %v4422 = vsub.f32 %v4358, %v4406
        %v4423 = vsub.f32 %v4359, %v4407
        %v4424 = vsub.f32 %v4360, %v4408
        %v4425 = vsub.f32 %v4361, %v4409
        %v4426 = vsub.f32 %v4362, %v4410
        %v4427 = vsub.f32 %v4363, %v4411
        %v4428 = vsub.f32 %v4364, %v4412
        %v4429 = vsub.f32 %v4365, %v4413
        %v4430 = vmul.f32 %v4414, %v4414
        %v4431 = vmul.f32 %v4415, %v4415
        %v4432 = vmul.f32 %v4416, %v4416
        %v4433 = vmul.f32 %v4417, %v4417
        %v4434 = vmul.f32 %v4418, %v4418
        %v4435 = vmul.f32 %v4419, %v4419
        %v4436 = vmul.f32 %v4420, %v4420
        %v4437 = vmul.f32 %v4421, %v4421
        %v4438 = vmul.f32 %v4422, %v4422
        %v4439 = vmul.f32 %v4423, %v4423
        %v4440 = vmul.f32 %v4424, %v4424
        %v4441 = vmul.f32 %v4425, %v4425
        %v4442 = vmul.f32 %v4426, %v4426
        %v4443 = vmul.f32 %v4427, %v4427
        %v4444 = vmul.f32 %v4428, %v4428
        %v4445 = vmul.f32 %v4429, %v4429
        %4446 = vadd.xlane.f32.xlu0 %v4430
        %v4447 = vpop.xlane.xlu0 %4446
        %4448 = vadd.xlane.f32.xlu0 %v4431
        %v4449 = vpop.xlane.xlu0 %4448
        %4450 = vadd.xlane.f32.xlu0 %v4432
        %v4451 = vpop.xlane.xlu0 %4450
        %4452 = vadd.xlane.f32.xlu0 %v4433
        %v4453 = vpop.xlane.xlu0 %4452
        %4454 = vadd.xlane.f32.xlu0 %v4434
        %v4455 = vpop.xlane.xlu0 %4454
        %4456 = vadd.xlane.f32.xlu0 %v4435
        %v4457 = vpop.xlane.xlu0 %4456
        %4458 = vadd.xlane.f32.xlu0 %v4436
        %v4459 = vpop.xlane.xlu0 %4458
        %4460 = vadd.xlane.f32.xlu0 %v4437
        %v4461 = vpop.xlane.xlu0 %4460
        %4462 = vadd.xlane.f32.xlu0 %v4438
        %v4463 = vpop.xlane.xlu0 %4462
        %4464 = vadd.xlane.f32.xlu0 %v4439
        %v4465 = vpop.xlane.xlu0 %4464
        %4466 = vadd.xlane.f32.xlu0 %v4440
        %v4467 = vpop.xlane.xlu0 %4466
        %4468 = vadd.xlane.f32.xlu0 %v4441
        %v4469 = vpop.xlane.xlu0 %4468
        %4470 = vadd.xlane.f32.xlu0 %v4442
        %v4471 = vpop.xlane.xlu0 %4470
        %4472 = vadd.xlane.f32.xlu0 %v4443
        %v4473 = vpop.xlane.xlu0 %4472
        %4474 = vadd.xlane.f32.xlu0 %v4444
        %v4475 = vpop.xlane.xlu0 %4474
        %4476 = vadd.xlane.f32.xlu0 %v4445
        %v4477 = vpop.xlane.xlu0 %4476
        %v4478 = vmul.f32 %v4447, %v3070
        %v4479 = vmul.f32 %v4449, %v3070
        %v4480 = vmul.f32 %v4451, %v3070
        %v4481 = vmul.f32 %v4453, %v3070
        %v4482 = vmul.f32 %v4455, %v3070
        %v4483 = vmul.f32 %v4457, %v3070
        %v4484 = vmul.f32 %v4459, %v3070
        %v4485 = vmul.f32 %v4461, %v3070
        %v4486 = vmul.f32 %v4463, %v3070
        %v4487 = vmul.f32 %v4465, %v3070
        %v4488 = vmul.f32 %v4467, %v3070
        %v4489 = vmul.f32 %v4469, %v3070
        %v4490 = vmul.f32 %v4471, %v3070
        %v4491 = vmul.f32 %v4473, %v3070
        %v4492 = vmul.f32 %v4475, %v3070
        %v4493 = vmul.f32 %v4477, %v3070
        %v4494 = vadd.f32 %v4478, 1e-12
        %v4495 = vadd.f32 %v4479, 1e-12
        %v4496 = vadd.f32 %v4480, 1e-12
        %v4497 = vadd.f32 %v4481, 1e-12
        %v4498 = vadd.f32 %v4482, 1e-12
        %v4499 = vadd.f32 %v4483, 1e-12
        %v4500 = vadd.f32 %v4484, 1e-12
        %v4501 = vadd.f32 %v4485, 1e-12
        %v4502 = vadd.f32 %v4486, 1e-12
        %v4503 = vadd.f32 %v4487, 1e-12
        %v4504 = vadd.f32 %v4488, 1e-12
        %v4505 = vadd.f32 %v4489, 1e-12
        %v4506 = vadd.f32 %v4490, 1e-12
        %v4507 = vadd.f32 %v4491, 1e-12
        %v4508 = vadd.f32 %v4492, 1e-12
        %v4509 = vadd.f32 %v4493, 1e-12
        %v4510 = vrsqrt.pop %v4494
        %v4511 = vrsqrt.pop %v4495
        %v4512 = vrsqrt.pop %v4496
        %v4513 = vrsqrt.pop %v4497
        %v4514 = vrsqrt.pop %v4498
        %v4515 = vrsqrt.pop %v4499
        %v4516 = vrsqrt.pop %v4500
        %v4517 = vrsqrt.pop %v4501
        %v4518 = vrsqrt.pop %v4502
        %v4519 = vrsqrt.pop %v4503
        %v4520 = vrsqrt.pop %v4504
        %v4521 = vrsqrt.pop %v4505
        %v4522 = vrsqrt.pop %v4506
        %v4523 = vrsqrt.pop %v4507
        %v4524 = vrsqrt.pop %v4508
        %v4525 = vrsqrt.pop %v4509
        %v4526 = vmul.f32 %v4414, %v4510
        %v4527 = vmul.f32 %v4415, %v4511
        %v4528 = vmul.f32 %v4416, %v4512
        %v4529 = vmul.f32 %v4417, %v4513
        %v4530 = vmul.f32 %v4418, %v4514
        %v4531 = vmul.f32 %v4419, %v4515
        %v4532 = vmul.f32 %v4420, %v4516
        %v4533 = vmul.f32 %v4421, %v4517
        %v4534 = vmul.f32 %v4422, %v4518
        %v4535 = vmul.f32 %v4423, %v4519
        %v4536 = vmul.f32 %v4424, %v4520
        %v4537 = vmul.f32 %v4425, %v4521
        %v4538 = vmul.f32 %v4426, %v4522
        %v4539 = vmul.f32 %v4427, %v4523
        %v4540 = vmul.f32 %v4428, %v4524
        %v4541 = vmul.f32 %v4429, %v4525
        %v4542 = vld [vmem:[%s14] sm:$0x1]
        %v4544 = vlaneseq
        %v4545 = vshrl.u32 %v4544, 7
        %v4546 = vsub.s32 0, %v4545
        %v4547 = vrot.slane %v4542, %v4546
        %v4549 = vmul.f32 %v4526, %v4547
        %v4550 = vmul.f32 %v4527, %v4547
        %v4551 = vmul.f32 %v4528, %v4547
        %v4552 = vmul.f32 %v4529, %v4547
        %v4553 = vmul.f32 %v4530, %v4547
        %v4554 = vmul.f32 %v4531, %v4547
        %v4555 = vmul.f32 %v4532, %v4547
        %v4556 = vmul.f32 %v4533, %v4547
        %v4557 = vmul.f32 %v4534, %v4547
        %v4558 = vmul.f32 %v4535, %v4547
        %v4559 = vmul.f32 %v4536, %v4547
        %v4560 = vmul.f32 %v4537, %v4547
        %v4561 = vmul.f32 %v4538, %v4547
        %v4562 = vmul.f32 %v4539, %v4547
        %v4563 = vmul.f32 %v4540, %v4547
        %v4564 = vmul.f32 %v4541, %v4547
        %v4565 = vld [vmem:[%s15] sm:$0x1]
        %v4567 = vlaneseq
        %v4568 = vshrl.u32 %v4567, 7
        %v4569 = vsub.s32 0, %v4568
        %v4570 = vrot.slane %v4565, %v4569
        %v4572 = vadd.f32 %v4549, %v4570
        %v4573 = vadd.f32 %v4550, %v4570
        %v4574 = vadd.f32 %v4551, %v4570
        %v4575 = vadd.f32 %v4552, %v4570
        %v4576 = vadd.f32 %v4553, %v4570
        %v4577 = vadd.f32 %v4554, %v4570
        %v4578 = vadd.f32 %v4555, %v4570
        %v4579 = vadd.f32 %v4556, %v4570
        %v4580 = vadd.f32 %v4557, %v4570
        %v4581 = vadd.f32 %v4558, %v4570
        %v4582 = vadd.f32 %v4559, %v4570
        %v4583 = vadd.f32 %v4560, %v4570
        %v4584 = vadd.f32 %v4561, %v4570
        %v4585 = vadd.f32 %v4562, %v4570
        %v4586 = vadd.f32 %v4563, %v4570
        %v4587 = vadd.f32 %v4564, %v4570
        %4588 = vst [vmem:[%s663] sm:$0xff] %v4572
        %4589 = vst [vmem:[%s663 + $0x8] sm:$0xff] %v4573
        %4590 = vst [vmem:[%s663 + $0x10] sm:$0xff] %v4574
        %4591 = vst [vmem:[%s663 + $0x18] sm:$0xff] %v4575
        %4592 = vst [vmem:[%s663 + $0x20] sm:$0xff] %v4576
        %4593 = vst [vmem:[%s663 + $0x28] sm:$0xff] %v4577
        %4594 = vst [vmem:[%s663 + $0x30] sm:$0xff] %v4578
        %4595 = vst [vmem:[%s663 + $0x38] sm:$0xff] %v4579
        %4596 = vst [vmem:[%s663 + $0x40] sm:$0xff] %v4580
        %4597 = vst [vmem:[%s663 + $0x48] sm:$0xff] %v4581
        %4598 = vst [vmem:[%s663 + $0x50] sm:$0xff] %v4582
        %4599 = vst [vmem:[%s663 + $0x58] sm:$0xff] %v4583
        %4600 = vst [vmem:[%s663 + $0x60] sm:$0xff] %v4584
        %4601 = vst [vmem:[%s663 + $0x68] sm:$0xff] %v4585
        %4602 = vst [vmem:[%s663 + $0x70] sm:$0xff] %v4586
        %4603 = vst [vmem:[%s663 + $0x78] sm:$0xff] %v4587
        %s4604 = sand.u32 %s406, 1
        %s4605 = scalar_lea.sflag [#allocation7], %s4604
        %s4606 = sand.u32 %s406, 1
        %s4607 = smul.addr %s4606, 128
        %s4608 = scalar_lea.vmem [#allocation17], %s4607
        // Predicated region
        $region117: #{tpu_custom_call.1} parent=83 // pred_check
          %p4609 = pneg %p416
        $region118: #{tpu_custom_call.1} parent=83 // pred_check_branch
          %4611 = sbr.rel (%p4609) target = $region120
        $region119: #{tpu_custom_call.1} parent=83 // pred_region
          %s4612 = smul.u32 16, %s43
          %s4614 = ssub.s32 2048, 2048
          %4615 = vsyncadd %s4605, %s4614
          %s4616 = smul.addr %s42, 32
          %s4617 = sadd.s32 %s4612, %s4616
          %s4618 = smul.addr %s4617, 128
          %s4619 = scalar_lea.hbm %s16, %s4618
          %s4620 = sshll.u32 %s4608, 4
          %s4621 = int_to_ptr.vmem [resolvable:$true] %s4620
          %4626 = dma.vmem_to_hbm [thread:$0]  %s4621, 2048, %s4619, %s4605, 128, 128, 8
        $region120: #{tpu_custom_call.1} parent=83 // pred_fallthru
          _
      $region84: #{tpu_custom_call.1} parent=5 // pred_fallthru
        _
      %p4627 = scmp.le.s32.totalorder 2, %s33
      // Predicated region
      $region121: #{tpu_custom_call.1} parent=5 // pred_check
        %p4628 = pneg %p4627
      $region122: #{tpu_custom_call.1} parent=5 // pred_check_branch
        %4630 = sbr.rel (%p4628) target = $region124
      $region123: #{tpu_custom_call.1} parent=5 // pred_region
        %s4631 = ssub.s32 %s33, 2
        // Predicated region
        $region125: #{tpu_custom_call.1} parent=123 // pred_check
          %p4632 = pneg %p422
        $region126: #{tpu_custom_call.1} parent=123 // pred_check_branch
          %4634 = sbr.rel (%p4632) target = $region128
        $region127: #{tpu_custom_call.1} parent=123 // pred_region
          %s4635 = sand.u32 %s407, 1
          %s4636 = scalar_lea.sflag [#allocation7], %s4635
          %s4637 = sand.u32 %s407, 1
          %s4638 = smul.addr %s4637, 128
          %s4639 = scalar_lea.vmem [#allocation17], %s4638
          %4640 = dma.done %s4636, 2048
        $region128: #{tpu_custom_call.1} parent=123 // pred_fallthru
          _
      $region124: #{tpu_custom_call.1} parent=5 // pred_fallthru
        _
    $region6: #{tpu_custom_call.1} parent=1 // loop_footer
      %s37 = sadd.s32 1, %s33
    $region7: #{tpu_custom_call.1} parent=1 // loop_footer_branch
      %32 = sbr.rel target = $region3
    $region8: #{tpu_custom_call.1} parent=1 // loop_exit
      _
    %4641 = vsyncpa [#allocation6], 1
    %s4642 = scalar_lea.sflag [#allocation6], 1
    %4643 = vsyncpa %s4642, 1
    %4644 = vsyncpa [#allocation9], 1
    %s4645 = scalar_lea.sflag [#allocation9], 1
    %4646 = vsyncpa %s4645, 1
    %4647 = vsyncpa [#allocation12], 1
    %4648 = vsyncpa [#allocation15], 1
    %4649 = vsyncpa [#allocation7], 1
    %s4650 = scalar_lea.sflag [#allocation7], 1
    %4651 = vsyncpa %s4650, 1

</llo_original>
